<compile_context>
chip_gen: v7x
topology: tpu7x:2x2x1
jax: 0.10.0
libtpu: 0.0.40
codegen_flags: <defaults>
</compile_context>

<pallas_src>
import functools

import jax
import jax.numpy as jnp
from jax.experimental import pallas as pl
from jax.experimental.pallas import tpu as pltpu

_EPS = 1e-5                 # nn.BatchNorm3d default eps
_SLOPE = 0.01               # nn.LeakyReLU default negative_slope
FACTOR = 8                  # SCN 'factor'

_TILE = 2048                # flat spatial tile (lane axis) for conv / BN kernels
_PALLAS_MIN_VOXELS = 2048   # levels smaller than this run through XLA (launch > math)
_VMEM_LIMIT = 32 * 1024 * 1024


def _cdiv(a, b):
    return -(-a // b)


def _rup(a, b):
    return _cdiv(a, b) * b


# ----------------------------------------------------------------------------- geometry
#  * output voxel (d,h,w) lives at flat index d*Hp*Wp + h*Wp + w ("corner" layout,
#    length Pout_p; h>=H / w>=W / round-up gaps are garbage and kept zeroed),
#  * conv-input voxel of the zero-padded volume lives at the same flat index, so tap
#    (a,b,c) is the constant lane offset a*Hp*Wp + b*Wp + c (<= halo = 2*s_in),
#  * the flat frame is chopped into tile-rows; output tile q needs tile-rows q and q+1.

def _geom(D, H, W, k, tile=_TILE):
    p = k // 2
    Hp, Wp = H + 2 * p, W + 2 * p
    row = Hp * Wp
    s_in = p * (row + Wp + 1)
    halo = 2 * s_in
    tile = max(tile, _rup(max(halo, 1), 128))      # one extra tile-row always suffices
    Pout = D * row
    nq = _cdiv(Pout, tile)
    Pout_p = nq * tile
    nw = nq + 1
    taps = tuple(a * row + b * Wp + c
                 for a in range(k) for b in range(k) for c in range(k))
    return dict(k=k, p=p, Hp=Hp, Wp=Wp, row=row, s_in=s_in, halo=halo, Pout=Pout,
                nq=nq, Pout_p=Pout_p, nw=nw, taps=taps, tile=tile)


def _valid_mask(g, D, H, W):
    idx = jnp.arange(g['Pout_p'], dtype=jnp.int32)
    w_ = idx % g['Wp']
    h_ = (idx // g['Wp']) % g['Hp']
    d_ = idx // g['row']
    m = (w_ < W) & (h_ < H) & (d_ < D)
    return m.astype(jnp.float32).reshape(1, g['Pout_p'])


def _frame3_from_flat(flat, g):
    """[N, Cp, L] -> bf16 tile-row frame [N, nw, Cp, tile] (zero padded to nw*tile)."""
    n, cp, L = flat.shape
    total = g['nw'] * g['tile']
    flat = jnp.pad(flat, ((0, 0), (0, 0), (0, total - L)))
    return (flat.reshape(n, cp, g['nw'], g['tile'])
                .transpose(0, 2, 1, 3).astype(jnp.bfloat16))


def _frame_from_dense(x, g, cp):
    """[N, C, D, H, W] -> tile-row frame (spatial zero padding + channel padding)."""
    n, c = x.shape[:2]
    p = g['p']
    xp = jnp.pad(x, ((0, 0), (0, cp - c), (p, p), (p, p), (p, p)))
    return _frame3_from_flat(xp.reshape(n, cp, -1), g)


def _frame_from_corner(y, g, cp):
    """Corner-layout activation [N, C, Pout_p] (garbage zeroed) -> next conv's frame."""
    n, c = y.shape[:2]
    yf = jnp.pad(y, ((0, 0), (0, cp - c), (g['s_in'], 0)))
    return _frame3_from_flat(yf, g)


def _dense_from_corner(y, g, D, H, W):
    n, c = y.shape[:2]
    return (y[:, :, :g['Pout']]
            .reshape(n, c, D, g['Hp'], g['Wp'])[:, :, :, :H, :W])


# ----------------------------------------------------------------------------- kernels

def _conv_kernel(xa_ref, xb_ref, w_ref, m_ref, y_ref, st_ref, win_ref, xs_ref,
                 *, taps, tile, halo, cp):
    """Fused Conv3d (tap-stacked single MXU dot) + masked BN-stat epilogue.

    xa_ref : [1, 1, Cp, tile]    bf16   tile-row q of the frame
    xb_ref : [1, 1, Cp, tile]    bf16   tile-row q+1 (halo source)
    w_ref  : [Coutp, k^3*Cp]     f32    tap-fused weight slab
    m_ref  : [1, tile]           f32    validity mask of this output tile
    y_ref  : [1, Coutp, tile]    bf16   conv output tile (corner layout)
    st_ref : [1, 1, Coutp, 128]  f32    lanes 0/1 = masked (sum, sumsq) per channel
    win_ref: [Cp, 2*tile]        bf16   scratch window (current row + halo)
    xs_ref : [k^3*Cp, tile]      f32    scratch: stacked conv operand
    """
    win_ref[:, :tile] = xa_ref[0, 0]
    if halo > 0:
        win_ref[:, tile:] = xb_ref[0, 0]

    for i, off in enumerate(taps):                       # static unrolled, aligned rows
        xs_ref[i * cp:(i + 1) * cp, :] = win_ref[:, off:off + tile].astype(jnp.float32)

    acc = jnp.dot(w_ref[...], xs_ref[...], preferred_element_type=jnp.float32)

    m = m_ref[...]                                       # (1, tile)
    am = acc * m
    s = jnp.sum(am, axis=1, keepdims=True)               # (Coutp, 1)
    q = jnp.sum(am * acc, axis=1, keepdims=True)         # (Coutp, 1)
    pad = jnp.zeros((acc.shape[0], 126), jnp.float32)
    st_ref[...] = jnp.concatenate([s, q, pad], axis=1)[None, None]
    y_ref[...] = acc.astype(y_ref.dtype)[None]


def _bn_lrelu_mask_kernel(y_ref, m_ref, sc_ref, sh_ref, o_ref):
    """y*scale + shift -> LeakyReLU -> *mask (re-zeroes the frame garbage), bf16 out."""
    v = y_ref[0].astype(jnp.float32) * sc_ref[...] + sh_ref[...]   # (C,tile)*(C,1)+(C,1)
    v = jnp.where(v >= 0.0, v, _SLOPE * v)
    o_ref[...] = (v * m_ref[...]).astype(o_ref.dtype)[None]


# ----------------------------------------------------------------------------- wrappers

def pallas_conv3d(frame3, w, g, mask, out_dtype=jnp.bfloat16):
    """frame3 [N, nw, Cp, tile] bf16; w torch-layout (Cout, Cin, k, k, k) f32.

    Returns corner-layout conv output [N, Cout, Pout_p] and masked per-tile BN
    statistics [N, nq, Cout, 128] f32 (lane 0 = sum, lane 1 = sum of squares).
    """
    n, nw, cp, tile = frame3.shape
    cout, cin, k = w.shape[0], w.shape[1], w.shape[2]
    k3 = k ** 3
    coutp = _rup(max(cout, 8), 8)

    wt = jnp.transpose(w, (0, 2, 3, 4, 1)).reshape(cout, k3, cin)
    wt = jnp.pad(wt, ((0, coutp - cout), (0, 0), (0, cp - cin)))
    wt = wt.reshape(coutp, k3 * cp).astype(jnp.float32)

    kernel = functools.partial(_conv_kernel, taps=g['taps'], tile=tile,
                               halo=g['halo'], cp=cp)

    y, stats = pl.pallas_call(
        kernel,
        grid=(n, g['nq']),
        in_specs=[
            pl.BlockSpec((1, 1, cp, tile), lambda b, q: (b, q, 0, 0)),
            pl.BlockSpec((1, 1, cp, tile), lambda b, q: (b, q + 1, 0, 0)),
            pl.BlockSpec((coutp, k3 * cp), lambda b, q: (0, 0)),
            pl.BlockSpec((1, tile), lambda b, q: (0, q)),
        ],
        out_specs=[
            pl.BlockSpec((1, coutp, tile), lambda b, q: (b, 0, q)),
            pl.BlockSpec((1, 1, coutp, 128), lambda b, q: (b, q, 0, 0)),
        ],
        out_shape=[
            jax.ShapeDtypeStruct((n, coutp, g['Pout_p']), out_dtype),
            jax.ShapeDtypeStruct((n, g['nq'], coutp, 128), jnp.float32),
        ],
        scratch_shapes=[pltpu.VMEM((cp, 2 * tile), jnp.bfloat16),
                        pltpu.VMEM((k3 * cp, tile), jnp.float32)],
        compiler_params=pltpu.CompilerParams(
            dimension_semantics=("parallel", "parallel"),
            vmem_limit_bytes=_VMEM_LIMIT),
    )(frame3, frame3, wt, mask)

    if coutp != cout:
        y = y[:, :cout]
        stats = stats[:, :, :cout]
    return y, stats


def _bn_scale_shift(stats, count, gamma, beta):
    """Training-mode BatchNorm (batch stats, biased var) folded to scale/shift."""
    s = stats.sum(axis=(0, 1))                               # (C, 128)
    mean = s[:, 0] / count
    var = jnp.maximum(s[:, 1] / count - mean * mean, 0.0)    # guard cancellation
    scale = gamma * jax.lax.rsqrt(var + _EPS)
    shift = beta - mean * scale
    return scale.reshape(-1, 1), shift.reshape(-1, 1)


def pallas_bn_lrelu(y, mask, scale, shift, g):
    n, c, pp = y.shape
    tile = g['tile']
    return pl.pallas_call(
        _bn_lrelu_mask_kernel,
        grid=(n, g['nq']),
        in_specs=[
            pl.BlockSpec((1, c, tile), lambda b, q: (b, 0, q)),
            pl.BlockSpec((1, tile), lambda b, q: (0, q)),
            pl.BlockSpec((c, 1), lambda b, q: (0, 0)),
            pl.BlockSpec((c, 1), lambda b, q: (0, 0)),
        ],
        out_specs=pl.BlockSpec((1, c, tile), lambda b, q: (b, 0, q)),
        out_shape=jax.ShapeDtypeStruct((n, c, pp), jnp.bfloat16),
        compiler_params=pltpu.CompilerParams(
            dimension_semantics=("parallel", "parallel"),
            vmem_limit_bytes=_VMEM_LIMIT),
    )(y, mask, scale, shift)


def conv_bn_lrelu(frame3, w, gamma, beta, g, mask, count):
    y, st = pallas_conv3d(frame3, w, g, mask, out_dtype=jnp.bfloat16)
    scale, shift = _bn_scale_shift(st, count, gamma, beta)
    return pallas_bn_lrelu(y, mask, scale, shift, g)


# ----------------------------------------------------------------------------- blocks

def _block_pallas(x, p):
    """Conv3d(3)->Dropout(0)->BN->LeakyReLU twice, fused Pallas path (corner layout)."""
    n, c, d, h, w = x.shape
    cout = p['w1'].shape[0]
    g = _geom(d, h, w, 3)
    mask = _valid_mask(g, d, h, w)
    count = n * d * h * w
    a1 = conv_bn_lrelu(_frame_from_dense(x, g, _rup(max(c, 8), 8)),
                       p['w1'], p['g1'], p['b1'], g, mask, count)
    # a1 is already a zeroed bf16 corner activation -> feeds conv2 with one flat pad.
    a2 = conv_bn_lrelu(_frame_from_corner(a1, g, _rup(max(cout, 8), 8)),
                       p['w2'], p['g2'], p['b2'], g, mask, count)
    # TODO(synk): keep corner layout across consecutive same-resolution blocks
    #             (in_conv -> enc1) instead of corner -> dense -> frame round trips.
    return _dense_from_corner(a2, g, d, h, w)


def _bn_lrelu_xla(y, gamma, beta):
    mean = jnp.mean(y, axis=(0, 2, 3, 4), keepdims=True)
    var = jnp.maximum(jnp.mean(y * y, axis=(0, 2, 3, 4), keepdims=True)
                      - mean * mean, 0.0)
    v = ((y - mean) * jax.lax.rsqrt(var + _EPS)
         * gamma.reshape(1, -1, 1, 1, 1) + beta.reshape(1, -1, 1, 1, 1))
    return jnp.where(v >= 0.0, v, _SLOPE * v)


def _block_xla(x, p):
    """Same block on tiny volumes: plain XLA (a Pallas launch costs more than the math)."""
    y = _bn_lrelu_xla(conv3d_xla(x, p['w1'], 1), p['g1'], p['b1'])
    return _bn_lrelu_xla(conv3d_xla(y, p['w2'], 1), p['g2'], p['b2'])


def block_apply(x, p):
    d, h, w = x.shape[2], x.shape[3], x.shape[4]
    if d * h * w >= _PALLAS_MIN_VOXELS:
        return _block_pallas(x, p)
    return _block_xla(x, p)


def conv1x1(x, w):
    """1x1x1 Conv3d (no bias, no BN) through the same fused conv kernel (single tap)."""
    n, c, d, h, wd = x.shape
    if d * h * wd >= _PALLAS_MIN_VOXELS:
        g = _geom(d, h, wd, 1)
        mask = _valid_mask(g, d, h, wd)
        y, _ = pallas_conv3d(_frame_from_dense(x, g, _rup(max(c, 8), 8)), w, g, mask,
                             out_dtype=jnp.float32)
        return _dense_from_corner(y, g, d, h, wd).astype(jnp.float32)
    return conv3d_xla(x, w, 0)


# ----------------------------------------------------------------------------- JAX glue

def avg_pool(x, k):
    # AvgPool3d(k, k, ceil_mode=True); test shapes divide exactly.
    # TODO(synk): handle ceil_mode padding for non-divisible spatial sizes.
    x = x.astype(jnp.float32)
    n, c, d, h, w = x.shape
    return x.reshape(n, c, d // k, k, h // k, k, w // k, k).mean(axis=(3, 5, 7))


def upsample_trilinear(x, s):
    """nn.Upsample(scale_factor=s, mode='trilinear', align_corners=True), NCDHW."""
    x = x.astype(jnp.float32)

    def interp(arr, axis, n_in):
        n_out = n_in * s
        if n_in == 1:
            return jnp.repeat(arr, n_out, axis=axis)
        pos = jnp.arange(n_out, dtype=jnp.float32) * (n_in - 1) / (n_out - 1)
        lo = jnp.clip(jnp.floor(pos).astype(jnp.int32), 0, n_in - 2)
        frac = pos - lo.astype(jnp.float32)
        a0 = jnp.take(arr, lo, axis=axis)
        a1 = jnp.take(arr, lo + 1, axis=axis)
        shp = [1] * arr.ndim
        shp[axis] = n_out
        return a0 * (1.0 - frac.reshape(shp)) + a1 * frac.reshape(shp)

    _, _, d, h, w = x.shape
    x = interp(x, 2, d)
    x = interp(x, 3, h)
    x = interp(x, 4, w)
    return x


def conv3d_xla(x, w, pad):
    return jax.lax.conv_general_dilated(
        x.astype(jnp.float32), w, window_strides=(1, 1, 1),
        padding=[(pad, pad)] * 3,
        dimension_numbers=('NCDHW', 'OIDHW', 'NCDHW'),
        preferred_element_type=jnp.float32)


# ----------------------------------------------------------------------------- model

def scn_forward(params, x):
    # --- LocalAppearance (mode='add', dropout=0.0) ---
    x0 = block_apply(x, params['in_conv'])
    e1 = block_apply(x0, params['enc1'])
    e2 = block_apply(avg_pool(e1, 2), params['enc2'])
    e3 = block_apply(avg_pool(e2, 2), params['enc3'])
    e4 = block_apply(avg_pool(e3, 2), params['enc4'])
    # Skip-adds stay in XLA so they fuse into the upsample producers.
    d3 = block_apply(upsample_trilinear(e4, 2) + e3, params['dec3'])
    d2 = block_apply(upsample_trilinear(d3, 2) + e2, params['dec2'])
    d1 = block_apply(upsample_trilinear(d2, 2) + e1, params['dec1'])
    HLA = conv1x1(d1, params['out_conv'])          # local_act is None -> identity

    # --- Spatial configuration branch (tiny 2^3 volume: plain XLA) ---
    t = avg_pool(d1, FACTOR)
    t = conv3d_xla(t, params['hsc1'], 3)
    t = conv3d_xla(t, params['hsc2'], 3)
    t = conv3d_xla(t, params['hsc3'], 3)
    t = conv3d_xla(t, params['hsc4'], 3)
    t = jnp.tanh(t)                                # spatial_act='tanh'
    HSC = upsample_trilinear(t, FACTOR)

    heatmap = HLA * HSC
    return heatmap, HLA, HSC


def init_params(key, cin, num_classes, filters):
    keys = iter(jax.random.split(key, 64))

    def conv_w(co, ci, k, std):
        # PyTorch Conv3d weight layout: (Cout, Cin, kd, kh, kw); bias=False everywhere.
        return jax.random.normal(next(keys), (co, ci, k, k, k), jnp.float32) * std

    def block_p(ci, co):
        return dict(
            w1=conv_w(co, ci, 3, 0.1),
            g1=jnp.ones((co,), jnp.float32), b1=jnp.zeros((co,), jnp.float32),
            w2=conv_w(co, co, 3, 0.1),
            g2=jnp.ones((co,), jnp.float32), b2=jnp.zeros((co,), jnp.float32),
        )

    F = filters
    return dict(
        in_conv=block_p(cin, F),
        enc1=block_p(F, F), enc2=block_p(F, F), enc3=block_p(F, F), enc4=block_p(F, F),
        dec3=block_p(F, F), dec2=block_p(F, F), dec1=block_p(F, F),
        out_conv=conv_w(num_classes, F, 1, 1e-4),            # trunc_normal_(0, 1e-4)
        hsc1=conv_w(F, F, 7, 0.02), hsc2=conv_w(F, F, 7, 0.02), hsc3=conv_w(F, F, 7, 0.02),
        hsc4=conv_w(num_classes, F, 7, 1e-4),                # trunc_normal_(0, 1e-4)
    )


if __name__ == "__main__":
    key = jax.random.PRNGKey(0)
    kx, kp = jax.random.split(key)

    N, CIN, S = 2, 1, 16            # batch, in_channels, cubic spatial size
    NUM_CLASSES, FILTERS = 4, 8

    x = jax.random.normal(kx, (N, CIN, S, S, S), jnp.float32)   # NCDHW, like PyTorch
    params = init_params(kp, CIN, NUM_CLASSES, FILTERS)

    fwd = jax.jit(scn_forward)
    heatmap, hla, hsc = fwd(params, x)
    jax.block_until_ready((heatmap, hla, hsc))

    assert heatmap.shape == (N, NUM_CLASSES, S, S, S)
    assert hla.shape == (N, NUM_CLASSES, S, S, S)
    assert hsc.shape == (N, NUM_CLASSES, S, S, S)
    assert bool(jnp.all(jnp.isfinite(heatmap)))
    print("KERNEL_OK")
</pallas_src>

<mosaic_0001>
module attributes {stable_mosaic.version = 11 : i64} {
  func.func @_bn_lrelu_mask_kernel(%arg0: i32, %arg1: i32, %arg2: memref<1x8x2048xbf16, #tpu.memory_space<vmem>>, %arg3: memref<1x2048xf32, #tpu.memory_space<vmem>>, %arg4: memref<8x1xf32, #tpu.memory_space<vmem>>, %arg5: memref<8x1xf32, #tpu.memory_space<vmem>>, %arg6: memref<1x8x2048xbf16, #tpu.memory_space<vmem>>) attributes {dimension_semantics = [#tpu.dimension_semantics<parallel>, #tpu.dimension_semantics<parallel>], iteration_bounds = array<i64: 2, 3>, scalar_prefetch = 0 : i64, scratch_operands = 0 : i64, tpu.core_type = #tpu.core_type<tc>, window_params = [{transform_indices = @transform_0, window_bounds = array<i64: 1, 8, 2048>}, {transform_indices = @transform_1, window_bounds = array<i64: 1, 2048>}, {pipeline_mode = #tpu.pipeline_mode<synchronous>, transform_indices = @transform_2, window_bounds = array<i64: 8, 1>}, {pipeline_mode = #tpu.pipeline_mode<synchronous>, transform_indices = @transform_3, window_bounds = array<i64: 8, 1>}, {transform_indices = @transform_4, window_bounds = array<i64: 1, 8, 2048>}]} {
    %c0 = arith.constant 0 : index
    %c0_0 = arith.constant 0 : index
    %c0_1 = arith.constant 0 : index
    %0 = vector.load %arg2[%c0, %c0_0, %c0_1] : memref<1x8x2048xbf16, #tpu.memory_space<vmem>>, vector<1x8x2048xbf16>
    %1 = vector.shape_cast %0 : vector<1x8x2048xbf16> to vector<8x2048xbf16>
    %2 = arith.extf %1 : vector<8x2048xbf16> to vector<8x2048xf32>
    %c0_2 = arith.constant 0 : index
    %c0_3 = arith.constant 0 : index
    %3 = vector.load %arg4[%c0_2, %c0_3] : memref<8x1xf32, #tpu.memory_space<vmem>>, vector<8x1xf32>
    %4 = vector.broadcast %3 : vector<8x1xf32> to vector<8x2048xf32>
    %5 = arith.mulf %2, %4 : vector<8x2048xf32>
    %c0_4 = arith.constant 0 : index
    %c0_5 = arith.constant 0 : index
    %6 = vector.load %arg5[%c0_4, %c0_5] : memref<8x1xf32, #tpu.memory_space<vmem>>, vector<8x1xf32>
    %7 = vector.broadcast %6 : vector<8x1xf32> to vector<8x2048xf32>
    %8 = arith.addf %5, %7 : vector<8x2048xf32>
    %cst = arith.constant 0.000000e+00 : f32
    %9 = vector.broadcast %cst : f32 to vector<8x2048xf32>
    %10 = arith.cmpf oge, %8, %9 : vector<8x2048xf32>
    %cst_6 = arith.constant 0.00999999977 : f32
    %11 = vector.broadcast %cst_6 : f32 to vector<8x2048xf32>
    %12 = arith.mulf %11, %8 : vector<8x2048xf32>
    %13 = arith.select %10, %8, %12 : vector<8x2048xi1>, vector<8x2048xf32>
    %c0_7 = arith.constant 0 : index
    %c0_8 = arith.constant 0 : index
    %14 = vector.load %arg3[%c0_7, %c0_8] : memref<1x2048xf32, #tpu.memory_space<vmem>>, vector<1x2048xf32>
    %15 = vector.broadcast %14 : vector<1x2048xf32> to vector<8x2048xf32>
    %16 = arith.mulf %13, %15 : vector<8x2048xf32>
    %17 = arith.truncf %16 : vector<8x2048xf32> to vector<8x2048xbf16>
    %18 = vector.shape_cast %17 : vector<8x2048xbf16> to vector<1x8x2048xbf16>
    %c0_9 = arith.constant 0 : index
    %c0_10 = arith.constant 0 : index
    %c0_11 = arith.constant 0 : index
    %19 = vector.load %arg6[%c0_9, %c0_10, %c0_11] : memref<1x8x2048xbf16, #tpu.memory_space<vmem>>, vector<1x8x2048xbf16>
    tpu.vector_store %arg6[%c0_9, %c0_10, %c0_11], %18 {strides = array<i32>} : memref<1x8x2048xbf16, #tpu.memory_space<vmem>>, vector<1x8x2048xbf16>,
    return
  }
  func.func @transform_0(%arg0: i32, %arg1: i32) -> (i32, i32, i32) {
    %c0_i32 = arith.constant 0 : i32
    %c0_i32_0 = arith.constant 0 : i32
    return %arg0, %c0_i32, %arg1 : i32, i32, i32
  }
  func.func @transform_1(%arg0: i32, %arg1: i32) -> (i32, i32) {
    %c0_i32 = arith.constant 0 : i32
    %c0_i32_0 = arith.constant 0 : i32
    return %c0_i32, %arg1 : i32, i32
  }
  func.func @transform_2(%arg0: i32, %arg1: i32) -> (i32, i32) {
    %c0_i32 = arith.constant 0 : i32
    %c0_i32_0 = arith.constant 0 : i32
    %c0_i32_1 = arith.constant 0 : i32
    return %c0_i32, %c0_i32_0 : i32, i32
  }
  func.func @transform_3(%arg0: i32, %arg1: i32) -> (i32, i32) {
    %c0_i32 = arith.constant 0 : i32
    %c0_i32_0 = arith.constant 0 : i32
    %c0_i32_1 = arith.constant 0 : i32
    return %c0_i32, %c0_i32_0 : i32, i32
  }
  func.func @transform_4(%arg0: i32, %arg1: i32) -> (i32, i32, i32) {
    %c0_i32 = arith.constant 0 : i32
    %c0_i32_0 = arith.constant 0 : i32
    return %arg0, %c0_i32, %arg1 : i32, i32, i32
  }
}

module attributes {stable_mosaic.version = 11 : i64} {
  func.func @_conv_kernel(%arg0: i32, %arg1: i32, %arg2: memref<1x1x8x2048xbf16, #tpu.memory_space<vmem>>, %arg3: memref<1x1x8x2048xbf16, #tpu.memory_space<vmem>>, %arg4: memref<8x216xf32, #tpu.memory_space<vmem>>, %arg5: memref<1x2048xf32, #tpu.memory_space<vmem>>, %arg6: memref<1x8x2048xbf16, #tpu.memory_space<vmem>>, %arg7: memref<1x1x8x128xf32, #tpu.memory_space<vmem>>, %arg8: memref<8x4096xbf16, #tpu.memory_space<vmem>>, %arg9: memref<216x2048xf32, #tpu.memory_space<vmem>>) attributes {dimension_semantics = [#tpu.dimension_semantics<parallel>, #tpu.dimension_semantics<parallel>], iteration_bounds = array<i64: 2, 3>, scalar_prefetch = 0 : i64, scratch_operands = 2 : i64, tpu.core_type = #tpu.core_type<tc>, window_params = [{transform_indices = @transform_0, window_bounds = array<i64: 1, 1, 8, 2048>}, {transform_indices = @transform_1, window_bounds = array<i64: 1, 1, 8, 2048>}, {pipeline_mode = #tpu.pipeline_mode<synchronous>, transform_indices = @transform_2, window_bounds = array<i64: 8, 216>}, {transform_indices = @transform_3, window_bounds = array<i64: 1, 2048>}, {transform_indices = @transform_4, window_bounds = array<i64: 1, 8, 2048>}, {transform_indices = @transform_5, window_bounds = array<i64: 1, 1, 8, 128>}]} {
    %c0 = arith.constant 0 : index
    %c0_0 = arith.constant 0 : index
    %c0_1 = arith.constant 0 : index
    %c0_2 = arith.constant 0 : index
    %0 = vector.load %arg2[%c0, %c0_0, %c0_1, %c0_2] : memref<1x1x8x2048xbf16, #tpu.memory_space<vmem>>, vector<1x1x8x2048xbf16>
    %1 = vector.shape_cast %0 : vector<1x1x8x2048xbf16> to vector<8x2048xbf16>
    %c0_3 = arith.constant 0 : index
    %c0_4 = arith.constant 0 : index
    %2 = vector.load %arg8[%c0_3, %c0_4] : memref<8x4096xbf16, #tpu.memory_space<vmem>>, vector<8x2048xbf16>
    tpu.vector_store %arg8[%c0_3, %c0_4], %1 {strides = array<i32>} : memref<8x4096xbf16, #tpu.memory_space<vmem>>, vector<8x2048xbf16>,
    %c0_5 = arith.constant 0 : index
    %c0_6 = arith.constant 0 : index
    %c0_7 = arith.constant 0 : index
    %c0_8 = arith.constant 0 : index
    %3 = vector.load %arg3[%c0_5, %c0_6, %c0_7, %c0_8] : memref<1x1x8x2048xbf16, #tpu.memory_space<vmem>>, vector<1x1x8x2048xbf16>
    %4 = vector.shape_cast %3 : vector<1x1x8x2048xbf16> to vector<8x2048xbf16>
    %c0_9 = arith.constant 0 : index
    %c2048 = arith.constant 2048 : index
    %5 = vector.load %arg8[%c0_9, %c2048] : memref<8x4096xbf16, #tpu.memory_space<vmem>>, vector<8x2048xbf16>
    tpu.vector_store %arg8[%c0_9, %c2048], %4 {strides = array<i32>} : memref<8x4096xbf16, #tpu.memory_space<vmem>>, vector<8x2048xbf16>,
    %c0_10 = arith.constant 0 : index
    %c0_11 = arith.constant 0 : index
    %6 = vector.load %arg8[%c0_10, %c0_11] : memref<8x4096xbf16, #tpu.memory_space<vmem>>, vector<8x2048xbf16>
    %7 = arith.extf %6 : vector<8x2048xbf16> to vector<8x2048xf32>
    %c0_12 = arith.constant 0 : index
    %c0_13 = arith.constant 0 : index
    %8 = vector.load %arg9[%c0_12, %c0_13] : memref<216x2048xf32, #tpu.memory_space<vmem>>, vector<8x2048xf32>
    tpu.vector_store %arg9[%c0_12, %c0_13], %7 {strides = array<i32>} : memref<216x2048xf32, #tpu.memory_space<vmem>>, vector<8x2048xf32>,
    %c0_14 = arith.constant 0 : index
    %c1 = arith.constant 1 : index
    %9 = vector.load %arg8[%c0_14, %c1] : memref<8x4096xbf16, #tpu.memory_space<vmem>>, vector<8x2048xbf16>
    %10 = arith.extf %9 : vector<8x2048xbf16> to vector<8x2048xf32>
    %c8 = arith.constant 8 : index
    %c0_15 = arith.constant 0 : index
    %11 = vector.load %arg9[%c8, %c0_15] : memref<216x2048xf32, #tpu.memory_space<vmem>>, vector<8x2048xf32>
    tpu.vector_store %arg9[%c8, %c0_15], %10 {strides = array<i32>} : memref<216x2048xf32, #tpu.memory_space<vmem>>, vector<8x2048xf32>,
    %c0_16 = arith.constant 0 : index
    %c2 = arith.constant 2 : index
    %12 = vector.load %arg8[%c0_16, %c2] : memref<8x4096xbf16, #tpu.memory_space<vmem>>, vector<8x2048xbf16>
    %13 = arith.extf %12 : vector<8x2048xbf16> to vector<8x2048xf32>
    %c16 = arith.constant 16 : index
    %c0_17 = arith.constant 0 : index
    %14 = vector.load %arg9[%c16, %c0_17] : memref<216x2048xf32, #tpu.memory_space<vmem>>, vector<8x2048xf32>
    tpu.vector_store %arg9[%c16, %c0_17], %13 {strides = array<i32>} : memref<216x2048xf32, #tpu.memory_space<vmem>>, vector<8x2048xf32>,
    %c0_18 = arith.constant 0 : index
    %c18 = arith.constant 18 : index
    %15 = vector.load %arg8[%c0_18, %c18] : memref<8x4096xbf16, #tpu.memory_space<vmem>>, vector<8x2048xbf16>
    %16 = arith.extf %15 : vector<8x2048xbf16> to vector<8x2048xf32>
    %c24 = arith.constant 24 : index
    %c0_19 = arith.constant 0 : index
    %17 = vector.load %arg9[%c24, %c0_19] : memref<216x2048xf32, #tpu.memory_space<vmem>>, vector<8x2048xf32>
    tpu.vector_store %arg9[%c24, %c0_19], %16 {strides = array<i32>} : memref<216x2048xf32, #tpu.memory_space<vmem>>, vector<8x2048xf32>,
    %c0_20 = arith.constant 0 : index
    %c19 = arith.constant 19 : index
    %18 = vector.load %arg8[%c0_20, %c19] : memref<8x4096xbf16, #tpu.memory_space<vmem>>, vector<8x2048xbf16>
    %19 = arith.extf %18 : vector<8x2048xbf16> to vector<8x2048xf32>
    %c32 = arith.constant 32 : index
    %c0_21 = arith.constant 0 : index
    %20 = vector.load %arg9[%c32, %c0_21] : memref<216x2048xf32, #tpu.memory_space<vmem>>, vector<8x2048xf32>
    tpu.vector_store %arg9[%c32, %c0_21], %19 {strides = array<i32>} : memref<216x2048xf32, #tpu.memory_space<vmem>>, vector<8x2048xf32>,
    %c0_22 = arith.constant 0 : index
    %c20 = arith.constant 20 : index
    %21 = vector.load %arg8[%c0_22, %c20] : memref<8x4096xbf16, #tpu.memory_space<vmem>>, vector<8x2048xbf16>
    %22 = arith.extf %21 : vector<8x2048xbf16> to vector<8x2048xf32>
    %c40 = arith.constant 40 : index
    %c0_23 = arith.constant 0 : index
    %23 = vector.load %arg9[%c40, %c0_23] : memref<216x2048xf32, #tpu.memory_space<vmem>>, vector<8x2048xf32>
    tpu.vector_store %arg9[%c40, %c0_23], %22 {strides = array<i32>} : memref<216x2048xf32, #tpu.memory_space<vmem>>, vector<8x2048xf32>,
    %c0_24 = arith.constant 0 : index
    %c36 = arith.constant 36 : index
    %24 = vector.load %arg8[%c0_24, %c36] : memref<8x4096xbf16, #tpu.memory_space<vmem>>, vector<8x2048xbf16>
    %25 = arith.extf %24 : vector<8x2048xbf16> to vector<8x2048xf32>
    %c48 = arith.constant 48 : index
    %c0_25 = arith.constant 0 : index
    %26 = vector.load %arg9[%c48, %c0_25] : memref<216x2048xf32, #tpu.memory_space<vmem>>, vector<8x2048xf32>
    tpu.vector_store %arg9[%c48, %c0_25], %25 {strides = array<i32>} : memref<216x2048xf32, #tpu.memory_space<vmem>>, vector<8x2048xf32>,
    %c0_26 = arith.constant 0 : index
    %c37 = arith.constant 37 : index
    %27 = vector.load %arg8[%c0_26, %c37] : memref<8x4096xbf16, #tpu.memory_space<vmem>>, vector<8x2048xbf16>
    %28 = arith.extf %27 : vector<8x2048xbf16> to vector<8x2048xf32>
    %c56 = arith.constant 56 : index
    %c0_27 = arith.constant 0 : index
    %29 = vector.load %arg9[%c56, %c0_27] : memref<216x2048xf32, #tpu.memory_space<vmem>>, vector<8x2048xf32>
    tpu.vector_store %arg9[%c56, %c0_27], %28 {strides = array<i32>} : memref<216x2048xf32, #tpu.memory_space<vmem>>, vector<8x2048xf32>,
    %c0_28 = arith.constant 0 : index
    %c38 = arith.constant 38 : index
    %30 = vector.load %arg8[%c0_28, %c38] : memref<8x4096xbf16, #tpu.memory_space<vmem>>, vector<8x2048xbf16>
    %31 = arith.extf %30 : vector<8x2048xbf16> to vector<8x2048xf32>
    %c64 = arith.constant 64 : index
    %c0_29 = arith.constant 0 : index
    %32 = vector.load %arg9[%c64, %c0_29] : memref<216x2048xf32, #tpu.memory_space<vmem>>, vector<8x2048xf32>
    tpu.vector_store %arg9[%c64, %c0_29], %31 {strides = array<i32>} : memref<216x2048xf32, #tpu.memory_space<vmem>>, vector<8x2048xf32>,
    %c0_30 = arith.constant 0 : index
    %c324 = arith.constant 324 : index
    %33 = vector.load %arg8[%c0_30, %c324] : memref<8x4096xbf16, #tpu.memory_space<vmem>>, vector<8x2048xbf16>
    %34 = arith.extf %33 : vector<8x2048xbf16> to vector<8x2048xf32>
    %c72 = arith.constant 72 : index
    %c0_31 = arith.constant 0 : index
    %35 = vector.load %arg9[%c72, %c0_31] : memref<216x2048xf32, #tpu.memory_space<vmem>>, vector<8x2048xf32>
    tpu.vector_store %arg9[%c72, %c0_31], %34 {strides = array<i32>} : memref<216x2048xf32, #tpu.memory_space<vmem>>, vector<8x2048xf32>,
    %c0_32 = arith.constant 0 : index
    %c325 = arith.constant 325 : index
    %36 = vector.load %arg8[%c0_32, %c325] : memref<8x4096xbf16, #tpu.memory_space<vmem>>, vector<8x2048xbf16>
    %37 = arith.extf %36 : vector<8x2048xbf16> to vector<8x2048xf32>
    %c80 = arith.constant 80 : index
    %c0_33 = arith.constant 0 : index
    %38 = vector.load %arg9[%c80, %c0_33] : memref<216x2048xf32, #tpu.memory_space<vmem>>, vector<8x2048xf32>
    tpu.vector_store %arg9[%c80, %c0_33], %37 {strides = array<i32>} : memref<216x2048xf32, #tpu.memory_space<vmem>>, vector<8x2048xf32>,
    %c0_34 = arith.constant 0 : index
    %c326 = arith.constant 326 : index
    %39 = vector.load %arg8[%c0_34, %c326] : memref<8x4096xbf16, #tpu.memory_space<vmem>>, vector<8x2048xbf16>
    %40 = arith.extf %39 : vector<8x2048xbf16> to vector<8x2048xf32>
    %c88 = arith.constant 88 : index
    %c0_35 = arith.constant 0 : index
    %41 = vector.load %arg9[%c88, %c0_35] : memref<216x2048xf32, #tpu.memory_space<vmem>>, vector<8x2048xf32>
    tpu.vector_store %arg9[%c88, %c0_35], %40 {strides = array<i32>} : memref<216x2048xf32, #tpu.memory_space<vmem>>, vector<8x2048xf32>,
    %c0_36 = arith.constant 0 : index
    %c342 = arith.constant 342 : index
    %42 = vector.load %arg8[%c0_36, %c342] : memref<8x4096xbf16, #tpu.memory_space<vmem>>, vector<8x2048xbf16>
    %43 = arith.extf %42 : vector<8x2048xbf16> to vector<8x2048xf32>
    %c96 = arith.constant 96 : index
    %c0_37 = arith.constant 0 : index
    %44 = vector.load %arg9[%c96, %c0_37] : memref<216x2048xf32, #tpu.memory_space<vmem>>, vector<8x2048xf32>
    tpu.vector_store %arg9[%c96, %c0_37], %43 {strides = array<i32>} : memref<216x2048xf32, #tpu.memory_space<vmem>>, vector<8x2048xf32>,
    %c0_38 = arith.constant 0 : index
    %c343 = arith.constant 343 : index
    %45 = vector.load %arg8[%c0_38, %c343] : memref<8x4096xbf16, #tpu.memory_space<vmem>>, vector<8x2048xbf16>
    %46 = arith.extf %45 : vector<8x2048xbf16> to vector<8x2048xf32>
    %c104 = arith.constant 104 : index
    %c0_39 = arith.constant 0 : index
    %47 = vector.load %arg9[%c104, %c0_39] : memref<216x2048xf32, #tpu.memory_space<vmem>>, vector<8x2048xf32>
    tpu.vector_store %arg9[%c104, %c0_39], %46 {strides = array<i32>} : memref<216x2048xf32, #tpu.memory_space<vmem>>, vector<8x2048xf32>,
    %c0_40 = arith.constant 0 : index
    %c344 = arith.constant 344 : index
    %48 = vector.load %arg8[%c0_40, %c344] : memref<8x4096xbf16, #tpu.memory_space<vmem>>, vector<8x2048xbf16>
    %49 = arith.extf %48 : vector<8x2048xbf16> to vector<8x2048xf32>
    %c112 = arith.constant 112 : index
    %c0_41 = arith.constant 0 : index
    %50 = vector.load %arg9[%c112, %c0_41] : memref<216x2048xf32, #tpu.memory_space<vmem>>, vector<8x2048xf32>
    tpu.vector_store %arg9[%c112, %c0_41], %49 {strides = array<i32>} : memref<216x2048xf32, #tpu.memory_space<vmem>>, vector<8x2048xf32>,
    %c0_42 = arith.constant 0 : index
    %c360 = arith.constant 360 : index
    %51 = vector.load %arg8[%c0_42, %c360] : memref<8x4096xbf16, #tpu.memory_space<vmem>>, vector<8x2048xbf16>
    %52 = arith.extf %51 : vector<8x2048xbf16> to vector<8x2048xf32>
    %c120 = arith.constant 120 : index
    %c0_43 = arith.constant 0 : index
    %53 = vector.load %arg9[%c120, %c0_43] : memref<216x2048xf32, #tpu.memory_space<vmem>>, vector<8x2048xf32>
    tpu.vector_store %arg9[%c120, %c0_43], %52 {strides = array<i32>} : memref<216x2048xf32, #tpu.memory_space<vmem>>, vector<8x2048xf32>,
    %c0_44 = arith.constant 0 : index
    %c361 = arith.constant 361 : index
    %54 = vector.load %arg8[%c0_44, %c361] : memref<8x4096xbf16, #tpu.memory_space<vmem>>, vector<8x2048xbf16>
    %55 = arith.extf %54 : vector<8x2048xbf16> to vector<8x2048xf32>
    %c128 = arith.constant 128 : index
    %c0_45 = arith.constant 0 : index
    %56 = vector.load %arg9[%c128, %c0_45] : memref<216x2048xf32, #tpu.memory_space<vmem>>, vector<8x2048xf32>
    tpu.vector_store %arg9[%c128, %c0_45], %55 {strides = array<i32>} : memref<216x2048xf32, #tpu.memory_space<vmem>>, vector<8x2048xf32>,
    %c0_46 = arith.constant 0 : index
    %c362 = arith.constant 362 : index
    %57 = vector.load %arg8[%c0_46, %c362] : memref<8x4096xbf16, #tpu.memory_space<vmem>>, vector<8x2048xbf16>
    %58 = arith.extf %57 : vector<8x2048xbf16> to vector<8x2048xf32>
    %c136 = arith.constant 136 : index
    %c0_47 = arith.constant 0 : index
    %59 = vector.load %arg9[%c136, %c0_47] : memref<216x2048xf32, #tpu.memory_space<vmem>>, vector<8x2048xf32>
    tpu.vector_store %arg9[%c136, %c0_47], %58 {strides = array<i32>} : memref<216x2048xf32, #tpu.memory_space<vmem>>, vector<8x2048xf32>,
    %c0_48 = arith.constant 0 : index
    %c648 = arith.constant 648 : index
    %60 = vector.load %arg8[%c0_48, %c648] : memref<8x4096xbf16, #tpu.memory_space<vmem>>, vector<8x2048xbf16>
    %61 = arith.extf %60 : vector<8x2048xbf16> to vector<8x2048xf32>
    %c144 = arith.constant 144 : index
    %c0_49 = arith.constant 0 : index
    %62 = vector.load %arg9[%c144, %c0_49] : memref<216x2048xf32, #tpu.memory_space<vmem>>, vector<8x2048xf32>
    tpu.vector_store %arg9[%c144, %c0_49], %61 {strides = array<i32>} : memref<216x2048xf32, #tpu.memory_space<vmem>>, vector<8x2048xf32>,
    %c0_50 = arith.constant 0 : index
    %c649 = arith.constant 649 : index
    %63 = vector.load %arg8[%c0_50, %c649] : memref<8x4096xbf16, #tpu.memory_space<vmem>>, vector<8x2048xbf16>
    %64 = arith.extf %63 : vector<8x2048xbf16> to vector<8x2048xf32>
    %c152 = arith.constant 152 : index
    %c0_51 = arith.constant 0 : index
    %65 = vector.load %arg9[%c152, %c0_51] : memref<216x2048xf32, #tpu.memory_space<vmem>>, vector<8x2048xf32>
    tpu.vector_store %arg9[%c152, %c0_51], %64 {strides = array<i32>} : memref<216x2048xf32, #tpu.memory_space<vmem>>, vector<8x2048xf32>,
    %c0_52 = arith.constant 0 : index
    %c650 = arith.constant 650 : index
    %66 = vector.load %arg8[%c0_52, %c650] : memref<8x4096xbf16, #tpu.memory_space<vmem>>, vector<8x2048xbf16>
    %67 = arith.extf %66 : vector<8x2048xbf16> to vector<8x2048xf32>
    %c160 = arith.constant 160 : index
    %c0_53 = arith.constant 0 : index
    %68 = vector.load %arg9[%c160, %c0_53] : memref<216x2048xf32, #tpu.memory_space<vmem>>, vector<8x2048xf32>
    tpu.vector_store %arg9[%c160, %c0_53], %67 {strides = array<i32>} : memref<216x2048xf32, #tpu.memory_space<vmem>>, vector<8x2048xf32>,
    %c0_54 = arith.constant 0 : index
    %c666 = arith.constant 666 : index
    %69 = vector.load %arg8[%c0_54, %c666] : memref<8x4096xbf16, #tpu.memory_space<vmem>>, vector<8x2048xbf16>
    %70 = arith.extf %69 : vector<8x2048xbf16> to vector<8x2048xf32>
    %c168 = arith.constant 168 : index
    %c0_55 = arith.constant 0 : index
    %71 = vector.load %arg9[%c168, %c0_55] : memref<216x2048xf32, #tpu.memory_space<vmem>>, vector<8x2048xf32>
    tpu.vector_store %arg9[%c168, %c0_55], %70 {strides = array<i32>} : memref<216x2048xf32, #tpu.memory_space<vmem>>, vector<8x2048xf32>,
    %c0_56 = arith.constant 0 : index
    %c667 = arith.constant 667 : index
    %72 = vector.load %arg8[%c0_56, %c667] : memref<8x4096xbf16, #tpu.memory_space<vmem>>, vector<8x2048xbf16>
    %73 = arith.extf %72 : vector<8x2048xbf16> to vector<8x2048xf32>
    %c176 = arith.constant 176 : index
    %c0_57 = arith.constant 0 : index
    %74 = vector.load %arg9[%c176, %c0_57] : memref<216x2048xf32, #tpu.memory_space<vmem>>, vector<8x2048xf32>
    tpu.vector_store %arg9[%c176, %c0_57], %73 {strides = array<i32>} : memref<216x2048xf32, #tpu.memory_space<vmem>>, vector<8x2048xf32>,
    %c0_58 = arith.constant 0 : index
    %c668 = arith.constant 668 : index
    %75 = vector.load %arg8[%c0_58, %c668] : memref<8x4096xbf16, #tpu.memory_space<vmem>>, vector<8x2048xbf16>
    %76 = arith.extf %75 : vector<8x2048xbf16> to vector<8x2048xf32>
    %c184 = arith.constant 184 : index
    %c0_59 = arith.constant 0 : index
    %77 = vector.load %arg9[%c184, %c0_59] : memref<216x2048xf32, #tpu.memory_space<vmem>>, vector<8x2048xf32>
    tpu.vector_store %arg9[%c184, %c0_59], %76 {strides = array<i32>} : memref<216x2048xf32, #tpu.memory_space<vmem>>, vector<8x2048xf32>,
    %c0_60 = arith.constant 0 : index
    %c684 = arith.constant 684 : index
    %78 = vector.load %arg8[%c0_60, %c684] : memref<8x4096xbf16, #tpu.memory_space<vmem>>, vector<8x2048xbf16>
    %79 = arith.extf %78 : vector<8x2048xbf16> to vector<8x2048xf32>
    %c192 = arith.constant 192 : index
    %c0_61 = arith.constant 0 : index
    %80 = vector.load %arg9[%c192, %c0_61] : memref<216x2048xf32, #tpu.memory_space<vmem>>, vector<8x2048xf32>
    tpu.vector_store %arg9[%c192, %c0_61], %79 {strides = array<i32>} : memref<216x2048xf32, #tpu.memory_space<vmem>>, vector<8x2048xf32>,
    %c0_62 = arith.constant 0 : index
    %c685 = arith.constant 685 : index
    %81 = vector.load %arg8[%c0_62, %c685] : memref<8x4096xbf16, #tpu.memory_space<vmem>>, vector<8x2048xbf16>
    %82 = arith.extf %81 : vector<8x2048xbf16> to vector<8x2048xf32>
    %c200 = arith.constant 200 : index
    %c0_63 = arith.constant 0 : index
    %83 = vector.load %arg9[%c200, %c0_63] : memref<216x2048xf32, #tpu.memory_space<vmem>>, vector<8x2048xf32>
    tpu.vector_store %arg9[%c200, %c0_63], %82 {strides = array<i32>} : memref<216x2048xf32, #tpu.memory_space<vmem>>, vector<8x2048xf32>,
    %c0_64 = arith.constant 0 : index
    %c686 = arith.constant 686 : index
    %84 = vector.load %arg8[%c0_64, %c686] : memref<8x4096xbf16, #tpu.memory_space<vmem>>, vector<8x2048xbf16>
    %85 = arith.extf %84 : vector<8x2048xbf16> to vector<8x2048xf32>
    %c208 = arith.constant 208 : index
    %c0_65 = arith.constant 0 : index
    %86 = vector.load %arg9[%c208, %c0_65] : memref<216x2048xf32, #tpu.memory_space<vmem>>, vector<8x2048xf32>
    tpu.vector_store %arg9[%c208, %c0_65], %85 {strides = array<i32>} : memref<216x2048xf32, #tpu.memory_space<vmem>>, vector<8x2048xf32>,
    %c0_66 = arith.constant 0 : index
    %c0_67 = arith.constant 0 : index
    %87 = vector.load %arg4[%c0_66, %c0_67] : memref<8x216xf32, #tpu.memory_space<vmem>>, vector<8x216xf32>
    %c0_68 = arith.constant 0 : index
    %c0_69 = arith.constant 0 : index
    %88 = vector.load %arg9[%c0_68, %c0_69] : memref<216x2048xf32, #tpu.memory_space<vmem>>, vector<216x2048xf32>
    %cst = arith.constant dense<0.000000e+00> : vector<8x2048xf32>
    %89 = tpu.matmul %87, %88, %cst {dimension_numbers = #tpu.dot_dimension_numbers<[1], [0], [0], [1], [0, 0, 1, 1], [], []>} : vector<8x216xf32>, vector<216x2048xf32>, vector<8x2048xf32> -> vector<8x2048xf32>
    %c0_70 = arith.constant 0 : index
    %c0_71 = arith.constant 0 : index
    %90 = vector.load %arg5[%c0_70, %c0_71] : memref<1x2048xf32, #tpu.memory_space<vmem>>, vector<1x2048xf32>
    %91 = vector.broadcast %90 : vector<1x2048xf32> to vector<8x2048xf32>
    %92 = arith.mulf %89, %91 : vector<8x2048xf32>
    %cst_72 = arith.constant dense<0.000000e+00> : vector<8xf32>
    %93 = vector.multi_reduction <add>, %92, %cst_72 [1] : vector<8x2048xf32> to vector<8xf32>
    %94 = vector.shape_cast %93 : vector<8xf32> to vector<8x1xf32>
    %95 = arith.mulf %92, %89 : vector<8x2048xf32>
    %cst_73 = arith.constant dense<0.000000e+00> : vector<8xf32>
    %96 = vector.multi_reduction <add>, %95, %cst_73 [1] : vector<8x2048xf32> to vector<8xf32>
    %97 = vector.shape_cast %96 : vector<8xf32> to vector<8x1xf32>
    %cst_74 = arith.constant 0.000000e+00 : f32
    %98 = vector.broadcast %cst_74 : f32 to vector<8x126xf32>
    %99 = tpu.concatenate %94, %97, %98 in 1 : vector<8x1xf32>, vector<8x1xf32>, vector<8x126xf32> -> vector<8x128xf32>
    %100 = vector.shape_cast %99 : vector<8x128xf32> to vector<1x1x8x128xf32>
    %c0_75 = arith.constant 0 : index
    %c0_76 = arith.constant 0 : index
    %c0_77 = arith.constant 0 : index
    %c0_78 = arith.constant 0 : index
    %101 = vector.load %arg7[%c0_75, %c0_76, %c0_77, %c0_78] : memref<1x1x8x128xf32, #tpu.memory_space<vmem>>, vector<1x1x8x128xf32>
    tpu.vector_store %arg7[%c0_75, %c0_76, %c0_77, %c0_78], %100 {strides = array<i32>} : memref<1x1x8x128xf32, #tpu.memory_space<vmem>>, vector<1x1x8x128xf32>,
    %102 = arith.truncf %89 : vector<8x2048xf32> to vector<8x2048xbf16>
    %103 = vector.shape_cast %102 : vector<8x2048xbf16> to vector<1x8x2048xbf16>
    %c0_79 = arith.constant 0 : index
    %c0_80 = arith.constant 0 : index
    %c0_81 = arith.constant 0 : index
    %104 = vector.load %arg6[%c0_79, %c0_80, %c0_81] : memref<1x8x2048xbf16, #tpu.memory_space<vmem>>, vector<1x8x2048xbf16>
    tpu.vector_store %arg6[%c0_79, %c0_80, %c0_81], %103 {strides = array<i32>} : memref<1x8x2048xbf16, #tpu.memory_space<vmem>>, vector<1x8x2048xbf16>,
    return
  }
  func.func @transform_0(%arg0: i32, %arg1: i32) -> (i32, i32, i32, i32) {
    %c0_i32 = arith.constant 0 : i32
    %c0_i32_0 = arith.constant 0 : i32
    %c0_i32_1 = arith.constant 0 : i32
    return %arg0, %arg1, %c0_i32, %c0_i32_0 : i32, i32, i32, i32
  }
  func.func @transform_1(%arg0: i32, %arg1: i32) -> (i32, i32, i32, i32) {
    %c1_i32 = arith.constant 1 : i32
    %0 = arith.addi %arg1, %c1_i32 : i32
    %c0_i32 = arith.constant 0 : i32
    %c0_i32_0 = arith.constant 0 : i32
    %c0_i32_1 = arith.constant 0 : i32
    return %arg0, %0, %c0_i32, %c0_i32_0 : i32, i32, i32, i32
  }
  func.func @transform_2(%arg0: i32, %arg1: i32) -> (i32, i32) {
    %c0_i32 = arith.constant 0 : i32
    %c0_i32_0 = arith.constant 0 : i32
    %c0_i32_1 = arith.constant 0 : i32
    return %c0_i32, %c0_i32_0 : i32, i32
  }
  func.func @transform_3(%arg0: i32, %arg1: i32) -> (i32, i32) {
    %c0_i32 = arith.constant 0 : i32
    %c0_i32_0 = arith.constant 0 : i32
    return %c0_i32, %arg1 : i32, i32
  }
  func.func @transform_4(%arg0: i32, %arg1: i32) -> (i32, i32, i32) {
    %c0_i32 = arith.constant 0 : i32
    %c0_i32_0 = arith.constant 0 : i32
    return %arg0, %c0_i32, %arg1 : i32, i32, i32
  }
  func.func @transform_5(%arg0: i32, %arg1: i32) -> (i32, i32, i32, i32) {
    %c0_i32 = arith.constant 0 : i32
    %c0_i32_0 = arith.constant 0 : i32
    %c0_i32_1 = arith.constant 0 : i32
    return %arg0, %arg1, %c0_i32, %c0_i32_0 : i32, i32, i32, i32
  }
}

module attributes {stable_mosaic.version = 11 : i64} {
  func.func @_conv_kernel(%arg0: i32, %arg1: i32, %arg2: memref<1x1x8x2048xbf16, #tpu.memory_space<vmem>>, %arg3: memref<1x1x8x2048xbf16, #tpu.memory_space<vmem>>, %arg4: memref<8x8xf32, #tpu.memory_space<vmem>>, %arg5: memref<1x2048xf32, #tpu.memory_space<vmem>>, %arg6: memref<1x8x2048xf32, #tpu.memory_space<vmem>>, %arg7: memref<1x1x8x128xf32, #tpu.memory_space<vmem>>, %arg8: memref<8x4096xbf16, #tpu.memory_space<vmem>>, %arg9: memref<8x2048xf32, #tpu.memory_space<vmem>>) attributes {dimension_semantics = [#tpu.dimension_semantics<parallel>, #tpu.dimension_semantics<parallel>], iteration_bounds = array<i64: 2, 2>, scalar_prefetch = 0 : i64, scratch_operands = 2 : i64, tpu.core_type = #tpu.core_type<tc>, window_params = [{transform_indices = @transform_0, window_bounds = array<i64: 1, 1, 8, 2048>}, {transform_indices = @transform_1, window_bounds = array<i64: 1, 1, 8, 2048>}, {pipeline_mode = #tpu.pipeline_mode<synchronous>, transform_indices = @transform_2, window_bounds = array<i64: 8, 8>}, {transform_indices = @transform_3, window_bounds = array<i64: 1, 2048>}, {transform_indices = @transform_4, window_bounds = array<i64: 1, 8, 2048>}, {transform_indices = @transform_5, window_bounds = array<i64: 1, 1, 8, 128>}]} {
    %c0 = arith.constant 0 : index
    %c0_0 = arith.constant 0 : index
    %c0_1 = arith.constant 0 : index
    %c0_2 = arith.constant 0 : index
    %0 = vector.load %arg2[%c0, %c0_0, %c0_1, %c0_2] : memref<1x1x8x2048xbf16, #tpu.memory_space<vmem>>, vector<1x1x8x2048xbf16>
    %1 = vector.shape_cast %0 : vector<1x1x8x2048xbf16> to vector<8x2048xbf16>
    %c0_3 = arith.constant 0 : index
    %c0_4 = arith.constant 0 : index
    %2 = vector.load %arg8[%c0_3, %c0_4] : memref<8x4096xbf16, #tpu.memory_space<vmem>>, vector<8x2048xbf16>
    tpu.vector_store %arg8[%c0_3, %c0_4], %1 {strides = array<i32>} : memref<8x4096xbf16, #tpu.memory_space<vmem>>, vector<8x2048xbf16>,
    %c0_5 = arith.constant 0 : index
    %c0_6 = arith.constant 0 : index
    %3 = vector.load %arg8[%c0_5, %c0_6] : memref<8x4096xbf16, #tpu.memory_space<vmem>>, vector<8x2048xbf16>
    %4 = arith.extf %3 : vector<8x2048xbf16> to vector<8x2048xf32>
    %c0_7 = arith.constant 0 : index
    %c0_8 = arith.constant 0 : index
    %5 = vector.load %arg9[%c0_7, %c0_8] : memref<8x2048xf32, #tpu.memory_space<vmem>>, vector<8x2048xf32>
    tpu.vector_store %arg9[%c0_7, %c0_8], %4 {strides = array<i32>} : memref<8x2048xf32, #tpu.memory_space<vmem>>, vector<8x2048xf32>,
    %c0_9 = arith.constant 0 : index
    %c0_10 = arith.constant 0 : index
    %6 = vector.load %arg4[%c0_9, %c0_10] : memref<8x8xf32, #tpu.memory_space<vmem>>, vector<8x8xf32>
    %c0_11 = arith.constant 0 : index
    %c0_12 = arith.constant 0 : index
    %7 = vector.load %arg9[%c0_11, %c0_12] : memref<8x2048xf32, #tpu.memory_space<vmem>>, vector<8x2048xf32>
    %cst = arith.constant dense<0.000000e+00> : vector<8x2048xf32>
    %8 = tpu.matmul %6, %7, %cst {dimension_numbers = #tpu.dot_dimension_numbers<[1], [0], [0], [1], [0, 0, 1, 1], [], []>} : vector<8x8xf32>, vector<8x2048xf32>, vector<8x2048xf32> -> vector<8x2048xf32>
    %c0_13 = arith.constant 0 : index
    %c0_14 = arith.constant 0 : index
    %9 = vector.load %arg5[%c0_13, %c0_14] : memref<1x2048xf32, #tpu.memory_space<vmem>>, vector<1x2048xf32>
    %10 = vector.broadcast %9 : vector<1x2048xf32> to vector<8x2048xf32>
    %11 = arith.mulf %8, %10 : vector<8x2048xf32>
    %cst_15 = arith.constant dense<0.000000e+00> : vector<8xf32>
    %12 = vector.multi_reduction <add>, %11, %cst_15 [1] : vector<8x2048xf32> to vector<8xf32>
    %13 = vector.shape_cast %12 : vector<8xf32> to vector<8x1xf32>
    %14 = arith.mulf %11, %8 : vector<8x2048xf32>
    %cst_16 = arith.constant dense<0.000000e+00> : vector<8xf32>
    %15 = vector.multi_reduction <add>, %14, %cst_16 [1] : vector<8x2048xf32> to vector<8xf32>
    %16 = vector.shape_cast %15 : vector<8xf32> to vector<8x1xf32>
    %cst_17 = arith.constant 0.000000e+00 : f32
    %17 = vector.broadcast %cst_17 : f32 to vector<8x126xf32>
    %18 = tpu.concatenate %13, %16, %17 in 1 : vector<8x1xf32>, vector<8x1xf32>, vector<8x126xf32> -> vector<8x128xf32>
    %19 = vector.shape_cast %18 : vector<8x128xf32> to vector<1x1x8x128xf32>
    %c0_18 = arith.constant 0 : index
    %c0_19 = arith.constant 0 : index
    %c0_20 = arith.constant 0 : index
    %c0_21 = arith.constant 0 : index
    %20 = vector.load %arg7[%c0_18, %c0_19, %c0_20, %c0_21] : memref<1x1x8x128xf32, #tpu.memory_space<vmem>>, vector<1x1x8x128xf32>
    tpu.vector_store %arg7[%c0_18, %c0_19, %c0_20, %c0_21], %19 {strides = array<i32>} : memref<1x1x8x128xf32, #tpu.memory_space<vmem>>, vector<1x1x8x128xf32>,
    %21 = vector.shape_cast %8 : vector<8x2048xf32> to vector<1x8x2048xf32>
    %c0_22 = arith.constant 0 : index
    %c0_23 = arith.constant 0 : index
    %c0_24 = arith.constant 0 : index
    %22 = vector.load %arg6[%c0_22, %c0_23, %c0_24] : memref<1x8x2048xf32, #tpu.memory_space<vmem>>, vector<1x8x2048xf32>
    tpu.vector_store %arg6[%c0_22, %c0_23, %c0_24], %21 {strides = array<i32>} : memref<1x8x2048xf32, #tpu.memory_space<vmem>>, vector<1x8x2048xf32>,
    return
  }
  func.func @transform_0(%arg0: i32, %arg1: i32) -> (i32, i32, i32, i32) {
    %c0_i32 = arith.constant 0 : i32
    %c0_i32_0 = arith.constant 0 : i32
    %c0_i32_1 = arith.constant 0 : i32
    return %arg0, %arg1, %c0_i32, %c0_i32_0 : i32, i32, i32, i32
  }
  func.func @transform_1(%arg0: i32, %arg1: i32) -> (i32, i32, i32, i32) {
    %c1_i32 = arith.constant 1 : i32
    %0 = arith.addi %arg1, %c1_i32 : i32
    %c0_i32 = arith.constant 0 : i32
    %c0_i32_0 = arith.constant 0 : i32
    %c0_i32_1 = arith.constant 0 : i32
    return %arg0, %0, %c0_i32, %c0_i32_0 : i32, i32, i32, i32
  }
  func.func @transform_2(%arg0: i32, %arg1: i32) -> (i32, i32) {
    %c0_i32 = arith.constant 0 : i32
    %c0_i32_0 = arith.constant 0 : i32
    %c0_i32_1 = arith.constant 0 : i32
    return %c0_i32, %c0_i32_0 : i32, i32
  }
  func.func @transform_3(%arg0: i32, %arg1: i32) -> (i32, i32) {
    %c0_i32 = arith.constant 0 : i32
    %c0_i32_0 = arith.constant 0 : i32
    return %c0_i32, %arg1 : i32, i32
  }
  func.func @transform_4(%arg0: i32, %arg1: i32) -> (i32, i32, i32) {
    %c0_i32 = arith.constant 0 : i32
    %c0_i32_0 = arith.constant 0 : i32
    return %arg0, %c0_i32, %arg1 : i32, i32, i32
  }
  func.func @transform_5(%arg0: i32, %arg1: i32) -> (i32, i32, i32, i32) {
    %c0_i32 = arith.constant 0 : i32
    %c0_i32_0 = arith.constant 0 : i32
    %c0_i32_1 = arith.constant 0 : i32
    return %arg0, %arg1, %c0_i32, %c0_i32_0 : i32, i32, i32, i32
  }
}

</mosaic_0001>

<llo_original>
// kernel: scn_forward.14
$region0: #{scn_forward.14}
  #allocation0 [shape = 'u32[]', space=smem, size = 0x4, offset = 0x4, fixed_abs, tag = 'smem constant byte address 0x4 - core index']
  #allocation1 [shape = 'u32[144,128]{1,0:T(1,128)}', space=vmem, size = 0x12000, scoped, tag = 'internal scratch']
  %s0 = inlined_call_operand.vmem [shape: bf16[2,8,6144], index: 0, kind: input, shape index: {}]
  %s1 = inlined_call_operand.vmem [shape: f32[1,6144], index: 1, kind: input, shape index: {}]
  %s2 = inlined_call_operand.vmem [shape: f32[8,1], index: 2, kind: input, shape index: {}]
  %s3 = inlined_call_operand.vmem [shape: f32[8,1], index: 3, kind: input, shape index: {}]
  %s4 = inlined_call_operand.vmem [shape: bf16[2,8,6144], index: 4, kind: output, shape index: {}]
  %s5 = sld [smem:[#allocation0]]
  $region49: #{scn_forward.14} parent=0
    _
  %s7 = ssub.s32 1, %s5
  %s8 = scalar_select 0, %s7, %s5
  loop: start=0, step=1, limit=8
  $region2: #{scn_forward.14} parent=0 // loop_pre_header
    _
  $region3: #{scn_forward.14} parent=0 // loop_header
    %s10 = sphi 0, %s14
    %p11 = scmp.ge.s32.totalorder %s10, 8
    %s17 = sphi 0, %s29
    %s18 = sphi 0, %s25
    %s19 = sphi 0, %s17
    %s20 = sphi 0, %s18
    %s21 = sphi 0, %s19
    %s22 = sphi 0, %s20
    %s34 = sphi 0, %s36
    %s37 = sphi 0, %s34
    %s38 = sphi 0, %s37
    %s54 = sphi 0, %s38
    %s60 = sphi 0, %s62
    %s63 = sphi 0, %s60
    %s64 = sphi 0, %s63
    %s80 = sphi 0, %s64
    %s84 = sphi 0, %s84
    %s86 = sphi 0, %s84
    %s87 = sphi 0, %s86
    %s101 = sphi 0, %s87
    %s105 = sphi 0, %s105
    %s107 = sphi 0, %s105
    %s108 = sphi 0, %s107
    %s122 = sphi 0, %s108
    %s130 = sphi 0, %s132
    %s133 = sphi 0, %s130
    %s134 = sphi 0, %s133
    %s150 = sphi 0, %s134
  $region4: #{scn_forward.14} parent=0 // loop_header_branch
    %13 = sbr.rel (%p11) target = $region8
  $region5: #{scn_forward.14} parent=0 // loop_body
    %s15 = ssub.s32 %s10, 1
    %s16 = ssub.s32 %s10, 2
    %s23 = sadd.s32 1, %s18
    %p24 = scmp.ge.s32.totalorder %s23, 3
    %s25 = scalar_select %p24, 0, %s23
    %s26 = sadd.s32 1, %s17
    %s27 = scalar_select %p24, %s26, %s17
    %p28 = scmp.ge.s32.totalorder %s27, 2
    %s29 = scalar_select %p28, 0, %s27
    %s30 = ssub.s32 %s17, %s29
    %s31 = ssub.s32 %s18, %s25
    %s32 = sor.u32 %s30, %s31
    %p33 = scmp.eq.s32.totalorder %s32, 0
    %s35 = sadd.s32 %s34, 1
    %s36 = scalar_select %p33, %s34, %s35
    %p39 = pneg %p33
    %p40 = scmp.eq.s32.totalorder %s10, 5
    %p41 = por %p39, %p40
    %p42 = scmp.ne.s32.totalorder %s34, %s37
    %p43 = scmp.eq.s32.totalorder %s10, 0
    %p44 = por %p42, %p43
    %p45 = scmp.ne.s32.totalorder %s34, %s37
    %p46 = scmp.eq.s32.totalorder %s15, 5
    %p47 = por %p45, %p46
    %p48 = scmp.ne.s32.totalorder %s37, %s38
    %p49 = scmp.eq.s32.totalorder %s15, 0
    %p50 = por %p48, %p49
    %p51 = scmp.ne.s32.totalorder %s37, %s38
    %p52 = scmp.eq.s32.totalorder %s16, 5
    %p53 = por %p51, %p52
    %p55 = scmp.ne.s32.totalorder %s38, %s54
    %p56 = scmp.eq.s32.totalorder %s16, 0
    %p57 = por %p55, %p56
    %s58 = ssub.s32 %s18, %s25
    %p59 = scmp.eq.s32.totalorder %s58, 0
    %s61 = sadd.s32 %s60, 1
    %s62 = scalar_select %p59, %s60, %s61
    %p65 = pneg %p59
    %p66 = scmp.eq.s32.totalorder %s10, 5
    %p67 = por %p65, %p66
    %p68 = scmp.ne.s32.totalorder %s60, %s63
    %p69 = scmp.eq.s32.totalorder %s10, 0
    %p70 = por %p68, %p69
    %p71 = scmp.ne.s32.totalorder %s60, %s63
    %p72 = scmp.eq.s32.totalorder %s15, 5
    %p73 = por %p71, %p72
    %p74 = scmp.ne.s32.totalorder %s63, %s64
    %p75 = scmp.eq.s32.totalorder %s15, 0
    %p76 = por %p74, %p75
    %p77 = scmp.ne.s32.totalorder %s63, %s64
    %p78 = scmp.eq.s32.totalorder %s16, 5
    %p79 = por %p77, %p78
    %p81 = scmp.ne.s32.totalorder %s64, %s80
    %p82 = scmp.eq.s32.totalorder %s16, 0
    %p83 = por %p81, %p82
    %s85 = sadd.s32 %s84, 1
    %p88 = scmp.eq.s32.totalorder %s10, 5
    %p89 = scmp.ne.s32.totalorder %s84, %s86
    %p90 = scmp.eq.s32.totalorder %s10, 0
    %p91 = por %p89, %p90
    %p92 = scmp.ne.s32.totalorder %s84, %s86
    %p93 = scmp.eq.s32.totalorder %s15, 5
    %p94 = por %p92, %p93
    %p95 = scmp.ne.s32.totalorder %s86, %s87
    %p96 = scmp.eq.s32.totalorder %s15, 0
    %p97 = por %p95, %p96
    %p98 = scmp.ne.s32.totalorder %s86, %s87
    %p99 = scmp.eq.s32.totalorder %s16, 5
    %p100 = por %p98, %p99
    %p102 = scmp.ne.s32.totalorder %s87, %s101
    %p103 = scmp.eq.s32.totalorder %s16, 0
    %p104 = por %p102, %p103
    %s106 = sadd.s32 %s105, 1
    %p109 = scmp.eq.s32.totalorder %s10, 5
    %p110 = scmp.ne.s32.totalorder %s105, %s107
    %p111 = scmp.eq.s32.totalorder %s10, 0
    %p112 = por %p110, %p111
    %p113 = scmp.ne.s32.totalorder %s105, %s107
    %p114 = scmp.eq.s32.totalorder %s15, 5
    %p115 = por %p113, %p114
    %p116 = scmp.ne.s32.totalorder %s107, %s108
    %p117 = scmp.eq.s32.totalorder %s15, 0
    %p118 = por %p116, %p117
    %p119 = scmp.ne.s32.totalorder %s107, %s108
    %p120 = scmp.eq.s32.totalorder %s16, 5
    %p121 = por %p119, %p120
    %p123 = scmp.ne.s32.totalorder %s108, %s122
    %p124 = scmp.eq.s32.totalorder %s16, 0
    %p125 = por %p123, %p124
    %s126 = ssub.s32 %s17, %s29
    %s127 = ssub.s32 %s18, %s25
    %s128 = sor.u32 %s126, %s127
    %p129 = scmp.eq.s32.totalorder %s128, 0
    %s131 = sadd.s32 %s130, 1
    %s132 = scalar_select %p129, %s130, %s131
    %p135 = pneg %p129
    %p136 = scmp.eq.s32.totalorder %s10, 5
    %p137 = por %p135, %p136
    %p138 = scmp.ne.s32.totalorder %s130, %s133
    %p139 = scmp.eq.s32.totalorder %s10, 0
    %p140 = por %p138, %p139
    %p141 = scmp.ne.s32.totalorder %s130, %s133
    %p142 = scmp.eq.s32.totalorder %s15, 5
    %p143 = por %p141, %p142
    %p144 = scmp.ne.s32.totalorder %s133, %s134
    %p145 = scmp.eq.s32.totalorder %s15, 0
    %p146 = por %p144, %p145
    %p147 = scmp.ne.s32.totalorder %s133, %s134
    %p148 = scmp.eq.s32.totalorder %s16, 5
    %p149 = por %p147, %p148
    %p151 = scmp.ne.s32.totalorder %s134, %s150
    %p152 = scmp.eq.s32.totalorder %s16, 0
    %p153 = por %p151, %p152
    %p154 = scmp.le.s32.totalorder 1, %s10
    %p155 = scmp.lt.s32.totalorder %s10, 7
    %p156 = pnand %p154, %p155
    %p157 = pneg %p156
    // Predicated region
    $region9: #{scn_forward.14} parent=5 // pred_check
      _
    $region10: #{scn_forward.14} parent=5 // pred_check_branch
      %159 = sbr.rel (%p156) target = $region12
    $region11: #{scn_forward.14} parent=5 // pred_region
      %s160 = ssub.s32 %s10, 1
      // Predicated region
      $region13: #{scn_forward.14} parent=11 // pred_check
        %p161 = pneg %p97
      $region14: #{scn_forward.14} parent=11 // pred_check_branch
        %163 = sbr.rel (%p161) target = $region16
      $region15: #{scn_forward.14} parent=11 // pred_region
        _
      $region16: #{scn_forward.14} parent=11 // pred_fallthru
        _
      // Predicated region
      $region17: #{scn_forward.14} parent=11 // pred_check
        %p164 = pneg %p118
      $region18: #{scn_forward.14} parent=11 // pred_check_branch
        %166 = sbr.rel (%p164) target = $region20
      $region19: #{scn_forward.14} parent=11 // pred_region
        _
      $region20: #{scn_forward.14} parent=11 // pred_fallthru
        _
    $region12: #{scn_forward.14} parent=5 // pred_fallthru
      _
    %p167 = scmp.lt.s32.totalorder %s10, 6
    // Predicated region
    $region21: #{scn_forward.14} parent=5 // pred_check
      %p168 = pneg %p167
    $region22: #{scn_forward.14} parent=5 // pred_check_branch
      %170 = sbr.rel (%p168) target = $region24
    $region23: #{scn_forward.14} parent=5 // pred_region
      // Predicated region
      $region25: #{scn_forward.14} parent=23 // pred_check
        %p171 = pneg %p44
      $region26: #{scn_forward.14} parent=23 // pred_check_branch
        %173 = sbr.rel (%p171) target = $region28
      $region27: #{scn_forward.14} parent=23 // pred_region
        %s174 = smul.u32 16, %s18
        %p175 = scmp.lt.s32.totalorder %s17, 1
        %s176 = scalar_select %p175, %s17, 1
        %p177 = scmp.lt.s32.totalorder %s174, 47
        %s178 = scalar_select %p177, %s174, 47
        %s179 = smul.addr %s176, 48
        %s180 = sadd.s32 %s178, %s179
        %s181 = smul.addr %s180, 4
        %s182 = scalar_lea.vmem %s0, %s181
        %s183 = smul.u32 16, %s18
      $region28: #{scn_forward.14} parent=23 // pred_fallthru
        _
      // Predicated region
      $region29: #{scn_forward.14} parent=23 // pred_check
        %p184 = pneg %p70
      $region30: #{scn_forward.14} parent=23 // pred_check_branch
        %186 = sbr.rel (%p184) target = $region32
      $region31: #{scn_forward.14} parent=23 // pred_region
        %s187 = smul.u32 16, %s18
        %p188 = scmp.lt.s32.totalorder %s187, 47
        %s189 = scalar_select %p188, %s187, 47
        %s190 = scalar_lea.vmem %s1, %s189
        %s191 = smul.u32 16, %s18
      $region32: #{scn_forward.14} parent=23 // pred_fallthru
        _
    $region24: #{scn_forward.14} parent=5 // pred_fallthru
      _
    %p192 = scmp.le.s32.totalorder 1, %s10
    %p193 = scmp.lt.s32.totalorder %s10, 7
    %p194 = pnand %p192, %p193
    %p195 = pneg %p194
    // Predicated region
    $region33: #{scn_forward.14} parent=5 // pred_check
      _
    $region34: #{scn_forward.14} parent=5 // pred_check_branch
      %197 = sbr.rel (%p194) target = $region36
    $region35: #{scn_forward.14} parent=5 // pred_region
      %s198 = ssub.s32 %s10, 1
      %s199 = smul.u32 16, %s20
      %p200 = scmp.lt.s32.totalorder %s19, 1
      %s201 = scalar_select %p200, %s19, 1
      %p202 = scmp.lt.s32.totalorder %s199, 47
      %s203 = scalar_select %p202, %s199, 47
      %s204 = smul.addr %s201, 48
      %s205 = sadd.s32 %s203, %s204
      %s206 = smul.addr %s205, 4
      %s207 = scalar_lea.vmem %s0, %s206
      %p208 = pneg %p50
      %p209 = pneg %p47
      %s210 = smul.u32 16, %s20
      %p211 = scmp.lt.s32.totalorder %s210, 47
      %s212 = scalar_select %p211, %s210, 47
      %s213 = scalar_lea.vmem %s1, %s212
      %p214 = pneg %p76
      %p215 = pneg %p73
      %p216 = pneg %p97
      %p217 = pneg %p94
      %p218 = pneg %p118
      %p219 = pneg %p115
      %p220 = pneg %p146
      %p221 = pneg %p143
      %s222 = smul.u32 16, %s20
      %p223 = scmp.lt.s32.totalorder %s19, 1
      %s224 = scalar_select %p223, %s19, 1
      %p225 = scmp.lt.s32.totalorder %s222, 47
      %s226 = scalar_select %p225, %s222, 47
      %s227 = smul.addr %s224, 48
      %s228 = sadd.s32 %s226, %s227
      %s229 = smul.addr %s228, 4
      %s230 = scalar_lea.vmem %s4, %s229
      %s231 = smul.u32 16, %s20
      %p232 = scmp.lt.s32.totalorder %s19, 1
      %s233 = scalar_select %p232, %s19, 1
      %p234 = scmp.lt.s32.totalorder %s231, 47
      %s235 = scalar_select %p234, %s231, 47
      %s236 = smul.addr %s233, 48
      %s237 = sadd.s32 %s235, %s236
      %s238 = smul.addr %s237, 4
      %s239 = scalar_lea.vmem %s0, %s238
      %s240 = smul.u32 16, %s20
      %s241 = smul.u32 16, %s20
      %p242 = scmp.lt.s32.totalorder %s241, 47
      %s243 = scalar_select %p242, %s241, 47
      %s244 = scalar_lea.vmem %s1, %s243
      %s245 = smul.u32 16, %s20
      %s246 = smul.u32 16, %s20
      %p247 = scmp.lt.s32.totalorder %s19, 1
      %s248 = scalar_select %p247, %s19, 1
      %p249 = scmp.lt.s32.totalorder %s246, 47
      %s250 = scalar_select %p249, %s246, 47
      %s251 = smul.addr %s248, 48
      %s252 = sadd.s32 %s250, %s251
      %s253 = smul.addr %s252, 4
      %s254 = scalar_lea.vmem %s4, %s253
      %s255 = smul.u32 16, %s20
      %v256 = vld [vmem:[%s239] sm:$0xff]
      %v257 = vld [vmem:[%s239 + $0x8] sm:$0xff]
      %v258 = vld [vmem:[%s239 + $0x10] sm:$0xff]
      %v259 = vld [vmem:[%s239 + $0x18] sm:$0xff]
      %v260 = vld [vmem:[%s239 + $0x20] sm:$0xff]
      %v261 = vld [vmem:[%s239 + $0x28] sm:$0xff]
      %v262 = vld [vmem:[%s239 + $0x30] sm:$0xff]
      %v263 = vld [vmem:[%s239 + $0x38] sm:$0xff]
      %v264 = vunpack.c.l.bf16 %v256
      %v265 = vunpack.c.h.bf16 %v256
      %v266 = vunpack.c.l.bf16 %v257
      %v267 = vunpack.c.h.bf16 %v257
      %v268 = vunpack.c.l.bf16 %v258
      %v269 = vunpack.c.h.bf16 %v258
      %v270 = vunpack.c.l.bf16 %v259
      %v271 = vunpack.c.h.bf16 %v259
      %v272 = vunpack.c.l.bf16 %v260
      %v273 = vunpack.c.h.bf16 %v260
      %v274 = vunpack.c.l.bf16 %v261
      %v275 = vunpack.c.h.bf16 %v261
      %v276 = vunpack.c.l.bf16 %v262
      %v277 = vunpack.c.h.bf16 %v262
      %v278 = vunpack.c.l.bf16 %v263
      %v279 = vunpack.c.h.bf16 %v263
      %v280 = vld [vmem:[%s2] sm:$0xff]
      %282 = vset.pattern.permute.xlu0 0
      %283 = vperm.xlu0 %282, %v280
      %v284 = vpop.permute.xlu0 %283
      %v286 = vmul.f32 %v264, %v284
      %v287 = vmul.f32 %v265, %v284
      %v288 = vmul.f32 %v266, %v284
      %v289 = vmul.f32 %v267, %v284
      %v290 = vmul.f32 %v268, %v284
      %v291 = vmul.f32 %v269, %v284
      %v292 = vmul.f32 %v270, %v284
      %v293 = vmul.f32 %v271, %v284
      %v294 = vmul.f32 %v272, %v284
      %v295 = vmul.f32 %v273, %v284
      %v296 = vmul.f32 %v274, %v284
      %v297 = vmul.f32 %v275, %v284
      %v298 = vmul.f32 %v276, %v284
      %v299 = vmul.f32 %v277, %v284
      %v300 = vmul.f32 %v278, %v284
      %v301 = vmul.f32 %v279, %v284
      %v302 = vld [vmem:[%s3] sm:$0xff]
      %304 = vset.pattern.permute.xlu0 0
      %305 = vperm.xlu0 %304, %v302
      %v306 = vpop.permute.xlu0 %305
      %v308 = vadd.f32 %v286, %v306
      %v309 = vadd.f32 %v287, %v306
      %v310 = vadd.f32 %v288, %v306
      %v311 = vadd.f32 %v289, %v306
      %v312 = vadd.f32 %v290, %v306
      %v313 = vadd.f32 %v291, %v306
      %v314 = vadd.f32 %v292, %v306
      %v315 = vadd.f32 %v293, %v306
      %v316 = vadd.f32 %v294, %v306
      %v317 = vadd.f32 %v295, %v306
      %v318 = vadd.f32 %v296, %v306
      %v319 = vadd.f32 %v297, %v306
      %v320 = vadd.f32 %v298, %v306
      %v321 = vadd.f32 %v299, %v306
      %v322 = vadd.f32 %v300, %v306
      %v323 = vadd.f32 %v301, %v306
      %vm324 = vcmp.ge.f32.partialorder %v308, 0.0
      %vm325 = vcmp.ge.f32.partialorder %v309, 0.0
      %vm326 = vcmp.ge.f32.partialorder %v310, 0.0
      %vm327 = vcmp.ge.f32.partialorder %v311, 0.0
      %vm328 = vcmp.ge.f32.partialorder %v312, 0.0
      %vm329 = vcmp.ge.f32.partialorder %v313, 0.0
      %vm330 = vcmp.ge.f32.partialorder %v314, 0.0
      %vm331 = vcmp.ge.f32.partialorder %v315, 0.0
      %vm332 = vcmp.ge.f32.partialorder %v316, 0.0
      %vm333 = vcmp.ge.f32.partialorder %v317, 0.0
      %vm334 = vcmp.ge.f32.partialorder %v318, 0.0
      %vm335 = vcmp.ge.f32.partialorder %v319, 0.0
      %vm336 = vcmp.ge.f32.partialorder %v320, 0.0
      %vm337 = vcmp.ge.f32.partialorder %v321, 0.0
      %vm338 = vcmp.ge.f32.partialorder %v322, 0.0
      %vm339 = vcmp.ge.f32.partialorder %v323, 0.0
      %v340 = vmul.f32 %v308, 0.01
      %v341 = vmul.f32 %v309, 0.01
      %v342 = vmul.f32 %v310, 0.01
      %v343 = vmul.f32 %v311, 0.01
      %v344 = vmul.f32 %v312, 0.01
      %v345 = vmul.f32 %v313, 0.01
      %v346 = vmul.f32 %v314, 0.01
      %v347 = vmul.f32 %v315, 0.01
      %v348 = vmul.f32 %v316, 0.01
      %v349 = vmul.f32 %v317, 0.01
      %v350 = vmul.f32 %v318, 0.01
      %v351 = vmul.f32 %v319, 0.01
      %v352 = vmul.f32 %v320, 0.01
      %v353 = vmul.f32 %v321, 0.01
      %v354 = vmul.f32 %v322, 0.01
      %v355 = vmul.f32 %v323, 0.01
      %v356 = vsel %vm324, %v308, %v340
      %v357 = vsel %vm325, %v309, %v341
      %v358 = vsel %vm326, %v310, %v342
      %v359 = vsel %vm327, %v311, %v343
      %v360 = vsel %vm328, %v312, %v344
      %v361 = vsel %vm329, %v313, %v345
      %v362 = vsel %vm330, %v314, %v346
      %v363 = vsel %vm331, %v315, %v347
      %v364 = vsel %vm332, %v316, %v348
      %v365 = vsel %vm333, %v317, %v349
      %v366 = vsel %vm334, %v318, %v350
      %v367 = vsel %vm335, %v319, %v351
      %v368 = vsel %vm336, %v320, %v352
      %v369 = vsel %vm337, %v321, %v353
      %v370 = vsel %vm338, %v322, %v354
      %v371 = vsel %vm339, %v323, %v355
      %v372 = vld [vmem:[%s244] sm:$0xff]
      %v373 = vld [vmem:[%s244 + $0x8] sm:$0xff]
      %v376 = vlaneseq
      %v377 = vshrl.u32 %v376, 7
      %v378 = vsub.s32 0, %v377
      %v379 = vrot.slane %v372, %v378
      %v380 = vlaneseq
      %v381 = vshrl.u32 %v380, 7
      %v382 = vsub.s32 1, %v381
      %v383 = vrot.slane %v372, %v382
      %v384 = vlaneseq
      %v385 = vshrl.u32 %v384, 7
      %v386 = vsub.s32 2, %v385
      %v387 = vrot.slane %v372, %v386
      %v388 = vlaneseq
      %v389 = vshrl.u32 %v388, 7
      %v390 = vsub.s32 3, %v389
      %v391 = vrot.slane %v372, %v390
      %v392 = vlaneseq
      %v393 = vshrl.u32 %v392, 7
      %v394 = vsub.s32 4, %v393
      %v395 = vrot.slane %v372, %v394
      %v396 = vlaneseq
      %v397 = vshrl.u32 %v396, 7
      %v398 = vsub.s32 5, %v397
      %v399 = vrot.slane %v372, %v398
      %v400 = vlaneseq
      %v401 = vshrl.u32 %v400, 7
      %v402 = vsub.s32 6, %v401
      %v403 = vrot.slane %v372, %v402
      %v404 = vlaneseq
      %v405 = vshrl.u32 %v404, 7
      %v406 = vsub.s32 7, %v405
      %v407 = vrot.slane %v372, %v406
      %v408 = vlaneseq
      %v409 = vshrl.u32 %v408, 7
      %v410 = vsub.s32 0, %v409
      %v411 = vrot.slane %v373, %v410
      %v412 = vlaneseq
      %v413 = vshrl.u32 %v412, 7
      %v414 = vsub.s32 1, %v413
      %v415 = vrot.slane %v373, %v414
      %v416 = vlaneseq
      %v417 = vshrl.u32 %v416, 7
      %v418 = vsub.s32 2, %v417
      %v419 = vrot.slane %v373, %v418
      %v420 = vlaneseq
      %v421 = vshrl.u32 %v420, 7
      %v422 = vsub.s32 3, %v421
      %v423 = vrot.slane %v373, %v422
      %v424 = vlaneseq
      %v425 = vshrl.u32 %v424, 7
      %v426 = vsub.s32 4, %v425
      %v427 = vrot.slane %v373, %v426
      %v428 = vlaneseq
      %v429 = vshrl.u32 %v428, 7
      %v430 = vsub.s32 5, %v429
      %v431 = vrot.slane %v373, %v430
      %v432 = vlaneseq
      %v433 = vshrl.u32 %v432, 7
      %v434 = vsub.s32 6, %v433
      %v435 = vrot.slane %v373, %v434
      %v436 = vlaneseq
      %v437 = vshrl.u32 %v436, 7
      %v438 = vsub.s32 7, %v437
      %v439 = vrot.slane %v373, %v438
      %v456 = vmul.f32 %v356, %v379
      %v457 = vmul.f32 %v357, %v383
      %v458 = vmul.f32 %v358, %v387
      %v459 = vmul.f32 %v359, %v391
      %v460 = vmul.f32 %v360, %v395
      %v461 = vmul.f32 %v361, %v399
      %v462 = vmul.f32 %v362, %v403
      %v463 = vmul.f32 %v363, %v407
      %v464 = vmul.f32 %v364, %v411
      %v465 = vmul.f32 %v365, %v415
      %v466 = vmul.f32 %v366, %v419
      %v467 = vmul.f32 %v367, %v423
      %v468 = vmul.f32 %v368, %v427
      %v469 = vmul.f32 %v369, %v431
      %v470 = vmul.f32 %v370, %v435
      %v471 = vmul.f32 %v371, %v439
      %v472 = vpack.c.bf16 %v456, %v456
      %v473 = vpack.c.bf16 %v457, %v457
      %v474 = vpack.c.bf16 %v458, %v458
      %v475 = vpack.c.bf16 %v459, %v459
      %v476 = vpack.c.bf16 %v460, %v460
      %v477 = vpack.c.bf16 %v461, %v461
      %v478 = vpack.c.bf16 %v462, %v462
      %v479 = vpack.c.bf16 %v463, %v463
      %v480 = vpack.c.bf16 %v464, %v464
      %v481 = vpack.c.bf16 %v465, %v465
      %v482 = vpack.c.bf16 %v466, %v466
      %v483 = vpack.c.bf16 %v467, %v467
      %v484 = vpack.c.bf16 %v468, %v468
      %v485 = vpack.c.bf16 %v469, %v469
      %v486 = vpack.c.bf16 %v470, %v470
      %v487 = vpack.c.bf16 %v471, %v471
      %v504 = vunpack.c.l.b16 %v472
      %v505 = vunpack.c.l.b16 %v473
      %v506 = vunpack.c.l.b16 %v474
      %v507 = vunpack.c.l.b16 %v475
      %v508 = vunpack.c.l.b16 %v476
      %v509 = vunpack.c.l.b16 %v477
      %v510 = vunpack.c.l.b16 %v478
      %v511 = vunpack.c.l.b16 %v479
      %v512 = vunpack.c.l.b16 %v480
      %v513 = vunpack.c.l.b16 %v481
      %v514 = vunpack.c.l.b16 %v482
      %v515 = vunpack.c.l.b16 %v483
      %v516 = vunpack.c.l.b16 %v484
      %v517 = vunpack.c.l.b16 %v485
      %v518 = vunpack.c.l.b16 %v486
      %v519 = vunpack.c.l.b16 %v487
      %v520 = vpack.c.b16 %v505, %v504
      %v521 = vpack.c.b16 %v507, %v506
      %v522 = vpack.c.b16 %v509, %v508
      %v523 = vpack.c.b16 %v511, %v510
      %v524 = vpack.c.b16 %v513, %v512
      %v525 = vpack.c.b16 %v515, %v514
      %v526 = vpack.c.b16 %v517, %v516
      %v527 = vpack.c.b16 %v519, %v518
      %536 = vst [vmem:[%s254] sm:$0xff] %v520
      %537 = vst [vmem:[%s254 + $0x8] sm:$0xff] %v521
      %538 = vst [vmem:[%s254 + $0x10] sm:$0xff] %v522
      %539 = vst [vmem:[%s254 + $0x18] sm:$0xff] %v523
      %540 = vst [vmem:[%s254 + $0x20] sm:$0xff] %v524
      %541 = vst [vmem:[%s254 + $0x28] sm:$0xff] %v525
      %542 = vst [vmem:[%s254 + $0x30] sm:$0xff] %v526
      %543 = vst [vmem:[%s254 + $0x38] sm:$0xff] %v527
      %s544 = smul.u32 16, %s20
      %p545 = scmp.lt.s32.totalorder %s19, 1
      %s546 = scalar_select %p545, %s19, 1
      %p547 = scmp.lt.s32.totalorder %s544, 47
      %s548 = scalar_select %p547, %s544, 47
      %s549 = smul.addr %s546, 48
      %s550 = sadd.s32 %s548, %s549
      %s551 = smul.addr %s550, 4
      %s552 = scalar_lea.vmem %s4, %s551
      // Predicated region
      $region37: #{scn_forward.14} parent=35 // pred_check
        %p553 = pneg %p143
      $region38: #{scn_forward.14} parent=35 // pred_check_branch
        %555 = sbr.rel (%p553) target = $region40
      $region39: #{scn_forward.14} parent=35 // pred_region
        %s556 = smul.u32 16, %s20
      $region40: #{scn_forward.14} parent=35 // pred_fallthru
        _
    $region36: #{scn_forward.14} parent=5 // pred_fallthru
      _
    %p557 = scmp.le.s32.totalorder 2, %s10
    // Predicated region
    $region41: #{scn_forward.14} parent=5 // pred_check
      %p558 = pneg %p557
    $region42: #{scn_forward.14} parent=5 // pred_check_branch
      %560 = sbr.rel (%p558) target = $region44
    $region43: #{scn_forward.14} parent=5 // pred_region
      %s561 = ssub.s32 %s10, 2
      // Predicated region
      $region45: #{scn_forward.14} parent=43 // pred_check
        %p562 = pneg %p149
      $region46: #{scn_forward.14} parent=43 // pred_check_branch
        %564 = sbr.rel (%p562) target = $region48
      $region47: #{scn_forward.14} parent=43 // pred_region
        %s565 = smul.u32 16, %s22
        %p566 = scmp.lt.s32.totalorder %s21, 1
        %s567 = scalar_select %p566, %s21, 1
        %p568 = scmp.lt.s32.totalorder %s565, 47
        %s569 = scalar_select %p568, %s565, 47
        %s570 = smul.addr %s567, 48
        %s571 = sadd.s32 %s569, %s570
        %s572 = smul.addr %s571, 4
        %s573 = scalar_lea.vmem %s4, %s572
      $region48: #{scn_forward.14} parent=43 // pred_fallthru
        _
    $region44: #{scn_forward.14} parent=5 // pred_fallthru
      _
  $region6: #{scn_forward.14} parent=0 // loop_footer
    %s14 = sadd.s32 1, %s10
  $region7: #{scn_forward.14} parent=0 // loop_footer_branch
    %9 = sbr.rel target = $region3
  $region8: #{scn_forward.14} parent=0 // loop_exit
    _

// kernel: scn_forward.13
$region0: #{scn_forward.13}
  #allocation0 [shape = 'u32[]', space=smem, size = 0x4, offset = 0x4, fixed_abs, tag = 'smem constant byte address 0x4 - core index']
  #allocation1 [shape = 'u32[144,128]{1,0:T(1,128)}', space=vmem, size = 0x12000, scoped, tag = 'internal scratch']
  #allocation2 [shape = 'bf16[8,4096]{1,0:T(8,128)(2,1)}', space=vmem, size = 0x10000, scoped, tag = 'scratch operand']
  #allocation3 [shape = 'f32[216,2048]{1,0:T(8,128)}', space=vmem, size = 0x1b0000, scoped, tag = 'scratch operand']
  %s0 = inlined_call_operand.vmem [shape: bf16[2,4,8,2048], index: 0, kind: input, shape index: {}, may-alias: {0,1}]
  %s1 = inlined_call_operand.vmem [shape: bf16[2,4,8,2048], index: 1, kind: input, shape index: {}, may-alias: {0,1}]
  %s2 = inlined_call_operand.vmem [shape: f32[8,216], index: 2, kind: input, shape index: {}]
  %s3 = inlined_call_operand.vmem [shape: f32[1,6144], index: 3, kind: input, shape index: {}]
  %s4 = inlined_call_operand.vmem [shape: bf16[2,8,6144], index: 4, kind: output, shape index: {0}]
  %s5 = inlined_call_operand.vmem [shape: f32[2,3,8,128], index: 5, kind: output, shape index: {1}]
  %6 = xla_tuple %s4, %s5
  %s7 = sld [smem:[#allocation0]]
  $region57: #{scn_forward.13} parent=0
    _
  %s9 = ssub.s32 1, %s7
  %s10 = scalar_select 0, %s9, %s7
  loop: start=0, step=1, limit=8
  $region2: #{scn_forward.13} parent=0 // loop_pre_header
    _
  $region3: #{scn_forward.13} parent=0 // loop_header
    %s12 = sphi 0, %s16
    %p13 = scmp.ge.s32.totalorder %s12, 8
    %s19 = sphi 0, %s31
    %s20 = sphi 0, %s27
    %s21 = sphi 0, %s19
    %s22 = sphi 0, %s20
    %s23 = sphi 0, %s21
    %s24 = sphi 0, %s22
    %s36 = sphi 0, %s38
    %s39 = sphi 0, %s36
    %s40 = sphi 0, %s39
    %s56 = sphi 0, %s40
    %s66 = sphi 0, %s68
    %s69 = sphi 0, %s66
    %s70 = sphi 0, %s69
    %s86 = sphi 0, %s70
    %s90 = sphi 0, %s90
    %s92 = sphi 0, %s90
    %s93 = sphi 0, %s92
    %s107 = sphi 0, %s93
    %s113 = sphi 0, %s115
    %s116 = sphi 0, %s113
    %s117 = sphi 0, %s116
    %s133 = sphi 0, %s117
    %s141 = sphi 0, %s143
    %s144 = sphi 0, %s141
    %s145 = sphi 0, %s144
    %s161 = sphi 0, %s145
    %s169 = sphi 0, %s171
    %s172 = sphi 0, %s169
    %s173 = sphi 0, %s172
    %s189 = sphi 0, %s173
  $region4: #{scn_forward.13} parent=0 // loop_header_branch
    %15 = sbr.rel (%p13) target = $region8
  $region5: #{scn_forward.13} parent=0 // loop_body
    %s17 = ssub.s32 %s12, 1
    %s18 = ssub.s32 %s12, 2
    %s25 = sadd.s32 1, %s20
    %p26 = scmp.ge.s32.totalorder %s25, 3
    %s27 = scalar_select %p26, 0, %s25
    %s28 = sadd.s32 1, %s19
    %s29 = scalar_select %p26, %s28, %s19
    %p30 = scmp.ge.s32.totalorder %s29, 2
    %s31 = scalar_select %p30, 0, %s29
    %s32 = ssub.s32 %s19, %s31
    %s33 = ssub.s32 %s20, %s27
    %s34 = sor.u32 %s32, %s33
    %p35 = scmp.eq.s32.totalorder %s34, 0
    %s37 = sadd.s32 %s36, 1
    %s38 = scalar_select %p35, %s36, %s37
    %p41 = pneg %p35
    %p42 = scmp.eq.s32.totalorder %s12, 5
    %p43 = por %p41, %p42
    %p44 = scmp.ne.s32.totalorder %s36, %s39
    %p45 = scmp.eq.s32.totalorder %s12, 0
    %p46 = por %p44, %p45
    %p47 = scmp.ne.s32.totalorder %s36, %s39
    %p48 = scmp.eq.s32.totalorder %s17, 5
    %p49 = por %p47, %p48
    %p50 = scmp.ne.s32.totalorder %s39, %s40
    %p51 = scmp.eq.s32.totalorder %s17, 0
    %p52 = por %p50, %p51
    %p53 = scmp.ne.s32.totalorder %s39, %s40
    %p54 = scmp.eq.s32.totalorder %s18, 5
    %p55 = por %p53, %p54
    %p57 = scmp.ne.s32.totalorder %s40, %s56
    %p58 = scmp.eq.s32.totalorder %s18, 0
    %p59 = por %p57, %p58
    %s60 = sadd.s32 %s20, 1
    %s61 = sadd.s32 %s27, 1
    %s62 = ssub.s32 %s19, %s31
    %s63 = ssub.s32 %s60, %s61
    %s64 = sor.u32 %s62, %s63
    %p65 = scmp.eq.s32.totalorder %s64, 0
    %s67 = sadd.s32 %s66, 1
    %s68 = scalar_select %p65, %s66, %s67
    %p71 = pneg %p65
    %p72 = scmp.eq.s32.totalorder %s12, 5
    %p73 = por %p71, %p72
    %p74 = scmp.ne.s32.totalorder %s66, %s69
    %p75 = scmp.eq.s32.totalorder %s12, 0
    %p76 = por %p74, %p75
    %p77 = scmp.ne.s32.totalorder %s66, %s69
    %p78 = scmp.eq.s32.totalorder %s17, 5
    %p79 = por %p77, %p78
    %p80 = scmp.ne.s32.totalorder %s69, %s70
    %p81 = scmp.eq.s32.totalorder %s17, 0
    %p82 = por %p80, %p81
    %p83 = scmp.ne.s32.totalorder %s69, %s70
    %p84 = scmp.eq.s32.totalorder %s18, 5
    %p85 = por %p83, %p84
    %p87 = scmp.ne.s32.totalorder %s70, %s86
    %p88 = scmp.eq.s32.totalorder %s18, 0
    %p89 = por %p87, %p88
    %s91 = sadd.s32 %s90, 1
    %p94 = scmp.eq.s32.totalorder %s12, 5
    %p95 = scmp.ne.s32.totalorder %s90, %s92
    %p96 = scmp.eq.s32.totalorder %s12, 0
    %p97 = por %p95, %p96
    %p98 = scmp.ne.s32.totalorder %s90, %s92
    %p99 = scmp.eq.s32.totalorder %s17, 5
    %p100 = por %p98, %p99
    %p101 = scmp.ne.s32.totalorder %s92, %s93
    %p102 = scmp.eq.s32.totalorder %s17, 0
    %p103 = por %p101, %p102
    %p104 = scmp.ne.s32.totalorder %s92, %s93
    %p105 = scmp.eq.s32.totalorder %s18, 5
    %p106 = por %p104, %p105
    %p108 = scmp.ne.s32.totalorder %s93, %s107
    %p109 = scmp.eq.s32.totalorder %s18, 0
    %p110 = por %p108, %p109
    %s111 = ssub.s32 %s20, %s27
    %p112 = scmp.eq.s32.totalorder %s111, 0
    %s114 = sadd.s32 %s113, 1
    %s115 = scalar_select %p112, %s113, %s114
    %p118 = pneg %p112
    %p119 = scmp.eq.s32.totalorder %s12, 5
    %p120 = por %p118, %p119
    %p121 = scmp.ne.s32.totalorder %s113, %s116
    %p122 = scmp.eq.s32.totalorder %s12, 0
    %p123 = por %p121, %p122
    %p124 = scmp.ne.s32.totalorder %s113, %s116
    %p125 = scmp.eq.s32.totalorder %s17, 5
    %p126 = por %p124, %p125
    %p127 = scmp.ne.s32.totalorder %s116, %s117
    %p128 = scmp.eq.s32.totalorder %s17, 0
    %p129 = por %p127, %p128
    %p130 = scmp.ne.s32.totalorder %s116, %s117
    %p131 = scmp.eq.s32.totalorder %s18, 5
    %p132 = por %p130, %p131
    %p134 = scmp.ne.s32.totalorder %s117, %s133
    %p135 = scmp.eq.s32.totalorder %s18, 0
    %p136 = por %p134, %p135
    %s137 = ssub.s32 %s19, %s31
    %s138 = ssub.s32 %s20, %s27
    %s139 = sor.u32 %s137, %s138
    %p140 = scmp.eq.s32.totalorder %s139, 0
    %s142 = sadd.s32 %s141, 1
    %s143 = scalar_select %p140, %s141, %s142
    %p146 = pneg %p140
    %p147 = scmp.eq.s32.totalorder %s12, 5
    %p148 = por %p146, %p147
    %p149 = scmp.ne.s32.totalorder %s141, %s144
    %p150 = scmp.eq.s32.totalorder %s12, 0
    %p151 = por %p149, %p150
    %p152 = scmp.ne.s32.totalorder %s141, %s144
    %p153 = scmp.eq.s32.totalorder %s17, 5
    %p154 = por %p152, %p153
    %p155 = scmp.ne.s32.totalorder %s144, %s145
    %p156 = scmp.eq.s32.totalorder %s17, 0
    %p157 = por %p155, %p156
    %p158 = scmp.ne.s32.totalorder %s144, %s145
    %p159 = scmp.eq.s32.totalorder %s18, 5
    %p160 = por %p158, %p159
    %p162 = scmp.ne.s32.totalorder %s145, %s161
    %p163 = scmp.eq.s32.totalorder %s18, 0
    %p164 = por %p162, %p163
    %s165 = ssub.s32 %s19, %s31
    %s166 = ssub.s32 %s20, %s27
    %s167 = sor.u32 %s165, %s166
    %p168 = scmp.eq.s32.totalorder %s167, 0
    %s170 = sadd.s32 %s169, 1
    %s171 = scalar_select %p168, %s169, %s170
    %p174 = pneg %p168
    %p175 = scmp.eq.s32.totalorder %s12, 5
    %p176 = por %p174, %p175
    %p177 = scmp.ne.s32.totalorder %s169, %s172
    %p178 = scmp.eq.s32.totalorder %s12, 0
    %p179 = por %p177, %p178
    %p180 = scmp.ne.s32.totalorder %s169, %s172
    %p181 = scmp.eq.s32.totalorder %s17, 5
    %p182 = por %p180, %p181
    %p183 = scmp.ne.s32.totalorder %s172, %s173
    %p184 = scmp.eq.s32.totalorder %s17, 0
    %p185 = por %p183, %p184
    %p186 = scmp.ne.s32.totalorder %s172, %s173
    %p187 = scmp.eq.s32.totalorder %s18, 5
    %p188 = por %p186, %p187
    %p190 = scmp.ne.s32.totalorder %s173, %s189
    %p191 = scmp.eq.s32.totalorder %s18, 0
    %p192 = por %p190, %p191
    %p193 = scmp.le.s32.totalorder 1, %s12
    %p194 = scmp.lt.s32.totalorder %s12, 7
    %p195 = pnand %p193, %p194
    %p196 = pneg %p195
    // Predicated region
    $region9: #{scn_forward.13} parent=5 // pred_check
      _
    $region10: #{scn_forward.13} parent=5 // pred_check_branch
      %198 = sbr.rel (%p195) target = $region12
    $region11: #{scn_forward.13} parent=5 // pred_region
      %s199 = ssub.s32 %s12, 1
      // Predicated region
      $region13: #{scn_forward.13} parent=11 // pred_check
        %p200 = pneg %p103
      $region14: #{scn_forward.13} parent=11 // pred_check_branch
        %202 = sbr.rel (%p200) target = $region16
      $region15: #{scn_forward.13} parent=11 // pred_region
        _
      $region16: #{scn_forward.13} parent=11 // pred_fallthru
        _
    $region12: #{scn_forward.13} parent=5 // pred_fallthru
      _
    %p203 = scmp.lt.s32.totalorder %s12, 6
    // Predicated region
    $region17: #{scn_forward.13} parent=5 // pred_check
      %p204 = pneg %p203
    $region18: #{scn_forward.13} parent=5 // pred_check_branch
      %206 = sbr.rel (%p204) target = $region20
    $region19: #{scn_forward.13} parent=5 // pred_region
      // Predicated region
      $region21: #{scn_forward.13} parent=19 // pred_check
        %p207 = pneg %p46
      $region22: #{scn_forward.13} parent=19 // pred_check_branch
        %209 = sbr.rel (%p207) target = $region24
      $region23: #{scn_forward.13} parent=19 // pred_region
        %p210 = scmp.lt.s32.totalorder %s19, 1
        %s211 = scalar_select %p210, %s19, 1
        %p212 = scmp.lt.s32.totalorder %s20, 3
        %s213 = scalar_select %p212, %s20, 3
        %s214 = smul.addr %s213, 16
        %s215 = smul.addr %s211, 64
        %s216 = sadd.s32 %s214, %s215
        %s217 = smul.addr %s216, 4
        %s218 = scalar_lea.vmem %s0, %s217
      $region24: #{scn_forward.13} parent=19 // pred_fallthru
        _
      // Predicated region
      $region25: #{scn_forward.13} parent=19 // pred_check
        %p219 = pneg %p76
      $region26: #{scn_forward.13} parent=19 // pred_check_branch
        %221 = sbr.rel (%p219) target = $region28
      $region27: #{scn_forward.13} parent=19 // pred_region
        %s222 = sadd.s32 %s20, 1
        %p223 = scmp.lt.s32.totalorder %s19, 1
        %s224 = scalar_select %p223, %s19, 1
        %p225 = scmp.lt.s32.totalorder %s222, 3
        %s226 = scalar_select %p225, %s222, 3
        %s227 = smul.addr %s226, 16
        %s228 = smul.addr %s224, 64
        %s229 = sadd.s32 %s227, %s228
        %s230 = smul.addr %s229, 4
        %s231 = scalar_lea.vmem %s1, %s230
        %s232 = sadd.s32 %s20, 1
      $region28: #{scn_forward.13} parent=19 // pred_fallthru
        _
      // Predicated region
      $region29: #{scn_forward.13} parent=19 // pred_check
        %p233 = pneg %p123
      $region30: #{scn_forward.13} parent=19 // pred_check_branch
        %235 = sbr.rel (%p233) target = $region32
      $region31: #{scn_forward.13} parent=19 // pred_region
        %s236 = smul.u32 16, %s20
        %p237 = scmp.lt.s32.totalorder %s236, 47
        %s238 = scalar_select %p237, %s236, 47
        %s239 = scalar_lea.vmem %s3, %s238
        %s240 = smul.u32 16, %s20
      $region32: #{scn_forward.13} parent=19 // pred_fallthru
        _
    $region20: #{scn_forward.13} parent=5 // pred_fallthru
      _
    %p241 = scmp.le.s32.totalorder 1, %s12
    %p242 = scmp.lt.s32.totalorder %s12, 7
    %p243 = pnand %p241, %p242
    %p244 = pneg %p243
    // Predicated region
    $region33: #{scn_forward.13} parent=5 // pred_check
      _
    $region34: #{scn_forward.13} parent=5 // pred_check_branch
      %246 = sbr.rel (%p243) target = $region36
    $region35: #{scn_forward.13} parent=5 // pred_region
      %s247 = ssub.s32 %s12, 1
      %p248 = scmp.lt.s32.totalorder %s21, 1
      %s249 = scalar_select %p248, %s21, 1
      %p250 = scmp.lt.s32.totalorder %s22, 3
      %s251 = scalar_select %p250, %s22, 3
      %s252 = smul.addr %s251, 16
      %s253 = smul.addr %s249, 64
      %s254 = sadd.s32 %s252, %s253
      %s255 = smul.addr %s254, 4
      %s256 = scalar_lea.vmem %s0, %s255
      %p257 = pneg %p52
      %p258 = pneg %p49
      %s259 = sadd.s32 %s22, 1
      %p260 = scmp.lt.s32.totalorder %s21, 1
      %s261 = scalar_select %p260, %s21, 1
      %p262 = scmp.lt.s32.totalorder %s259, 3
      %s263 = scalar_select %p262, %s259, 3
      %s264 = smul.addr %s263, 16
      %s265 = smul.addr %s261, 64
      %s266 = sadd.s32 %s264, %s265
      %s267 = smul.addr %s266, 4
      %s268 = scalar_lea.vmem %s1, %s267
      %p269 = pneg %p82
      %p270 = pneg %p79
      %p271 = pneg %p103
      %p272 = pneg %p100
      %s273 = smul.u32 16, %s22
      %p274 = scmp.lt.s32.totalorder %s273, 47
      %s275 = scalar_select %p274, %s273, 47
      %s276 = scalar_lea.vmem %s3, %s275
      %p277 = pneg %p129
      %p278 = pneg %p126
      %p279 = pneg %p157
      %p280 = pneg %p154
      %s281 = smul.u32 16, %s22
      %p282 = scmp.lt.s32.totalorder %s21, 1
      %s283 = scalar_select %p282, %s21, 1
      %p284 = scmp.lt.s32.totalorder %s281, 47
      %s285 = scalar_select %p284, %s281, 47
      %s286 = smul.addr %s283, 48
      %s287 = sadd.s32 %s285, %s286
      %s288 = smul.addr %s287, 4
      %s289 = scalar_lea.vmem %s4, %s288
      %p290 = pneg %p185
      %p291 = pneg %p182
      %p292 = scmp.lt.s32.totalorder %s21, 1
      %s293 = scalar_select %p292, %s21, 1
      %p294 = scmp.lt.s32.totalorder %s22, 2
      %s295 = scalar_select %p294, %s22, 2
      %s296 = smul.addr %s293, 3
      %s297 = sadd.s32 %s295, %s296
      %s298 = smul.addr %s297, 8
      %s299 = scalar_lea.vmem %s5, %s298
      %p300 = scmp.lt.s32.totalorder %s21, 1
      %s301 = scalar_select %p300, %s21, 1
      %p302 = scmp.lt.s32.totalorder %s22, 3
      %s303 = scalar_select %p302, %s22, 3
      %s304 = smul.addr %s303, 16
      %s305 = smul.addr %s301, 64
      %s306 = sadd.s32 %s304, %s305
      %s307 = smul.addr %s306, 4
      %s308 = scalar_lea.vmem %s0, %s307
      %s309 = sadd.s32 %s22, 1
      %p310 = scmp.lt.s32.totalorder %s21, 1
      %s311 = scalar_select %p310, %s21, 1
      %p312 = scmp.lt.s32.totalorder %s309, 3
      %s313 = scalar_select %p312, %s309, 3
      %s314 = smul.addr %s313, 16
      %s315 = smul.addr %s311, 64
      %s316 = sadd.s32 %s314, %s315
      %s317 = smul.addr %s316, 4
      %s318 = scalar_lea.vmem %s1, %s317
      %s319 = sadd.s32 %s22, 1
      %s320 = smul.u32 16, %s22
      %p321 = scmp.lt.s32.totalorder %s320, 47
      %s322 = scalar_select %p321, %s320, 47
      %s323 = scalar_lea.vmem %s3, %s322
      %s324 = smul.u32 16, %s22
      %s325 = smul.u32 16, %s22
      %p326 = scmp.lt.s32.totalorder %s21, 1
      %s327 = scalar_select %p326, %s21, 1
      %p328 = scmp.lt.s32.totalorder %s325, 47
      %s329 = scalar_select %p328, %s325, 47
      %s330 = smul.addr %s327, 48
      %s331 = sadd.s32 %s329, %s330
      %s332 = smul.addr %s331, 4
      %s333 = scalar_lea.vmem %s4, %s332
      %s334 = smul.u32 16, %s22
      %p335 = scmp.lt.s32.totalorder %s21, 1
      %s336 = scalar_select %p335, %s21, 1
      %p337 = scmp.lt.s32.totalorder %s22, 2
      %s338 = scalar_select %p337, %s22, 2
      %s339 = smul.addr %s336, 3
      %s340 = sadd.s32 %s338, %s339
      %s341 = smul.addr %s340, 8
      %s342 = scalar_lea.vmem %s5, %s341
      %v343 = vld [vmem:[%s308] sm:$0xff]
      %v344 = vld [vmem:[%s308 + $0x8] sm:$0xff]
      %v345 = vld [vmem:[%s308 + $0x10] sm:$0xff]
      %v346 = vld [vmem:[%s308 + $0x18] sm:$0xff]
      %v347 = vld [vmem:[%s308 + $0x20] sm:$0xff]
      %v348 = vld [vmem:[%s308 + $0x28] sm:$0xff]
      %v349 = vld [vmem:[%s308 + $0x30] sm:$0xff]
      %v350 = vld [vmem:[%s308 + $0x38] sm:$0xff]
      %351 = vst [vmem:[#allocation2] sm:$0xff] %v343
      %352 = vst [vmem:[#allocation2 + $0x8] sm:$0xff] %v344
      %353 = vst [vmem:[#allocation2 + $0x10] sm:$0xff] %v345
      %354 = vst [vmem:[#allocation2 + $0x18] sm:$0xff] %v346
      %355 = vst [vmem:[#allocation2 + $0x20] sm:$0xff] %v347
      %356 = vst [vmem:[#allocation2 + $0x28] sm:$0xff] %v348
      %357 = vst [vmem:[#allocation2 + $0x30] sm:$0xff] %v349
      %358 = vst [vmem:[#allocation2 + $0x38] sm:$0xff] %v350
      %v359 = vld [vmem:[%s318] sm:$0xff]
      %v360 = vld [vmem:[%s318 + $0x8] sm:$0xff]
      %v361 = vld [vmem:[%s318 + $0x10] sm:$0xff]
      %v362 = vld [vmem:[%s318 + $0x18] sm:$0xff]
      %v363 = vld [vmem:[%s318 + $0x20] sm:$0xff]
      %v364 = vld [vmem:[%s318 + $0x28] sm:$0xff]
      %v365 = vld [vmem:[%s318 + $0x30] sm:$0xff]
      %v366 = vld [vmem:[%s318 + $0x38] sm:$0xff]
      %367 = vst [vmem:[#allocation2 + $0x40] sm:$0xff] %v359
      %368 = vst [vmem:[#allocation2 + $0x48] sm:$0xff] %v360
      %369 = vst [vmem:[#allocation2 + $0x50] sm:$0xff] %v361
      %370 = vst [vmem:[#allocation2 + $0x58] sm:$0xff] %v362
      %371 = vst [vmem:[#allocation2 + $0x60] sm:$0xff] %v363
      %372 = vst [vmem:[#allocation2 + $0x68] sm:$0xff] %v364
      %373 = vst [vmem:[#allocation2 + $0x70] sm:$0xff] %v365
      %374 = vst [vmem:[#allocation2 + $0x78] sm:$0xff] %v366
      %v375 = vld [vmem:[#allocation2] sm:$0xff]
      %v376 = vld [vmem:[#allocation2 + $0x8] sm:$0xff]
      %v377 = vld [vmem:[#allocation2 + $0x10] sm:$0xff]
      %v378 = vld [vmem:[#allocation2 + $0x18] sm:$0xff]
      %v379 = vld [vmem:[#allocation2 + $0x20] sm:$0xff]
      %v380 = vld [vmem:[#allocation2 + $0x28] sm:$0xff]
      %v381 = vld [vmem:[#allocation2 + $0x30] sm:$0xff]
      %v382 = vld [vmem:[#allocation2 + $0x38] sm:$0xff]
      %v383 = vunpack.c.l.bf16 %v375
      %v384 = vunpack.c.h.bf16 %v375
      %v385 = vunpack.c.l.bf16 %v376
      %v386 = vunpack.c.h.bf16 %v376
      %v387 = vunpack.c.l.bf16 %v377
      %v388 = vunpack.c.h.bf16 %v377
      %v389 = vunpack.c.l.bf16 %v378
      %v390 = vunpack.c.h.bf16 %v378
      %v391 = vunpack.c.l.bf16 %v379
      %v392 = vunpack.c.h.bf16 %v379
      %v393 = vunpack.c.l.bf16 %v380
      %v394 = vunpack.c.h.bf16 %v380
      %v395 = vunpack.c.l.bf16 %v381
      %v396 = vunpack.c.h.bf16 %v381
      %v397 = vunpack.c.l.bf16 %v382
      %v398 = vunpack.c.h.bf16 %v382
      %399 = vst [vmem:[#allocation3] sm:$0xff] %v383
      %400 = vst [vmem:[#allocation3 + $0x8] sm:$0xff] %v384
      %401 = vst [vmem:[#allocation3 + $0x10] sm:$0xff] %v385
      %402 = vst [vmem:[#allocation3 + $0x18] sm:$0xff] %v386
      %403 = vst [vmem:[#allocation3 + $0x20] sm:$0xff] %v387
      %404 = vst [vmem:[#allocation3 + $0x28] sm:$0xff] %v388
      %405 = vst [vmem:[#allocation3 + $0x30] sm:$0xff] %v389
      %406 = vst [vmem:[#allocation3 + $0x38] sm:$0xff] %v390
      %407 = vst [vmem:[#allocation3 + $0x40] sm:$0xff] %v391
      %408 = vst [vmem:[#allocation3 + $0x48] sm:$0xff] %v392
      %409 = vst [vmem:[#allocation3 + $0x50] sm:$0xff] %v393
      %410 = vst [vmem:[#allocation3 + $0x58] sm:$0xff] %v394
      %411 = vst [vmem:[#allocation3 + $0x60] sm:$0xff] %v395
      %412 = vst [vmem:[#allocation3 + $0x68] sm:$0xff] %v396
      %413 = vst [vmem:[#allocation3 + $0x70] sm:$0xff] %v397
      %414 = vst [vmem:[#allocation3 + $0x78] sm:$0xff] %v398
      %v415 = vld [vmem:[#allocation2] sm:$0xff]
      %v416 = vld [vmem:[#allocation2 + $0x8] sm:$0xff]
      %v417 = vld [vmem:[#allocation2 + $0x10] sm:$0xff]
      %v418 = vld [vmem:[#allocation2 + $0x18] sm:$0xff]
      %v419 = vld [vmem:[#allocation2 + $0x20] sm:$0xff]
      %v420 = vld [vmem:[#allocation2 + $0x28] sm:$0xff]
      %v421 = vld [vmem:[#allocation2 + $0x30] sm:$0xff]
      %v422 = vld [vmem:[#allocation2 + $0x38] sm:$0xff]
      %v423 = vld [vmem:[#allocation2 + $0x40] sm:$0xf]
      %v424 = vunpack.c.l.bf16 %v415
      %v425 = vunpack.c.h.bf16 %v415
      %v426 = vunpack.c.l.bf16 %v416
      %v427 = vunpack.c.h.bf16 %v416
      %v428 = vunpack.c.l.bf16 %v417
      %v429 = vunpack.c.h.bf16 %v417
      %v430 = vunpack.c.l.bf16 %v418
      %v431 = vunpack.c.h.bf16 %v418
      %v432 = vunpack.c.l.bf16 %v419
      %v433 = vunpack.c.h.bf16 %v419
      %v434 = vunpack.c.l.bf16 %v420
      %v435 = vunpack.c.h.bf16 %v420
      %v436 = vunpack.c.l.bf16 %v421
      %v437 = vunpack.c.h.bf16 %v421
      %v438 = vunpack.c.l.bf16 %v422
      %v439 = vunpack.c.h.bf16 %v422
      %v440 = vunpack.c.l.bf16 %v423
      %458 = vrot.lane.b32.xlu0 %v424, 127
      %v459 = vpop.permute.xlu0 %458
      %460 = vrot.lane.b32.xlu0 %v425, 127
      %v461 = vpop.permute.xlu0 %460
      %462 = vrot.lane.b32.xlu0 %v426, 127
      %v463 = vpop.permute.xlu0 %462
      %464 = vrot.lane.b32.xlu0 %v427, 127
      %v465 = vpop.permute.xlu0 %464
      %466 = vrot.lane.b32.xlu0 %v428, 127
      %v467 = vpop.permute.xlu0 %466
      %468 = vrot.lane.b32.xlu0 %v429, 127
      %v469 = vpop.permute.xlu0 %468
      %470 = vrot.lane.b32.xlu0 %v430, 127
      %v471 = vpop.permute.xlu0 %470
      %472 = vrot.lane.b32.xlu0 %v431, 127
      %v473 = vpop.permute.xlu0 %472
      %474 = vrot.lane.b32.xlu0 %v432, 127
      %v475 = vpop.permute.xlu0 %474
      %476 = vrot.lane.b32.xlu0 %v433, 127
      %v477 = vpop.permute.xlu0 %476
      %478 = vrot.lane.b32.xlu0 %v434, 127
      %v479 = vpop.permute.xlu0 %478
      %480 = vrot.lane.b32.xlu0 %v435, 127
      %v481 = vpop.permute.xlu0 %480
      %482 = vrot.lane.b32.xlu0 %v436, 127
      %v483 = vpop.permute.xlu0 %482
      %484 = vrot.lane.b32.xlu0 %v437, 127
      %v485 = vpop.permute.xlu0 %484
      %486 = vrot.lane.b32.xlu0 %v438, 127
      %v487 = vpop.permute.xlu0 %486
      %488 = vrot.lane.b32.xlu0 %v439, 127
      %v489 = vpop.permute.xlu0 %488
      %490 = vrot.lane.b32.xlu0 %v440, 127
      %v491 = vpop.permute.xlu0 %490
      %vm492 = vcmask 1039360
      %v493 = vsel %vm492, %v459, %v461
      %v494 = vsel %vm492, %v461, %v463
      %v495 = vsel %vm492, %v463, %v465
      %v496 = vsel %vm492, %v465, %v467
      %v497 = vsel %vm492, %v467, %v469
      %v498 = vsel %vm492, %v469, %v471
      %v499 = vsel %vm492, %v471, %v473
      %v500 = vsel %vm492, %v473, %v475
      %v501 = vsel %vm492, %v475, %v477
      %v502 = vsel %vm492, %v477, %v479
      %v503 = vsel %vm492, %v479, %v481
      %v504 = vsel %vm492, %v481, %v483
      %v505 = vsel %vm492, %v483, %v485
      %v506 = vsel %vm492, %v485, %v487
      %v507 = vsel %vm492, %v487, %v489
      %v508 = vsel %vm492, %v489, %v491
      %525 = vst [vmem:[#allocation3 + $0x80] sm:$0xff] %v493
      %526 = vst [vmem:[#allocation3 + $0x88] sm:$0xff] %v494
      %527 = vst [vmem:[#allocation3 + $0x90] sm:$0xff] %v495
      %528 = vst [vmem:[#allocation3 + $0x98] sm:$0xff] %v496
      %529 = vst [vmem:[#allocation3 + $0xa0] sm:$0xff] %v497
      %530 = vst [vmem:[#allocation3 + $0xa8] sm:$0xff] %v498
      %531 = vst [vmem:[#allocation3 + $0xb0] sm:$0xff] %v499
      %532 = vst [vmem:[#allocation3 + $0xb8] sm:$0xff] %v500
      %533 = vst [vmem:[#allocation3 + $0xc0] sm:$0xff] %v501
      %534 = vst [vmem:[#allocation3 + $0xc8] sm:$0xff] %v502
      %535 = vst [vmem:[#allocation3 + $0xd0] sm:$0xff] %v503
      %536 = vst [vmem:[#allocation3 + $0xd8] sm:$0xff] %v504
      %537 = vst [vmem:[#allocation3 + $0xe0] sm:$0xff] %v505
      %538 = vst [vmem:[#allocation3 + $0xe8] sm:$0xff] %v506
      %539 = vst [vmem:[#allocation3 + $0xf0] sm:$0xff] %v507
      %540 = vst [vmem:[#allocation3 + $0xf8] sm:$0xff] %v508
      %v541 = vld [vmem:[#allocation2] sm:$0xff]
      %v542 = vld [vmem:[#allocation2 + $0x8] sm:$0xff]
      %v543 = vld [vmem:[#allocation2 + $0x10] sm:$0xff]
      %v544 = vld [vmem:[#allocation2 + $0x18] sm:$0xff]
      %v545 = vld [vmem:[#allocation2 + $0x20] sm:$0xff]
      %v546 = vld [vmem:[#allocation2 + $0x28] sm:$0xff]
      %v547 = vld [vmem:[#allocation2 + $0x30] sm:$0xff]
      %v548 = vld [vmem:[#allocation2 + $0x38] sm:$0xff]
      %v549 = vld [vmem:[#allocation2 + $0x40] sm:$0xf]
      %v550 = vunpack.c.l.bf16 %v541
      %v551 = vunpack.c.h.bf16 %v541
      %v552 = vunpack.c.l.bf16 %v542
      %v553 = vunpack.c.h.bf16 %v542
      %v554 = vunpack.c.l.bf16 %v543
      %v555 = vunpack.c.h.bf16 %v543
      %v556 = vunpack.c.l.bf16 %v544
      %v557 = vunpack.c.h.bf16 %v544
      %v558 = vunpack.c.l.bf16 %v545
      %v559 = vunpack.c.h.bf16 %v545
      %v560 = vunpack.c.l.bf16 %v546
      %v561 = vunpack.c.h.bf16 %v546
      %v562 = vunpack.c.l.bf16 %v547
      %v563 = vunpack.c.h.bf16 %v547
      %v564 = vunpack.c.l.bf16 %v548
      %v565 = vunpack.c.h.bf16 %v548
      %v566 = vunpack.c.l.bf16 %v549
      %584 = vrot.lane.b32.xlu0 %v550, 126
      %v585 = vpop.permute.xlu0 %584
      %586 = vrot.lane.b32.xlu0 %v551, 126
      %v587 = vpop.permute.xlu0 %586
      %588 = vrot.lane.b32.xlu0 %v552, 126
      %v589 = vpop.permute.xlu0 %588
      %590 = vrot.lane.b32.xlu0 %v553, 126
      %v591 = vpop.permute.xlu0 %590
      %592 = vrot.lane.b32.xlu0 %v554, 126
      %v593 = vpop.permute.xlu0 %592
      %594 = vrot.lane.b32.xlu0 %v555, 126
      %v595 = vpop.permute.xlu0 %594
      %596 = vrot.lane.b32.xlu0 %v556, 126
      %v597 = vpop.permute.xlu0 %596
      %598 = vrot.lane.b32.xlu0 %v557, 126
      %v599 = vpop.permute.xlu0 %598
      %600 = vrot.lane.b32.xlu0 %v558, 126
      %v601 = vpop.permute.xlu0 %600
      %602 = vrot.lane.b32.xlu0 %v559, 126
      %v603 = vpop.permute.xlu0 %602
      %604 = vrot.lane.b32.xlu0 %v560, 126
      %v605 = vpop.permute.xlu0 %604
      %606 = vrot.lane.b32.xlu0 %v561, 126
      %v607 = vpop.permute.xlu0 %606
      %608 = vrot.lane.b32.xlu0 %v562, 126
      %v609 = vpop.permute.xlu0 %608
      %610 = vrot.lane.b32.xlu0 %v563, 126
      %v611 = vpop.permute.xlu0 %610
      %612 = vrot.lane.b32.xlu0 %v564, 126
      %v613 = vpop.permute.xlu0 %612
      %614 = vrot.lane.b32.xlu0 %v565, 126
      %v615 = vpop.permute.xlu0 %614
      %616 = vrot.lane.b32.xlu0 %v566, 126
      %v617 = vpop.permute.xlu0 %616
      %vm618 = vcmask 1031168
      %v619 = vsel %vm618, %v585, %v587
      %v620 = vsel %vm618, %v587, %v589
      %v621 = vsel %vm618, %v589, %v591
      %v622 = vsel %vm618, %v591, %v593
      %v623 = vsel %vm618, %v593, %v595
      %v624 = vsel %vm618, %v595, %v597
      %v625 = vsel %vm618, %v597, %v599
      %v626 = vsel %vm618, %v599, %v601
      %v627 = vsel %vm618, %v601, %v603
      %v628 = vsel %vm618, %v603, %v605
      %v629 = vsel %vm618, %v605, %v607
      %v630 = vsel %vm618, %v607, %v609
      %v631 = vsel %vm618, %v609, %v611
      %v632 = vsel %vm618, %v611, %v613
      %v633 = vsel %vm618, %v613, %v615
      %v634 = vsel %vm618, %v615, %v617
      %651 = vst [vmem:[#allocation3 + $0x100] sm:$0xff] %v619
      %652 = vst [vmem:[#allocation3 + $0x108] sm:$0xff] %v620
      %653 = vst [vmem:[#allocation3 + $0x110] sm:$0xff] %v621
      %654 = vst [vmem:[#allocation3 + $0x118] sm:$0xff] %v622
      %655 = vst [vmem:[#allocation3 + $0x120] sm:$0xff] %v623
      %656 = vst [vmem:[#allocation3 + $0x128] sm:$0xff] %v624
      %657 = vst [vmem:[#allocation3 + $0x130] sm:$0xff] %v625
      %658 = vst [vmem:[#allocation3 + $0x138] sm:$0xff] %v626
      %659 = vst [vmem:[#allocation3 + $0x140] sm:$0xff] %v627
      %660 = vst [vmem:[#allocation3 + $0x148] sm:$0xff] %v628
      %661 = vst [vmem:[#allocation3 + $0x150] sm:$0xff] %v629
      %662 = vst [vmem:[#allocation3 + $0x158] sm:$0xff] %v630
      %663 = vst [vmem:[#allocation3 + $0x160] sm:$0xff] %v631
      %664 = vst [vmem:[#allocation3 + $0x168] sm:$0xff] %v632
      %665 = vst [vmem:[#allocation3 + $0x170] sm:$0xff] %v633
      %666 = vst [vmem:[#allocation3 + $0x178] sm:$0xff] %v634
      %v667 = vld [vmem:[#allocation2] sm:$0xff]
      %v668 = vld [vmem:[#allocation2 + $0x8] sm:$0xff]
      %v669 = vld [vmem:[#allocation2 + $0x10] sm:$0xff]
      %v670 = vld [vmem:[#allocation2 + $0x18] sm:$0xff]
      %v671 = vld [vmem:[#allocation2 + $0x20] sm:$0xff]
      %v672 = vld [vmem:[#allocation2 + $0x28] sm:$0xff]
      %v673 = vld [vmem:[#allocation2 + $0x30] sm:$0xff]
      %v674 = vld [vmem:[#allocation2 + $0x38] sm:$0xff]
      %v675 = vld [vmem:[#allocation2 + $0x40] sm:$0xf]
      %v676 = vunpack.c.l.bf16 %v667
      %v677 = vunpack.c.h.bf16 %v667
      %v678 = vunpack.c.l.bf16 %v668
      %v679 = vunpack.c.h.bf16 %v668
      %v680 = vunpack.c.l.bf16 %v669
      %v681 = vunpack.c.h.bf16 %v669
      %v682 = vunpack.c.l.bf16 %v670
      %v683 = vunpack.c.h.bf16 %v670
      %v684 = vunpack.c.l.bf16 %v671
      %v685 = vunpack.c.h.bf16 %v671
      %v686 = vunpack.c.l.bf16 %v672
      %v687 = vunpack.c.h.bf16 %v672
      %v688 = vunpack.c.l.bf16 %v673
      %v689 = vunpack.c.h.bf16 %v673
      %v690 = vunpack.c.l.bf16 %v674
      %v691 = vunpack.c.h.bf16 %v674
      %v692 = vunpack.c.l.bf16 %v675
      %710 = vrot.lane.b32.xlu0 %v676, 110
      %v711 = vpop.permute.xlu0 %710
      %712 = vrot.lane.b32.xlu0 %v677, 110
      %v713 = vpop.permute.xlu0 %712
      %714 = vrot.lane.b32.xlu0 %v678, 110
      %v715 = vpop.permute.xlu0 %714
      %716 = vrot.lane.b32.xlu0 %v679, 110
      %v717 = vpop.permute.xlu0 %716
      %718 = vrot.lane.b32.xlu0 %v680, 110
      %v719 = vpop.permute.xlu0 %718
      %720 = vrot.lane.b32.xlu0 %v681, 110
      %v721 = vpop.permute.xlu0 %720
      %722 = vrot.lane.b32.xlu0 %v682, 110
      %v723 = vpop.permute.xlu0 %722
      %724 = vrot.lane.b32.xlu0 %v683, 110
      %v725 = vpop.permute.xlu0 %724
      %726 = vrot.lane.b32.xlu0 %v684, 110
      %v727 = vpop.permute.xlu0 %726
      %728 = vrot.lane.b32.xlu0 %v685, 110
      %v729 = vpop.permute.xlu0 %728
      %730 = vrot.lane.b32.xlu0 %v686, 110
      %v731 = vpop.permute.xlu0 %730
      %732 = vrot.lane.b32.xlu0 %v687, 110
      %v733 = vpop.permute.xlu0 %732
      %734 = vrot.lane.b32.xlu0 %v688, 110
      %v735 = vpop.permute.xlu0 %734
      %736 = vrot.lane.b32.xlu0 %v689, 110
      %v737 = vpop.permute.xlu0 %736
      %738 = vrot.lane.b32.xlu0 %v690, 110
      %v739 = vpop.permute.xlu0 %738
      %740 = vrot.lane.b32.xlu0 %v691, 110
      %v741 = vpop.permute.xlu0 %740
      %742 = vrot.lane.b32.xlu0 %v692, 110
      %v743 = vpop.permute.xlu0 %742
      %vm744 = vcmask 900096
      %v745 = vsel %vm744, %v711, %v713
      %v746 = vsel %vm744, %v713, %v715
      %v747 = vsel %vm744, %v715, %v717
      %v748 = vsel %vm744, %v717, %v719
      %v749 = vsel %vm744, %v719, %v721
      %v750 = vsel %vm744, %v721, %v723
      %v751 = vsel %vm744, %v723, %v725
      %v752 = vsel %vm744, %v725, %v727
      %v753 = vsel %vm744, %v727, %v729
      %v754 = vsel %vm744, %v729, %v731
      %v755 = vsel %vm744, %v731, %v733
      %v756 = vsel %vm744, %v733, %v735
      %v757 = vsel %vm744, %v735, %v737
      %v758 = vsel %vm744, %v737, %v739
      %v759 = vsel %vm744, %v739, %v741
      %v760 = vsel %vm744, %v741, %v743
      %777 = vst [vmem:[#allocation3 + $0x180] sm:$0xff] %v745
      %778 = vst [vmem:[#allocation3 + $0x188] sm:$0xff] %v746
      %779 = vst [vmem:[#allocation3 + $0x190] sm:$0xff] %v747
      %780 = vst [vmem:[#allocation3 + $0x198] sm:$0xff] %v748
      %781 = vst [vmem:[#allocation3 + $0x1a0] sm:$0xff] %v749
      %782 = vst [vmem:[#allocation3 + $0x1a8] sm:$0xff] %v750
      %783 = vst [vmem:[#allocation3 + $0x1b0] sm:$0xff] %v751
      %784 = vst [vmem:[#allocation3 + $0x1b8] sm:$0xff] %v752
      %785 = vst [vmem:[#allocation3 + $0x1c0] sm:$0xff] %v753
      %786 = vst [vmem:[#allocation3 + $0x1c8] sm:$0xff] %v754
      %787 = vst [vmem:[#allocation3 + $0x1d0] sm:$0xff] %v755
      %788 = vst [vmem:[#allocation3 + $0x1d8] sm:$0xff] %v756
      %789 = vst [vmem:[#allocation3 + $0x1e0] sm:$0xff] %v757
      %790 = vst [vmem:[#allocation3 + $0x1e8] sm:$0xff] %v758
      %791 = vst [vmem:[#allocation3 + $0x1f0] sm:$0xff] %v759
      %792 = vst [vmem:[#allocation3 + $0x1f8] sm:$0xff] %v760
      %v793 = vld [vmem:[#allocation2] sm:$0xff]
      %v794 = vld [vmem:[#allocation2 + $0x8] sm:$0xff]
      %v795 = vld [vmem:[#allocation2 + $0x10] sm:$0xff]
      %v796 = vld [vmem:[#allocation2 + $0x18] sm:$0xff]
      %v797 = vld [vmem:[#allocation2 + $0x20] sm:$0xff]
      %v798 = vld [vmem:[#allocation2 + $0x28] sm:$0xff]
      %v799 = vld [vmem:[#allocation2 + $0x30] sm:$0xff]
      %v800 = vld [vmem:[#allocation2 + $0x38] sm:$0xff]
      %v801 = vld [vmem:[#allocation2 + $0x40] sm:$0xf]
      %v802 = vunpack.c.l.bf16 %v793
      %v803 = vunpack.c.h.bf16 %v793
      %v804 = vunpack.c.l.bf16 %v794
      %v805 = vunpack.c.h.bf16 %v794
      %v806 = vunpack.c.l.bf16 %v795
      %v807 = vunpack.c.h.bf16 %v795
      %v808 = vunpack.c.l.bf16 %v796
      %v809 = vunpack.c.h.bf16 %v796
      %v810 = vunpack.c.l.bf16 %v797
      %v811 = vunpack.c.h.bf16 %v797
      %v812 = vunpack.c.l.bf16 %v798
      %v813 = vunpack.c.h.bf16 %v798
      %v814 = vunpack.c.l.bf16 %v799
      %v815 = vunpack.c.h.bf16 %v799
      %v816 = vunpack.c.l.bf16 %v800
      %v817 = vunpack.c.h.bf16 %v800
      %v818 = vunpack.c.l.bf16 %v801
      %836 = vrot.lane.b32.xlu0 %v802, 109
      %v837 = vpop.permute.xlu0 %836
      %838 = vrot.lane.b32.xlu0 %v803, 109
      %v839 = vpop.permute.xlu0 %838
      %840 = vrot.lane.b32.xlu0 %v804, 109
      %v841 = vpop.permute.xlu0 %840
      %842 = vrot.lane.b32.xlu0 %v805, 109
      %v843 = vpop.permute.xlu0 %842
      %844 = vrot.lane.b32.xlu0 %v806, 109
      %v845 = vpop.permute.xlu0 %844
      %846 = vrot.lane.b32.xlu0 %v807, 109
      %v847 = vpop.permute.xlu0 %846
      %848 = vrot.lane.b32.xlu0 %v808, 109
      %v849 = vpop.permute.xlu0 %848
      %850 = vrot.lane.b32.xlu0 %v809, 109
      %v851 = vpop.permute.xlu0 %850
      %852 = vrot.lane.b32.xlu0 %v810, 109
      %v853 = vpop.permute.xlu0 %852
      %854 = vrot.lane.b32.xlu0 %v811, 109
      %v855 = vpop.permute.xlu0 %854
      %856 = vrot.lane.b32.xlu0 %v812, 109
      %v857 = vpop.permute.xlu0 %856
      %858 = vrot.lane.b32.xlu0 %v813, 109
      %v859 = vpop.permute.xlu0 %858
      %860 = vrot.lane.b32.xlu0 %v814, 109
      %v861 = vpop.permute.xlu0 %860
      %862 = vrot.lane.b32.xlu0 %v815, 109
      %v863 = vpop.permute.xlu0 %862
      %864 = vrot.lane.b32.xlu0 %v816, 109
      %v865 = vpop.permute.xlu0 %864
      %866 = vrot.lane.b32.xlu0 %v817, 109
      %v867 = vpop.permute.xlu0 %866
      %868 = vrot.lane.b32.xlu0 %v818, 109
      %v869 = vpop.permute.xlu0 %868
      %vm870 = vcmask 891904
      %v871 = vsel %vm870, %v837, %v839
      %v872 = vsel %vm870, %v839, %v841
      %v873 = vsel %vm870, %v841, %v843
      %v874 = vsel %vm870, %v843, %v845
      %v875 = vsel %vm870, %v845, %v847
      %v876 = vsel %vm870, %v847, %v849
      %v877 = vsel %vm870, %v849, %v851
      %v878 = vsel %vm870, %v851, %v853
      %v879 = vsel %vm870, %v853, %v855
      %v880 = vsel %vm870, %v855, %v857
      %v881 = vsel %vm870, %v857, %v859
      %v882 = vsel %vm870, %v859, %v861
      %v883 = vsel %vm870, %v861, %v863
      %v884 = vsel %vm870, %v863, %v865
      %v885 = vsel %vm870, %v865, %v867
      %v886 = vsel %vm870, %v867, %v869
      %903 = vst [vmem:[#allocation3 + $0x200] sm:$0xff] %v871
      %904 = vst [vmem:[#allocation3 + $0x208] sm:$0xff] %v872
      %905 = vst [vmem:[#allocation3 + $0x210] sm:$0xff] %v873
      %906 = vst [vmem:[#allocation3 + $0x218] sm:$0xff] %v874
      %907 = vst [vmem:[#allocation3 + $0x220] sm:$0xff] %v875
      %908 = vst [vmem:[#allocation3 + $0x228] sm:$0xff] %v876
      %909 = vst [vmem:[#allocation3 + $0x230] sm:$0xff] %v877
      %910 = vst [vmem:[#allocation3 + $0x238] sm:$0xff] %v878
      %911 = vst [vmem:[#allocation3 + $0x240] sm:$0xff] %v879
      %912 = vst [vmem:[#allocation3 + $0x248] sm:$0xff] %v880
      %913 = vst [vmem:[#allocation3 + $0x250] sm:$0xff] %v881
      %914 = vst [vmem:[#allocation3 + $0x258] sm:$0xff] %v882
      %915 = vst [vmem:[#allocation3 + $0x260] sm:$0xff] %v883
      %916 = vst [vmem:[#allocation3 + $0x268] sm:$0xff] %v884
      %917 = vst [vmem:[#allocation3 + $0x270] sm:$0xff] %v885
      %918 = vst [vmem:[#allocation3 + $0x278] sm:$0xff] %v886
      %v919 = vld [vmem:[#allocation2] sm:$0xff]
      %v920 = vld [vmem:[#allocation2 + $0x8] sm:$0xff]
      %v921 = vld [vmem:[#allocation2 + $0x10] sm:$0xff]
      %v922 = vld [vmem:[#allocation2 + $0x18] sm:$0xff]
      %v923 = vld [vmem:[#allocation2 + $0x20] sm:$0xff]
      %v924 = vld [vmem:[#allocation2 + $0x28] sm:$0xff]
      %v925 = vld [vmem:[#allocation2 + $0x30] sm:$0xff]
      %v926 = vld [vmem:[#allocation2 + $0x38] sm:$0xff]
      %v927 = vld [vmem:[#allocation2 + $0x40] sm:$0xf]
      %v928 = vunpack.c.l.bf16 %v919
      %v929 = vunpack.c.h.bf16 %v919
      %v930 = vunpack.c.l.bf16 %v920
      %v931 = vunpack.c.h.bf16 %v920
      %v932 = vunpack.c.l.bf16 %v921
      %v933 = vunpack.c.h.bf16 %v921
      %v934 = vunpack.c.l.bf16 %v922
      %v935 = vunpack.c.h.bf16 %v922
      %v936 = vunpack.c.l.bf16 %v923
      %v937 = vunpack.c.h.bf16 %v923
      %v938 = vunpack.c.l.bf16 %v924
      %v939 = vunpack.c.h.bf16 %v924
      %v940 = vunpack.c.l.bf16 %v925
      %v941 = vunpack.c.h.bf16 %v925
      %v942 = vunpack.c.l.bf16 %v926
      %v943 = vunpack.c.h.bf16 %v926
      %v944 = vunpack.c.l.bf16 %v927
      %962 = vrot.lane.b32.xlu0 %v928, 108
      %v963 = vpop.permute.xlu0 %962
      %964 = vrot.lane.b32.xlu0 %v929, 108
      %v965 = vpop.permute.xlu0 %964
      %966 = vrot.lane.b32.xlu0 %v930, 108
      %v967 = vpop.permute.xlu0 %966
      %968 = vrot.lane.b32.xlu0 %v931, 108
      %v969 = vpop.permute.xlu0 %968
      %970 = vrot.lane.b32.xlu0 %v932, 108
      %v971 = vpop.permute.xlu0 %970
      %972 = vrot.lane.b32.xlu0 %v933, 108
      %v973 = vpop.permute.xlu0 %972
      %974 = vrot.lane.b32.xlu0 %v934, 108
      %v975 = vpop.permute.xlu0 %974
      %976 = vrot.lane.b32.xlu0 %v935, 108
      %v977 = vpop.permute.xlu0 %976
      %978 = vrot.lane.b32.xlu0 %v936, 108
      %v979 = vpop.permute.xlu0 %978
      %980 = vrot.lane.b32.xlu0 %v937, 108
      %v981 = vpop.permute.xlu0 %980
      %982 = vrot.lane.b32.xlu0 %v938, 108
      %v983 = vpop.permute.xlu0 %982
      %984 = vrot.lane.b32.xlu0 %v939, 108
      %v985 = vpop.permute.xlu0 %984
      %986 = vrot.lane.b32.xlu0 %v940, 108
      %v987 = vpop.permute.xlu0 %986
      %988 = vrot.lane.b32.xlu0 %v941, 108
      %v989 = vpop.permute.xlu0 %988
      %990 = vrot.lane.b32.xlu0 %v942, 108
      %v991 = vpop.permute.xlu0 %990
      %992 = vrot.lane.b32.xlu0 %v943, 108
      %v993 = vpop.permute.xlu0 %992
      %994 = vrot.lane.b32.xlu0 %v944, 108
      %v995 = vpop.permute.xlu0 %994
      %vm996 = vcmask 883712
      %v997 = vsel %vm996, %v963, %v965
      %v998 = vsel %vm996, %v965, %v967
      %v999 = vsel %vm996, %v967, %v969
      %v1000 = vsel %vm996, %v969, %v971
      %v1001 = vsel %vm996, %v971, %v973
      %v1002 = vsel %vm996, %v973, %v975
      %v1003 = vsel %vm996, %v975, %v977
      %v1004 = vsel %vm996, %v977, %v979
      %v1005 = vsel %vm996, %v979, %v981
      %v1006 = vsel %vm996, %v981, %v983
      %v1007 = vsel %vm996, %v983, %v985
      %v1008 = vsel %vm996, %v985, %v987
      %v1009 = vsel %vm996, %v987, %v989
      %v1010 = vsel %vm996, %v989, %v991
      %v1011 = vsel %vm996, %v991, %v993
      %v1012 = vsel %vm996, %v993, %v995
      %1029 = vst [vmem:[#allocation3 + $0x280] sm:$0xff] %v997
      %1030 = vst [vmem:[#allocation3 + $0x288] sm:$0xff] %v998
      %1031 = vst [vmem:[#allocation3 + $0x290] sm:$0xff] %v999
      %1032 = vst [vmem:[#allocation3 + $0x298] sm:$0xff] %v1000
      %1033 = vst [vmem:[#allocation3 + $0x2a0] sm:$0xff] %v1001
      %1034 = vst [vmem:[#allocation3 + $0x2a8] sm:$0xff] %v1002
      %1035 = vst [vmem:[#allocation3 + $0x2b0] sm:$0xff] %v1003
      %1036 = vst [vmem:[#allocation3 + $0x2b8] sm:$0xff] %v1004
      %1037 = vst [vmem:[#allocation3 + $0x2c0] sm:$0xff] %v1005
      %1038 = vst [vmem:[#allocation3 + $0x2c8] sm:$0xff] %v1006
      %1039 = vst [vmem:[#allocation3 + $0x2d0] sm:$0xff] %v1007
      %1040 = vst [vmem:[#allocation3 + $0x2d8] sm:$0xff] %v1008
      %1041 = vst [vmem:[#allocation3 + $0x2e0] sm:$0xff] %v1009
      %1042 = vst [vmem:[#allocation3 + $0x2e8] sm:$0xff] %v1010
      %1043 = vst [vmem:[#allocation3 + $0x2f0] sm:$0xff] %v1011
      %1044 = vst [vmem:[#allocation3 + $0x2f8] sm:$0xff] %v1012
      %v1045 = vld [vmem:[#allocation2] sm:$0xff]
      %v1046 = vld [vmem:[#allocation2 + $0x8] sm:$0xff]
      %v1047 = vld [vmem:[#allocation2 + $0x10] sm:$0xff]
      %v1048 = vld [vmem:[#allocation2 + $0x18] sm:$0xff]
      %v1049 = vld [vmem:[#allocation2 + $0x20] sm:$0xff]
      %v1050 = vld [vmem:[#allocation2 + $0x28] sm:$0xff]
      %v1051 = vld [vmem:[#allocation2 + $0x30] sm:$0xff]
      %v1052 = vld [vmem:[#allocation2 + $0x38] sm:$0xff]
      %v1053 = vld [vmem:[#allocation2 + $0x40] sm:$0xf]
      %v1054 = vunpack.c.l.bf16 %v1045
      %v1055 = vunpack.c.h.bf16 %v1045
      %v1056 = vunpack.c.l.bf16 %v1046
      %v1057 = vunpack.c.h.bf16 %v1046
      %v1058 = vunpack.c.l.bf16 %v1047
      %v1059 = vunpack.c.h.bf16 %v1047
      %v1060 = vunpack.c.l.bf16 %v1048
      %v1061 = vunpack.c.h.bf16 %v1048
      %v1062 = vunpack.c.l.bf16 %v1049
      %v1063 = vunpack.c.h.bf16 %v1049
      %v1064 = vunpack.c.l.bf16 %v1050
      %v1065 = vunpack.c.h.bf16 %v1050
      %v1066 = vunpack.c.l.bf16 %v1051
      %v1067 = vunpack.c.h.bf16 %v1051
      %v1068 = vunpack.c.l.bf16 %v1052
      %v1069 = vunpack.c.h.bf16 %v1052
      %v1070 = vunpack.c.l.bf16 %v1053
      %1088 = vrot.lane.b32.xlu0 %v1054, 92
      %v1089 = vpop.permute.xlu0 %1088
      %1090 = vrot.lane.b32.xlu0 %v1055, 92
      %v1091 = vpop.permute.xlu0 %1090
      %1092 = vrot.lane.b32.xlu0 %v1056, 92
      %v1093 = vpop.permute.xlu0 %1092
      %1094 = vrot.lane.b32.xlu0 %v1057, 92
      %v1095 = vpop.permute.xlu0 %1094
      %1096 = vrot.lane.b32.xlu0 %v1058, 92
      %v1097 = vpop.permute.xlu0 %1096
      %1098 = vrot.lane.b32.xlu0 %v1059, 92
      %v1099 = vpop.permute.xlu0 %1098
      %1100 = vrot.lane.b32.xlu0 %v1060, 92
      %v1101 = vpop.permute.xlu0 %1100
      %1102 = vrot.lane.b32.xlu0 %v1061, 92
      %v1103 = vpop.permute.xlu0 %1102
      %1104 = vrot.lane.b32.xlu0 %v1062, 92
      %v1105 = vpop.permute.xlu0 %1104
      %1106 = vrot.lane.b32.xlu0 %v1063, 92
      %v1107 = vpop.permute.xlu0 %1106
      %1108 = vrot.lane.b32.xlu0 %v1064, 92
      %v1109 = vpop.permute.xlu0 %1108
      %1110 = vrot.lane.b32.xlu0 %v1065, 92
      %v1111 = vpop.permute.xlu0 %1110
      %1112 = vrot.lane.b32.xlu0 %v1066, 92
      %v1113 = vpop.permute.xlu0 %1112
      %1114 = vrot.lane.b32.xlu0 %v1067, 92
      %v1115 = vpop.permute.xlu0 %1114
      %1116 = vrot.lane.b32.xlu0 %v1068, 92
      %v1117 = vpop.permute.xlu0 %1116
      %1118 = vrot.lane.b32.xlu0 %v1069, 92
      %v1119 = vpop.permute.xlu0 %1118
      %1120 = vrot.lane.b32.xlu0 %v1070, 92
      %v1121 = vpop.permute.xlu0 %1120
      %vm1122 = vcmask 752640
      %v1123 = vsel %vm1122, %v1089, %v1091
      %v1124 = vsel %vm1122, %v1091, %v1093
      %v1125 = vsel %vm1122, %v1093, %v1095
      %v1126 = vsel %vm1122, %v1095, %v1097
      %v1127 = vsel %vm1122, %v1097, %v1099
      %v1128 = vsel %vm1122, %v1099, %v1101
      %v1129 = vsel %vm1122, %v1101, %v1103
      %v1130 = vsel %vm1122, %v1103, %v1105
      %v1131 = vsel %vm1122, %v1105, %v1107
      %v1132 = vsel %vm1122, %v1107, %v1109
      %v1133 = vsel %vm1122, %v1109, %v1111
      %v1134 = vsel %vm1122, %v1111, %v1113
      %v1135 = vsel %vm1122, %v1113, %v1115
      %v1136 = vsel %vm1122, %v1115, %v1117
      %v1137 = vsel %vm1122, %v1117, %v1119
      %v1138 = vsel %vm1122, %v1119, %v1121
      %1155 = vst [vmem:[#allocation3 + $0x300] sm:$0xff] %v1123
      %1156 = vst [vmem:[#allocation3 + $0x308] sm:$0xff] %v1124
      %1157 = vst [vmem:[#allocation3 + $0x310] sm:$0xff] %v1125
      %1158 = vst [vmem:[#allocation3 + $0x318] sm:$0xff] %v1126
      %1159 = vst [vmem:[#allocation3 + $0x320] sm:$0xff] %v1127
      %1160 = vst [vmem:[#allocation3 + $0x328] sm:$0xff] %v1128
      %1161 = vst [vmem:[#allocation3 + $0x330] sm:$0xff] %v1129
      %1162 = vst [vmem:[#allocation3 + $0x338] sm:$0xff] %v1130
      %1163 = vst [vmem:[#allocation3 + $0x340] sm:$0xff] %v1131
      %1164 = vst [vmem:[#allocation3 + $0x348] sm:$0xff] %v1132
      %1165 = vst [vmem:[#allocation3 + $0x350] sm:$0xff] %v1133
      %1166 = vst [vmem:[#allocation3 + $0x358] sm:$0xff] %v1134
      %1167 = vst [vmem:[#allocation3 + $0x360] sm:$0xff] %v1135
      %1168 = vst [vmem:[#allocation3 + $0x368] sm:$0xff] %v1136
      %1169 = vst [vmem:[#allocation3 + $0x370] sm:$0xff] %v1137
      %1170 = vst [vmem:[#allocation3 + $0x378] sm:$0xff] %v1138
      %v1171 = vld [vmem:[#allocation2] sm:$0xff]
      %v1172 = vld [vmem:[#allocation2 + $0x8] sm:$0xff]
      %v1173 = vld [vmem:[#allocation2 + $0x10] sm:$0xff]
      %v1174 = vld [vmem:[#allocation2 + $0x18] sm:$0xff]
      %v1175 = vld [vmem:[#allocation2 + $0x20] sm:$0xff]
      %v1176 = vld [vmem:[#allocation2 + $0x28] sm:$0xff]
      %v1177 = vld [vmem:[#allocation2 + $0x30] sm:$0xff]
      %v1178 = vld [vmem:[#allocation2 + $0x38] sm:$0xff]
      %v1179 = vld [vmem:[#allocation2 + $0x40] sm:$0xf]
      %v1180 = vunpack.c.l.bf16 %v1171
      %v1181 = vunpack.c.h.bf16 %v1171
      %v1182 = vunpack.c.l.bf16 %v1172
      %v1183 = vunpack.c.h.bf16 %v1172
      %v1184 = vunpack.c.l.bf16 %v1173
      %v1185 = vunpack.c.h.bf16 %v1173
      %v1186 = vunpack.c.l.bf16 %v1174
      %v1187 = vunpack.c.h.bf16 %v1174
      %v1188 = vunpack.c.l.bf16 %v1175
      %v1189 = vunpack.c.h.bf16 %v1175
      %v1190 = vunpack.c.l.bf16 %v1176
      %v1191 = vunpack.c.h.bf16 %v1176
      %v1192 = vunpack.c.l.bf16 %v1177
      %v1193 = vunpack.c.h.bf16 %v1177
      %v1194 = vunpack.c.l.bf16 %v1178
      %v1195 = vunpack.c.h.bf16 %v1178
      %v1196 = vunpack.c.l.bf16 %v1179
      %1214 = vrot.lane.b32.xlu0 %v1180, 91
      %v1215 = vpop.permute.xlu0 %1214
      %1216 = vrot.lane.b32.xlu0 %v1181, 91
      %v1217 = vpop.permute.xlu0 %1216
      %1218 = vrot.lane.b32.xlu0 %v1182, 91
      %v1219 = vpop.permute.xlu0 %1218
      %1220 = vrot.lane.b32.xlu0 %v1183, 91
      %v1221 = vpop.permute.xlu0 %1220
      %1222 = vrot.lane.b32.xlu0 %v1184, 91
      %v1223 = vpop.permute.xlu0 %1222
      %1224 = vrot.lane.b32.xlu0 %v1185, 91
      %v1225 = vpop.permute.xlu0 %1224
      %1226 = vrot.lane.b32.xlu0 %v1186, 91
      %v1227 = vpop.permute.xlu0 %1226
      %1228 = vrot.lane.b32.xlu0 %v1187, 91
      %v1229 = vpop.permute.xlu0 %1228
      %1230 = vrot.lane.b32.xlu0 %v1188, 91
      %v1231 = vpop.permute.xlu0 %1230
      %1232 = vrot.lane.b32.xlu0 %v1189, 91
      %v1233 = vpop.permute.xlu0 %1232
      %1234 = vrot.lane.b32.xlu0 %v1190, 91
      %v1235 = vpop.permute.xlu0 %1234
      %1236 = vrot.lane.b32.xlu0 %v1191, 91
      %v1237 = vpop.permute.xlu0 %1236
      %1238 = vrot.lane.b32.xlu0 %v1192, 91
      %v1239 = vpop.permute.xlu0 %1238
      %1240 = vrot.lane.b32.xlu0 %v1193, 91
      %v1241 = vpop.permute.xlu0 %1240
      %1242 = vrot.lane.b32.xlu0 %v1194, 91
      %v1243 = vpop.permute.xlu0 %1242
      %1244 = vrot.lane.b32.xlu0 %v1195, 91
      %v1245 = vpop.permute.xlu0 %1244
      %1246 = vrot.lane.b32.xlu0 %v1196, 91
      %v1247 = vpop.permute.xlu0 %1246
      %vm1248 = vcmask 744448
      %v1249 = vsel %vm1248, %v1215, %v1217
      %v1250 = vsel %vm1248, %v1217, %v1219
      %v1251 = vsel %vm1248, %v1219, %v1221
      %v1252 = vsel %vm1248, %v1221, %v1223
      %v1253 = vsel %vm1248, %v1223, %v1225
      %v1254 = vsel %vm1248, %v1225, %v1227
      %v1255 = vsel %vm1248, %v1227, %v1229
      %v1256 = vsel %vm1248, %v1229, %v1231
      %v1257 = vsel %vm1248, %v1231, %v1233
      %v1258 = vsel %vm1248, %v1233, %v1235
      %v1259 = vsel %vm1248, %v1235, %v1237
      %v1260 = vsel %vm1248, %v1237, %v1239
      %v1261 = vsel %vm1248, %v1239, %v1241
      %v1262 = vsel %vm1248, %v1241, %v1243
      %v1263 = vsel %vm1248, %v1243, %v1245
      %v1264 = vsel %vm1248, %v1245, %v1247
      %1281 = vst [vmem:[#allocation3 + $0x380] sm:$0xff] %v1249
      %1282 = vst [vmem:[#allocation3 + $0x388] sm:$0xff] %v1250
      %1283 = vst [vmem:[#allocation3 + $0x390] sm:$0xff] %v1251
      %1284 = vst [vmem:[#allocation3 + $0x398] sm:$0xff] %v1252
      %1285 = vst [vmem:[#allocation3 + $0x3a0] sm:$0xff] %v1253
      %1286 = vst [vmem:[#allocation3 + $0x3a8] sm:$0xff] %v1254
      %1287 = vst [vmem:[#allocation3 + $0x3b0] sm:$0xff] %v1255
      %1288 = vst [vmem:[#allocation3 + $0x3b8] sm:$0xff] %v1256
      %1289 = vst [vmem:[#allocation3 + $0x3c0] sm:$0xff] %v1257
      %1290 = vst [vmem:[#allocation3 + $0x3c8] sm:$0xff] %v1258
      %1291 = vst [vmem:[#allocation3 + $0x3d0] sm:$0xff] %v1259
      %1292 = vst [vmem:[#allocation3 + $0x3d8] sm:$0xff] %v1260
      %1293 = vst [vmem:[#allocation3 + $0x3e0] sm:$0xff] %v1261
      %1294 = vst [vmem:[#allocation3 + $0x3e8] sm:$0xff] %v1262
      %1295 = vst [vmem:[#allocation3 + $0x3f0] sm:$0xff] %v1263
      %1296 = vst [vmem:[#allocation3 + $0x3f8] sm:$0xff] %v1264
      %v1297 = vld [vmem:[#allocation2] sm:$0xff]
      %v1298 = vld [vmem:[#allocation2 + $0x8] sm:$0xff]
      %v1299 = vld [vmem:[#allocation2 + $0x10] sm:$0xff]
      %v1300 = vld [vmem:[#allocation2 + $0x18] sm:$0xff]
      %v1301 = vld [vmem:[#allocation2 + $0x20] sm:$0xff]
      %v1302 = vld [vmem:[#allocation2 + $0x28] sm:$0xff]
      %v1303 = vld [vmem:[#allocation2 + $0x30] sm:$0xff]
      %v1304 = vld [vmem:[#allocation2 + $0x38] sm:$0xff]
      %v1305 = vld [vmem:[#allocation2 + $0x40] sm:$0xf]
      %v1306 = vunpack.c.l.bf16 %v1297
      %v1307 = vunpack.c.h.bf16 %v1297
      %v1308 = vunpack.c.l.bf16 %v1298
      %v1309 = vunpack.c.h.bf16 %v1298
      %v1310 = vunpack.c.l.bf16 %v1299
      %v1311 = vunpack.c.h.bf16 %v1299
      %v1312 = vunpack.c.l.bf16 %v1300
      %v1313 = vunpack.c.h.bf16 %v1300
      %v1314 = vunpack.c.l.bf16 %v1301
      %v1315 = vunpack.c.h.bf16 %v1301
      %v1316 = vunpack.c.l.bf16 %v1302
      %v1317 = vunpack.c.h.bf16 %v1302
      %v1318 = vunpack.c.l.bf16 %v1303
      %v1319 = vunpack.c.h.bf16 %v1303
      %v1320 = vunpack.c.l.bf16 %v1304
      %v1321 = vunpack.c.h.bf16 %v1304
      %v1322 = vunpack.c.l.bf16 %v1305
      %1340 = vrot.lane.b32.xlu0 %v1306, 90
      %v1341 = vpop.permute.xlu0 %1340
      %1342 = vrot.lane.b32.xlu0 %v1307, 90
      %v1343 = vpop.permute.xlu0 %1342
      %1344 = vrot.lane.b32.xlu0 %v1308, 90
      %v1345 = vpop.permute.xlu0 %1344
      %1346 = vrot.lane.b32.xlu0 %v1309, 90
      %v1347 = vpop.permute.xlu0 %1346
      %1348 = vrot.lane.b32.xlu0 %v1310, 90
      %v1349 = vpop.permute.xlu0 %1348
      %1350 = vrot.lane.b32.xlu0 %v1311, 90
      %v1351 = vpop.permute.xlu0 %1350
      %1352 = vrot.lane.b32.xlu0 %v1312, 90
      %v1353 = vpop.permute.xlu0 %1352
      %1354 = vrot.lane.b32.xlu0 %v1313, 90
      %v1355 = vpop.permute.xlu0 %1354
      %1356 = vrot.lane.b32.xlu0 %v1314, 90
      %v1357 = vpop.permute.xlu0 %1356
      %1358 = vrot.lane.b32.xlu0 %v1315, 90
      %v1359 = vpop.permute.xlu0 %1358
      %1360 = vrot.lane.b32.xlu0 %v1316, 90
      %v1361 = vpop.permute.xlu0 %1360
      %1362 = vrot.lane.b32.xlu0 %v1317, 90
      %v1363 = vpop.permute.xlu0 %1362
      %1364 = vrot.lane.b32.xlu0 %v1318, 90
      %v1365 = vpop.permute.xlu0 %1364
      %1366 = vrot.lane.b32.xlu0 %v1319, 90
      %v1367 = vpop.permute.xlu0 %1366
      %1368 = vrot.lane.b32.xlu0 %v1320, 90
      %v1369 = vpop.permute.xlu0 %1368
      %1370 = vrot.lane.b32.xlu0 %v1321, 90
      %v1371 = vpop.permute.xlu0 %1370
      %1372 = vrot.lane.b32.xlu0 %v1322, 90
      %v1373 = vpop.permute.xlu0 %1372
      %vm1374 = vcmask 736256
      %v1375 = vsel %vm1374, %v1341, %v1343
      %v1376 = vsel %vm1374, %v1343, %v1345
      %v1377 = vsel %vm1374, %v1345, %v1347
      %v1378 = vsel %vm1374, %v1347, %v1349
      %v1379 = vsel %vm1374, %v1349, %v1351
      %v1380 = vsel %vm1374, %v1351, %v1353
      %v1381 = vsel %vm1374, %v1353, %v1355
      %v1382 = vsel %vm1374, %v1355, %v1357
      %v1383 = vsel %vm1374, %v1357, %v1359
      %v1384 = vsel %vm1374, %v1359, %v1361
      %v1385 = vsel %vm1374, %v1361, %v1363
      %v1386 = vsel %vm1374, %v1363, %v1365
      %v1387 = vsel %vm1374, %v1365, %v1367
      %v1388 = vsel %vm1374, %v1367, %v1369
      %v1389 = vsel %vm1374, %v1369, %v1371
      %v1390 = vsel %vm1374, %v1371, %v1373
      %1407 = vst [vmem:[#allocation3 + $0x400] sm:$0xff] %v1375
      %1408 = vst [vmem:[#allocation3 + $0x408] sm:$0xff] %v1376
      %1409 = vst [vmem:[#allocation3 + $0x410] sm:$0xff] %v1377
      %1410 = vst [vmem:[#allocation3 + $0x418] sm:$0xff] %v1378
      %1411 = vst [vmem:[#allocation3 + $0x420] sm:$0xff] %v1379
      %1412 = vst [vmem:[#allocation3 + $0x428] sm:$0xff] %v1380
      %1413 = vst [vmem:[#allocation3 + $0x430] sm:$0xff] %v1381
      %1414 = vst [vmem:[#allocation3 + $0x438] sm:$0xff] %v1382
      %1415 = vst [vmem:[#allocation3 + $0x440] sm:$0xff] %v1383
      %1416 = vst [vmem:[#allocation3 + $0x448] sm:$0xff] %v1384
      %1417 = vst [vmem:[#allocation3 + $0x450] sm:$0xff] %v1385
      %1418 = vst [vmem:[#allocation3 + $0x458] sm:$0xff] %v1386
      %1419 = vst [vmem:[#allocation3 + $0x460] sm:$0xff] %v1387
      %1420 = vst [vmem:[#allocation3 + $0x468] sm:$0xff] %v1388
      %1421 = vst [vmem:[#allocation3 + $0x470] sm:$0xff] %v1389
      %1422 = vst [vmem:[#allocation3 + $0x478] sm:$0xff] %v1390
      %v1423 = vld [vmem:[#allocation2 + $0x8] sm:$0xff]
      %v1424 = vld [vmem:[#allocation2 + $0x10] sm:$0xff]
      %v1425 = vld [vmem:[#allocation2 + $0x18] sm:$0xff]
      %v1426 = vld [vmem:[#allocation2 + $0x20] sm:$0xff]
      %v1427 = vld [vmem:[#allocation2 + $0x28] sm:$0xff]
      %v1428 = vld [vmem:[#allocation2 + $0x30] sm:$0xff]
      %v1429 = vld [vmem:[#allocation2 + $0x38] sm:$0xff]
      %v1430 = vld [vmem:[#allocation2 + $0x40] sm:$0xff]
      %v1431 = vld [vmem:[#allocation2 + $0x48] sm:$0xf]
      %v1432 = vunpack.c.l.bf16 %v1423
      %v1433 = vunpack.c.h.bf16 %v1423
      %v1434 = vunpack.c.l.bf16 %v1424
      %v1435 = vunpack.c.h.bf16 %v1424
      %v1436 = vunpack.c.l.bf16 %v1425
      %v1437 = vunpack.c.h.bf16 %v1425
      %v1438 = vunpack.c.l.bf16 %v1426
      %v1439 = vunpack.c.h.bf16 %v1426
      %v1440 = vunpack.c.l.bf16 %v1427
      %v1441 = vunpack.c.h.bf16 %v1427
      %v1442 = vunpack.c.l.bf16 %v1428
      %v1443 = vunpack.c.h.bf16 %v1428
      %v1444 = vunpack.c.l.bf16 %v1429
      %v1445 = vunpack.c.h.bf16 %v1429
      %v1446 = vunpack.c.l.bf16 %v1430
      %v1447 = vunpack.c.h.bf16 %v1430
      %v1448 = vunpack.c.l.bf16 %v1431
      %1466 = vrot.lane.b32.xlu0 %v1432, 60
      %v1467 = vpop.permute.xlu0 %1466
      %1468 = vrot.lane.b32.xlu0 %v1433, 60
      %v1469 = vpop.permute.xlu0 %1468
      %1470 = vrot.lane.b32.xlu0 %v1434, 60
      %v1471 = vpop.permute.xlu0 %1470
      %1472 = vrot.lane.b32.xlu0 %v1435, 60
      %v1473 = vpop.permute.xlu0 %1472
      %1474 = vrot.lane.b32.xlu0 %v1436, 60
      %v1475 = vpop.permute.xlu0 %1474
      %1476 = vrot.lane.b32.xlu0 %v1437, 60
      %v1477 = vpop.permute.xlu0 %1476
      %1478 = vrot.lane.b32.xlu0 %v1438, 60
      %v1479 = vpop.permute.xlu0 %1478
      %1480 = vrot.lane.b32.xlu0 %v1439, 60
      %v1481 = vpop.permute.xlu0 %1480
      %1482 = vrot.lane.b32.xlu0 %v1440, 60
      %v1483 = vpop.permute.xlu0 %1482
      %1484 = vrot.lane.b32.xlu0 %v1441, 60
      %v1485 = vpop.permute.xlu0 %1484
      %1486 = vrot.lane.b32.xlu0 %v1442, 60
      %v1487 = vpop.permute.xlu0 %1486
      %1488 = vrot.lane.b32.xlu0 %v1443, 60
      %v1489 = vpop.permute.xlu0 %1488
      %1490 = vrot.lane.b32.xlu0 %v1444, 60
      %v1491 = vpop.permute.xlu0 %1490
      %1492 = vrot.lane.b32.xlu0 %v1445, 60
      %v1493 = vpop.permute.xlu0 %1492
      %1494 = vrot.lane.b32.xlu0 %v1446, 60
      %v1495 = vpop.permute.xlu0 %1494
      %1496 = vrot.lane.b32.xlu0 %v1447, 60
      %v1497 = vpop.permute.xlu0 %1496
      %1498 = vrot.lane.b32.xlu0 %v1448, 60
      %v1499 = vpop.permute.xlu0 %1498
      %vm1500 = vcmask 490496
      %v1501 = vsel %vm1500, %v1467, %v1469
      %v1502 = vsel %vm1500, %v1469, %v1471
      %v1503 = vsel %vm1500, %v1471, %v1473
      %v1504 = vsel %vm1500, %v1473, %v1475
      %v1505 = vsel %vm1500, %v1475, %v1477
      %v1506 = vsel %vm1500, %v1477, %v1479
      %v1507 = vsel %vm1500, %v1479, %v1481
      %v1508 = vsel %vm1500, %v1481, %v1483
      %v1509 = vsel %vm1500, %v1483, %v1485
      %v1510 = vsel %vm1500, %v1485, %v1487
      %v1511 = vsel %vm1500, %v1487, %v1489
      %v1512 = vsel %vm1500, %v1489, %v1491
      %v1513 = vsel %vm1500, %v1491, %v1493
      %v1514 = vsel %vm1500, %v1493, %v1495
      %v1515 = vsel %vm1500, %v1495, %v1497
      %v1516 = vsel %vm1500, %v1497, %v1499
      %1533 = vst [vmem:[#allocation3 + $0x480] sm:$0xff] %v1501
      %1534 = vst [vmem:[#allocation3 + $0x488] sm:$0xff] %v1502
      %1535 = vst [vmem:[#allocation3 + $0x490] sm:$0xff] %v1503
      %1536 = vst [vmem:[#allocation3 + $0x498] sm:$0xff] %v1504
      %1537 = vst [vmem:[#allocation3 + $0x4a0] sm:$0xff] %v1505
      %1538 = vst [vmem:[#allocation3 + $0x4a8] sm:$0xff] %v1506
      %1539 = vst [vmem:[#allocation3 + $0x4b0] sm:$0xff] %v1507
      %1540 = vst [vmem:[#allocation3 + $0x4b8] sm:$0xff] %v1508
      %1541 = vst [vmem:[#allocation3 + $0x4c0] sm:$0xff] %v1509
      %1542 = vst [vmem:[#allocation3 + $0x4c8] sm:$0xff] %v1510
      %1543 = vst [vmem:[#allocation3 + $0x4d0] sm:$0xff] %v1511
      %1544 = vst [vmem:[#allocation3 + $0x4d8] sm:$0xff] %v1512
      %1545 = vst [vmem:[#allocation3 + $0x4e0] sm:$0xff] %v1513
      %1546 = vst [vmem:[#allocation3 + $0x4e8] sm:$0xff] %v1514
      %1547 = vst [vmem:[#allocation3 + $0x4f0] sm:$0xff] %v1515
      %1548 = vst [vmem:[#allocation3 + $0x4f8] sm:$0xff] %v1516
      %v1549 = vld [vmem:[#allocation2 + $0x8] sm:$0xff]
      %v1550 = vld [vmem:[#allocation2 + $0x10] sm:$0xff]
      %v1551 = vld [vmem:[#allocation2 + $0x18] sm:$0xff]
      %v1552 = vld [vmem:[#allocation2 + $0x20] sm:$0xff]
      %v1553 = vld [vmem:[#allocation2 + $0x28] sm:$0xff]
      %v1554 = vld [vmem:[#allocation2 + $0x30] sm:$0xff]
      %v1555 = vld [vmem:[#allocation2 + $0x38] sm:$0xff]
      %v1556 = vld [vmem:[#allocation2 + $0x40] sm:$0xff]
      %v1557 = vld [vmem:[#allocation2 + $0x48] sm:$0xf]
      %v1558 = vunpack.c.l.bf16 %v1549
      %v1559 = vunpack.c.h.bf16 %v1549
      %v1560 = vunpack.c.l.bf16 %v1550
      %v1561 = vunpack.c.h.bf16 %v1550
      %v1562 = vunpack.c.l.bf16 %v1551
      %v1563 = vunpack.c.h.bf16 %v1551
      %v1564 = vunpack.c.l.bf16 %v1552
      %v1565 = vunpack.c.h.bf16 %v1552
      %v1566 = vunpack.c.l.bf16 %v1553
      %v1567 = vunpack.c.h.bf16 %v1553
      %v1568 = vunpack.c.l.bf16 %v1554
      %v1569 = vunpack.c.h.bf16 %v1554
      %v1570 = vunpack.c.l.bf16 %v1555
      %v1571 = vunpack.c.h.bf16 %v1555
      %v1572 = vunpack.c.l.bf16 %v1556
      %v1573 = vunpack.c.h.bf16 %v1556
      %v1574 = vunpack.c.l.bf16 %v1557
      %1592 = vrot.lane.b32.xlu0 %v1558, 59
      %v1593 = vpop.permute.xlu0 %1592
      %1594 = vrot.lane.b32.xlu0 %v1559, 59
      %v1595 = vpop.permute.xlu0 %1594
      %1596 = vrot.lane.b32.xlu0 %v1560, 59
      %v1597 = vpop.permute.xlu0 %1596
      %1598 = vrot.lane.b32.xlu0 %v1561, 59
      %v1599 = vpop.permute.xlu0 %1598
      %1600 = vrot.lane.b32.xlu0 %v1562, 59
      %v1601 = vpop.permute.xlu0 %1600
      %1602 = vrot.lane.b32.xlu0 %v1563, 59
      %v1603 = vpop.permute.xlu0 %1602
      %1604 = vrot.lane.b32.xlu0 %v1564, 59
      %v1605 = vpop.permute.xlu0 %1604
      %1606 = vrot.lane.b32.xlu0 %v1565, 59
      %v1607 = vpop.permute.xlu0 %1606
      %1608 = vrot.lane.b32.xlu0 %v1566, 59
      %v1609 = vpop.permute.xlu0 %1608
      %1610 = vrot.lane.b32.xlu0 %v1567, 59
      %v1611 = vpop.permute.xlu0 %1610
      %1612 = vrot.lane.b32.xlu0 %v1568, 59
      %v1613 = vpop.permute.xlu0 %1612
      %1614 = vrot.lane.b32.xlu0 %v1569, 59
      %v1615 = vpop.permute.xlu0 %1614
      %1616 = vrot.lane.b32.xlu0 %v1570, 59
      %v1617 = vpop.permute.xlu0 %1616
      %1618 = vrot.lane.b32.xlu0 %v1571, 59
      %v1619 = vpop.permute.xlu0 %1618
      %1620 = vrot.lane.b32.xlu0 %v1572, 59
      %v1621 = vpop.permute.xlu0 %1620
      %1622 = vrot.lane.b32.xlu0 %v1573, 59
      %v1623 = vpop.permute.xlu0 %1622
      %1624 = vrot.lane.b32.xlu0 %v1574, 59
      %v1625 = vpop.permute.xlu0 %1624
      %vm1626 = vcmask 482304
      %v1627 = vsel %vm1626, %v1593, %v1595
      %v1628 = vsel %vm1626, %v1595, %v1597
      %v1629 = vsel %vm1626, %v1597, %v1599
      %v1630 = vsel %vm1626, %v1599, %v1601
      %v1631 = vsel %vm1626, %v1601, %v1603
      %v1632 = vsel %vm1626, %v1603, %v1605
      %v1633 = vsel %vm1626, %v1605, %v1607
      %v1634 = vsel %vm1626, %v1607, %v1609
      %v1635 = vsel %vm1626, %v1609, %v1611
      %v1636 = vsel %vm1626, %v1611, %v1613
      %v1637 = vsel %vm1626, %v1613, %v1615
      %v1638 = vsel %vm1626, %v1615, %v1617
      %v1639 = vsel %vm1626, %v1617, %v1619
      %v1640 = vsel %vm1626, %v1619, %v1621
      %v1641 = vsel %vm1626, %v1621, %v1623
      %v1642 = vsel %vm1626, %v1623, %v1625
      %1659 = vst [vmem:[#allocation3 + $0x500] sm:$0xff] %v1627
      %1660 = vst [vmem:[#allocation3 + $0x508] sm:$0xff] %v1628
      %1661 = vst [vmem:[#allocation3 + $0x510] sm:$0xff] %v1629
      %1662 = vst [vmem:[#allocation3 + $0x518] sm:$0xff] %v1630
      %1663 = vst [vmem:[#allocation3 + $0x520] sm:$0xff] %v1631
      %1664 = vst [vmem:[#allocation3 + $0x528] sm:$0xff] %v1632
      %1665 = vst [vmem:[#allocation3 + $0x530] sm:$0xff] %v1633
      %1666 = vst [vmem:[#allocation3 + $0x538] sm:$0xff] %v1634
      %1667 = vst [vmem:[#allocation3 + $0x540] sm:$0xff] %v1635
      %1668 = vst [vmem:[#allocation3 + $0x548] sm:$0xff] %v1636
      %1669 = vst [vmem:[#allocation3 + $0x550] sm:$0xff] %v1637
      %1670 = vst [vmem:[#allocation3 + $0x558] sm:$0xff] %v1638
      %1671 = vst [vmem:[#allocation3 + $0x560] sm:$0xff] %v1639
      %1672 = vst [vmem:[#allocation3 + $0x568] sm:$0xff] %v1640
      %1673 = vst [vmem:[#allocation3 + $0x570] sm:$0xff] %v1641
      %1674 = vst [vmem:[#allocation3 + $0x578] sm:$0xff] %v1642
      %v1675 = vld [vmem:[#allocation2 + $0x8] sm:$0xff]
      %v1676 = vld [vmem:[#allocation2 + $0x10] sm:$0xff]
      %v1677 = vld [vmem:[#allocation2 + $0x18] sm:$0xff]
      %v1678 = vld [vmem:[#allocation2 + $0x20] sm:$0xff]
      %v1679 = vld [vmem:[#allocation2 + $0x28] sm:$0xff]
      %v1680 = vld [vmem:[#allocation2 + $0x30] sm:$0xff]
      %v1681 = vld [vmem:[#allocation2 + $0x38] sm:$0xff]
      %v1682 = vld [vmem:[#allocation2 + $0x40] sm:$0xff]
      %v1683 = vld [vmem:[#allocation2 + $0x48] sm:$0xf]
      %v1684 = vunpack.c.l.bf16 %v1675
      %v1685 = vunpack.c.h.bf16 %v1675
      %v1686 = vunpack.c.l.bf16 %v1676
      %v1687 = vunpack.c.h.bf16 %v1676
      %v1688 = vunpack.c.l.bf16 %v1677
      %v1689 = vunpack.c.h.bf16 %v1677
      %v1690 = vunpack.c.l.bf16 %v1678
      %v1691 = vunpack.c.h.bf16 %v1678
      %v1692 = vunpack.c.l.bf16 %v1679
      %v1693 = vunpack.c.h.bf16 %v1679
      %v1694 = vunpack.c.l.bf16 %v1680
      %v1695 = vunpack.c.h.bf16 %v1680
      %v1696 = vunpack.c.l.bf16 %v1681
      %v1697 = vunpack.c.h.bf16 %v1681
      %v1698 = vunpack.c.l.bf16 %v1682
      %v1699 = vunpack.c.h.bf16 %v1682
      %v1700 = vunpack.c.l.bf16 %v1683
      %1718 = vrot.lane.b32.xlu0 %v1684, 58
      %v1719 = vpop.permute.xlu0 %1718
      %1720 = vrot.lane.b32.xlu0 %v1685, 58
      %v1721 = vpop.permute.xlu0 %1720
      %1722 = vrot.lane.b32.xlu0 %v1686, 58
      %v1723 = vpop.permute.xlu0 %1722
      %1724 = vrot.lane.b32.xlu0 %v1687, 58
      %v1725 = vpop.permute.xlu0 %1724
      %1726 = vrot.lane.b32.xlu0 %v1688, 58
      %v1727 = vpop.permute.xlu0 %1726
      %1728 = vrot.lane.b32.xlu0 %v1689, 58
      %v1729 = vpop.permute.xlu0 %1728
      %1730 = vrot.lane.b32.xlu0 %v1690, 58
      %v1731 = vpop.permute.xlu0 %1730
      %1732 = vrot.lane.b32.xlu0 %v1691, 58
      %v1733 = vpop.permute.xlu0 %1732
      %1734 = vrot.lane.b32.xlu0 %v1692, 58
      %v1735 = vpop.permute.xlu0 %1734
      %1736 = vrot.lane.b32.xlu0 %v1693, 58
      %v1737 = vpop.permute.xlu0 %1736
      %1738 = vrot.lane.b32.xlu0 %v1694, 58
      %v1739 = vpop.permute.xlu0 %1738
      %1740 = vrot.lane.b32.xlu0 %v1695, 58
      %v1741 = vpop.permute.xlu0 %1740
      %1742 = vrot.lane.b32.xlu0 %v1696, 58
      %v1743 = vpop.permute.xlu0 %1742
      %1744 = vrot.lane.b32.xlu0 %v1697, 58
      %v1745 = vpop.permute.xlu0 %1744
      %1746 = vrot.lane.b32.xlu0 %v1698, 58
      %v1747 = vpop.permute.xlu0 %1746
      %1748 = vrot.lane.b32.xlu0 %v1699, 58
      %v1749 = vpop.permute.xlu0 %1748
      %1750 = vrot.lane.b32.xlu0 %v1700, 58
      %v1751 = vpop.permute.xlu0 %1750
      %vm1752 = vcmask 474112
      %v1753 = vsel %vm1752, %v1719, %v1721
      %v1754 = vsel %vm1752, %v1721, %v1723
      %v1755 = vsel %vm1752, %v1723, %v1725
      %v1756 = vsel %vm1752, %v1725, %v1727
      %v1757 = vsel %vm1752, %v1727, %v1729
      %v1758 = vsel %vm1752, %v1729, %v1731
      %v1759 = vsel %vm1752, %v1731, %v1733
      %v1760 = vsel %vm1752, %v1733, %v1735
      %v1761 = vsel %vm1752, %v1735, %v1737
      %v1762 = vsel %vm1752, %v1737, %v1739
      %v1763 = vsel %vm1752, %v1739, %v1741
      %v1764 = vsel %vm1752, %v1741, %v1743
      %v1765 = vsel %vm1752, %v1743, %v1745
      %v1766 = vsel %vm1752, %v1745, %v1747
      %v1767 = vsel %vm1752, %v1747, %v1749
      %v1768 = vsel %vm1752, %v1749, %v1751
      %1785 = vst [vmem:[#allocation3 + $0x580] sm:$0xff] %v1753
      %1786 = vst [vmem:[#allocation3 + $0x588] sm:$0xff] %v1754
      %1787 = vst [vmem:[#allocation3 + $0x590] sm:$0xff] %v1755
      %1788 = vst [vmem:[#allocation3 + $0x598] sm:$0xff] %v1756
      %1789 = vst [vmem:[#allocation3 + $0x5a0] sm:$0xff] %v1757
      %1790 = vst [vmem:[#allocation3 + $0x5a8] sm:$0xff] %v1758
      %1791 = vst [vmem:[#allocation3 + $0x5b0] sm:$0xff] %v1759
      %1792 = vst [vmem:[#allocation3 + $0x5b8] sm:$0xff] %v1760
      %1793 = vst [vmem:[#allocation3 + $0x5c0] sm:$0xff] %v1761
      %1794 = vst [vmem:[#allocation3 + $0x5c8] sm:$0xff] %v1762
      %1795 = vst [vmem:[#allocation3 + $0x5d0] sm:$0xff] %v1763
      %1796 = vst [vmem:[#allocation3 + $0x5d8] sm:$0xff] %v1764
      %1797 = vst [vmem:[#allocation3 + $0x5e0] sm:$0xff] %v1765
      %1798 = vst [vmem:[#allocation3 + $0x5e8] sm:$0xff] %v1766
      %1799 = vst [vmem:[#allocation3 + $0x5f0] sm:$0xff] %v1767
      %1800 = vst [vmem:[#allocation3 + $0x5f8] sm:$0xff] %v1768
      %v1801 = vld [vmem:[#allocation2 + $0x8] sm:$0xff]
      %v1802 = vld [vmem:[#allocation2 + $0x10] sm:$0xff]
      %v1803 = vld [vmem:[#allocation2 + $0x18] sm:$0xff]
      %v1804 = vld [vmem:[#allocation2 + $0x20] sm:$0xff]
      %v1805 = vld [vmem:[#allocation2 + $0x28] sm:$0xff]
      %v1806 = vld [vmem:[#allocation2 + $0x30] sm:$0xff]
      %v1807 = vld [vmem:[#allocation2 + $0x38] sm:$0xff]
      %v1808 = vld [vmem:[#allocation2 + $0x40] sm:$0xff]
      %v1809 = vld [vmem:[#allocation2 + $0x48] sm:$0xf]
      %v1810 = vunpack.c.l.bf16 %v1801
      %v1811 = vunpack.c.h.bf16 %v1801
      %v1812 = vunpack.c.l.bf16 %v1802
      %v1813 = vunpack.c.h.bf16 %v1802
      %v1814 = vunpack.c.l.bf16 %v1803
      %v1815 = vunpack.c.h.bf16 %v1803
      %v1816 = vunpack.c.l.bf16 %v1804
      %v1817 = vunpack.c.h.bf16 %v1804
      %v1818 = vunpack.c.l.bf16 %v1805
      %v1819 = vunpack.c.h.bf16 %v1805
      %v1820 = vunpack.c.l.bf16 %v1806
      %v1821 = vunpack.c.h.bf16 %v1806
      %v1822 = vunpack.c.l.bf16 %v1807
      %v1823 = vunpack.c.h.bf16 %v1807
      %v1824 = vunpack.c.l.bf16 %v1808
      %v1825 = vunpack.c.h.bf16 %v1808
      %v1826 = vunpack.c.l.bf16 %v1809
      %1844 = vrot.lane.b32.xlu0 %v1810, 42
      %v1845 = vpop.permute.xlu0 %1844
      %1846 = vrot.lane.b32.xlu0 %v1811, 42
      %v1847 = vpop.permute.xlu0 %1846
      %1848 = vrot.lane.b32.xlu0 %v1812, 42
      %v1849 = vpop.permute.xlu0 %1848
      %1850 = vrot.lane.b32.xlu0 %v1813, 42
      %v1851 = vpop.permute.xlu0 %1850
      %1852 = vrot.lane.b32.xlu0 %v1814, 42
      %v1853 = vpop.permute.xlu0 %1852
      %1854 = vrot.lane.b32.xlu0 %v1815, 42
      %v1855 = vpop.permute.xlu0 %1854
      %1856 = vrot.lane.b32.xlu0 %v1816, 42
      %v1857 = vpop.permute.xlu0 %1856
      %1858 = vrot.lane.b32.xlu0 %v1817, 42
      %v1859 = vpop.permute.xlu0 %1858
      %1860 = vrot.lane.b32.xlu0 %v1818, 42
      %v1861 = vpop.permute.xlu0 %1860
      %1862 = vrot.lane.b32.xlu0 %v1819, 42
      %v1863 = vpop.permute.xlu0 %1862
      %1864 = vrot.lane.b32.xlu0 %v1820, 42
      %v1865 = vpop.permute.xlu0 %1864
      %1866 = vrot.lane.b32.xlu0 %v1821, 42
      %v1867 = vpop.permute.xlu0 %1866
      %1868 = vrot.lane.b32.xlu0 %v1822, 42
      %v1869 = vpop.permute.xlu0 %1868
      %1870 = vrot.lane.b32.xlu0 %v1823, 42
      %v1871 = vpop.permute.xlu0 %1870
      %1872 = vrot.lane.b32.xlu0 %v1824, 42
      %v1873 = vpop.permute.xlu0 %1872
      %1874 = vrot.lane.b32.xlu0 %v1825, 42
      %v1875 = vpop.permute.xlu0 %1874
      %1876 = vrot.lane.b32.xlu0 %v1826, 42
      %v1877 = vpop.permute.xlu0 %1876
      %vm1878 = vcmask 343040
      %v1879 = vsel %vm1878, %v1845, %v1847
      %v1880 = vsel %vm1878, %v1847, %v1849
      %v1881 = vsel %vm1878, %v1849, %v1851
      %v1882 = vsel %vm1878, %v1851, %v1853
      %v1883 = vsel %vm1878, %v1853, %v1855
      %v1884 = vsel %vm1878, %v1855, %v1857
      %v1885 = vsel %vm1878, %v1857, %v1859
      %v1886 = vsel %vm1878, %v1859, %v1861
      %v1887 = vsel %vm1878, %v1861, %v1863
      %v1888 = vsel %vm1878, %v1863, %v1865
      %v1889 = vsel %vm1878, %v1865, %v1867
      %v1890 = vsel %vm1878, %v1867, %v1869
      %v1891 = vsel %vm1878, %v1869, %v1871
      %v1892 = vsel %vm1878, %v1871, %v1873
      %v1893 = vsel %vm1878, %v1873, %v1875
      %v1894 = vsel %vm1878, %v1875, %v1877
      %1911 = vst [vmem:[#allocation3 + $0x600] sm:$0xff] %v1879
      %1912 = vst [vmem:[#allocation3 + $0x608] sm:$0xff] %v1880
      %1913 = vst [vmem:[#allocation3 + $0x610] sm:$0xff] %v1881
      %1914 = vst [vmem:[#allocation3 + $0x618] sm:$0xff] %v1882
      %1915 = vst [vmem:[#allocation3 + $0x620] sm:$0xff] %v1883
      %1916 = vst [vmem:[#allocation3 + $0x628] sm:$0xff] %v1884
      %1917 = vst [vmem:[#allocation3 + $0x630] sm:$0xff] %v1885
      %1918 = vst [vmem:[#allocation3 + $0x638] sm:$0xff] %v1886
      %1919 = vst [vmem:[#allocation3 + $0x640] sm:$0xff] %v1887
      %1920 = vst [vmem:[#allocation3 + $0x648] sm:$0xff] %v1888
      %1921 = vst [vmem:[#allocation3 + $0x650] sm:$0xff] %v1889
      %1922 = vst [vmem:[#allocation3 + $0x658] sm:$0xff] %v1890
      %1923 = vst [vmem:[#allocation3 + $0x660] sm:$0xff] %v1891
      %1924 = vst [vmem:[#allocation3 + $0x668] sm:$0xff] %v1892
      %1925 = vst [vmem:[#allocation3 + $0x670] sm:$0xff] %v1893
      %1926 = vst [vmem:[#allocation3 + $0x678] sm:$0xff] %v1894
      %v1927 = vld [vmem:[#allocation2 + $0x8] sm:$0xff]
      %v1928 = vld [vmem:[#allocation2 + $0x10] sm:$0xff]
      %v1929 = vld [vmem:[#allocation2 + $0x18] sm:$0xff]
      %v1930 = vld [vmem:[#allocation2 + $0x20] sm:$0xff]
      %v1931 = vld [vmem:[#allocation2 + $0x28] sm:$0xff]
      %v1932 = vld [vmem:[#allocation2 + $0x30] sm:$0xff]
      %v1933 = vld [vmem:[#allocation2 + $0x38] sm:$0xff]
      %v1934 = vld [vmem:[#allocation2 + $0x40] sm:$0xff]
      %v1935 = vld [vmem:[#allocation2 + $0x48] sm:$0xf]
      %v1936 = vunpack.c.l.bf16 %v1927
      %v1937 = vunpack.c.h.bf16 %v1927
      %v1938 = vunpack.c.l.bf16 %v1928
      %v1939 = vunpack.c.h.bf16 %v1928
      %v1940 = vunpack.c.l.bf16 %v1929
      %v1941 = vunpack.c.h.bf16 %v1929
      %v1942 = vunpack.c.l.bf16 %v1930
      %v1943 = vunpack.c.h.bf16 %v1930
      %v1944 = vunpack.c.l.bf16 %v1931
      %v1945 = vunpack.c.h.bf16 %v1931
      %v1946 = vunpack.c.l.bf16 %v1932
      %v1947 = vunpack.c.h.bf16 %v1932
      %v1948 = vunpack.c.l.bf16 %v1933
      %v1949 = vunpack.c.h.bf16 %v1933
      %v1950 = vunpack.c.l.bf16 %v1934
      %v1951 = vunpack.c.h.bf16 %v1934
      %v1952 = vunpack.c.l.bf16 %v1935
      %1970 = vrot.lane.b32.xlu0 %v1936, 41
      %v1971 = vpop.permute.xlu0 %1970
      %1972 = vrot.lane.b32.xlu0 %v1937, 41
      %v1973 = vpop.permute.xlu0 %1972
      %1974 = vrot.lane.b32.xlu0 %v1938, 41
      %v1975 = vpop.permute.xlu0 %1974
      %1976 = vrot.lane.b32.xlu0 %v1939, 41
      %v1977 = vpop.permute.xlu0 %1976
      %1978 = vrot.lane.b32.xlu0 %v1940, 41
      %v1979 = vpop.permute.xlu0 %1978
      %1980 = vrot.lane.b32.xlu0 %v1941, 41
      %v1981 = vpop.permute.xlu0 %1980
      %1982 = vrot.lane.b32.xlu0 %v1942, 41
      %v1983 = vpop.permute.xlu0 %1982
      %1984 = vrot.lane.b32.xlu0 %v1943, 41
      %v1985 = vpop.permute.xlu0 %1984
      %1986 = vrot.lane.b32.xlu0 %v1944, 41
      %v1987 = vpop.permute.xlu0 %1986
      %1988 = vrot.lane.b32.xlu0 %v1945, 41
      %v1989 = vpop.permute.xlu0 %1988
      %1990 = vrot.lane.b32.xlu0 %v1946, 41
      %v1991 = vpop.permute.xlu0 %1990
      %1992 = vrot.lane.b32.xlu0 %v1947, 41
      %v1993 = vpop.permute.xlu0 %1992
      %1994 = vrot.lane.b32.xlu0 %v1948, 41
      %v1995 = vpop.permute.xlu0 %1994
      %1996 = vrot.lane.b32.xlu0 %v1949, 41
      %v1997 = vpop.permute.xlu0 %1996
      %1998 = vrot.lane.b32.xlu0 %v1950, 41
      %v1999 = vpop.permute.xlu0 %1998
      %2000 = vrot.lane.b32.xlu0 %v1951, 41
      %v2001 = vpop.permute.xlu0 %2000
      %2002 = vrot.lane.b32.xlu0 %v1952, 41
      %v2003 = vpop.permute.xlu0 %2002
      %vm2004 = vcmask 334848
      %v2005 = vsel %vm2004, %v1971, %v1973
      %v2006 = vsel %vm2004, %v1973, %v1975
      %v2007 = vsel %vm2004, %v1975, %v1977
      %v2008 = vsel %vm2004, %v1977, %v1979
      %v2009 = vsel %vm2004, %v1979, %v1981
      %v2010 = vsel %vm2004, %v1981, %v1983
      %v2011 = vsel %vm2004, %v1983, %v1985
      %v2012 = vsel %vm2004, %v1985, %v1987
      %v2013 = vsel %vm2004, %v1987, %v1989
      %v2014 = vsel %vm2004, %v1989, %v1991
      %v2015 = vsel %vm2004, %v1991, %v1993
      %v2016 = vsel %vm2004, %v1993, %v1995
      %v2017 = vsel %vm2004, %v1995, %v1997
      %v2018 = vsel %vm2004, %v1997, %v1999
      %v2019 = vsel %vm2004, %v1999, %v2001
      %v2020 = vsel %vm2004, %v2001, %v2003
      %2037 = vst [vmem:[#allocation3 + $0x680] sm:$0xff] %v2005
      %2038 = vst [vmem:[#allocation3 + $0x688] sm:$0xff] %v2006
      %2039 = vst [vmem:[#allocation3 + $0x690] sm:$0xff] %v2007
      %2040 = vst [vmem:[#allocation3 + $0x698] sm:$0xff] %v2008
      %2041 = vst [vmem:[#allocation3 + $0x6a0] sm:$0xff] %v2009
      %2042 = vst [vmem:[#allocation3 + $0x6a8] sm:$0xff] %v2010
      %2043 = vst [vmem:[#allocation3 + $0x6b0] sm:$0xff] %v2011
      %2044 = vst [vmem:[#allocation3 + $0x6b8] sm:$0xff] %v2012
      %2045 = vst [vmem:[#allocation3 + $0x6c0] sm:$0xff] %v2013
      %2046 = vst [vmem:[#allocation3 + $0x6c8] sm:$0xff] %v2014
      %2047 = vst [vmem:[#allocation3 + $0x6d0] sm:$0xff] %v2015
      %2048 = vst [vmem:[#allocation3 + $0x6d8] sm:$0xff] %v2016
      %2049 = vst [vmem:[#allocation3 + $0x6e0] sm:$0xff] %v2017
      %2050 = vst [vmem:[#allocation3 + $0x6e8] sm:$0xff] %v2018
      %2051 = vst [vmem:[#allocation3 + $0x6f0] sm:$0xff] %v2019
      %2052 = vst [vmem:[#allocation3 + $0x6f8] sm:$0xff] %v2020
      %v2053 = vld [vmem:[#allocation2 + $0x8] sm:$0xff]
      %v2054 = vld [vmem:[#allocation2 + $0x10] sm:$0xff]
      %v2055 = vld [vmem:[#allocation2 + $0x18] sm:$0xff]
      %v2056 = vld [vmem:[#allocation2 + $0x20] sm:$0xff]
      %v2057 = vld [vmem:[#allocation2 + $0x28] sm:$0xff]
      %v2058 = vld [vmem:[#allocation2 + $0x30] sm:$0xff]
      %v2059 = vld [vmem:[#allocation2 + $0x38] sm:$0xff]
      %v2060 = vld [vmem:[#allocation2 + $0x40] sm:$0xff]
      %v2061 = vld [vmem:[#allocation2 + $0x48] sm:$0xf]
      %v2062 = vunpack.c.l.bf16 %v2053
      %v2063 = vunpack.c.h.bf16 %v2053
      %v2064 = vunpack.c.l.bf16 %v2054
      %v2065 = vunpack.c.h.bf16 %v2054
      %v2066 = vunpack.c.l.bf16 %v2055
      %v2067 = vunpack.c.h.bf16 %v2055
      %v2068 = vunpack.c.l.bf16 %v2056
      %v2069 = vunpack.c.h.bf16 %v2056
      %v2070 = vunpack.c.l.bf16 %v2057
      %v2071 = vunpack.c.h.bf16 %v2057
      %v2072 = vunpack.c.l.bf16 %v2058
      %v2073 = vunpack.c.h.bf16 %v2058
      %v2074 = vunpack.c.l.bf16 %v2059
      %v2075 = vunpack.c.h.bf16 %v2059
      %v2076 = vunpack.c.l.bf16 %v2060
      %v2077 = vunpack.c.h.bf16 %v2060
      %v2078 = vunpack.c.l.bf16 %v2061
      %2096 = vrot.lane.b32.xlu0 %v2062, 40
      %v2097 = vpop.permute.xlu0 %2096
      %2098 = vrot.lane.b32.xlu0 %v2063, 40
      %v2099 = vpop.permute.xlu0 %2098
      %2100 = vrot.lane.b32.xlu0 %v2064, 40
      %v2101 = vpop.permute.xlu0 %2100
      %2102 = vrot.lane.b32.xlu0 %v2065, 40
      %v2103 = vpop.permute.xlu0 %2102
      %2104 = vrot.lane.b32.xlu0 %v2066, 40
      %v2105 = vpop.permute.xlu0 %2104
      %2106 = vrot.lane.b32.xlu0 %v2067, 40
      %v2107 = vpop.permute.xlu0 %2106
      %2108 = vrot.lane.b32.xlu0 %v2068, 40
      %v2109 = vpop.permute.xlu0 %2108
      %2110 = vrot.lane.b32.xlu0 %v2069, 40
      %v2111 = vpop.permute.xlu0 %2110
      %2112 = vrot.lane.b32.xlu0 %v2070, 40
      %v2113 = vpop.permute.xlu0 %2112
      %2114 = vrot.lane.b32.xlu0 %v2071, 40
      %v2115 = vpop.permute.xlu0 %2114
      %2116 = vrot.lane.b32.xlu0 %v2072, 40
      %v2117 = vpop.permute.xlu0 %2116
      %2118 = vrot.lane.b32.xlu0 %v2073, 40
      %v2119 = vpop.permute.xlu0 %2118
      %2120 = vrot.lane.b32.xlu0 %v2074, 40
      %v2121 = vpop.permute.xlu0 %2120
      %2122 = vrot.lane.b32.xlu0 %v2075, 40
      %v2123 = vpop.permute.xlu0 %2122
      %2124 = vrot.lane.b32.xlu0 %v2076, 40
      %v2125 = vpop.permute.xlu0 %2124
      %2126 = vrot.lane.b32.xlu0 %v2077, 40
      %v2127 = vpop.permute.xlu0 %2126
      %2128 = vrot.lane.b32.xlu0 %v2078, 40
      %v2129 = vpop.permute.xlu0 %2128
      %vm2130 = vcmask 326656
      %v2131 = vsel %vm2130, %v2097, %v2099
      %v2132 = vsel %vm2130, %v2099, %v2101
      %v2133 = vsel %vm2130, %v2101, %v2103
      %v2134 = vsel %vm2130, %v2103, %v2105
      %v2135 = vsel %vm2130, %v2105, %v2107
      %v2136 = vsel %vm2130, %v2107, %v2109
      %v2137 = vsel %vm2130, %v2109, %v2111
      %v2138 = vsel %vm2130, %v2111, %v2113
      %v2139 = vsel %vm2130, %v2113, %v2115
      %v2140 = vsel %vm2130, %v2115, %v2117
      %v2141 = vsel %vm2130, %v2117, %v2119
      %v2142 = vsel %vm2130, %v2119, %v2121
      %v2143 = vsel %vm2130, %v2121, %v2123
      %v2144 = vsel %vm2130, %v2123, %v2125
      %v2145 = vsel %vm2130, %v2125, %v2127
      %v2146 = vsel %vm2130, %v2127, %v2129
      %2163 = vst [vmem:[#allocation3 + $0x700] sm:$0xff] %v2131
      %2164 = vst [vmem:[#allocation3 + $0x708] sm:$0xff] %v2132
      %2165 = vst [vmem:[#allocation3 + $0x710] sm:$0xff] %v2133
      %2166 = vst [vmem:[#allocation3 + $0x718] sm:$0xff] %v2134
      %2167 = vst [vmem:[#allocation3 + $0x720] sm:$0xff] %v2135
      %2168 = vst [vmem:[#allocation3 + $0x728] sm:$0xff] %v2136
      %2169 = vst [vmem:[#allocation3 + $0x730] sm:$0xff] %v2137
      %2170 = vst [vmem:[#allocation3 + $0x738] sm:$0xff] %v2138
      %2171 = vst [vmem:[#allocation3 + $0x740] sm:$0xff] %v2139
      %2172 = vst [vmem:[#allocation3 + $0x748] sm:$0xff] %v2140
      %2173 = vst [vmem:[#allocation3 + $0x750] sm:$0xff] %v2141
      %2174 = vst [vmem:[#allocation3 + $0x758] sm:$0xff] %v2142
      %2175 = vst [vmem:[#allocation3 + $0x760] sm:$0xff] %v2143
      %2176 = vst [vmem:[#allocation3 + $0x768] sm:$0xff] %v2144
      %2177 = vst [vmem:[#allocation3 + $0x770] sm:$0xff] %v2145
      %2178 = vst [vmem:[#allocation3 + $0x778] sm:$0xff] %v2146
      %v2179 = vld [vmem:[#allocation2 + $0x8] sm:$0xff]
      %v2180 = vld [vmem:[#allocation2 + $0x10] sm:$0xff]
      %v2181 = vld [vmem:[#allocation2 + $0x18] sm:$0xff]
      %v2182 = vld [vmem:[#allocation2 + $0x20] sm:$0xff]
      %v2183 = vld [vmem:[#allocation2 + $0x28] sm:$0xff]
      %v2184 = vld [vmem:[#allocation2 + $0x30] sm:$0xff]
      %v2185 = vld [vmem:[#allocation2 + $0x38] sm:$0xff]
      %v2186 = vld [vmem:[#allocation2 + $0x40] sm:$0xff]
      %v2187 = vld [vmem:[#allocation2 + $0x48] sm:$0xf]
      %v2188 = vunpack.c.l.bf16 %v2179
      %v2189 = vunpack.c.h.bf16 %v2179
      %v2190 = vunpack.c.l.bf16 %v2180
      %v2191 = vunpack.c.h.bf16 %v2180
      %v2192 = vunpack.c.l.bf16 %v2181
      %v2193 = vunpack.c.h.bf16 %v2181
      %v2194 = vunpack.c.l.bf16 %v2182
      %v2195 = vunpack.c.h.bf16 %v2182
      %v2196 = vunpack.c.l.bf16 %v2183
      %v2197 = vunpack.c.h.bf16 %v2183
      %v2198 = vunpack.c.l.bf16 %v2184
      %v2199 = vunpack.c.h.bf16 %v2184
      %v2200 = vunpack.c.l.bf16 %v2185
      %v2201 = vunpack.c.h.bf16 %v2185
      %v2202 = vunpack.c.l.bf16 %v2186
      %v2203 = vunpack.c.h.bf16 %v2186
      %v2204 = vunpack.c.l.bf16 %v2187
      %2222 = vrot.lane.b32.xlu0 %v2188, 24
      %v2223 = vpop.permute.xlu0 %2222
      %2224 = vrot.lane.b32.xlu0 %v2189, 24
      %v2225 = vpop.permute.xlu0 %2224
      %2226 = vrot.lane.b32.xlu0 %v2190, 24
      %v2227 = vpop.permute.xlu0 %2226
      %2228 = vrot.lane.b32.xlu0 %v2191, 24
      %v2229 = vpop.permute.xlu0 %2228
      %2230 = vrot.lane.b32.xlu0 %v2192, 24
      %v2231 = vpop.permute.xlu0 %2230
      %2232 = vrot.lane.b32.xlu0 %v2193, 24
      %v2233 = vpop.permute.xlu0 %2232
      %2234 = vrot.lane.b32.xlu0 %v2194, 24
      %v2235 = vpop.permute.xlu0 %2234
      %2236 = vrot.lane.b32.xlu0 %v2195, 24
      %v2237 = vpop.permute.xlu0 %2236
      %2238 = vrot.lane.b32.xlu0 %v2196, 24
      %v2239 = vpop.permute.xlu0 %2238
      %2240 = vrot.lane.b32.xlu0 %v2197, 24
      %v2241 = vpop.permute.xlu0 %2240
      %2242 = vrot.lane.b32.xlu0 %v2198, 24
      %v2243 = vpop.permute.xlu0 %2242
      %2244 = vrot.lane.b32.xlu0 %v2199, 24
      %v2245 = vpop.permute.xlu0 %2244
      %2246 = vrot.lane.b32.xlu0 %v2200, 24
      %v2247 = vpop.permute.xlu0 %2246
      %2248 = vrot.lane.b32.xlu0 %v2201, 24
      %v2249 = vpop.permute.xlu0 %2248
      %2250 = vrot.lane.b32.xlu0 %v2202, 24
      %v2251 = vpop.permute.xlu0 %2250
      %2252 = vrot.lane.b32.xlu0 %v2203, 24
      %v2253 = vpop.permute.xlu0 %2252
      %2254 = vrot.lane.b32.xlu0 %v2204, 24
      %v2255 = vpop.permute.xlu0 %2254
      %vm2256 = vcmask 195584
      %v2257 = vsel %vm2256, %v2223, %v2225
      %v2258 = vsel %vm2256, %v2225, %v2227
      %v2259 = vsel %vm2256, %v2227, %v2229
      %v2260 = vsel %vm2256, %v2229, %v2231
      %v2261 = vsel %vm2256, %v2231, %v2233
      %v2262 = vsel %vm2256, %v2233, %v2235
      %v2263 = vsel %vm2256, %v2235, %v2237
      %v2264 = vsel %vm2256, %v2237, %v2239
      %v2265 = vsel %vm2256, %v2239, %v2241
      %v2266 = vsel %vm2256, %v2241, %v2243
      %v2267 = vsel %vm2256, %v2243, %v2245
      %v2268 = vsel %vm2256, %v2245, %v2247
      %v2269 = vsel %vm2256, %v2247, %v2249
      %v2270 = vsel %vm2256, %v2249, %v2251
      %v2271 = vsel %vm2256, %v2251, %v2253
      %v2272 = vsel %vm2256, %v2253, %v2255
      %2289 = vst [vmem:[#allocation3 + $0x780] sm:$0xff] %v2257
      %2290 = vst [vmem:[#allocation3 + $0x788] sm:$0xff] %v2258
      %2291 = vst [vmem:[#allocation3 + $0x790] sm:$0xff] %v2259
      %2292 = vst [vmem:[#allocation3 + $0x798] sm:$0xff] %v2260
      %2293 = vst [vmem:[#allocation3 + $0x7a0] sm:$0xff] %v2261
      %2294 = vst [vmem:[#allocation3 + $0x7a8] sm:$0xff] %v2262
      %2295 = vst [vmem:[#allocation3 + $0x7b0] sm:$0xff] %v2263
      %2296 = vst [vmem:[#allocation3 + $0x7b8] sm:$0xff] %v2264
      %2297 = vst [vmem:[#allocation3 + $0x7c0] sm:$0xff] %v2265
      %2298 = vst [vmem:[#allocation3 + $0x7c8] sm:$0xff] %v2266
      %2299 = vst [vmem:[#allocation3 + $0x7d0] sm:$0xff] %v2267
      %2300 = vst [vmem:[#allocation3 + $0x7d8] sm:$0xff] %v2268
      %2301 = vst [vmem:[#allocation3 + $0x7e0] sm:$0xff] %v2269
      %2302 = vst [vmem:[#allocation3 + $0x7e8] sm:$0xff] %v2270
      %2303 = vst [vmem:[#allocation3 + $0x7f0] sm:$0xff] %v2271
      %2304 = vst [vmem:[#allocation3 + $0x7f8] sm:$0xff] %v2272
      %v2305 = vld [vmem:[#allocation2 + $0x8] sm:$0xff]
      %v2306 = vld [vmem:[#allocation2 + $0x10] sm:$0xff]
      %v2307 = vld [vmem:[#allocation2 + $0x18] sm:$0xff]
      %v2308 = vld [vmem:[#allocation2 + $0x20] sm:$0xff]
      %v2309 = vld [vmem:[#allocation2 + $0x28] sm:$0xff]
      %v2310 = vld [vmem:[#allocation2 + $0x30] sm:$0xff]
      %v2311 = vld [vmem:[#allocation2 + $0x38] sm:$0xff]
      %v2312 = vld [vmem:[#allocation2 + $0x40] sm:$0xff]
      %v2313 = vld [vmem:[#allocation2 + $0x48] sm:$0xf]
      %v2314 = vunpack.c.l.bf16 %v2305
      %v2315 = vunpack.c.h.bf16 %v2305
      %v2316 = vunpack.c.l.bf16 %v2306
      %v2317 = vunpack.c.h.bf16 %v2306
      %v2318 = vunpack.c.l.bf16 %v2307
      %v2319 = vunpack.c.h.bf16 %v2307
      %v2320 = vunpack.c.l.bf16 %v2308
      %v2321 = vunpack.c.h.bf16 %v2308
      %v2322 = vunpack.c.l.bf16 %v2309
      %v2323 = vunpack.c.h.bf16 %v2309
      %v2324 = vunpack.c.l.bf16 %v2310
      %v2325 = vunpack.c.h.bf16 %v2310
      %v2326 = vunpack.c.l.bf16 %v2311
      %v2327 = vunpack.c.h.bf16 %v2311
      %v2328 = vunpack.c.l.bf16 %v2312
      %v2329 = vunpack.c.h.bf16 %v2312
      %v2330 = vunpack.c.l.bf16 %v2313
      %2348 = vrot.lane.b32.xlu0 %v2314, 23
      %v2349 = vpop.permute.xlu0 %2348
      %2350 = vrot.lane.b32.xlu0 %v2315, 23
      %v2351 = vpop.permute.xlu0 %2350
      %2352 = vrot.lane.b32.xlu0 %v2316, 23
      %v2353 = vpop.permute.xlu0 %2352
      %2354 = vrot.lane.b32.xlu0 %v2317, 23
      %v2355 = vpop.permute.xlu0 %2354
      %2356 = vrot.lane.b32.xlu0 %v2318, 23
      %v2357 = vpop.permute.xlu0 %2356
      %2358 = vrot.lane.b32.xlu0 %v2319, 23
      %v2359 = vpop.permute.xlu0 %2358
      %2360 = vrot.lane.b32.xlu0 %v2320, 23
      %v2361 = vpop.permute.xlu0 %2360
      %2362 = vrot.lane.b32.xlu0 %v2321, 23
      %v2363 = vpop.permute.xlu0 %2362
      %2364 = vrot.lane.b32.xlu0 %v2322, 23
      %v2365 = vpop.permute.xlu0 %2364
      %2366 = vrot.lane.b32.xlu0 %v2323, 23
      %v2367 = vpop.permute.xlu0 %2366
      %2368 = vrot.lane.b32.xlu0 %v2324, 23
      %v2369 = vpop.permute.xlu0 %2368
      %2370 = vrot.lane.b32.xlu0 %v2325, 23
      %v2371 = vpop.permute.xlu0 %2370
      %2372 = vrot.lane.b32.xlu0 %v2326, 23
      %v2373 = vpop.permute.xlu0 %2372
      %2374 = vrot.lane.b32.xlu0 %v2327, 23
      %v2375 = vpop.permute.xlu0 %2374
      %2376 = vrot.lane.b32.xlu0 %v2328, 23
      %v2377 = vpop.permute.xlu0 %2376
      %2378 = vrot.lane.b32.xlu0 %v2329, 23
      %v2379 = vpop.permute.xlu0 %2378
      %2380 = vrot.lane.b32.xlu0 %v2330, 23
      %v2381 = vpop.permute.xlu0 %2380
      %vm2382 = vcmask 187392
      %v2383 = vsel %vm2382, %v2349, %v2351
      %v2384 = vsel %vm2382, %v2351, %v2353
      %v2385 = vsel %vm2382, %v2353, %v2355
      %v2386 = vsel %vm2382, %v2355, %v2357
      %v2387 = vsel %vm2382, %v2357, %v2359
      %v2388 = vsel %vm2382, %v2359, %v2361
      %v2389 = vsel %vm2382, %v2361, %v2363
      %v2390 = vsel %vm2382, %v2363, %v2365
      %v2391 = vsel %vm2382, %v2365, %v2367
      %v2392 = vsel %vm2382, %v2367, %v2369
      %v2393 = vsel %vm2382, %v2369, %v2371
      %v2394 = vsel %vm2382, %v2371, %v2373
      %v2395 = vsel %vm2382, %v2373, %v2375
      %v2396 = vsel %vm2382, %v2375, %v2377
      %v2397 = vsel %vm2382, %v2377, %v2379
      %v2398 = vsel %vm2382, %v2379, %v2381
      %2415 = vst [vmem:[#allocation3 + $0x800] sm:$0xff] %v2383
      %2416 = vst [vmem:[#allocation3 + $0x808] sm:$0xff] %v2384
      %2417 = vst [vmem:[#allocation3 + $0x810] sm:$0xff] %v2385
      %2418 = vst [vmem:[#allocation3 + $0x818] sm:$0xff] %v2386
      %2419 = vst [vmem:[#allocation3 + $0x820] sm:$0xff] %v2387
      %2420 = vst [vmem:[#allocation3 + $0x828] sm:$0xff] %v2388
      %2421 = vst [vmem:[#allocation3 + $0x830] sm:$0xff] %v2389
      %2422 = vst [vmem:[#allocation3 + $0x838] sm:$0xff] %v2390
      %2423 = vst [vmem:[#allocation3 + $0x840] sm:$0xff] %v2391
      %2424 = vst [vmem:[#allocation3 + $0x848] sm:$0xff] %v2392
      %2425 = vst [vmem:[#allocation3 + $0x850] sm:$0xff] %v2393
      %2426 = vst [vmem:[#allocation3 + $0x858] sm:$0xff] %v2394
      %2427 = vst [vmem:[#allocation3 + $0x860] sm:$0xff] %v2395
      %2428 = vst [vmem:[#allocation3 + $0x868] sm:$0xff] %v2396
      %2429 = vst [vmem:[#allocation3 + $0x870] sm:$0xff] %v2397
      %2430 = vst [vmem:[#allocation3 + $0x878] sm:$0xff] %v2398
      %v2431 = vld [vmem:[#allocation2 + $0x8] sm:$0xff]
      %v2432 = vld [vmem:[#allocation2 + $0x10] sm:$0xff]
      %v2433 = vld [vmem:[#allocation2 + $0x18] sm:$0xff]
      %v2434 = vld [vmem:[#allocation2 + $0x20] sm:$0xff]
      %v2435 = vld [vmem:[#allocation2 + $0x28] sm:$0xff]
      %v2436 = vld [vmem:[#allocation2 + $0x30] sm:$0xff]
      %v2437 = vld [vmem:[#allocation2 + $0x38] sm:$0xff]
      %v2438 = vld [vmem:[#allocation2 + $0x40] sm:$0xff]
      %v2439 = vld [vmem:[#allocation2 + $0x48] sm:$0xf]
      %v2440 = vunpack.c.l.bf16 %v2431
      %v2441 = vunpack.c.h.bf16 %v2431
      %v2442 = vunpack.c.l.bf16 %v2432
      %v2443 = vunpack.c.h.bf16 %v2432
      %v2444 = vunpack.c.l.bf16 %v2433
      %v2445 = vunpack.c.h.bf16 %v2433
      %v2446 = vunpack.c.l.bf16 %v2434
      %v2447 = vunpack.c.h.bf16 %v2434
      %v2448 = vunpack.c.l.bf16 %v2435
      %v2449 = vunpack.c.h.bf16 %v2435
      %v2450 = vunpack.c.l.bf16 %v2436
      %v2451 = vunpack.c.h.bf16 %v2436
      %v2452 = vunpack.c.l.bf16 %v2437
      %v2453 = vunpack.c.h.bf16 %v2437
      %v2454 = vunpack.c.l.bf16 %v2438
      %v2455 = vunpack.c.h.bf16 %v2438
      %v2456 = vunpack.c.l.bf16 %v2439
      %2474 = vrot.lane.b32.xlu0 %v2440, 22
      %v2475 = vpop.permute.xlu0 %2474
      %2476 = vrot.lane.b32.xlu0 %v2441, 22
      %v2477 = vpop.permute.xlu0 %2476
      %2478 = vrot.lane.b32.xlu0 %v2442, 22
      %v2479 = vpop.permute.xlu0 %2478
      %2480 = vrot.lane.b32.xlu0 %v2443, 22
      %v2481 = vpop.permute.xlu0 %2480
      %2482 = vrot.lane.b32.xlu0 %v2444, 22
      %v2483 = vpop.permute.xlu0 %2482
      %2484 = vrot.lane.b32.xlu0 %v2445, 22
      %v2485 = vpop.permute.xlu0 %2484
      %2486 = vrot.lane.b32.xlu0 %v2446, 22
      %v2487 = vpop.permute.xlu0 %2486
      %2488 = vrot.lane.b32.xlu0 %v2447, 22
      %v2489 = vpop.permute.xlu0 %2488
      %2490 = vrot.lane.b32.xlu0 %v2448, 22
      %v2491 = vpop.permute.xlu0 %2490
      %2492 = vrot.lane.b32.xlu0 %v2449, 22
      %v2493 = vpop.permute.xlu0 %2492
      %2494 = vrot.lane.b32.xlu0 %v2450, 22
      %v2495 = vpop.permute.xlu0 %2494
      %2496 = vrot.lane.b32.xlu0 %v2451, 22
      %v2497 = vpop.permute.xlu0 %2496
      %2498 = vrot.lane.b32.xlu0 %v2452, 22
      %v2499 = vpop.permute.xlu0 %2498
      %2500 = vrot.lane.b32.xlu0 %v2453, 22
      %v2501 = vpop.permute.xlu0 %2500
      %2502 = vrot.lane.b32.xlu0 %v2454, 22
      %v2503 = vpop.permute.xlu0 %2502
      %2504 = vrot.lane.b32.xlu0 %v2455, 22
      %v2505 = vpop.permute.xlu0 %2504
      %2506 = vrot.lane.b32.xlu0 %v2456, 22
      %v2507 = vpop.permute.xlu0 %2506
      %vm2508 = vcmask 179200
      %v2509 = vsel %vm2508, %v2475, %v2477
      %v2510 = vsel %vm2508, %v2477, %v2479
      %v2511 = vsel %vm2508, %v2479, %v2481
      %v2512 = vsel %vm2508, %v2481, %v2483
      %v2513 = vsel %vm2508, %v2483, %v2485
      %v2514 = vsel %vm2508, %v2485, %v2487
      %v2515 = vsel %vm2508, %v2487, %v2489
      %v2516 = vsel %vm2508, %v2489, %v2491
      %v2517 = vsel %vm2508, %v2491, %v2493
      %v2518 = vsel %vm2508, %v2493, %v2495
      %v2519 = vsel %vm2508, %v2495, %v2497
      %v2520 = vsel %vm2508, %v2497, %v2499
      %v2521 = vsel %vm2508, %v2499, %v2501
      %v2522 = vsel %vm2508, %v2501, %v2503
      %v2523 = vsel %vm2508, %v2503, %v2505
      %v2524 = vsel %vm2508, %v2505, %v2507
      %2541 = vst [vmem:[#allocation3 + $0x880] sm:$0xff] %v2509
      %2542 = vst [vmem:[#allocation3 + $0x888] sm:$0xff] %v2510
      %2543 = vst [vmem:[#allocation3 + $0x890] sm:$0xff] %v2511
      %2544 = vst [vmem:[#allocation3 + $0x898] sm:$0xff] %v2512
      %2545 = vst [vmem:[#allocation3 + $0x8a0] sm:$0xff] %v2513
      %2546 = vst [vmem:[#allocation3 + $0x8a8] sm:$0xff] %v2514
      %2547 = vst [vmem:[#allocation3 + $0x8b0] sm:$0xff] %v2515
      %2548 = vst [vmem:[#allocation3 + $0x8b8] sm:$0xff] %v2516
      %2549 = vst [vmem:[#allocation3 + $0x8c0] sm:$0xff] %v2517
      %2550 = vst [vmem:[#allocation3 + $0x8c8] sm:$0xff] %v2518
      %2551 = vst [vmem:[#allocation3 + $0x8d0] sm:$0xff] %v2519
      %2552 = vst [vmem:[#allocation3 + $0x8d8] sm:$0xff] %v2520
      %2553 = vst [vmem:[#allocation3 + $0x8e0] sm:$0xff] %v2521
      %2554 = vst [vmem:[#allocation3 + $0x8e8] sm:$0xff] %v2522
      %2555 = vst [vmem:[#allocation3 + $0x8f0] sm:$0xff] %v2523
      %2556 = vst [vmem:[#allocation3 + $0x8f8] sm:$0xff] %v2524
      %v2557 = vld [vmem:[#allocation2 + $0x14] sm:$0xff]
      %v2558 = vld [vmem:[#allocation2 + $0x1c] sm:$0xff]
      %v2559 = vld [vmem:[#allocation2 + $0x24] sm:$0xff]
      %v2560 = vld [vmem:[#allocation2 + $0x2c] sm:$0xff]
      %v2561 = vld [vmem:[#allocation2 + $0x34] sm:$0xff]
      %v2562 = vld [vmem:[#allocation2 + $0x3c] sm:$0xff]
      %v2563 = vld [vmem:[#allocation2 + $0x44] sm:$0xff]
      %v2564 = vld [vmem:[#allocation2 + $0x4c] sm:$0xff]
      %v2565 = vld [vmem:[#allocation2 + $0x54] sm:$0xf]
      %v2566 = vunpack.c.l.bf16 %v2557
      %v2567 = vunpack.c.h.bf16 %v2557
      %v2568 = vunpack.c.l.bf16 %v2558
      %v2569 = vunpack.c.h.bf16 %v2558
      %v2570 = vunpack.c.l.bf16 %v2559
      %v2571 = vunpack.c.h.bf16 %v2559
      %v2572 = vunpack.c.l.bf16 %v2560
      %v2573 = vunpack.c.h.bf16 %v2560
      %v2574 = vunpack.c.l.bf16 %v2561
      %v2575 = vunpack.c.h.bf16 %v2561
      %v2576 = vunpack.c.l.bf16 %v2562
      %v2577 = vunpack.c.h.bf16 %v2562
      %v2578 = vunpack.c.l.bf16 %v2563
      %v2579 = vunpack.c.h.bf16 %v2563
      %v2580 = vunpack.c.l.bf16 %v2564
      %v2581 = vunpack.c.h.bf16 %v2564
      %v2582 = vunpack.c.l.bf16 %v2565
      %2600 = vrot.lane.b32.xlu0 %v2566, 120
      %v2601 = vpop.permute.xlu0 %2600
      %2602 = vrot.lane.b32.xlu0 %v2567, 120
      %v2603 = vpop.permute.xlu0 %2602
      %2604 = vrot.lane.b32.xlu0 %v2568, 120
      %v2605 = vpop.permute.xlu0 %2604
      %2606 = vrot.lane.b32.xlu0 %v2569, 120
      %v2607 = vpop.permute.xlu0 %2606
      %2608 = vrot.lane.b32.xlu0 %v2570, 120
      %v2609 = vpop.permute.xlu0 %2608
      %2610 = vrot.lane.b32.xlu0 %v2571, 120
      %v2611 = vpop.permute.xlu0 %2610
      %2612 = vrot.lane.b32.xlu0 %v2572, 120
      %v2613 = vpop.permute.xlu0 %2612
      %2614 = vrot.lane.b32.xlu0 %v2573, 120
      %v2615 = vpop.permute.xlu0 %2614
      %2616 = vrot.lane.b32.xlu0 %v2574, 120
      %v2617 = vpop.permute.xlu0 %2616
      %2618 = vrot.lane.b32.xlu0 %v2575, 120
      %v2619 = vpop.permute.xlu0 %2618
      %2620 = vrot.lane.b32.xlu0 %v2576, 120
      %v2621 = vpop.permute.xlu0 %2620
      %2622 = vrot.lane.b32.xlu0 %v2577, 120
      %v2623 = vpop.permute.xlu0 %2622
      %2624 = vrot.lane.b32.xlu0 %v2578, 120
      %v2625 = vpop.permute.xlu0 %2624
      %2626 = vrot.lane.b32.xlu0 %v2579, 120
      %v2627 = vpop.permute.xlu0 %2626
      %2628 = vrot.lane.b32.xlu0 %v2580, 120
      %v2629 = vpop.permute.xlu0 %2628
      %2630 = vrot.lane.b32.xlu0 %v2581, 120
      %v2631 = vpop.permute.xlu0 %2630
      %2632 = vrot.lane.b32.xlu0 %v2582, 120
      %v2633 = vpop.permute.xlu0 %2632
      %vm2634 = vcmask 982016
      %v2635 = vsel %vm2634, %v2601, %v2603
      %v2636 = vsel %vm2634, %v2603, %v2605
      %v2637 = vsel %vm2634, %v2605, %v2607
      %v2638 = vsel %vm2634, %v2607, %v2609
      %v2639 = vsel %vm2634, %v2609, %v2611
      %v2640 = vsel %vm2634, %v2611, %v2613
      %v2641 = vsel %vm2634, %v2613, %v2615
      %v2642 = vsel %vm2634, %v2615, %v2617
      %v2643 = vsel %vm2634, %v2617, %v2619
      %v2644 = vsel %vm2634, %v2619, %v2621
      %v2645 = vsel %vm2634, %v2621, %v2623
      %v2646 = vsel %vm2634, %v2623, %v2625
      %v2647 = vsel %vm2634, %v2625, %v2627
      %v2648 = vsel %vm2634, %v2627, %v2629
      %v2649 = vsel %vm2634, %v2629, %v2631
      %v2650 = vsel %vm2634, %v2631, %v2633
      %2667 = vst [vmem:[#allocation3 + $0x900] sm:$0xff] %v2635
      %2668 = vst [vmem:[#allocation3 + $0x908] sm:$0xff] %v2636
      %2669 = vst [vmem:[#allocation3 + $0x910] sm:$0xff] %v2637
      %2670 = vst [vmem:[#allocation3 + $0x918] sm:$0xff] %v2638
      %2671 = vst [vmem:[#allocation3 + $0x920] sm:$0xff] %v2639
      %2672 = vst [vmem:[#allocation3 + $0x928] sm:$0xff] %v2640
      %2673 = vst [vmem:[#allocation3 + $0x930] sm:$0xff] %v2641
      %2674 = vst [vmem:[#allocation3 + $0x938] sm:$0xff] %v2642
      %2675 = vst [vmem:[#allocation3 + $0x940] sm:$0xff] %v2643
      %2676 = vst [vmem:[#allocation3 + $0x948] sm:$0xff] %v2644
      %2677 = vst [vmem:[#allocation3 + $0x950] sm:$0xff] %v2645
      %2678 = vst [vmem:[#allocation3 + $0x958] sm:$0xff] %v2646
      %2679 = vst [vmem:[#allocation3 + $0x960] sm:$0xff] %v2647
      %2680 = vst [vmem:[#allocation3 + $0x968] sm:$0xff] %v2648
      %2681 = vst [vmem:[#allocation3 + $0x970] sm:$0xff] %v2649
      %2682 = vst [vmem:[#allocation3 + $0x978] sm:$0xff] %v2650
      %v2683 = vld [vmem:[#allocation2 + $0x14] sm:$0xff]
      %v2684 = vld [vmem:[#allocation2 + $0x1c] sm:$0xff]
      %v2685 = vld [vmem:[#allocation2 + $0x24] sm:$0xff]
      %v2686 = vld [vmem:[#allocation2 + $0x2c] sm:$0xff]
      %v2687 = vld [vmem:[#allocation2 + $0x34] sm:$0xff]
      %v2688 = vld [vmem:[#allocation2 + $0x3c] sm:$0xff]
      %v2689 = vld [vmem:[#allocation2 + $0x44] sm:$0xff]
      %v2690 = vld [vmem:[#allocation2 + $0x4c] sm:$0xff]
      %v2691 = vld [vmem:[#allocation2 + $0x54] sm:$0xf]
      %v2692 = vunpack.c.l.bf16 %v2683
      %v2693 = vunpack.c.h.bf16 %v2683
      %v2694 = vunpack.c.l.bf16 %v2684
      %v2695 = vunpack.c.h.bf16 %v2684
      %v2696 = vunpack.c.l.bf16 %v2685
      %v2697 = vunpack.c.h.bf16 %v2685
      %v2698 = vunpack.c.l.bf16 %v2686
      %v2699 = vunpack.c.h.bf16 %v2686
      %v2700 = vunpack.c.l.bf16 %v2687
      %v2701 = vunpack.c.h.bf16 %v2687
      %v2702 = vunpack.c.l.bf16 %v2688
      %v2703 = vunpack.c.h.bf16 %v2688
      %v2704 = vunpack.c.l.bf16 %v2689
      %v2705 = vunpack.c.h.bf16 %v2689
      %v2706 = vunpack.c.l.bf16 %v2690
      %v2707 = vunpack.c.h.bf16 %v2690
      %v2708 = vunpack.c.l.bf16 %v2691
      %2726 = vrot.lane.b32.xlu0 %v2692, 119
      %v2727 = vpop.permute.xlu0 %2726
      %2728 = vrot.lane.b32.xlu0 %v2693, 119
      %v2729 = vpop.permute.xlu0 %2728
      %2730 = vrot.lane.b32.xlu0 %v2694, 119
      %v2731 = vpop.permute.xlu0 %2730
      %2732 = vrot.lane.b32.xlu0 %v2695, 119
      %v2733 = vpop.permute.xlu0 %2732
      %2734 = vrot.lane.b32.xlu0 %v2696, 119
      %v2735 = vpop.permute.xlu0 %2734
      %2736 = vrot.lane.b32.xlu0 %v2697, 119
      %v2737 = vpop.permute.xlu0 %2736
      %2738 = vrot.lane.b32.xlu0 %v2698, 119
      %v2739 = vpop.permute.xlu0 %2738
      %2740 = vrot.lane.b32.xlu0 %v2699, 119
      %v2741 = vpop.permute.xlu0 %2740
      %2742 = vrot.lane.b32.xlu0 %v2700, 119
      %v2743 = vpop.permute.xlu0 %2742
      %2744 = vrot.lane.b32.xlu0 %v2701, 119
      %v2745 = vpop.permute.xlu0 %2744
      %2746 = vrot.lane.b32.xlu0 %v2702, 119
      %v2747 = vpop.permute.xlu0 %2746
      %2748 = vrot.lane.b32.xlu0 %v2703, 119
      %v2749 = vpop.permute.xlu0 %2748
      %2750 = vrot.lane.b32.xlu0 %v2704, 119
      %v2751 = vpop.permute.xlu0 %2750
      %2752 = vrot.lane.b32.xlu0 %v2705, 119
      %v2753 = vpop.permute.xlu0 %2752
      %2754 = vrot.lane.b32.xlu0 %v2706, 119
      %v2755 = vpop.permute.xlu0 %2754
      %2756 = vrot.lane.b32.xlu0 %v2707, 119
      %v2757 = vpop.permute.xlu0 %2756
      %2758 = vrot.lane.b32.xlu0 %v2708, 119
      %v2759 = vpop.permute.xlu0 %2758
      %vm2760 = vcmask 973824
      %v2761 = vsel %vm2760, %v2727, %v2729
      %v2762 = vsel %vm2760, %v2729, %v2731
      %v2763 = vsel %vm2760, %v2731, %v2733
      %v2764 = vsel %vm2760, %v2733, %v2735
      %v2765 = vsel %vm2760, %v2735, %v2737
      %v2766 = vsel %vm2760, %v2737, %v2739
      %v2767 = vsel %vm2760, %v2739, %v2741
      %v2768 = vsel %vm2760, %v2741, %v2743
      %v2769 = vsel %vm2760, %v2743, %v2745
      %v2770 = vsel %vm2760, %v2745, %v2747
      %v2771 = vsel %vm2760, %v2747, %v2749
      %v2772 = vsel %vm2760, %v2749, %v2751
      %v2773 = vsel %vm2760, %v2751, %v2753
      %v2774 = vsel %vm2760, %v2753, %v2755
      %v2775 = vsel %vm2760, %v2755, %v2757
      %v2776 = vsel %vm2760, %v2757, %v2759
      %2793 = vst [vmem:[#allocation3 + $0x980] sm:$0xff] %v2761
      %2794 = vst [vmem:[#allocation3 + $0x988] sm:$0xff] %v2762
      %2795 = vst [vmem:[#allocation3 + $0x990] sm:$0xff] %v2763
      %2796 = vst [vmem:[#allocation3 + $0x998] sm:$0xff] %v2764
      %2797 = vst [vmem:[#allocation3 + $0x9a0] sm:$0xff] %v2765
      %2798 = vst [vmem:[#allocation3 + $0x9a8] sm:$0xff] %v2766
      %2799 = vst [vmem:[#allocation3 + $0x9b0] sm:$0xff] %v2767
      %2800 = vst [vmem:[#allocation3 + $0x9b8] sm:$0xff] %v2768
      %2801 = vst [vmem:[#allocation3 + $0x9c0] sm:$0xff] %v2769
      %2802 = vst [vmem:[#allocation3 + $0x9c8] sm:$0xff] %v2770
      %2803 = vst [vmem:[#allocation3 + $0x9d0] sm:$0xff] %v2771
      %2804 = vst [vmem:[#allocation3 + $0x9d8] sm:$0xff] %v2772
      %2805 = vst [vmem:[#allocation3 + $0x9e0] sm:$0xff] %v2773
      %2806 = vst [vmem:[#allocation3 + $0x9e8] sm:$0xff] %v2774
      %2807 = vst [vmem:[#allocation3 + $0x9f0] sm:$0xff] %v2775
      %2808 = vst [vmem:[#allocation3 + $0x9f8] sm:$0xff] %v2776
      %v2809 = vld [vmem:[#allocation2 + $0x14] sm:$0xff]
      %v2810 = vld [vmem:[#allocation2 + $0x1c] sm:$0xff]
      %v2811 = vld [vmem:[#allocation2 + $0x24] sm:$0xff]
      %v2812 = vld [vmem:[#allocation2 + $0x2c] sm:$0xff]
      %v2813 = vld [vmem:[#allocation2 + $0x34] sm:$0xff]
      %v2814 = vld [vmem:[#allocation2 + $0x3c] sm:$0xff]
      %v2815 = vld [vmem:[#allocation2 + $0x44] sm:$0xff]
      %v2816 = vld [vmem:[#allocation2 + $0x4c] sm:$0xff]
      %v2817 = vld [vmem:[#allocation2 + $0x54] sm:$0xf]
      %v2818 = vunpack.c.l.bf16 %v2809
      %v2819 = vunpack.c.h.bf16 %v2809
      %v2820 = vunpack.c.l.bf16 %v2810
      %v2821 = vunpack.c.h.bf16 %v2810
      %v2822 = vunpack.c.l.bf16 %v2811
      %v2823 = vunpack.c.h.bf16 %v2811
      %v2824 = vunpack.c.l.bf16 %v2812
      %v2825 = vunpack.c.h.bf16 %v2812
      %v2826 = vunpack.c.l.bf16 %v2813
      %v2827 = vunpack.c.h.bf16 %v2813
      %v2828 = vunpack.c.l.bf16 %v2814
      %v2829 = vunpack.c.h.bf16 %v2814
      %v2830 = vunpack.c.l.bf16 %v2815
      %v2831 = vunpack.c.h.bf16 %v2815
      %v2832 = vunpack.c.l.bf16 %v2816
      %v2833 = vunpack.c.h.bf16 %v2816
      %v2834 = vunpack.c.l.bf16 %v2817
      %2852 = vrot.lane.b32.xlu0 %v2818, 118
      %v2853 = vpop.permute.xlu0 %2852
      %2854 = vrot.lane.b32.xlu0 %v2819, 118
      %v2855 = vpop.permute.xlu0 %2854
      %2856 = vrot.lane.b32.xlu0 %v2820, 118
      %v2857 = vpop.permute.xlu0 %2856
      %2858 = vrot.lane.b32.xlu0 %v2821, 118
      %v2859 = vpop.permute.xlu0 %2858
      %2860 = vrot.lane.b32.xlu0 %v2822, 118
      %v2861 = vpop.permute.xlu0 %2860
      %2862 = vrot.lane.b32.xlu0 %v2823, 118
      %v2863 = vpop.permute.xlu0 %2862
      %2864 = vrot.lane.b32.xlu0 %v2824, 118
      %v2865 = vpop.permute.xlu0 %2864
      %2866 = vrot.lane.b32.xlu0 %v2825, 118
      %v2867 = vpop.permute.xlu0 %2866
      %2868 = vrot.lane.b32.xlu0 %v2826, 118
      %v2869 = vpop.permute.xlu0 %2868
      %2870 = vrot.lane.b32.xlu0 %v2827, 118
      %v2871 = vpop.permute.xlu0 %2870
      %2872 = vrot.lane.b32.xlu0 %v2828, 118
      %v2873 = vpop.permute.xlu0 %2872
      %2874 = vrot.lane.b32.xlu0 %v2829, 118
      %v2875 = vpop.permute.xlu0 %2874
      %2876 = vrot.lane.b32.xlu0 %v2830, 118
      %v2877 = vpop.permute.xlu0 %2876
      %2878 = vrot.lane.b32.xlu0 %v2831, 118
      %v2879 = vpop.permute.xlu0 %2878
      %2880 = vrot.lane.b32.xlu0 %v2832, 118
      %v2881 = vpop.permute.xlu0 %2880
      %2882 = vrot.lane.b32.xlu0 %v2833, 118
      %v2883 = vpop.permute.xlu0 %2882
      %2884 = vrot.lane.b32.xlu0 %v2834, 118
      %v2885 = vpop.permute.xlu0 %2884
      %vm2886 = vcmask 965632
      %v2887 = vsel %vm2886, %v2853, %v2855
      %v2888 = vsel %vm2886, %v2855, %v2857
      %v2889 = vsel %vm2886, %v2857, %v2859
      %v2890 = vsel %vm2886, %v2859, %v2861
      %v2891 = vsel %vm2886, %v2861, %v2863
      %v2892 = vsel %vm2886, %v2863, %v2865
      %v2893 = vsel %vm2886, %v2865, %v2867
      %v2894 = vsel %vm2886, %v2867, %v2869
      %v2895 = vsel %vm2886, %v2869, %v2871
      %v2896 = vsel %vm2886, %v2871, %v2873
      %v2897 = vsel %vm2886, %v2873, %v2875
      %v2898 = vsel %vm2886, %v2875, %v2877
      %v2899 = vsel %vm2886, %v2877, %v2879
      %v2900 = vsel %vm2886, %v2879, %v2881
      %v2901 = vsel %vm2886, %v2881, %v2883
      %v2902 = vsel %vm2886, %v2883, %v2885
      %2919 = vst [vmem:[#allocation3 + $0xa00] sm:$0xff] %v2887
      %2920 = vst [vmem:[#allocation3 + $0xa08] sm:$0xff] %v2888
      %2921 = vst [vmem:[#allocation3 + $0xa10] sm:$0xff] %v2889
      %2922 = vst [vmem:[#allocation3 + $0xa18] sm:$0xff] %v2890
      %2923 = vst [vmem:[#allocation3 + $0xa20] sm:$0xff] %v2891
      %2924 = vst [vmem:[#allocation3 + $0xa28] sm:$0xff] %v2892
      %2925 = vst [vmem:[#allocation3 + $0xa30] sm:$0xff] %v2893
      %2926 = vst [vmem:[#allocation3 + $0xa38] sm:$0xff] %v2894
      %2927 = vst [vmem:[#allocation3 + $0xa40] sm:$0xff] %v2895
      %2928 = vst [vmem:[#allocation3 + $0xa48] sm:$0xff] %v2896
      %2929 = vst [vmem:[#allocation3 + $0xa50] sm:$0xff] %v2897
      %2930 = vst [vmem:[#allocation3 + $0xa58] sm:$0xff] %v2898
      %2931 = vst [vmem:[#allocation3 + $0xa60] sm:$0xff] %v2899
      %2932 = vst [vmem:[#allocation3 + $0xa68] sm:$0xff] %v2900
      %2933 = vst [vmem:[#allocation3 + $0xa70] sm:$0xff] %v2901
      %2934 = vst [vmem:[#allocation3 + $0xa78] sm:$0xff] %v2902
      %v2935 = vld [vmem:[#allocation2 + $0x14] sm:$0xff]
      %v2936 = vld [vmem:[#allocation2 + $0x1c] sm:$0xff]
      %v2937 = vld [vmem:[#allocation2 + $0x24] sm:$0xff]
      %v2938 = vld [vmem:[#allocation2 + $0x2c] sm:$0xff]
      %v2939 = vld [vmem:[#allocation2 + $0x34] sm:$0xff]
      %v2940 = vld [vmem:[#allocation2 + $0x3c] sm:$0xff]
      %v2941 = vld [vmem:[#allocation2 + $0x44] sm:$0xff]
      %v2942 = vld [vmem:[#allocation2 + $0x4c] sm:$0xff]
      %v2943 = vld [vmem:[#allocation2 + $0x54] sm:$0xf]
      %v2944 = vunpack.c.l.bf16 %v2935
      %v2945 = vunpack.c.h.bf16 %v2935
      %v2946 = vunpack.c.l.bf16 %v2936
      %v2947 = vunpack.c.h.bf16 %v2936
      %v2948 = vunpack.c.l.bf16 %v2937
      %v2949 = vunpack.c.h.bf16 %v2937
      %v2950 = vunpack.c.l.bf16 %v2938
      %v2951 = vunpack.c.h.bf16 %v2938
      %v2952 = vunpack.c.l.bf16 %v2939
      %v2953 = vunpack.c.h.bf16 %v2939
      %v2954 = vunpack.c.l.bf16 %v2940
      %v2955 = vunpack.c.h.bf16 %v2940
      %v2956 = vunpack.c.l.bf16 %v2941
      %v2957 = vunpack.c.h.bf16 %v2941
      %v2958 = vunpack.c.l.bf16 %v2942
      %v2959 = vunpack.c.h.bf16 %v2942
      %v2960 = vunpack.c.l.bf16 %v2943
      %2978 = vrot.lane.b32.xlu0 %v2944, 102
      %v2979 = vpop.permute.xlu0 %2978
      %2980 = vrot.lane.b32.xlu0 %v2945, 102
      %v2981 = vpop.permute.xlu0 %2980
      %2982 = vrot.lane.b32.xlu0 %v2946, 102
      %v2983 = vpop.permute.xlu0 %2982
      %2984 = vrot.lane.b32.xlu0 %v2947, 102
      %v2985 = vpop.permute.xlu0 %2984
      %2986 = vrot.lane.b32.xlu0 %v2948, 102
      %v2987 = vpop.permute.xlu0 %2986
      %2988 = vrot.lane.b32.xlu0 %v2949, 102
      %v2989 = vpop.permute.xlu0 %2988
      %2990 = vrot.lane.b32.xlu0 %v2950, 102
      %v2991 = vpop.permute.xlu0 %2990
      %2992 = vrot.lane.b32.xlu0 %v2951, 102
      %v2993 = vpop.permute.xlu0 %2992
      %2994 = vrot.lane.b32.xlu0 %v2952, 102
      %v2995 = vpop.permute.xlu0 %2994
      %2996 = vrot.lane.b32.xlu0 %v2953, 102
      %v2997 = vpop.permute.xlu0 %2996
      %2998 = vrot.lane.b32.xlu0 %v2954, 102
      %v2999 = vpop.permute.xlu0 %2998
      %3000 = vrot.lane.b32.xlu0 %v2955, 102
      %v3001 = vpop.permute.xlu0 %3000
      %3002 = vrot.lane.b32.xlu0 %v2956, 102
      %v3003 = vpop.permute.xlu0 %3002
      %3004 = vrot.lane.b32.xlu0 %v2957, 102
      %v3005 = vpop.permute.xlu0 %3004
      %3006 = vrot.lane.b32.xlu0 %v2958, 102
      %v3007 = vpop.permute.xlu0 %3006
      %3008 = vrot.lane.b32.xlu0 %v2959, 102
      %v3009 = vpop.permute.xlu0 %3008
      %3010 = vrot.lane.b32.xlu0 %v2960, 102
      %v3011 = vpop.permute.xlu0 %3010
      %vm3012 = vcmask 834560
      %v3013 = vsel %vm3012, %v2979, %v2981
      %v3014 = vsel %vm3012, %v2981, %v2983
      %v3015 = vsel %vm3012, %v2983, %v2985
      %v3016 = vsel %vm3012, %v2985, %v2987
      %v3017 = vsel %vm3012, %v2987, %v2989
      %v3018 = vsel %vm3012, %v2989, %v2991
      %v3019 = vsel %vm3012, %v2991, %v2993
      %v3020 = vsel %vm3012, %v2993, %v2995
      %v3021 = vsel %vm3012, %v2995, %v2997
      %v3022 = vsel %vm3012, %v2997, %v2999
      %v3023 = vsel %vm3012, %v2999, %v3001
      %v3024 = vsel %vm3012, %v3001, %v3003
      %v3025 = vsel %vm3012, %v3003, %v3005
      %v3026 = vsel %vm3012, %v3005, %v3007
      %v3027 = vsel %vm3012, %v3007, %v3009
      %v3028 = vsel %vm3012, %v3009, %v3011
      %3045 = vst [vmem:[#allocation3 + $0xa80] sm:$0xff] %v3013
      %3046 = vst [vmem:[#allocation3 + $0xa88] sm:$0xff] %v3014
      %3047 = vst [vmem:[#allocation3 + $0xa90] sm:$0xff] %v3015
      %3048 = vst [vmem:[#allocation3 + $0xa98] sm:$0xff] %v3016
      %3049 = vst [vmem:[#allocation3 + $0xaa0] sm:$0xff] %v3017
      %3050 = vst [vmem:[#allocation3 + $0xaa8] sm:$0xff] %v3018
      %3051 = vst [vmem:[#allocation3 + $0xab0] sm:$0xff] %v3019
      %3052 = vst [vmem:[#allocation3 + $0xab8] sm:$0xff] %v3020
      %3053 = vst [vmem:[#allocation3 + $0xac0] sm:$0xff] %v3021
      %3054 = vst [vmem:[#allocation3 + $0xac8] sm:$0xff] %v3022
      %3055 = vst [vmem:[#allocation3 + $0xad0] sm:$0xff] %v3023
      %3056 = vst [vmem:[#allocation3 + $0xad8] sm:$0xff] %v3024
      %3057 = vst [vmem:[#allocation3 + $0xae0] sm:$0xff] %v3025
      %3058 = vst [vmem:[#allocation3 + $0xae8] sm:$0xff] %v3026
      %3059 = vst [vmem:[#allocation3 + $0xaf0] sm:$0xff] %v3027
      %3060 = vst [vmem:[#allocation3 + $0xaf8] sm:$0xff] %v3028
      %v3061 = vld [vmem:[#allocation2 + $0x14] sm:$0xff]
      %v3062 = vld [vmem:[#allocation2 + $0x1c] sm:$0xff]
      %v3063 = vld [vmem:[#allocation2 + $0x24] sm:$0xff]
      %v3064 = vld [vmem:[#allocation2 + $0x2c] sm:$0xff]
      %v3065 = vld [vmem:[#allocation2 + $0x34] sm:$0xff]
      %v3066 = vld [vmem:[#allocation2 + $0x3c] sm:$0xff]
      %v3067 = vld [vmem:[#allocation2 + $0x44] sm:$0xff]
      %v3068 = vld [vmem:[#allocation2 + $0x4c] sm:$0xff]
      %v3069 = vld [vmem:[#allocation2 + $0x54] sm:$0xf]
      %v3070 = vunpack.c.l.bf16 %v3061
      %v3071 = vunpack.c.h.bf16 %v3061
      %v3072 = vunpack.c.l.bf16 %v3062
      %v3073 = vunpack.c.h.bf16 %v3062
      %v3074 = vunpack.c.l.bf16 %v3063
      %v3075 = vunpack.c.h.bf16 %v3063
      %v3076 = vunpack.c.l.bf16 %v3064
      %v3077 = vunpack.c.h.bf16 %v3064
      %v3078 = vunpack.c.l.bf16 %v3065
      %v3079 = vunpack.c.h.bf16 %v3065
      %v3080 = vunpack.c.l.bf16 %v3066
      %v3081 = vunpack.c.h.bf16 %v3066
      %v3082 = vunpack.c.l.bf16 %v3067
      %v3083 = vunpack.c.h.bf16 %v3067
      %v3084 = vunpack.c.l.bf16 %v3068
      %v3085 = vunpack.c.h.bf16 %v3068
      %v3086 = vunpack.c.l.bf16 %v3069
      %3104 = vrot.lane.b32.xlu0 %v3070, 101
      %v3105 = vpop.permute.xlu0 %3104
      %3106 = vrot.lane.b32.xlu0 %v3071, 101
      %v3107 = vpop.permute.xlu0 %3106
      %3108 = vrot.lane.b32.xlu0 %v3072, 101
      %v3109 = vpop.permute.xlu0 %3108
      %3110 = vrot.lane.b32.xlu0 %v3073, 101
      %v3111 = vpop.permute.xlu0 %3110
      %3112 = vrot.lane.b32.xlu0 %v3074, 101
      %v3113 = vpop.permute.xlu0 %3112
      %3114 = vrot.lane.b32.xlu0 %v3075, 101
      %v3115 = vpop.permute.xlu0 %3114
      %3116 = vrot.lane.b32.xlu0 %v3076, 101
      %v3117 = vpop.permute.xlu0 %3116
      %3118 = vrot.lane.b32.xlu0 %v3077, 101
      %v3119 = vpop.permute.xlu0 %3118
      %3120 = vrot.lane.b32.xlu0 %v3078, 101
      %v3121 = vpop.permute.xlu0 %3120
      %3122 = vrot.lane.b32.xlu0 %v3079, 101
      %v3123 = vpop.permute.xlu0 %3122
      %3124 = vrot.lane.b32.xlu0 %v3080, 101
      %v3125 = vpop.permute.xlu0 %3124
      %3126 = vrot.lane.b32.xlu0 %v3081, 101
      %v3127 = vpop.permute.xlu0 %3126
      %3128 = vrot.lane.b32.xlu0 %v3082, 101
      %v3129 = vpop.permute.xlu0 %3128
      %3130 = vrot.lane.b32.xlu0 %v3083, 101
      %v3131 = vpop.permute.xlu0 %3130
      %3132 = vrot.lane.b32.xlu0 %v3084, 101
      %v3133 = vpop.permute.xlu0 %3132
      %3134 = vrot.lane.b32.xlu0 %v3085, 101
      %v3135 = vpop.permute.xlu0 %3134
      %3136 = vrot.lane.b32.xlu0 %v3086, 101
      %v3137 = vpop.permute.xlu0 %3136
      %vm3138 = vcmask 826368
      %v3139 = vsel %vm3138, %v3105, %v3107
      %v3140 = vsel %vm3138, %v3107, %v3109
      %v3141 = vsel %vm3138, %v3109, %v3111
      %v3142 = vsel %vm3138, %v3111, %v3113
      %v3143 = vsel %vm3138, %v3113, %v3115
      %v3144 = vsel %vm3138, %v3115, %v3117
      %v3145 = vsel %vm3138, %v3117, %v3119
      %v3146 = vsel %vm3138, %v3119, %v3121
      %v3147 = vsel %vm3138, %v3121, %v3123
      %v3148 = vsel %vm3138, %v3123, %v3125
      %v3149 = vsel %vm3138, %v3125, %v3127
      %v3150 = vsel %vm3138, %v3127, %v3129
      %v3151 = vsel %vm3138, %v3129, %v3131
      %v3152 = vsel %vm3138, %v3131, %v3133
      %v3153 = vsel %vm3138, %v3133, %v3135
      %v3154 = vsel %vm3138, %v3135, %v3137
      %3171 = vst [vmem:[#allocation3 + $0xb00] sm:$0xff] %v3139
      %3172 = vst [vmem:[#allocation3 + $0xb08] sm:$0xff] %v3140
      %3173 = vst [vmem:[#allocation3 + $0xb10] sm:$0xff] %v3141
      %3174 = vst [vmem:[#allocation3 + $0xb18] sm:$0xff] %v3142
      %3175 = vst [vmem:[#allocation3 + $0xb20] sm:$0xff] %v3143
      %3176 = vst [vmem:[#allocation3 + $0xb28] sm:$0xff] %v3144
      %3177 = vst [vmem:[#allocation3 + $0xb30] sm:$0xff] %v3145
      %3178 = vst [vmem:[#allocation3 + $0xb38] sm:$0xff] %v3146
      %3179 = vst [vmem:[#allocation3 + $0xb40] sm:$0xff] %v3147
      %3180 = vst [vmem:[#allocation3 + $0xb48] sm:$0xff] %v3148
      %3181 = vst [vmem:[#allocation3 + $0xb50] sm:$0xff] %v3149
      %3182 = vst [vmem:[#allocation3 + $0xb58] sm:$0xff] %v3150
      %3183 = vst [vmem:[#allocation3 + $0xb60] sm:$0xff] %v3151
      %3184 = vst [vmem:[#allocation3 + $0xb68] sm:$0xff] %v3152
      %3185 = vst [vmem:[#allocation3 + $0xb70] sm:$0xff] %v3153
      %3186 = vst [vmem:[#allocation3 + $0xb78] sm:$0xff] %v3154
      %v3187 = vld [vmem:[#allocation2 + $0x14] sm:$0xff]
      %v3188 = vld [vmem:[#allocation2 + $0x1c] sm:$0xff]
      %v3189 = vld [vmem:[#allocation2 + $0x24] sm:$0xff]
      %v3190 = vld [vmem:[#allocation2 + $0x2c] sm:$0xff]
      %v3191 = vld [vmem:[#allocation2 + $0x34] sm:$0xff]
      %v3192 = vld [vmem:[#allocation2 + $0x3c] sm:$0xff]
      %v3193 = vld [vmem:[#allocation2 + $0x44] sm:$0xff]
      %v3194 = vld [vmem:[#allocation2 + $0x4c] sm:$0xff]
      %v3195 = vld [vmem:[#allocation2 + $0x54] sm:$0xf]
      %v3196 = vunpack.c.l.bf16 %v3187
      %v3197 = vunpack.c.h.bf16 %v3187
      %v3198 = vunpack.c.l.bf16 %v3188
      %v3199 = vunpack.c.h.bf16 %v3188
      %v3200 = vunpack.c.l.bf16 %v3189
      %v3201 = vunpack.c.h.bf16 %v3189
      %v3202 = vunpack.c.l.bf16 %v3190
      %v3203 = vunpack.c.h.bf16 %v3190
      %v3204 = vunpack.c.l.bf16 %v3191
      %v3205 = vunpack.c.h.bf16 %v3191
      %v3206 = vunpack.c.l.bf16 %v3192
      %v3207 = vunpack.c.h.bf16 %v3192
      %v3208 = vunpack.c.l.bf16 %v3193
      %v3209 = vunpack.c.h.bf16 %v3193
      %v3210 = vunpack.c.l.bf16 %v3194
      %v3211 = vunpack.c.h.bf16 %v3194
      %v3212 = vunpack.c.l.bf16 %v3195
      %3230 = vrot.lane.b32.xlu0 %v3196, 100
      %v3231 = vpop.permute.xlu0 %3230
      %3232 = vrot.lane.b32.xlu0 %v3197, 100
      %v3233 = vpop.permute.xlu0 %3232
      %3234 = vrot.lane.b32.xlu0 %v3198, 100
      %v3235 = vpop.permute.xlu0 %3234
      %3236 = vrot.lane.b32.xlu0 %v3199, 100
      %v3237 = vpop.permute.xlu0 %3236
      %3238 = vrot.lane.b32.xlu0 %v3200, 100
      %v3239 = vpop.permute.xlu0 %3238
      %3240 = vrot.lane.b32.xlu0 %v3201, 100
      %v3241 = vpop.permute.xlu0 %3240
      %3242 = vrot.lane.b32.xlu0 %v3202, 100
      %v3243 = vpop.permute.xlu0 %3242
      %3244 = vrot.lane.b32.xlu0 %v3203, 100
      %v3245 = vpop.permute.xlu0 %3244
      %3246 = vrot.lane.b32.xlu0 %v3204, 100
      %v3247 = vpop.permute.xlu0 %3246
      %3248 = vrot.lane.b32.xlu0 %v3205, 100
      %v3249 = vpop.permute.xlu0 %3248
      %3250 = vrot.lane.b32.xlu0 %v3206, 100
      %v3251 = vpop.permute.xlu0 %3250
      %3252 = vrot.lane.b32.xlu0 %v3207, 100
      %v3253 = vpop.permute.xlu0 %3252
      %3254 = vrot.lane.b32.xlu0 %v3208, 100
      %v3255 = vpop.permute.xlu0 %3254
      %3256 = vrot.lane.b32.xlu0 %v3209, 100
      %v3257 = vpop.permute.xlu0 %3256
      %3258 = vrot.lane.b32.xlu0 %v3210, 100
      %v3259 = vpop.permute.xlu0 %3258
      %3260 = vrot.lane.b32.xlu0 %v3211, 100
      %v3261 = vpop.permute.xlu0 %3260
      %3262 = vrot.lane.b32.xlu0 %v3212, 100
      %v3263 = vpop.permute.xlu0 %3262
      %vm3264 = vcmask 818176
      %v3265 = vsel %vm3264, %v3231, %v3233
      %v3266 = vsel %vm3264, %v3233, %v3235
      %v3267 = vsel %vm3264, %v3235, %v3237
      %v3268 = vsel %vm3264, %v3237, %v3239
      %v3269 = vsel %vm3264, %v3239, %v3241
      %v3270 = vsel %vm3264, %v3241, %v3243
      %v3271 = vsel %vm3264, %v3243, %v3245
      %v3272 = vsel %vm3264, %v3245, %v3247
      %v3273 = vsel %vm3264, %v3247, %v3249
      %v3274 = vsel %vm3264, %v3249, %v3251
      %v3275 = vsel %vm3264, %v3251, %v3253
      %v3276 = vsel %vm3264, %v3253, %v3255
      %v3277 = vsel %vm3264, %v3255, %v3257
      %v3278 = vsel %vm3264, %v3257, %v3259
      %v3279 = vsel %vm3264, %v3259, %v3261
      %v3280 = vsel %vm3264, %v3261, %v3263
      %3297 = vst [vmem:[#allocation3 + $0xb80] sm:$0xff] %v3265
      %3298 = vst [vmem:[#allocation3 + $0xb88] sm:$0xff] %v3266
      %3299 = vst [vmem:[#allocation3 + $0xb90] sm:$0xff] %v3267
      %3300 = vst [vmem:[#allocation3 + $0xb98] sm:$0xff] %v3268
      %3301 = vst [vmem:[#allocation3 + $0xba0] sm:$0xff] %v3269
      %3302 = vst [vmem:[#allocation3 + $0xba8] sm:$0xff] %v3270
      %3303 = vst [vmem:[#allocation3 + $0xbb0] sm:$0xff] %v3271
      %3304 = vst [vmem:[#allocation3 + $0xbb8] sm:$0xff] %v3272
      %3305 = vst [vmem:[#allocation3 + $0xbc0] sm:$0xff] %v3273
      %3306 = vst [vmem:[#allocation3 + $0xbc8] sm:$0xff] %v3274
      %3307 = vst [vmem:[#allocation3 + $0xbd0] sm:$0xff] %v3275
      %3308 = vst [vmem:[#allocation3 + $0xbd8] sm:$0xff] %v3276
      %3309 = vst [vmem:[#allocation3 + $0xbe0] sm:$0xff] %v3277
      %3310 = vst [vmem:[#allocation3 + $0xbe8] sm:$0xff] %v3278
      %3311 = vst [vmem:[#allocation3 + $0xbf0] sm:$0xff] %v3279
      %3312 = vst [vmem:[#allocation3 + $0xbf8] sm:$0xff] %v3280
      %v3313 = vld [vmem:[#allocation2 + $0x14] sm:$0xff]
      %v3314 = vld [vmem:[#allocation2 + $0x1c] sm:$0xff]
      %v3315 = vld [vmem:[#allocation2 + $0x24] sm:$0xff]
      %v3316 = vld [vmem:[#allocation2 + $0x2c] sm:$0xff]
      %v3317 = vld [vmem:[#allocation2 + $0x34] sm:$0xff]
      %v3318 = vld [vmem:[#allocation2 + $0x3c] sm:$0xff]
      %v3319 = vld [vmem:[#allocation2 + $0x44] sm:$0xff]
      %v3320 = vld [vmem:[#allocation2 + $0x4c] sm:$0xff]
      %v3321 = vld [vmem:[#allocation2 + $0x54] sm:$0xf]
      %v3322 = vunpack.c.l.bf16 %v3313
      %v3323 = vunpack.c.h.bf16 %v3313
      %v3324 = vunpack.c.l.bf16 %v3314
      %v3325 = vunpack.c.h.bf16 %v3314
      %v3326 = vunpack.c.l.bf16 %v3315
      %v3327 = vunpack.c.h.bf16 %v3315
      %v3328 = vunpack.c.l.bf16 %v3316
      %v3329 = vunpack.c.h.bf16 %v3316
      %v3330 = vunpack.c.l.bf16 %v3317
      %v3331 = vunpack.c.h.bf16 %v3317
      %v3332 = vunpack.c.l.bf16 %v3318
      %v3333 = vunpack.c.h.bf16 %v3318
      %v3334 = vunpack.c.l.bf16 %v3319
      %v3335 = vunpack.c.h.bf16 %v3319
      %v3336 = vunpack.c.l.bf16 %v3320
      %v3337 = vunpack.c.h.bf16 %v3320
      %v3338 = vunpack.c.l.bf16 %v3321
      %3356 = vrot.lane.b32.xlu0 %v3322, 84
      %v3357 = vpop.permute.xlu0 %3356
      %3358 = vrot.lane.b32.xlu0 %v3323, 84
      %v3359 = vpop.permute.xlu0 %3358
      %3360 = vrot.lane.b32.xlu0 %v3324, 84
      %v3361 = vpop.permute.xlu0 %3360
      %3362 = vrot.lane.b32.xlu0 %v3325, 84
      %v3363 = vpop.permute.xlu0 %3362
      %3364 = vrot.lane.b32.xlu0 %v3326, 84
      %v3365 = vpop.permute.xlu0 %3364
      %3366 = vrot.lane.b32.xlu0 %v3327, 84
      %v3367 = vpop.permute.xlu0 %3366
      %3368 = vrot.lane.b32.xlu0 %v3328, 84
      %v3369 = vpop.permute.xlu0 %3368
      %3370 = vrot.lane.b32.xlu0 %v3329, 84
      %v3371 = vpop.permute.xlu0 %3370
      %3372 = vrot.lane.b32.xlu0 %v3330, 84
      %v3373 = vpop.permute.xlu0 %3372
      %3374 = vrot.lane.b32.xlu0 %v3331, 84
      %v3375 = vpop.permute.xlu0 %3374
      %3376 = vrot.lane.b32.xlu0 %v3332, 84
      %v3377 = vpop.permute.xlu0 %3376
      %3378 = vrot.lane.b32.xlu0 %v3333, 84
      %v3379 = vpop.permute.xlu0 %3378
      %3380 = vrot.lane.b32.xlu0 %v3334, 84
      %v3381 = vpop.permute.xlu0 %3380
      %3382 = vrot.lane.b32.xlu0 %v3335, 84
      %v3383 = vpop.permute.xlu0 %3382
      %3384 = vrot.lane.b32.xlu0 %v3336, 84
      %v3385 = vpop.permute.xlu0 %3384
      %3386 = vrot.lane.b32.xlu0 %v3337, 84
      %v3387 = vpop.permute.xlu0 %3386
      %3388 = vrot.lane.b32.xlu0 %v3338, 84
      %v3389 = vpop.permute.xlu0 %3388
      %vm3390 = vcmask 687104
      %v3391 = vsel %vm3390, %v3357, %v3359
      %v3392 = vsel %vm3390, %v3359, %v3361
      %v3393 = vsel %vm3390, %v3361, %v3363
      %v3394 = vsel %vm3390, %v3363, %v3365
      %v3395 = vsel %vm3390, %v3365, %v3367
      %v3396 = vsel %vm3390, %v3367, %v3369
      %v3397 = vsel %vm3390, %v3369, %v3371
      %v3398 = vsel %vm3390, %v3371, %v3373
      %v3399 = vsel %vm3390, %v3373, %v3375
      %v3400 = vsel %vm3390, %v3375, %v3377
      %v3401 = vsel %vm3390, %v3377, %v3379
      %v3402 = vsel %vm3390, %v3379, %v3381
      %v3403 = vsel %vm3390, %v3381, %v3383
      %v3404 = vsel %vm3390, %v3383, %v3385
      %v3405 = vsel %vm3390, %v3385, %v3387
      %v3406 = vsel %vm3390, %v3387, %v3389
      %3423 = vst [vmem:[#allocation3 + $0xc00] sm:$0xff] %v3391
      %3424 = vst [vmem:[#allocation3 + $0xc08] sm:$0xff] %v3392
      %3425 = vst [vmem:[#allocation3 + $0xc10] sm:$0xff] %v3393
      %3426 = vst [vmem:[#allocation3 + $0xc18] sm:$0xff] %v3394
      %3427 = vst [vmem:[#allocation3 + $0xc20] sm:$0xff] %v3395
      %3428 = vst [vmem:[#allocation3 + $0xc28] sm:$0xff] %v3396
      %3429 = vst [vmem:[#allocation3 + $0xc30] sm:$0xff] %v3397
      %3430 = vst [vmem:[#allocation3 + $0xc38] sm:$0xff] %v3398
      %3431 = vst [vmem:[#allocation3 + $0xc40] sm:$0xff] %v3399
      %3432 = vst [vmem:[#allocation3 + $0xc48] sm:$0xff] %v3400
      %3433 = vst [vmem:[#allocation3 + $0xc50] sm:$0xff] %v3401
      %3434 = vst [vmem:[#allocation3 + $0xc58] sm:$0xff] %v3402
      %3435 = vst [vmem:[#allocation3 + $0xc60] sm:$0xff] %v3403
      %3436 = vst [vmem:[#allocation3 + $0xc68] sm:$0xff] %v3404
      %3437 = vst [vmem:[#allocation3 + $0xc70] sm:$0xff] %v3405
      %3438 = vst [vmem:[#allocation3 + $0xc78] sm:$0xff] %v3406
      %v3439 = vld [vmem:[#allocation2 + $0x14] sm:$0xff]
      %v3440 = vld [vmem:[#allocation2 + $0x1c] sm:$0xff]
      %v3441 = vld [vmem:[#allocation2 + $0x24] sm:$0xff]
      %v3442 = vld [vmem:[#allocation2 + $0x2c] sm:$0xff]
      %v3443 = vld [vmem:[#allocation2 + $0x34] sm:$0xff]
      %v3444 = vld [vmem:[#allocation2 + $0x3c] sm:$0xff]
      %v3445 = vld [vmem:[#allocation2 + $0x44] sm:$0xff]
      %v3446 = vld [vmem:[#allocation2 + $0x4c] sm:$0xff]
      %v3447 = vld [vmem:[#allocation2 + $0x54] sm:$0xf]
      %v3448 = vunpack.c.l.bf16 %v3439
      %v3449 = vunpack.c.h.bf16 %v3439
      %v3450 = vunpack.c.l.bf16 %v3440
      %v3451 = vunpack.c.h.bf16 %v3440
      %v3452 = vunpack.c.l.bf16 %v3441
      %v3453 = vunpack.c.h.bf16 %v3441
      %v3454 = vunpack.c.l.bf16 %v3442
      %v3455 = vunpack.c.h.bf16 %v3442
      %v3456 = vunpack.c.l.bf16 %v3443
      %v3457 = vunpack.c.h.bf16 %v3443
      %v3458 = vunpack.c.l.bf16 %v3444
      %v3459 = vunpack.c.h.bf16 %v3444
      %v3460 = vunpack.c.l.bf16 %v3445
      %v3461 = vunpack.c.h.bf16 %v3445
      %v3462 = vunpack.c.l.bf16 %v3446
      %v3463 = vunpack.c.h.bf16 %v3446
      %v3464 = vunpack.c.l.bf16 %v3447
      %3482 = vrot.lane.b32.xlu0 %v3448, 83
      %v3483 = vpop.permute.xlu0 %3482
      %3484 = vrot.lane.b32.xlu0 %v3449, 83
      %v3485 = vpop.permute.xlu0 %3484
      %3486 = vrot.lane.b32.xlu0 %v3450, 83
      %v3487 = vpop.permute.xlu0 %3486
      %3488 = vrot.lane.b32.xlu0 %v3451, 83
      %v3489 = vpop.permute.xlu0 %3488
      %3490 = vrot.lane.b32.xlu0 %v3452, 83
      %v3491 = vpop.permute.xlu0 %3490
      %3492 = vrot.lane.b32.xlu0 %v3453, 83
      %v3493 = vpop.permute.xlu0 %3492
      %3494 = vrot.lane.b32.xlu0 %v3454, 83
      %v3495 = vpop.permute.xlu0 %3494
      %3496 = vrot.lane.b32.xlu0 %v3455, 83
      %v3497 = vpop.permute.xlu0 %3496
      %3498 = vrot.lane.b32.xlu0 %v3456, 83
      %v3499 = vpop.permute.xlu0 %3498
      %3500 = vrot.lane.b32.xlu0 %v3457, 83
      %v3501 = vpop.permute.xlu0 %3500
      %3502 = vrot.lane.b32.xlu0 %v3458, 83
      %v3503 = vpop.permute.xlu0 %3502
      %3504 = vrot.lane.b32.xlu0 %v3459, 83
      %v3505 = vpop.permute.xlu0 %3504
      %3506 = vrot.lane.b32.xlu0 %v3460, 83
      %v3507 = vpop.permute.xlu0 %3506
      %3508 = vrot.lane.b32.xlu0 %v3461, 83
      %v3509 = vpop.permute.xlu0 %3508
      %3510 = vrot.lane.b32.xlu0 %v3462, 83
      %v3511 = vpop.permute.xlu0 %3510
      %3512 = vrot.lane.b32.xlu0 %v3463, 83
      %v3513 = vpop.permute.xlu0 %3512
      %3514 = vrot.lane.b32.xlu0 %v3464, 83
      %v3515 = vpop.permute.xlu0 %3514
      %vm3516 = vcmask 678912
      %v3517 = vsel %vm3516, %v3483, %v3485
      %v3518 = vsel %vm3516, %v3485, %v3487
      %v3519 = vsel %vm3516, %v3487, %v3489
      %v3520 = vsel %vm3516, %v3489, %v3491
      %v3521 = vsel %vm3516, %v3491, %v3493
      %v3522 = vsel %vm3516, %v3493, %v3495
      %v3523 = vsel %vm3516, %v3495, %v3497
      %v3524 = vsel %vm3516, %v3497, %v3499
      %v3525 = vsel %vm3516, %v3499, %v3501
      %v3526 = vsel %vm3516, %v3501, %v3503
      %v3527 = vsel %vm3516, %v3503, %v3505
      %v3528 = vsel %vm3516, %v3505, %v3507
      %v3529 = vsel %vm3516, %v3507, %v3509
      %v3530 = vsel %vm3516, %v3509, %v3511
      %v3531 = vsel %vm3516, %v3511, %v3513
      %v3532 = vsel %vm3516, %v3513, %v3515
      %3549 = vst [vmem:[#allocation3 + $0xc80] sm:$0xff] %v3517
      %3550 = vst [vmem:[#allocation3 + $0xc88] sm:$0xff] %v3518
      %3551 = vst [vmem:[#allocation3 + $0xc90] sm:$0xff] %v3519
      %3552 = vst [vmem:[#allocation3 + $0xc98] sm:$0xff] %v3520
      %3553 = vst [vmem:[#allocation3 + $0xca0] sm:$0xff] %v3521
      %3554 = vst [vmem:[#allocation3 + $0xca8] sm:$0xff] %v3522
      %3555 = vst [vmem:[#allocation3 + $0xcb0] sm:$0xff] %v3523
      %3556 = vst [vmem:[#allocation3 + $0xcb8] sm:$0xff] %v3524
      %3557 = vst [vmem:[#allocation3 + $0xcc0] sm:$0xff] %v3525
      %3558 = vst [vmem:[#allocation3 + $0xcc8] sm:$0xff] %v3526
      %3559 = vst [vmem:[#allocation3 + $0xcd0] sm:$0xff] %v3527
      %3560 = vst [vmem:[#allocation3 + $0xcd8] sm:$0xff] %v3528
      %3561 = vst [vmem:[#allocation3 + $0xce0] sm:$0xff] %v3529
      %3562 = vst [vmem:[#allocation3 + $0xce8] sm:$0xff] %v3530
      %3563 = vst [vmem:[#allocation3 + $0xcf0] sm:$0xff] %v3531
      %3564 = vst [vmem:[#allocation3 + $0xcf8] sm:$0xff] %v3532
      %v3565 = vld [vmem:[#allocation2 + $0x14] sm:$0xff]
      %v3566 = vld [vmem:[#allocation2 + $0x1c] sm:$0xff]
      %v3567 = vld [vmem:[#allocation2 + $0x24] sm:$0xff]
      %v3568 = vld [vmem:[#allocation2 + $0x2c] sm:$0xff]
      %v3569 = vld [vmem:[#allocation2 + $0x34] sm:$0xff]
      %v3570 = vld [vmem:[#allocation2 + $0x3c] sm:$0xff]
      %v3571 = vld [vmem:[#allocation2 + $0x44] sm:$0xff]
      %v3572 = vld [vmem:[#allocation2 + $0x4c] sm:$0xff]
      %v3573 = vld [vmem:[#allocation2 + $0x54] sm:$0xf]
      %v3574 = vunpack.c.l.bf16 %v3565
      %v3575 = vunpack.c.h.bf16 %v3565
      %v3576 = vunpack.c.l.bf16 %v3566
      %v3577 = vunpack.c.h.bf16 %v3566
      %v3578 = vunpack.c.l.bf16 %v3567
      %v3579 = vunpack.c.h.bf16 %v3567
      %v3580 = vunpack.c.l.bf16 %v3568
      %v3581 = vunpack.c.h.bf16 %v3568
      %v3582 = vunpack.c.l.bf16 %v3569
      %v3583 = vunpack.c.h.bf16 %v3569
      %v3584 = vunpack.c.l.bf16 %v3570
      %v3585 = vunpack.c.h.bf16 %v3570
      %v3586 = vunpack.c.l.bf16 %v3571
      %v3587 = vunpack.c.h.bf16 %v3571
      %v3588 = vunpack.c.l.bf16 %v3572
      %v3589 = vunpack.c.h.bf16 %v3572
      %v3590 = vunpack.c.l.bf16 %v3573
      %3608 = vrot.lane.b32.xlu0 %v3574, 82
      %v3609 = vpop.permute.xlu0 %3608
      %3610 = vrot.lane.b32.xlu0 %v3575, 82
      %v3611 = vpop.permute.xlu0 %3610
      %3612 = vrot.lane.b32.xlu0 %v3576, 82
      %v3613 = vpop.permute.xlu0 %3612
      %3614 = vrot.lane.b32.xlu0 %v3577, 82
      %v3615 = vpop.permute.xlu0 %3614
      %3616 = vrot.lane.b32.xlu0 %v3578, 82
      %v3617 = vpop.permute.xlu0 %3616
      %3618 = vrot.lane.b32.xlu0 %v3579, 82
      %v3619 = vpop.permute.xlu0 %3618
      %3620 = vrot.lane.b32.xlu0 %v3580, 82
      %v3621 = vpop.permute.xlu0 %3620
      %3622 = vrot.lane.b32.xlu0 %v3581, 82
      %v3623 = vpop.permute.xlu0 %3622
      %3624 = vrot.lane.b32.xlu0 %v3582, 82
      %v3625 = vpop.permute.xlu0 %3624
      %3626 = vrot.lane.b32.xlu0 %v3583, 82
      %v3627 = vpop.permute.xlu0 %3626
      %3628 = vrot.lane.b32.xlu0 %v3584, 82
      %v3629 = vpop.permute.xlu0 %3628
      %3630 = vrot.lane.b32.xlu0 %v3585, 82
      %v3631 = vpop.permute.xlu0 %3630
      %3632 = vrot.lane.b32.xlu0 %v3586, 82
      %v3633 = vpop.permute.xlu0 %3632
      %3634 = vrot.lane.b32.xlu0 %v3587, 82
      %v3635 = vpop.permute.xlu0 %3634
      %3636 = vrot.lane.b32.xlu0 %v3588, 82
      %v3637 = vpop.permute.xlu0 %3636
      %3638 = vrot.lane.b32.xlu0 %v3589, 82
      %v3639 = vpop.permute.xlu0 %3638
      %3640 = vrot.lane.b32.xlu0 %v3590, 82
      %v3641 = vpop.permute.xlu0 %3640
      %vm3642 = vcmask 670720
      %v3643 = vsel %vm3642, %v3609, %v3611
      %v3644 = vsel %vm3642, %v3611, %v3613
      %v3645 = vsel %vm3642, %v3613, %v3615
      %v3646 = vsel %vm3642, %v3615, %v3617
      %v3647 = vsel %vm3642, %v3617, %v3619
      %v3648 = vsel %vm3642, %v3619, %v3621
      %v3649 = vsel %vm3642, %v3621, %v3623
      %v3650 = vsel %vm3642, %v3623, %v3625
      %v3651 = vsel %vm3642, %v3625, %v3627
      %v3652 = vsel %vm3642, %v3627, %v3629
      %v3653 = vsel %vm3642, %v3629, %v3631
      %v3654 = vsel %vm3642, %v3631, %v3633
      %v3655 = vsel %vm3642, %v3633, %v3635
      %v3656 = vsel %vm3642, %v3635, %v3637
      %v3657 = vsel %vm3642, %v3637, %v3639
      %v3658 = vsel %vm3642, %v3639, %v3641
      %3675 = vst [vmem:[#allocation3 + $0xd00] sm:$0xff] %v3643
      %3676 = vst [vmem:[#allocation3 + $0xd08] sm:$0xff] %v3644
      %3677 = vst [vmem:[#allocation3 + $0xd10] sm:$0xff] %v3645
      %3678 = vst [vmem:[#allocation3 + $0xd18] sm:$0xff] %v3646
      %3679 = vst [vmem:[#allocation3 + $0xd20] sm:$0xff] %v3647
      %3680 = vst [vmem:[#allocation3 + $0xd28] sm:$0xff] %v3648
      %3681 = vst [vmem:[#allocation3 + $0xd30] sm:$0xff] %v3649
      %3682 = vst [vmem:[#allocation3 + $0xd38] sm:$0xff] %v3650
      %3683 = vst [vmem:[#allocation3 + $0xd40] sm:$0xff] %v3651
      %3684 = vst [vmem:[#allocation3 + $0xd48] sm:$0xff] %v3652
      %3685 = vst [vmem:[#allocation3 + $0xd50] sm:$0xff] %v3653
      %3686 = vst [vmem:[#allocation3 + $0xd58] sm:$0xff] %v3654
      %3687 = vst [vmem:[#allocation3 + $0xd60] sm:$0xff] %v3655
      %3688 = vst [vmem:[#allocation3 + $0xd68] sm:$0xff] %v3656
      %3689 = vst [vmem:[#allocation3 + $0xd70] sm:$0xff] %v3657
      %3690 = vst [vmem:[#allocation3 + $0xd78] sm:$0xff] %v3658
      %v3691 = vld [vmem:[%s2] sm:$0xff]
      %v3692 = vld [vmem:[%s2 + $0x8] sm:$0xff]
      %v3693 = vld [vmem:[#allocation3] sm:$0xff]
      %v3694 = vld [vmem:[#allocation3 + $0x8] sm:$0xff]
      %v3695 = vld [vmem:[#allocation3 + $0x10] sm:$0xff]
      %v3696 = vld [vmem:[#allocation3 + $0x18] sm:$0xff]
      %v3697 = vld [vmem:[#allocation3 + $0x20] sm:$0xff]
      %v3698 = vld [vmem:[#allocation3 + $0x28] sm:$0xff]
      %v3699 = vld [vmem:[#allocation3 + $0x30] sm:$0xff]
      %v3700 = vld [vmem:[#allocation3 + $0x38] sm:$0xff]
      %v3701 = vld [vmem:[#allocation3 + $0x40] sm:$0xff]
      %v3702 = vld [vmem:[#allocation3 + $0x48] sm:$0xff]
      %v3703 = vld [vmem:[#allocation3 + $0x50] sm:$0xff]
      %v3704 = vld [vmem:[#allocation3 + $0x58] sm:$0xff]
      %v3705 = vld [vmem:[#allocation3 + $0x60] sm:$0xff]
      %v3706 = vld [vmem:[#allocation3 + $0x68] sm:$0xff]
      %v3707 = vld [vmem:[#allocation3 + $0x70] sm:$0xff]
      %v3708 = vld [vmem:[#allocation3 + $0x78] sm:$0xff]
      %v3709 = vld [vmem:[#allocation3 + $0x80] sm:$0xff]
      %v3710 = vld [vmem:[#allocation3 + $0x88] sm:$0xff]
      %v3711 = vld [vmem:[#allocation3 + $0x90] sm:$0xff]
      %v3712 = vld [vmem:[#allocation3 + $0x98] sm:$0xff]
      %v3713 = vld [vmem:[#allocation3 + $0xa0] sm:$0xff]
      %v3714 = vld [vmem:[#allocation3 + $0xa8] sm:$0xff]
      %v3715 = vld [vmem:[#allocation3 + $0xb0] sm:$0xff]
      %v3716 = vld [vmem:[#allocation3 + $0xb8] sm:$0xff]
      %v3717 = vld [vmem:[#allocation3 + $0xc0] sm:$0xff]
      %v3718 = vld [vmem:[#allocation3 + $0xc8] sm:$0xff]
      %v3719 = vld [vmem:[#allocation3 + $0xd0] sm:$0xff]
      %v3720 = vld [vmem:[#allocation3 + $0xd8] sm:$0xff]
      %v3721 = vld [vmem:[#allocation3 + $0xe0] sm:$0xff]
      %v3722 = vld [vmem:[#allocation3 + $0xe8] sm:$0xff]
      %v3723 = vld [vmem:[#allocation3 + $0xf0] sm:$0xff]
      %v3724 = vld [vmem:[#allocation3 + $0xf8] sm:$0xff]
      %v3725 = vld [vmem:[#allocation3 + $0x100] sm:$0xff]
      %v3726 = vld [vmem:[#allocation3 + $0x108] sm:$0xff]
      %v3727 = vld [vmem:[#allocation3 + $0x110] sm:$0xff]
      %v3728 = vld [vmem:[#allocation3 + $0x118] sm:$0xff]
      %v3729 = vld [vmem:[#allocation3 + $0x120] sm:$0xff]
      %v3730 = vld [vmem:[#allocation3 + $0x128] sm:$0xff]
      %v3731 = vld [vmem:[#allocation3 + $0x130] sm:$0xff]
      %v3732 = vld [vmem:[#allocation3 + $0x138] sm:$0xff]
      %v3733 = vld [vmem:[#allocation3 + $0x140] sm:$0xff]
      %v3734 = vld [vmem:[#allocation3 + $0x148] sm:$0xff]
      %v3735 = vld [vmem:[#allocation3 + $0x150] sm:$0xff]
      %v3736 = vld [vmem:[#allocation3 + $0x158] sm:$0xff]
      %v3737 = vld [vmem:[#allocation3 + $0x160] sm:$0xff]
      %v3738 = vld [vmem:[#allocation3 + $0x168] sm:$0xff]
      %v3739 = vld [vmem:[#allocation3 + $0x170] sm:$0xff]
      %v3740 = vld [vmem:[#allocation3 + $0x178] sm:$0xff]
      %v3741 = vld [vmem:[#allocation3 + $0x180] sm:$0xff]
      %v3742 = vld [vmem:[#allocation3 + $0x188] sm:$0xff]
      %v3743 = vld [vmem:[#allocation3 + $0x190] sm:$0xff]
      %v3744 = vld [vmem:[#allocation3 + $0x198] sm:$0xff]
      %v3745 = vld [vmem:[#allocation3 + $0x1a0] sm:$0xff]
      %v3746 = vld [vmem:[#allocation3 + $0x1a8] sm:$0xff]
      %v3747 = vld [vmem:[#allocation3 + $0x1b0] sm:$0xff]
      %v3748 = vld [vmem:[#allocation3 + $0x1b8] sm:$0xff]
      %v3749 = vld [vmem:[#allocation3 + $0x1c0] sm:$0xff]
      %v3750 = vld [vmem:[#allocation3 + $0x1c8] sm:$0xff]
      %v3751 = vld [vmem:[#allocation3 + $0x1d0] sm:$0xff]
      %v3752 = vld [vmem:[#allocation3 + $0x1d8] sm:$0xff]
      %v3753 = vld [vmem:[#allocation3 + $0x1e0] sm:$0xff]
      %v3754 = vld [vmem:[#allocation3 + $0x1e8] sm:$0xff]
      %v3755 = vld [vmem:[#allocation3 + $0x1f0] sm:$0xff]
      %v3756 = vld [vmem:[#allocation3 + $0x1f8] sm:$0xff]
      %v3757 = vld [vmem:[#allocation3 + $0x200] sm:$0xff]
      %v3758 = vld [vmem:[#allocation3 + $0x208] sm:$0xff]
      %v3759 = vld [vmem:[#allocation3 + $0x210] sm:$0xff]
      %v3760 = vld [vmem:[#allocation3 + $0x218] sm:$0xff]
      %v3761 = vld [vmem:[#allocation3 + $0x220] sm:$0xff]
      %v3762 = vld [vmem:[#allocation3 + $0x228] sm:$0xff]
      %v3763 = vld [vmem:[#allocation3 + $0x230] sm:$0xff]
      %v3764 = vld [vmem:[#allocation3 + $0x238] sm:$0xff]
      %v3765 = vld [vmem:[#allocation3 + $0x240] sm:$0xff]
      %v3766 = vld [vmem:[#allocation3 + $0x248] sm:$0xff]
      %v3767 = vld [vmem:[#allocation3 + $0x250] sm:$0xff]
      %v3768 = vld [vmem:[#allocation3 + $0x258] sm:$0xff]
      %v3769 = vld [vmem:[#allocation3 + $0x260] sm:$0xff]
      %v3770 = vld [vmem:[#allocation3 + $0x268] sm:$0xff]
      %v3771 = vld [vmem:[#allocation3 + $0x270] sm:$0xff]
      %v3772 = vld [vmem:[#allocation3 + $0x278] sm:$0xff]
      %v3773 = vld [vmem:[#allocation3 + $0x280] sm:$0xff]
      %v3774 = vld [vmem:[#allocation3 + $0x288] sm:$0xff]
      %v3775 = vld [vmem:[#allocation3 + $0x290] sm:$0xff]
      %v3776 = vld [vmem:[#allocation3 + $0x298] sm:$0xff]
      %v3777 = vld [vmem:[#allocation3 + $0x2a0] sm:$0xff]
      %v3778 = vld [vmem:[#allocation3 + $0x2a8] sm:$0xff]
      %v3779 = vld [vmem:[#allocation3 + $0x2b0] sm:$0xff]
      %v3780 = vld [vmem:[#allocation3 + $0x2b8] sm:$0xff]
      %v3781 = vld [vmem:[#allocation3 + $0x2c0] sm:$0xff]
      %v3782 = vld [vmem:[#allocation3 + $0x2c8] sm:$0xff]
      %v3783 = vld [vmem:[#allocation3 + $0x2d0] sm:$0xff]
      %v3784 = vld [vmem:[#allocation3 + $0x2d8] sm:$0xff]
      %v3785 = vld [vmem:[#allocation3 + $0x2e0] sm:$0xff]
      %v3786 = vld [vmem:[#allocation3 + $0x2e8] sm:$0xff]
      %v3787 = vld [vmem:[#allocation3 + $0x2f0] sm:$0xff]
      %v3788 = vld [vmem:[#allocation3 + $0x2f8] sm:$0xff]
      %v3789 = vld [vmem:[#allocation3 + $0x300] sm:$0xff]
      %v3790 = vld [vmem:[#allocation3 + $0x308] sm:$0xff]
      %v3791 = vld [vmem:[#allocation3 + $0x310] sm:$0xff]
      %v3792 = vld [vmem:[#allocation3 + $0x318] sm:$0xff]
      %v3793 = vld [vmem:[#allocation3 + $0x320] sm:$0xff]
      %v3794 = vld [vmem:[#allocation3 + $0x328] sm:$0xff]
      %v3795 = vld [vmem:[#allocation3 + $0x330] sm:$0xff]
      %v3796 = vld [vmem:[#allocation3 + $0x338] sm:$0xff]
      %v3797 = vld [vmem:[#allocation3 + $0x340] sm:$0xff]
      %v3798 = vld [vmem:[#allocation3 + $0x348] sm:$0xff]
      %v3799 = vld [vmem:[#allocation3 + $0x350] sm:$0xff]
      %v3800 = vld [vmem:[#allocation3 + $0x358] sm:$0xff]
      %v3801 = vld [vmem:[#allocation3 + $0x360] sm:$0xff]
      %v3802 = vld [vmem:[#allocation3 + $0x368] sm:$0xff]
      %v3803 = vld [vmem:[#allocation3 + $0x370] sm:$0xff]
      %v3804 = vld [vmem:[#allocation3 + $0x378] sm:$0xff]
      %v3805 = vld [vmem:[#allocation3 + $0x380] sm:$0xff]
      %v3806 = vld [vmem:[#allocation3 + $0x388] sm:$0xff]
      %v3807 = vld [vmem:[#allocation3 + $0x390] sm:$0xff]
      %v3808 = vld [vmem:[#allocation3 + $0x398] sm:$0xff]
      %v3809 = vld [vmem:[#allocation3 + $0x3a0] sm:$0xff]
      %v3810 = vld [vmem:[#allocation3 + $0x3a8] sm:$0xff]
      %v3811 = vld [vmem:[#allocation3 + $0x3b0] sm:$0xff]
      %v3812 = vld [vmem:[#allocation3 + $0x3b8] sm:$0xff]
      %v3813 = vld [vmem:[#allocation3 + $0x3c0] sm:$0xff]
      %v3814 = vld [vmem:[#allocation3 + $0x3c8] sm:$0xff]
      %v3815 = vld [vmem:[#allocation3 + $0x3d0] sm:$0xff]
      %v3816 = vld [vmem:[#allocation3 + $0x3d8] sm:$0xff]
      %v3817 = vld [vmem:[#allocation3 + $0x3e0] sm:$0xff]
      %v3818 = vld [vmem:[#allocation3 + $0x3e8] sm:$0xff]
      %v3819 = vld [vmem:[#allocation3 + $0x3f0] sm:$0xff]
      %v3820 = vld [vmem:[#allocation3 + $0x3f8] sm:$0xff]
      %v3821 = vld [vmem:[#allocation3 + $0x400] sm:$0xff]
      %v3822 = vld [vmem:[#allocation3 + $0x408] sm:$0xff]
      %v3823 = vld [vmem:[#allocation3 + $0x410] sm:$0xff]
      %v3824 = vld [vmem:[#allocation3 + $0x418] sm:$0xff]
      %v3825 = vld [vmem:[#allocation3 + $0x420] sm:$0xff]
      %v3826 = vld [vmem:[#allocation3 + $0x428] sm:$0xff]
      %v3827 = vld [vmem:[#allocation3 + $0x430] sm:$0xff]
      %v3828 = vld [vmem:[#allocation3 + $0x438] sm:$0xff]
      %v3829 = vld [vmem:[#allocation3 + $0x440] sm:$0xff]
      %v3830 = vld [vmem:[#allocation3 + $0x448] sm:$0xff]
      %v3831 = vld [vmem:[#allocation3 + $0x450] sm:$0xff]
      %v3832 = vld [vmem:[#allocation3 + $0x458] sm:$0xff]
      %v3833 = vld [vmem:[#allocation3 + $0x460] sm:$0xff]
      %v3834 = vld [vmem:[#allocation3 + $0x468] sm:$0xff]
      %v3835 = vld [vmem:[#allocation3 + $0x470] sm:$0xff]
      %v3836 = vld [vmem:[#allocation3 + $0x478] sm:$0xff]
      %v3837 = vld [vmem:[#allocation3 + $0x480] sm:$0xff]
      %v3838 = vld [vmem:[#allocation3 + $0x488] sm:$0xff]
      %v3839 = vld [vmem:[#allocation3 + $0x490] sm:$0xff]
      %v3840 = vld [vmem:[#allocation3 + $0x498] sm:$0xff]
      %v3841 = vld [vmem:[#allocation3 + $0x4a0] sm:$0xff]
      %v3842 = vld [vmem:[#allocation3 + $0x4a8] sm:$0xff]
      %v3843 = vld [vmem:[#allocation3 + $0x4b0] sm:$0xff]
      %v3844 = vld [vmem:[#allocation3 + $0x4b8] sm:$0xff]
      %v3845 = vld [vmem:[#allocation3 + $0x4c0] sm:$0xff]
      %v3846 = vld [vmem:[#allocation3 + $0x4c8] sm:$0xff]
      %v3847 = vld [vmem:[#allocation3 + $0x4d0] sm:$0xff]
      %v3848 = vld [vmem:[#allocation3 + $0x4d8] sm:$0xff]
      %v3849 = vld [vmem:[#allocation3 + $0x4e0] sm:$0xff]
      %v3850 = vld [vmem:[#allocation3 + $0x4e8] sm:$0xff]
      %v3851 = vld [vmem:[#allocation3 + $0x4f0] sm:$0xff]
      %v3852 = vld [vmem:[#allocation3 + $0x4f8] sm:$0xff]
      %v3853 = vld [vmem:[#allocation3 + $0x500] sm:$0xff]
      %v3854 = vld [vmem:[#allocation3 + $0x508] sm:$0xff]
      %v3855 = vld [vmem:[#allocation3 + $0x510] sm:$0xff]
      %v3856 = vld [vmem:[#allocation3 + $0x518] sm:$0xff]
      %v3857 = vld [vmem:[#allocation3 + $0x520] sm:$0xff]
      %v3858 = vld [vmem:[#allocation3 + $0x528] sm:$0xff]
      %v3859 = vld [vmem:[#allocation3 + $0x530] sm:$0xff]
      %v3860 = vld [vmem:[#allocation3 + $0x538] sm:$0xff]
      %v3861 = vld [vmem:[#allocation3 + $0x540] sm:$0xff]
      %v3862 = vld [vmem:[#allocation3 + $0x548] sm:$0xff]
      %v3863 = vld [vmem:[#allocation3 + $0x550] sm:$0xff]
      %v3864 = vld [vmem:[#allocation3 + $0x558] sm:$0xff]
      %v3865 = vld [vmem:[#allocation3 + $0x560] sm:$0xff]
      %v3866 = vld [vmem:[#allocation3 + $0x568] sm:$0xff]
      %v3867 = vld [vmem:[#allocation3 + $0x570] sm:$0xff]
      %v3868 = vld [vmem:[#allocation3 + $0x578] sm:$0xff]
      %v3869 = vld [vmem:[#allocation3 + $0x580] sm:$0xff]
      %v3870 = vld [vmem:[#allocation3 + $0x588] sm:$0xff]
      %v3871 = vld [vmem:[#allocation3 + $0x590] sm:$0xff]
      %v3872 = vld [vmem:[#allocation3 + $0x598] sm:$0xff]
      %v3873 = vld [vmem:[#allocation3 + $0x5a0] sm:$0xff]
      %v3874 = vld [vmem:[#allocation3 + $0x5a8] sm:$0xff]
      %v3875 = vld [vmem:[#allocation3 + $0x5b0] sm:$0xff]
      %v3876 = vld [vmem:[#allocation3 + $0x5b8] sm:$0xff]
      %v3877 = vld [vmem:[#allocation3 + $0x5c0] sm:$0xff]
      %v3878 = vld [vmem:[#allocation3 + $0x5c8] sm:$0xff]
      %v3879 = vld [vmem:[#allocation3 + $0x5d0] sm:$0xff]
      %v3880 = vld [vmem:[#allocation3 + $0x5d8] sm:$0xff]
      %v3881 = vld [vmem:[#allocation3 + $0x5e0] sm:$0xff]
      %v3882 = vld [vmem:[#allocation3 + $0x5e8] sm:$0xff]
      %v3883 = vld [vmem:[#allocation3 + $0x5f0] sm:$0xff]
      %v3884 = vld [vmem:[#allocation3 + $0x5f8] sm:$0xff]
      %v3885 = vld [vmem:[#allocation3 + $0x600] sm:$0xff]
      %v3886 = vld [vmem:[#allocation3 + $0x608] sm:$0xff]
      %v3887 = vld [vmem:[#allocation3 + $0x610] sm:$0xff]
      %v3888 = vld [vmem:[#allocation3 + $0x618] sm:$0xff]
      %v3889 = vld [vmem:[#allocation3 + $0x620] sm:$0xff]
      %v3890 = vld [vmem:[#allocation3 + $0x628] sm:$0xff]
      %v3891 = vld [vmem:[#allocation3 + $0x630] sm:$0xff]
      %v3892 = vld [vmem:[#allocation3 + $0x638] sm:$0xff]
      %v3893 = vld [vmem:[#allocation3 + $0x640] sm:$0xff]
      %v3894 = vld [vmem:[#allocation3 + $0x648] sm:$0xff]
      %v3895 = vld [vmem:[#allocation3 + $0x650] sm:$0xff]
      %v3896 = vld [vmem:[#allocation3 + $0x658] sm:$0xff]
      %v3897 = vld [vmem:[#allocation3 + $0x660] sm:$0xff]
      %v3898 = vld [vmem:[#allocation3 + $0x668] sm:$0xff]
      %v3899 = vld [vmem:[#allocation3 + $0x670] sm:$0xff]
      %v3900 = vld [vmem:[#allocation3 + $0x678] sm:$0xff]
      %v3901 = vld [vmem:[#allocation3 + $0x680] sm:$0xff]
      %v3902 = vld [vmem:[#allocation3 + $0x688] sm:$0xff]
      %v3903 = vld [vmem:[#allocation3 + $0x690] sm:$0xff]
      %v3904 = vld [vmem:[#allocation3 + $0x698] sm:$0xff]
      %v3905 = vld [vmem:[#allocation3 + $0x6a0] sm:$0xff]
      %v3906 = vld [vmem:[#allocation3 + $0x6a8] sm:$0xff]
      %v3907 = vld [vmem:[#allocation3 + $0x6b0] sm:$0xff]
      %v3908 = vld [vmem:[#allocation3 + $0x6b8] sm:$0xff]
      %v3909 = vld [vmem:[#allocation3 + $0x6c0] sm:$0xff]
      %v3910 = vld [vmem:[#allocation3 + $0x6c8] sm:$0xff]
      %v3911 = vld [vmem:[#allocation3 + $0x6d0] sm:$0xff]
      %v3912 = vld [vmem:[#allocation3 + $0x6d8] sm:$0xff]
      %v3913 = vld [vmem:[#allocation3 + $0x6e0] sm:$0xff]
      %v3914 = vld [vmem:[#allocation3 + $0x6e8] sm:$0xff]
      %v3915 = vld [vmem:[#allocation3 + $0x6f0] sm:$0xff]
      %v3916 = vld [vmem:[#allocation3 + $0x6f8] sm:$0xff]
      %v3917 = vld [vmem:[#allocation3 + $0x700] sm:$0xff]
      %v3918 = vld [vmem:[#allocation3 + $0x708] sm:$0xff]
      %v3919 = vld [vmem:[#allocation3 + $0x710] sm:$0xff]
      %v3920 = vld [vmem:[#allocation3 + $0x718] sm:$0xff]
      %v3921 = vld [vmem:[#allocation3 + $0x720] sm:$0xff]
      %v3922 = vld [vmem:[#allocation3 + $0x728] sm:$0xff]
      %v3923 = vld [vmem:[#allocation3 + $0x730] sm:$0xff]
      %v3924 = vld [vmem:[#allocation3 + $0x738] sm:$0xff]
      %v3925 = vld [vmem:[#allocation3 + $0x740] sm:$0xff]
      %v3926 = vld [vmem:[#allocation3 + $0x748] sm:$0xff]
      %v3927 = vld [vmem:[#allocation3 + $0x750] sm:$0xff]
      %v3928 = vld [vmem:[#allocation3 + $0x758] sm:$0xff]
      %v3929 = vld [vmem:[#allocation3 + $0x760] sm:$0xff]
      %v3930 = vld [vmem:[#allocation3 + $0x768] sm:$0xff]
      %v3931 = vld [vmem:[#allocation3 + $0x770] sm:$0xff]
      %v3932 = vld [vmem:[#allocation3 + $0x778] sm:$0xff]
      %v3933 = vld [vmem:[#allocation3 + $0x780] sm:$0xff]
      %v3934 = vld [vmem:[#allocation3 + $0x788] sm:$0xff]
      %v3935 = vld [vmem:[#allocation3 + $0x790] sm:$0xff]
      %v3936 = vld [vmem:[#allocation3 + $0x798] sm:$0xff]
      %v3937 = vld [vmem:[#allocation3 + $0x7a0] sm:$0xff]
      %v3938 = vld [vmem:[#allocation3 + $0x7a8] sm:$0xff]
      %v3939 = vld [vmem:[#allocation3 + $0x7b0] sm:$0xff]
      %v3940 = vld [vmem:[#allocation3 + $0x7b8] sm:$0xff]
      %v3941 = vld [vmem:[#allocation3 + $0x7c0] sm:$0xff]
      %v3942 = vld [vmem:[#allocation3 + $0x7c8] sm:$0xff]
      %v3943 = vld [vmem:[#allocation3 + $0x7d0] sm:$0xff]
      %v3944 = vld [vmem:[#allocation3 + $0x7d8] sm:$0xff]
      %v3945 = vld [vmem:[#allocation3 + $0x7e0] sm:$0xff]
      %v3946 = vld [vmem:[#allocation3 + $0x7e8] sm:$0xff]
      %v3947 = vld [vmem:[#allocation3 + $0x7f0] sm:$0xff]
      %v3948 = vld [vmem:[#allocation3 + $0x7f8] sm:$0xff]
      %v3949 = vld [vmem:[#allocation3 + $0x800] sm:$0xff]
      %v3950 = vld [vmem:[#allocation3 + $0x808] sm:$0xff]
      %v3951 = vld [vmem:[#allocation3 + $0x810] sm:$0xff]
      %v3952 = vld [vmem:[#allocation3 + $0x818] sm:$0xff]
      %v3953 = vld [vmem:[#allocation3 + $0x820] sm:$0xff]
      %v3954 = vld [vmem:[#allocation3 + $0x828] sm:$0xff]
      %v3955 = vld [vmem:[#allocation3 + $0x830] sm:$0xff]
      %v3956 = vld [vmem:[#allocation3 + $0x838] sm:$0xff]
      %v3957 = vld [vmem:[#allocation3 + $0x840] sm:$0xff]
      %v3958 = vld [vmem:[#allocation3 + $0x848] sm:$0xff]
      %v3959 = vld [vmem:[#allocation3 + $0x850] sm:$0xff]
      %v3960 = vld [vmem:[#allocation3 + $0x858] sm:$0xff]
      %v3961 = vld [vmem:[#allocation3 + $0x860] sm:$0xff]
      %v3962 = vld [vmem:[#allocation3 + $0x868] sm:$0xff]
      %v3963 = vld [vmem:[#allocation3 + $0x870] sm:$0xff]
      %v3964 = vld [vmem:[#allocation3 + $0x878] sm:$0xff]
      %v3965 = vld [vmem:[#allocation3 + $0x880] sm:$0xff]
      %v3966 = vld [vmem:[#allocation3 + $0x888] sm:$0xff]
      %v3967 = vld [vmem:[#allocation3 + $0x890] sm:$0xff]
      %v3968 = vld [vmem:[#allocation3 + $0x898] sm:$0xff]
      %v3969 = vld [vmem:[#allocation3 + $0x8a0] sm:$0xff]
      %v3970 = vld [vmem:[#allocation3 + $0x8a8] sm:$0xff]
      %v3971 = vld [vmem:[#allocation3 + $0x8b0] sm:$0xff]
      %v3972 = vld [vmem:[#allocation3 + $0x8b8] sm:$0xff]
      %v3973 = vld [vmem:[#allocation3 + $0x8c0] sm:$0xff]
      %v3974 = vld [vmem:[#allocation3 + $0x8c8] sm:$0xff]
      %v3975 = vld [vmem:[#allocation3 + $0x8d0] sm:$0xff]
      %v3976 = vld [vmem:[#allocation3 + $0x8d8] sm:$0xff]
      %v3977 = vld [vmem:[#allocation3 + $0x8e0] sm:$0xff]
      %v3978 = vld [vmem:[#allocation3 + $0x8e8] sm:$0xff]
      %v3979 = vld [vmem:[#allocation3 + $0x8f0] sm:$0xff]
      %v3980 = vld [vmem:[#allocation3 + $0x8f8] sm:$0xff]
      %v3981 = vld [vmem:[#allocation3 + $0x900] sm:$0xff]
      %v3982 = vld [vmem:[#allocation3 + $0x908] sm:$0xff]
      %v3983 = vld [vmem:[#allocation3 + $0x910] sm:$0xff]
      %v3984 = vld [vmem:[#allocation3 + $0x918] sm:$0xff]
      %v3985 = vld [vmem:[#allocation3 + $0x920] sm:$0xff]
      %v3986 = vld [vmem:[#allocation3 + $0x928] sm:$0xff]
      %v3987 = vld [vmem:[#allocation3 + $0x930] sm:$0xff]
      %v3988 = vld [vmem:[#allocation3 + $0x938] sm:$0xff]
      %v3989 = vld [vmem:[#allocation3 + $0x940] sm:$0xff]
      %v3990 = vld [vmem:[#allocation3 + $0x948] sm:$0xff]
      %v3991 = vld [vmem:[#allocation3 + $0x950] sm:$0xff]
      %v3992 = vld [vmem:[#allocation3 + $0x958] sm:$0xff]
      %v3993 = vld [vmem:[#allocation3 + $0x960] sm:$0xff]
      %v3994 = vld [vmem:[#allocation3 + $0x968] sm:$0xff]
      %v3995 = vld [vmem:[#allocation3 + $0x970] sm:$0xff]
      %v3996 = vld [vmem:[#allocation3 + $0x978] sm:$0xff]
      %v3997 = vld [vmem:[#allocation3 + $0x980] sm:$0xff]
      %v3998 = vld [vmem:[#allocation3 + $0x988] sm:$0xff]
      %v3999 = vld [vmem:[#allocation3 + $0x990] sm:$0xff]
      %v4000 = vld [vmem:[#allocation3 + $0x998] sm:$0xff]
      %v4001 = vld [vmem:[#allocation3 + $0x9a0] sm:$0xff]
      %v4002 = vld [vmem:[#allocation3 + $0x9a8] sm:$0xff]
      %v4003 = vld [vmem:[#allocation3 + $0x9b0] sm:$0xff]
      %v4004 = vld [vmem:[#allocation3 + $0x9b8] sm:$0xff]
      %v4005 = vld [vmem:[#allocation3 + $0x9c0] sm:$0xff]
      %v4006 = vld [vmem:[#allocation3 + $0x9c8] sm:$0xff]
      %v4007 = vld [vmem:[#allocation3 + $0x9d0] sm:$0xff]
      %v4008 = vld [vmem:[#allocation3 + $0x9d8] sm:$0xff]
      %v4009 = vld [vmem:[#allocation3 + $0x9e0] sm:$0xff]
      %v4010 = vld [vmem:[#allocation3 + $0x9e8] sm:$0xff]
      %v4011 = vld [vmem:[#allocation3 + $0x9f0] sm:$0xff]
      %v4012 = vld [vmem:[#allocation3 + $0x9f8] sm:$0xff]
      %v4013 = vld [vmem:[#allocation3 + $0xa00] sm:$0xff]
      %v4014 = vld [vmem:[#allocation3 + $0xa08] sm:$0xff]
      %v4015 = vld [vmem:[#allocation3 + $0xa10] sm:$0xff]
      %v4016 = vld [vmem:[#allocation3 + $0xa18] sm:$0xff]
      %v4017 = vld [vmem:[#allocation3 + $0xa20] sm:$0xff]
      %v4018 = vld [vmem:[#allocation3 + $0xa28] sm:$0xff]
      %v4019 = vld [vmem:[#allocation3 + $0xa30] sm:$0xff]
      %v4020 = vld [vmem:[#allocation3 + $0xa38] sm:$0xff]
      %v4021 = vld [vmem:[#allocation3 + $0xa40] sm:$0xff]
      %v4022 = vld [vmem:[#allocation3 + $0xa48] sm:$0xff]
      %v4023 = vld [vmem:[#allocation3 + $0xa50] sm:$0xff]
      %v4024 = vld [vmem:[#allocation3 + $0xa58] sm:$0xff]
      %v4025 = vld [vmem:[#allocation3 + $0xa60] sm:$0xff]
      %v4026 = vld [vmem:[#allocation3 + $0xa68] sm:$0xff]
      %v4027 = vld [vmem:[#allocation3 + $0xa70] sm:$0xff]
      %v4028 = vld [vmem:[#allocation3 + $0xa78] sm:$0xff]
      %v4029 = vld [vmem:[#allocation3 + $0xa80] sm:$0xff]
      %v4030 = vld [vmem:[#allocation3 + $0xa88] sm:$0xff]
      %v4031 = vld [vmem:[#allocation3 + $0xa90] sm:$0xff]
      %v4032 = vld [vmem:[#allocation3 + $0xa98] sm:$0xff]
      %v4033 = vld [vmem:[#allocation3 + $0xaa0] sm:$0xff]
      %v4034 = vld [vmem:[#allocation3 + $0xaa8] sm:$0xff]
      %v4035 = vld [vmem:[#allocation3 + $0xab0] sm:$0xff]
      %v4036 = vld [vmem:[#allocation3 + $0xab8] sm:$0xff]
      %v4037 = vld [vmem:[#allocation3 + $0xac0] sm:$0xff]
      %v4038 = vld [vmem:[#allocation3 + $0xac8] sm:$0xff]
      %v4039 = vld [vmem:[#allocation3 + $0xad0] sm:$0xff]
      %v4040 = vld [vmem:[#allocation3 + $0xad8] sm:$0xff]
      %v4041 = vld [vmem:[#allocation3 + $0xae0] sm:$0xff]
      %v4042 = vld [vmem:[#allocation3 + $0xae8] sm:$0xff]
      %v4043 = vld [vmem:[#allocation3 + $0xaf0] sm:$0xff]
      %v4044 = vld [vmem:[#allocation3 + $0xaf8] sm:$0xff]
      %v4045 = vld [vmem:[#allocation3 + $0xb00] sm:$0xff]
      %v4046 = vld [vmem:[#allocation3 + $0xb08] sm:$0xff]
      %v4047 = vld [vmem:[#allocation3 + $0xb10] sm:$0xff]
      %v4048 = vld [vmem:[#allocation3 + $0xb18] sm:$0xff]
      %v4049 = vld [vmem:[#allocation3 + $0xb20] sm:$0xff]
      %v4050 = vld [vmem:[#allocation3 + $0xb28] sm:$0xff]
      %v4051 = vld [vmem:[#allocation3 + $0xb30] sm:$0xff]
      %v4052 = vld [vmem:[#allocation3 + $0xb38] sm:$0xff]
      %v4053 = vld [vmem:[#allocation3 + $0xb40] sm:$0xff]
      %v4054 = vld [vmem:[#allocation3 + $0xb48] sm:$0xff]
      %v4055 = vld [vmem:[#allocation3 + $0xb50] sm:$0xff]
      %v4056 = vld [vmem:[#allocation3 + $0xb58] sm:$0xff]
      %v4057 = vld [vmem:[#allocation3 + $0xb60] sm:$0xff]
      %v4058 = vld [vmem:[#allocation3 + $0xb68] sm:$0xff]
      %v4059 = vld [vmem:[#allocation3 + $0xb70] sm:$0xff]
      %v4060 = vld [vmem:[#allocation3 + $0xb78] sm:$0xff]
      %v4061 = vld [vmem:[#allocation3 + $0xb80] sm:$0xff]
      %v4062 = vld [vmem:[#allocation3 + $0xb88] sm:$0xff]
      %v4063 = vld [vmem:[#allocation3 + $0xb90] sm:$0xff]
      %v4064 = vld [vmem:[#allocation3 + $0xb98] sm:$0xff]
      %v4065 = vld [vmem:[#allocation3 + $0xba0] sm:$0xff]
      %v4066 = vld [vmem:[#allocation3 + $0xba8] sm:$0xff]
      %v4067 = vld [vmem:[#allocation3 + $0xbb0] sm:$0xff]
      %v4068 = vld [vmem:[#allocation3 + $0xbb8] sm:$0xff]
      %v4069 = vld [vmem:[#allocation3 + $0xbc0] sm:$0xff]
      %v4070 = vld [vmem:[#allocation3 + $0xbc8] sm:$0xff]
      %v4071 = vld [vmem:[#allocation3 + $0xbd0] sm:$0xff]
      %v4072 = vld [vmem:[#allocation3 + $0xbd8] sm:$0xff]
      %v4073 = vld [vmem:[#allocation3 + $0xbe0] sm:$0xff]
      %v4074 = vld [vmem:[#allocation3 + $0xbe8] sm:$0xff]
      %v4075 = vld [vmem:[#allocation3 + $0xbf0] sm:$0xff]
      %v4076 = vld [vmem:[#allocation3 + $0xbf8] sm:$0xff]
      %v4077 = vld [vmem:[#allocation3 + $0xc00] sm:$0xff]
      %v4078 = vld [vmem:[#allocation3 + $0xc08] sm:$0xff]
      %v4079 = vld [vmem:[#allocation3 + $0xc10] sm:$0xff]
      %v4080 = vld [vmem:[#allocation3 + $0xc18] sm:$0xff]
      %v4081 = vld [vmem:[#allocation3 + $0xc20] sm:$0xff]
      %v4082 = vld [vmem:[#allocation3 + $0xc28] sm:$0xff]
      %v4083 = vld [vmem:[#allocation3 + $0xc30] sm:$0xff]
      %v4084 = vld [vmem:[#allocation3 + $0xc38] sm:$0xff]
      %v4085 = vld [vmem:[#allocation3 + $0xc40] sm:$0xff]
      %v4086 = vld [vmem:[#allocation3 + $0xc48] sm:$0xff]
      %v4087 = vld [vmem:[#allocation3 + $0xc50] sm:$0xff]
      %v4088 = vld [vmem:[#allocation3 + $0xc58] sm:$0xff]
      %v4089 = vld [vmem:[#allocation3 + $0xc60] sm:$0xff]
      %v4090 = vld [vmem:[#allocation3 + $0xc68] sm:$0xff]
      %v4091 = vld [vmem:[#allocation3 + $0xc70] sm:$0xff]
      %v4092 = vld [vmem:[#allocation3 + $0xc78] sm:$0xff]
      %v4093 = vld [vmem:[#allocation3 + $0xc80] sm:$0xff]
      %v4094 = vld [vmem:[#allocation3 + $0xc88] sm:$0xff]
      %v4095 = vld [vmem:[#allocation3 + $0xc90] sm:$0xff]
      %v4096 = vld [vmem:[#allocation3 + $0xc98] sm:$0xff]
      %v4097 = vld [vmem:[#allocation3 + $0xca0] sm:$0xff]
      %v4098 = vld [vmem:[#allocation3 + $0xca8] sm:$0xff]
      %v4099 = vld [vmem:[#allocation3 + $0xcb0] sm:$0xff]
      %v4100 = vld [vmem:[#allocation3 + $0xcb8] sm:$0xff]
      %v4101 = vld [vmem:[#allocation3 + $0xcc0] sm:$0xff]
      %v4102 = vld [vmem:[#allocation3 + $0xcc8] sm:$0xff]
      %v4103 = vld [vmem:[#allocation3 + $0xcd0] sm:$0xff]
      %v4104 = vld [vmem:[#allocation3 + $0xcd8] sm:$0xff]
      %v4105 = vld [vmem:[#allocation3 + $0xce0] sm:$0xff]
      %v4106 = vld [vmem:[#allocation3 + $0xce8] sm:$0xff]
      %v4107 = vld [vmem:[#allocation3 + $0xcf0] sm:$0xff]
      %v4108 = vld [vmem:[#allocation3 + $0xcf8] sm:$0xff]
      %v4109 = vld [vmem:[#allocation3 + $0xd00] sm:$0xff]
      %v4110 = vld [vmem:[#allocation3 + $0xd08] sm:$0xff]
      %v4111 = vld [vmem:[#allocation3 + $0xd10] sm:$0xff]
      %v4112 = vld [vmem:[#allocation3 + $0xd18] sm:$0xff]
      %v4113 = vld [vmem:[#allocation3 + $0xd20] sm:$0xff]
      %v4114 = vld [vmem:[#allocation3 + $0xd28] sm:$0xff]
      %v4115 = vld [vmem:[#allocation3 + $0xd30] sm:$0xff]
      %v4116 = vld [vmem:[#allocation3 + $0xd38] sm:$0xff]
      %v4117 = vld [vmem:[#allocation3 + $0xd40] sm:$0xff]
      %v4118 = vld [vmem:[#allocation3 + $0xd48] sm:$0xff]
      %v4119 = vld [vmem:[#allocation3 + $0xd50] sm:$0xff]
      %v4120 = vld [vmem:[#allocation3 + $0xd58] sm:$0xff]
      %v4121 = vld [vmem:[#allocation3 + $0xd60] sm:$0xff]
      %v4122 = vld [vmem:[#allocation3 + $0xd68] sm:$0xff]
      %v4123 = vld [vmem:[#allocation3 + $0xd70] sm:$0xff]
      %v4124 = vld [vmem:[#allocation3 + $0xd78] sm:$0xff]
      %vm4125 = vcmask 719872
      %v4127 = vsel %vm4125, %v3692, 0
      %4129 = vmatprep.subr.mxu0 %v3694
      %4130 = vmatpush1.msra.mxu0 %v3693
      %4131 = vmatprep.subr.mxu0 %v3710
      %4132 = vmatpush1.msra.mxu0 %v3709
      %4133 = vmatprep.subr.mxu0 %v3726
      %4134 = vmatpush1.msra.mxu0 %v3725
      %4135 = vmatprep.subr.mxu0 %v3742
      %4136 = vmatpush1.msra.mxu0 %v3741
      %4137 = vmatprep.subr.mxu0 %v3758
      %4138 = vmatpush1.msra.mxu0 %v3757
      %4139 = vmatprep.subr.mxu0 %v3774
      %4140 = vmatpush1.msra.mxu0 %v3773
      %4141 = vmatprep.subr.mxu0 %v3790
      %4142 = vmatpush1.msra.mxu0 %v3789
      %4143 = vmatprep.subr.mxu0 %v3806
      %4144 = vmatpush1.msra.mxu0 %v3805
      %4145 = vmatprep.subr.mxu0 %v3822
      %4146 = vmatpush1.msra.mxu0 %v3821
      %4147 = vmatprep.subr.mxu0 %v3838
      %4148 = vmatpush1.msra.mxu0 %v3837
      %4149 = vmatprep.subr.mxu0 %v3854
      %4150 = vmatpush1.msra.mxu0 %v3853
      %4151 = vmatprep.subr.mxu0 %v3870
      %4152 = vmatpush1.msra.mxu0 %v3869
      %4153 = vmatprep.subr.mxu0 %v3886
      %4154 = vmatpush1.msra.mxu0 %v3885
      %4155 = vmatprep.subr.mxu0 %v3902
      %4156 = vmatpush1.msra.mxu0 %v3901
      %4157 = vmatprep.subr.mxu0 %v3918
      %4158 = vmatpush1.msra.mxu0 %v3917
      %4159 = vmatprep.subr.mxu0 %v3934
      %4160 = vmatpush1.msra.mxu0 %v3933
      %4161 = vmatprep.subr.mxu0 %v3950
      %4162 = vmatpush1.msra.mxu0 %v3949
      %4163 = vmatprep.subr.mxu0 %v3966
      %4164 = vmatpush1.msra.mxu0 %v3965
      %4165 = vmatprep.subr.mxu0 %v3982
      %4166 = vmatpush1.msra.mxu0 %v3981
      %4167 = vmatprep.subr.mxu0 %v3998
      %4168 = vmatpush1.msra.mxu0 %v3997
      %4169 = vmatprep.subr.mxu0 %v4014
      %4170 = vmatpush1.msra.mxu0 %v4013
      %4171 = vmatprep.subr.mxu0 %v4030
      %4172 = vmatpush1.msra.mxu0 %v4029
      %4173 = vmatprep.subr.mxu0 %v4046
      %4174 = vmatpush1.msra.mxu0 %v4045
      %4175 = vmatprep.subr.mxu0 %v4062
      %4176 = vmatpush1.msra.mxu0 %v4061
      %4177 = vmatprep.subr.mxu0 %v4078
      %4178 = vmatpush1.msra.mxu0 %v4077
      %4179 = vmatprep.subr.mxu0 %v4094
      %4180 = vmatpush1.msra.mxu0 %v4093
      %4181 = vmatprep.subr.mxu0 %v4110
      %4182 = vmatpush1.msra.mxu0 %v4109
      %4183 = vmatprep.subr.mxu0 0.0
      %4184 = vmatpush1.msra.mxu0 0.0
      %4185 = vmatprep.subr.mxu0 0.0
      %4186 = vmatpush1.msra.mxu0 0.0
      %4187 = vmatprep.subr.mxu0 0.0
      %4188 = vmatpush1.msra.mxu0 0.0
      %4189 = vmatprep.subr.mxu0 0.0
      %4190 = vmatpush1.msra.mxu0 0.0
      %4191 = vmatprep.subr.mxu0 0.0
      %4192 = vmatpush1.msra.mxu0 0.0
      %4193 = vmatprep.mubr.f32.mxu0 %v4127
      %4194 = vmatmul.mubr.f32.gmra.mrb[0].mxu0 %v3691
      %v4195 = vpop.f32.mrb[0].mxu0
      %v4196 = vadd.f32 0.0, %v4195
      %v4197 = vpop.f32.mrb[0].mxu0
      %v4198 = vadd.f32 0.0, %v4197
      %4199 = vdwg.mxu0
      %4200 = vmatprep.subr.mxu0 %v3696
      %4201 = vmatpush1.msra.mxu0 %v3695
      %4202 = vmatprep.subr.mxu0 %v3712
      %4203 = vmatpush1.msra.mxu0 %v3711
      %4204 = vmatprep.subr.mxu0 %v3728
      %4205 = vmatpush1.msra.mxu0 %v3727
      %4206 = vmatprep.subr.mxu0 %v3744
      %4207 = vmatpush1.msra.mxu0 %v3743
      %4208 = vmatprep.subr.mxu0 %v3760
      %4209 = vmatpush1.msra.mxu0 %v3759
      %4210 = vmatprep.subr.mxu0 %v3776
      %4211 = vmatpush1.msra.mxu0 %v3775
      %4212 = vmatprep.subr.mxu0 %v3792
      %4213 = vmatpush1.msra.mxu0 %v3791
      %4214 = vmatprep.subr.mxu0 %v3808
      %4215 = vmatpush1.msra.mxu0 %v3807
      %4216 = vmatprep.subr.mxu0 %v3824
      %4217 = vmatpush1.msra.mxu0 %v3823
      %4218 = vmatprep.subr.mxu0 %v3840
      %4219 = vmatpush1.msra.mxu0 %v3839
      %4220 = vmatprep.subr.mxu0 %v3856
      %4221 = vmatpush1.msra.mxu0 %v3855
      %4222 = vmatprep.subr.mxu0 %v3872
      %4223 = vmatpush1.msra.mxu0 %v3871
      %4224 = vmatprep.subr.mxu0 %v3888
      %4225 = vmatpush1.msra.mxu0 %v3887
      %4226 = vmatprep.subr.mxu0 %v3904
      %4227 = vmatpush1.msra.mxu0 %v3903
      %4228 = vmatprep.subr.mxu0 %v3920
      %4229 = vmatpush1.msra.mxu0 %v3919
      %4230 = vmatprep.subr.mxu0 %v3936
      %4231 = vmatpush1.msra.mxu0 %v3935
      %4232 = vmatprep.subr.mxu0 %v3952
      %4233 = vmatpush1.msra.mxu0 %v3951
      %4234 = vmatprep.subr.mxu0 %v3968
      %4235 = vmatpush1.msra.mxu0 %v3967
      %4236 = vmatprep.subr.mxu0 %v3984
      %4237 = vmatpush1.msra.mxu0 %v3983
      %4238 = vmatprep.subr.mxu0 %v4000
      %4239 = vmatpush1.msra.mxu0 %v3999
      %4240 = vmatprep.subr.mxu0 %v4016
      %4241 = vmatpush1.msra.mxu0 %v4015
      %4242 = vmatprep.subr.mxu0 %v4032
      %4243 = vmatpush1.msra.mxu0 %v4031
      %4244 = vmatprep.subr.mxu0 %v4048
      %4245 = vmatpush1.msra.mxu0 %v4047
      %4246 = vmatprep.subr.mxu0 %v4064
      %4247 = vmatpush1.msra.mxu0 %v4063
      %4248 = vmatprep.subr.mxu0 %v4080
      %4249 = vmatpush1.msra.mxu0 %v4079
      %4250 = vmatprep.subr.mxu0 %v4096
      %4251 = vmatpush1.msra.mxu0 %v4095
      %4252 = vmatprep.subr.mxu0 %v4112
      %4253 = vmatpush1.msra.mxu0 %v4111
      %4254 = vmatprep.subr.mxu0 0.0
      %4255 = vmatpush1.msra.mxu0 0.0
      %4256 = vmatprep.subr.mxu0 0.0
      %4257 = vmatpush1.msra.mxu0 0.0
      %4258 = vmatprep.subr.mxu0 0.0
      %4259 = vmatpush1.msra.mxu0 0.0
      %4260 = vmatprep.subr.mxu0 0.0
      %4261 = vmatpush1.msra.mxu0 0.0
      %4262 = vmatprep.subr.mxu0 0.0
      %4263 = vmatpush1.msra.mxu0 0.0
      %4264 = vmatprep.mubr.f32.mxu0 %v4127
      %4265 = vmatmul.mubr.f32.gmra.mrb[0].mxu0 %v3691
      %v4266 = vpop.f32.mrb[0].mxu0
      %v4267 = vadd.f32 0.0, %v4266
      %v4268 = vpop.f32.mrb[0].mxu0
      %v4269 = vadd.f32 0.0, %v4268
      %4270 = vdwg.mxu0
      %4271 = vmatprep.subr.mxu0 %v3698
      %4272 = vmatpush1.msra.mxu0 %v3697
      %4273 = vmatprep.subr.mxu0 %v3714
      %4274 = vmatpush1.msra.mxu0 %v3713
      %4275 = vmatprep.subr.mxu0 %v3730
      %4276 = vmatpush1.msra.mxu0 %v3729
      %4277 = vmatprep.subr.mxu0 %v3746
      %4278 = vmatpush1.msra.mxu0 %v3745
      %4279 = vmatprep.subr.mxu0 %v3762
      %4280 = vmatpush1.msra.mxu0 %v3761
      %4281 = vmatprep.subr.mxu0 %v3778
      %4282 = vmatpush1.msra.mxu0 %v3777
      %4283 = vmatprep.subr.mxu0 %v3794
      %4284 = vmatpush1.msra.mxu0 %v3793
      %4285 = vmatprep.subr.mxu0 %v3810
      %4286 = vmatpush1.msra.mxu0 %v3809
      %4287 = vmatprep.subr.mxu0 %v3826
      %4288 = vmatpush1.msra.mxu0 %v3825
      %4289 = vmatprep.subr.mxu0 %v3842
      %4290 = vmatpush1.msra.mxu0 %v3841
      %4291 = vmatprep.subr.mxu0 %v3858
      %4292 = vmatpush1.msra.mxu0 %v3857
      %4293 = vmatprep.subr.mxu0 %v3874
      %4294 = vmatpush1.msra.mxu0 %v3873
      %4295 = vmatprep.subr.mxu0 %v3890
      %4296 = vmatpush1.msra.mxu0 %v3889
      %4297 = vmatprep.subr.mxu0 %v3906
      %4298 = vmatpush1.msra.mxu0 %v3905
      %4299 = vmatprep.subr.mxu0 %v3922
      %4300 = vmatpush1.msra.mxu0 %v3921
      %4301 = vmatprep.subr.mxu0 %v3938
      %4302 = vmatpush1.msra.mxu0 %v3937
      %4303 = vmatprep.subr.mxu0 %v3954
      %4304 = vmatpush1.msra.mxu0 %v3953
      %4305 = vmatprep.subr.mxu0 %v3970
      %4306 = vmatpush1.msra.mxu0 %v3969
      %4307 = vmatprep.subr.mxu0 %v3986
      %4308 = vmatpush1.msra.mxu0 %v3985
      %4309 = vmatprep.subr.mxu0 %v4002
      %4310 = vmatpush1.msra.mxu0 %v4001
      %4311 = vmatprep.subr.mxu0 %v4018
      %4312 = vmatpush1.msra.mxu0 %v4017
      %4313 = vmatprep.subr.mxu0 %v4034
      %4314 = vmatpush1.msra.mxu0 %v4033
      %4315 = vmatprep.subr.mxu0 %v4050
      %4316 = vmatpush1.msra.mxu0 %v4049
      %4317 = vmatprep.subr.mxu0 %v4066
      %4318 = vmatpush1.msra.mxu0 %v4065
      %4319 = vmatprep.subr.mxu0 %v4082
      %4320 = vmatpush1.msra.mxu0 %v4081
      %4321 = vmatprep.subr.mxu0 %v4098
      %4322 = vmatpush1.msra.mxu0 %v4097
      %4323 = vmatprep.subr.mxu0 %v4114
      %4324 = vmatpush1.msra.mxu0 %v4113
      %4325 = vmatprep.subr.mxu0 0.0
      %4326 = vmatpush1.msra.mxu0 0.0
      %4327 = vmatprep.subr.mxu0 0.0
      %4328 = vmatpush1.msra.mxu0 0.0
      %4329 = vmatprep.subr.mxu0 0.0
      %4330 = vmatpush1.msra.mxu0 0.0
      %4331 = vmatprep.subr.mxu0 0.0
      %4332 = vmatpush1.msra.mxu0 0.0
      %4333 = vmatprep.subr.mxu0 0.0
      %4334 = vmatpush1.msra.mxu0 0.0
      %4335 = vmatprep.mubr.f32.mxu0 %v4127
      %4336 = vmatmul.mubr.f32.gmra.mrb[0].mxu0 %v3691
      %v4337 = vpop.f32.mrb[0].mxu0
      %v4338 = vadd.f32 0.0, %v4337
      %v4339 = vpop.f32.mrb[0].mxu0
      %v4340 = vadd.f32 0.0, %v4339
      %4341 = vdwg.mxu0
      %4342 = vmatprep.subr.mxu0 %v3700
      %4343 = vmatpush1.msra.mxu0 %v3699
      %4344 = vmatprep.subr.mxu0 %v3716
      %4345 = vmatpush1.msra.mxu0 %v3715
      %4346 = vmatprep.subr.mxu0 %v3732
      %4347 = vmatpush1.msra.mxu0 %v3731
      %4348 = vmatprep.subr.mxu0 %v3748
      %4349 = vmatpush1.msra.mxu0 %v3747
      %4350 = vmatprep.subr.mxu0 %v3764
      %4351 = vmatpush1.msra.mxu0 %v3763
      %4352 = vmatprep.subr.mxu0 %v3780
      %4353 = vmatpush1.msra.mxu0 %v3779
      %4354 = vmatprep.subr.mxu0 %v3796
      %4355 = vmatpush1.msra.mxu0 %v3795
      %4356 = vmatprep.subr.mxu0 %v3812
      %4357 = vmatpush1.msra.mxu0 %v3811
      %4358 = vmatprep.subr.mxu0 %v3828
      %4359 = vmatpush1.msra.mxu0 %v3827
      %4360 = vmatprep.subr.mxu0 %v3844
      %4361 = vmatpush1.msra.mxu0 %v3843
      %4362 = vmatprep.subr.mxu0 %v3860
      %4363 = vmatpush1.msra.mxu0 %v3859
      %4364 = vmatprep.subr.mxu0 %v3876
      %4365 = vmatpush1.msra.mxu0 %v3875
      %4366 = vmatprep.subr.mxu0 %v3892
      %4367 = vmatpush1.msra.mxu0 %v3891
      %4368 = vmatprep.subr.mxu0 %v3908
      %4369 = vmatpush1.msra.mxu0 %v3907
      %4370 = vmatprep.subr.mxu0 %v3924
      %4371 = vmatpush1.msra.mxu0 %v3923
      %4372 = vmatprep.subr.mxu0 %v3940
      %4373 = vmatpush1.msra.mxu0 %v3939
      %4374 = vmatprep.subr.mxu0 %v3956
      %4375 = vmatpush1.msra.mxu0 %v3955
      %4376 = vmatprep.subr.mxu0 %v3972
      %4377 = vmatpush1.msra.mxu0 %v3971
      %4378 = vmatprep.subr.mxu0 %v3988
      %4379 = vmatpush1.msra.mxu0 %v3987
      %4380 = vmatprep.subr.mxu0 %v4004
      %4381 = vmatpush1.msra.mxu0 %v4003
      %4382 = vmatprep.subr.mxu0 %v4020
      %4383 = vmatpush1.msra.mxu0 %v4019
      %4384 = vmatprep.subr.mxu0 %v4036
      %4385 = vmatpush1.msra.mxu0 %v4035
      %4386 = vmatprep.subr.mxu0 %v4052
      %4387 = vmatpush1.msra.mxu0 %v4051
      %4388 = vmatprep.subr.mxu0 %v4068
      %4389 = vmatpush1.msra.mxu0 %v4067
      %4390 = vmatprep.subr.mxu0 %v4084
      %4391 = vmatpush1.msra.mxu0 %v4083
      %4392 = vmatprep.subr.mxu0 %v4100
      %4393 = vmatpush1.msra.mxu0 %v4099
      %4394 = vmatprep.subr.mxu0 %v4116
      %4395 = vmatpush1.msra.mxu0 %v4115
      %4396 = vmatprep.subr.mxu0 0.0
      %4397 = vmatpush1.msra.mxu0 0.0
      %4398 = vmatprep.subr.mxu0 0.0
      %4399 = vmatpush1.msra.mxu0 0.0
      %4400 = vmatprep.subr.mxu0 0.0
      %4401 = vmatpush1.msra.mxu0 0.0
      %4402 = vmatprep.subr.mxu0 0.0
      %4403 = vmatpush1.msra.mxu0 0.0
      %4404 = vmatprep.subr.mxu0 0.0
      %4405 = vmatpush1.msra.mxu0 0.0
      %4406 = vmatprep.mubr.f32.mxu0 %v4127
      %4407 = vmatmul.mubr.f32.gmra.mrb[0].mxu0 %v3691
      %v4408 = vpop.f32.mrb[0].mxu0
      %v4409 = vadd.f32 0.0, %v4408
      %v4410 = vpop.f32.mrb[0].mxu0
      %v4411 = vadd.f32 0.0, %v4410
      %4412 = vdwg.mxu0
      %4413 = vmatprep.subr.mxu0 %v3702
      %4414 = vmatpush1.msra.mxu0 %v3701
      %4415 = vmatprep.subr.mxu0 %v3718
      %4416 = vmatpush1.msra.mxu0 %v3717
      %4417 = vmatprep.subr.mxu0 %v3734
      %4418 = vmatpush1.msra.mxu0 %v3733
      %4419 = vmatprep.subr.mxu0 %v3750
      %4420 = vmatpush1.msra.mxu0 %v3749
      %4421 = vmatprep.subr.mxu0 %v3766
      %4422 = vmatpush1.msra.mxu0 %v3765
      %4423 = vmatprep.subr.mxu0 %v3782
      %4424 = vmatpush1.msra.mxu0 %v3781
      %4425 = vmatprep.subr.mxu0 %v3798
      %4426 = vmatpush1.msra.mxu0 %v3797
      %4427 = vmatprep.subr.mxu0 %v3814
      %4428 = vmatpush1.msra.mxu0 %v3813
      %4429 = vmatprep.subr.mxu0 %v3830
      %4430 = vmatpush1.msra.mxu0 %v3829
      %4431 = vmatprep.subr.mxu0 %v3846
      %4432 = vmatpush1.msra.mxu0 %v3845
      %4433 = vmatprep.subr.mxu0 %v3862
      %4434 = vmatpush1.msra.mxu0 %v3861
      %4435 = vmatprep.subr.mxu0 %v3878
      %4436 = vmatpush1.msra.mxu0 %v3877
      %4437 = vmatprep.subr.mxu0 %v3894
      %4438 = vmatpush1.msra.mxu0 %v3893
      %4439 = vmatprep.subr.mxu0 %v3910
      %4440 = vmatpush1.msra.mxu0 %v3909
      %4441 = vmatprep.subr.mxu0 %v3926
      %4442 = vmatpush1.msra.mxu0 %v3925
      %4443 = vmatprep.subr.mxu0 %v3942
      %4444 = vmatpush1.msra.mxu0 %v3941
      %4445 = vmatprep.subr.mxu0 %v3958
      %4446 = vmatpush1.msra.mxu0 %v3957
      %4447 = vmatprep.subr.mxu0 %v3974
      %4448 = vmatpush1.msra.mxu0 %v3973
      %4449 = vmatprep.subr.mxu0 %v3990
      %4450 = vmatpush1.msra.mxu0 %v3989
      %4451 = vmatprep.subr.mxu0 %v4006
      %4452 = vmatpush1.msra.mxu0 %v4005
      %4453 = vmatprep.subr.mxu0 %v4022
      %4454 = vmatpush1.msra.mxu0 %v4021
      %4455 = vmatprep.subr.mxu0 %v4038
      %4456 = vmatpush1.msra.mxu0 %v4037
      %4457 = vmatprep.subr.mxu0 %v4054
      %4458 = vmatpush1.msra.mxu0 %v4053
      %4459 = vmatprep.subr.mxu0 %v4070
      %4460 = vmatpush1.msra.mxu0 %v4069
      %4461 = vmatprep.subr.mxu0 %v4086
      %4462 = vmatpush1.msra.mxu0 %v4085
      %4463 = vmatprep.subr.mxu0 %v4102
      %4464 = vmatpush1.msra.mxu0 %v4101
      %4465 = vmatprep.subr.mxu0 %v4118
      %4466 = vmatpush1.msra.mxu0 %v4117
      %4467 = vmatprep.subr.mxu0 0.0
      %4468 = vmatpush1.msra.mxu0 0.0
      %4469 = vmatprep.subr.mxu0 0.0
      %4470 = vmatpush1.msra.mxu0 0.0
      %4471 = vmatprep.subr.mxu0 0.0
      %4472 = vmatpush1.msra.mxu0 0.0
      %4473 = vmatprep.subr.mxu0 0.0
      %4474 = vmatpush1.msra.mxu0 0.0
      %4475 = vmatprep.subr.mxu0 0.0
      %4476 = vmatpush1.msra.mxu0 0.0
      %4477 = vmatprep.mubr.f32.mxu0 %v4127
      %4478 = vmatmul.mubr.f32.gmra.mrb[0].mxu0 %v3691
      %v4479 = vpop.f32.mrb[0].mxu0
      %v4480 = vadd.f32 0.0, %v4479
      %v4481 = vpop.f32.mrb[0].mxu0
      %v4482 = vadd.f32 0.0, %v4481
      %4483 = vdwg.mxu0
      %4484 = vmatprep.subr.mxu0 %v3704
      %4485 = vmatpush1.msra.mxu0 %v3703
      %4486 = vmatprep.subr.mxu0 %v3720
      %4487 = vmatpush1.msra.mxu0 %v3719
      %4488 = vmatprep.subr.mxu0 %v3736
      %4489 = vmatpush1.msra.mxu0 %v3735
      %4490 = vmatprep.subr.mxu0 %v3752
      %4491 = vmatpush1.msra.mxu0 %v3751
      %4492 = vmatprep.subr.mxu0 %v3768
      %4493 = vmatpush1.msra.mxu0 %v3767
      %4494 = vmatprep.subr.mxu0 %v3784
      %4495 = vmatpush1.msra.mxu0 %v3783
      %4496 = vmatprep.subr.mxu0 %v3800
      %4497 = vmatpush1.msra.mxu0 %v3799
      %4498 = vmatprep.subr.mxu0 %v3816
      %4499 = vmatpush1.msra.mxu0 %v3815
      %4500 = vmatprep.subr.mxu0 %v3832
      %4501 = vmatpush1.msra.mxu0 %v3831
      %4502 = vmatprep.subr.mxu0 %v3848
      %4503 = vmatpush1.msra.mxu0 %v3847
      %4504 = vmatprep.subr.mxu0 %v3864
      %4505 = vmatpush1.msra.mxu0 %v3863
      %4506 = vmatprep.subr.mxu0 %v3880
      %4507 = vmatpush1.msra.mxu0 %v3879
      %4508 = vmatprep.subr.mxu0 %v3896
      %4509 = vmatpush1.msra.mxu0 %v3895
      %4510 = vmatprep.subr.mxu0 %v3912
      %4511 = vmatpush1.msra.mxu0 %v3911
      %4512 = vmatprep.subr.mxu0 %v3928
      %4513 = vmatpush1.msra.mxu0 %v3927
      %4514 = vmatprep.subr.mxu0 %v3944
      %4515 = vmatpush1.msra.mxu0 %v3943
      %4516 = vmatprep.subr.mxu0 %v3960
      %4517 = vmatpush1.msra.mxu0 %v3959
      %4518 = vmatprep.subr.mxu0 %v3976
      %4519 = vmatpush1.msra.mxu0 %v3975
      %4520 = vmatprep.subr.mxu0 %v3992
      %4521 = vmatpush1.msra.mxu0 %v3991
      %4522 = vmatprep.subr.mxu0 %v4008
      %4523 = vmatpush1.msra.mxu0 %v4007
      %4524 = vmatprep.subr.mxu0 %v4024
      %4525 = vmatpush1.msra.mxu0 %v4023
      %4526 = vmatprep.subr.mxu0 %v4040
      %4527 = vmatpush1.msra.mxu0 %v4039
      %4528 = vmatprep.subr.mxu0 %v4056
      %4529 = vmatpush1.msra.mxu0 %v4055
      %4530 = vmatprep.subr.mxu0 %v4072
      %4531 = vmatpush1.msra.mxu0 %v4071
      %4532 = vmatprep.subr.mxu0 %v4088
      %4533 = vmatpush1.msra.mxu0 %v4087
      %4534 = vmatprep.subr.mxu0 %v4104
      %4535 = vmatpush1.msra.mxu0 %v4103
      %4536 = vmatprep.subr.mxu0 %v4120
      %4537 = vmatpush1.msra.mxu0 %v4119
      %4538 = vmatprep.subr.mxu0 0.0
      %4539 = vmatpush1.msra.mxu0 0.0
      %4540 = vmatprep.subr.mxu0 0.0
      %4541 = vmatpush1.msra.mxu0 0.0
      %4542 = vmatprep.subr.mxu0 0.0
      %4543 = vmatpush1.msra.mxu0 0.0
      %4544 = vmatprep.subr.mxu0 0.0
      %4545 = vmatpush1.msra.mxu0 0.0
      %4546 = vmatprep.subr.mxu0 0.0
      %4547 = vmatpush1.msra.mxu0 0.0
      %4548 = vmatprep.mubr.f32.mxu0 %v4127
      %4549 = vmatmul.mubr.f32.gmra.mrb[0].mxu0 %v3691
      %v4550 = vpop.f32.mrb[0].mxu0
      %v4551 = vadd.f32 0.0, %v4550
      %v4552 = vpop.f32.mrb[0].mxu0
      %v4553 = vadd.f32 0.0, %v4552
      %4554 = vdwg.mxu0
      %4555 = vmatprep.subr.mxu0 %v3706
      %4556 = vmatpush1.msra.mxu0 %v3705
      %4557 = vmatprep.subr.mxu0 %v3722
      %4558 = vmatpush1.msra.mxu0 %v3721
      %4559 = vmatprep.subr.mxu0 %v3738
      %4560 = vmatpush1.msra.mxu0 %v3737
      %4561 = vmatprep.subr.mxu0 %v3754
      %4562 = vmatpush1.msra.mxu0 %v3753
      %4563 = vmatprep.subr.mxu0 %v3770
      %4564 = vmatpush1.msra.mxu0 %v3769
      %4565 = vmatprep.subr.mxu0 %v3786
      %4566 = vmatpush1.msra.mxu0 %v3785
      %4567 = vmatprep.subr.mxu0 %v3802
      %4568 = vmatpush1.msra.mxu0 %v3801
      %4569 = vmatprep.subr.mxu0 %v3818
      %4570 = vmatpush1.msra.mxu0 %v3817
      %4571 = vmatprep.subr.mxu0 %v3834
      %4572 = vmatpush1.msra.mxu0 %v3833
      %4573 = vmatprep.subr.mxu0 %v3850
      %4574 = vmatpush1.msra.mxu0 %v3849
      %4575 = vmatprep.subr.mxu0 %v3866
      %4576 = vmatpush1.msra.mxu0 %v3865
      %4577 = vmatprep.subr.mxu0 %v3882
      %4578 = vmatpush1.msra.mxu0 %v3881
      %4579 = vmatprep.subr.mxu0 %v3898
      %4580 = vmatpush1.msra.mxu0 %v3897
      %4581 = vmatprep.subr.mxu0 %v3914
      %4582 = vmatpush1.msra.mxu0 %v3913
      %4583 = vmatprep.subr.mxu0 %v3930
      %4584 = vmatpush1.msra.mxu0 %v3929
      %4585 = vmatprep.subr.mxu0 %v3946
      %4586 = vmatpush1.msra.mxu0 %v3945
      %4587 = vmatprep.subr.mxu0 %v3962
      %4588 = vmatpush1.msra.mxu0 %v3961
      %4589 = vmatprep.subr.mxu0 %v3978
      %4590 = vmatpush1.msra.mxu0 %v3977
      %4591 = vmatprep.subr.mxu0 %v3994
      %4592 = vmatpush1.msra.mxu0 %v3993
      %4593 = vmatprep.subr.mxu0 %v4010
      %4594 = vmatpush1.msra.mxu0 %v4009
      %4595 = vmatprep.subr.mxu0 %v4026
      %4596 = vmatpush1.msra.mxu0 %v4025
      %4597 = vmatprep.subr.mxu0 %v4042
      %4598 = vmatpush1.msra.mxu0 %v4041
      %4599 = vmatprep.subr.mxu0 %v4058
      %4600 = vmatpush1.msra.mxu0 %v4057
      %4601 = vmatprep.subr.mxu0 %v4074
      %4602 = vmatpush1.msra.mxu0 %v4073
      %4603 = vmatprep.subr.mxu0 %v4090
      %4604 = vmatpush1.msra.mxu0 %v4089
      %4605 = vmatprep.subr.mxu0 %v4106
      %4606 = vmatpush1.msra.mxu0 %v4105
      %4607 = vmatprep.subr.mxu0 %v4122
      %4608 = vmatpush1.msra.mxu0 %v4121
      %4609 = vmatprep.subr.mxu0 0.0
      %4610 = vmatpush1.msra.mxu0 0.0
      %4611 = vmatprep.subr.mxu0 0.0
      %4612 = vmatpush1.msra.mxu0 0.0
      %4613 = vmatprep.subr.mxu0 0.0
      %4614 = vmatpush1.msra.mxu0 0.0
      %4615 = vmatprep.subr.mxu0 0.0
      %4616 = vmatpush1.msra.mxu0 0.0
      %4617 = vmatprep.subr.mxu0 0.0
      %4618 = vmatpush1.msra.mxu0 0.0
      %4619 = vmatprep.mubr.f32.mxu0 %v4127
      %4620 = vmatmul.mubr.f32.gmra.mrb[0].mxu0 %v3691
      %v4621 = vpop.f32.mrb[0].mxu0
      %v4622 = vadd.f32 0.0, %v4621
      %v4623 = vpop.f32.mrb[0].mxu0
      %v4624 = vadd.f32 0.0, %v4623
      %4625 = vdwg.mxu0
      %4626 = vmatprep.subr.mxu0 %v3708
      %4627 = vmatpush1.msra.mxu0 %v3707
      %4628 = vmatprep.subr.mxu0 %v3724
      %4629 = vmatpush1.msra.mxu0 %v3723
      %4630 = vmatprep.subr.mxu0 %v3740
      %4631 = vmatpush1.msra.mxu0 %v3739
      %4632 = vmatprep.subr.mxu0 %v3756
      %4633 = vmatpush1.msra.mxu0 %v3755
      %4634 = vmatprep.subr.mxu0 %v3772
      %4635 = vmatpush1.msra.mxu0 %v3771
      %4636 = vmatprep.subr.mxu0 %v3788
      %4637 = vmatpush1.msra.mxu0 %v3787
      %4638 = vmatprep.subr.mxu0 %v3804
      %4639 = vmatpush1.msra.mxu0 %v3803
      %4640 = vmatprep.subr.mxu0 %v3820
      %4641 = vmatpush1.msra.mxu0 %v3819
      %4642 = vmatprep.subr.mxu0 %v3836
      %4643 = vmatpush1.msra.mxu0 %v3835
      %4644 = vmatprep.subr.mxu0 %v3852
      %4645 = vmatpush1.msra.mxu0 %v3851
      %4646 = vmatprep.subr.mxu0 %v3868
      %4647 = vmatpush1.msra.mxu0 %v3867
      %4648 = vmatprep.subr.mxu0 %v3884
      %4649 = vmatpush1.msra.mxu0 %v3883
      %4650 = vmatprep.subr.mxu0 %v3900
      %4651 = vmatpush1.msra.mxu0 %v3899
      %4652 = vmatprep.subr.mxu0 %v3916
      %4653 = vmatpush1.msra.mxu0 %v3915
      %4654 = vmatprep.subr.mxu0 %v3932
      %4655 = vmatpush1.msra.mxu0 %v3931
      %4656 = vmatprep.subr.mxu0 %v3948
      %4657 = vmatpush1.msra.mxu0 %v3947
      %4658 = vmatprep.subr.mxu0 %v3964
      %4659 = vmatpush1.msra.mxu0 %v3963
      %4660 = vmatprep.subr.mxu0 %v3980
      %4661 = vmatpush1.msra.mxu0 %v3979
      %4662 = vmatprep.subr.mxu0 %v3996
      %4663 = vmatpush1.msra.mxu0 %v3995
      %4664 = vmatprep.subr.mxu0 %v4012
      %4665 = vmatpush1.msra.mxu0 %v4011
      %4666 = vmatprep.subr.mxu0 %v4028
      %4667 = vmatpush1.msra.mxu0 %v4027
      %4668 = vmatprep.subr.mxu0 %v4044
      %4669 = vmatpush1.msra.mxu0 %v4043
      %4670 = vmatprep.subr.mxu0 %v4060
      %4671 = vmatpush1.msra.mxu0 %v4059
      %4672 = vmatprep.subr.mxu0 %v4076
      %4673 = vmatpush1.msra.mxu0 %v4075
      %4674 = vmatprep.subr.mxu0 %v4092
      %4675 = vmatpush1.msra.mxu0 %v4091
      %4676 = vmatprep.subr.mxu0 %v4108
      %4677 = vmatpush1.msra.mxu0 %v4107
      %4678 = vmatprep.subr.mxu0 %v4124
      %4679 = vmatpush1.msra.mxu0 %v4123
      %4680 = vmatprep.subr.mxu0 0.0
      %4681 = vmatpush1.msra.mxu0 0.0
      %4682 = vmatprep.subr.mxu0 0.0
      %4683 = vmatpush1.msra.mxu0 0.0
      %4684 = vmatprep.subr.mxu0 0.0
      %4685 = vmatpush1.msra.mxu0 0.0
      %4686 = vmatprep.subr.mxu0 0.0
      %4687 = vmatpush1.msra.mxu0 0.0
      %4688 = vmatprep.subr.mxu0 0.0
      %4689 = vmatpush1.msra.mxu0 0.0
      %4690 = vmatprep.mubr.f32.mxu0 %v4127
      %4691 = vmatmul.mubr.f32.gmra.mrb[0].mxu0 %v3691
      %v4692 = vpop.f32.mrb[0].mxu0
      %v4693 = vadd.f32 0.0, %v4692
      %v4694 = vpop.f32.mrb[0].mxu0
      %v4695 = vadd.f32 0.0, %v4694
      %4696 = vdwg.mxu0
      %v4697 = vld [vmem:[%s323] sm:$0xff]
      %v4698 = vld [vmem:[%s323 + $0x8] sm:$0xff]
      %v4701 = vlaneseq
      %v4702 = vshrl.u32 %v4701, 7
      %v4703 = vsub.s32 0, %v4702
      %v4704 = vrot.slane %v4697, %v4703
      %v4705 = vlaneseq
      %v4706 = vshrl.u32 %v4705, 7
      %v4707 = vsub.s32 1, %v4706
      %v4708 = vrot.slane %v4697, %v4707
      %v4709 = vlaneseq
      %v4710 = vshrl.u32 %v4709, 7
      %v4711 = vsub.s32 2, %v4710
      %v4712 = vrot.slane %v4697, %v4711
      %v4713 = vlaneseq
      %v4714 = vshrl.u32 %v4713, 7
      %v4715 = vsub.s32 3, %v4714
      %v4716 = vrot.slane %v4697, %v4715
      %v4717 = vlaneseq
      %v4718 = vshrl.u32 %v4717, 7
      %v4719 = vsub.s32 4, %v4718
      %v4720 = vrot.slane %v4697, %v4719
      %v4721 = vlaneseq
      %v4722 = vshrl.u32 %v4721, 7
      %v4723 = vsub.s32 5, %v4722
      %v4724 = vrot.slane %v4697, %v4723
      %v4725 = vlaneseq
      %v4726 = vshrl.u32 %v4725, 7
      %v4727 = vsub.s32 6, %v4726
      %v4728 = vrot.slane %v4697, %v4727
      %v4729 = vlaneseq
      %v4730 = vshrl.u32 %v4729, 7
      %v4731 = vsub.s32 7, %v4730
      %v4732 = vrot.slane %v4697, %v4731
      %v4733 = vlaneseq
      %v4734 = vshrl.u32 %v4733, 7
      %v4735 = vsub.s32 0, %v4734
      %v4736 = vrot.slane %v4698, %v4735
      %v4737 = vlaneseq
      %v4738 = vshrl.u32 %v4737, 7
      %v4739 = vsub.s32 1, %v4738
      %v4740 = vrot.slane %v4698, %v4739
      %v4741 = vlaneseq
      %v4742 = vshrl.u32 %v4741, 7
      %v4743 = vsub.s32 2, %v4742
      %v4744 = vrot.slane %v4698, %v4743
      %v4745 = vlaneseq
      %v4746 = vshrl.u32 %v4745, 7
      %v4747 = vsub.s32 3, %v4746
      %v4748 = vrot.slane %v4698, %v4747
      %v4749 = vlaneseq
      %v4750 = vshrl.u32 %v4749, 7
      %v4751 = vsub.s32 4, %v4750
      %v4752 = vrot.slane %v4698, %v4751
      %v4753 = vlaneseq
      %v4754 = vshrl.u32 %v4753, 7
      %v4755 = vsub.s32 5, %v4754
      %v4756 = vrot.slane %v4698, %v4755
      %v4757 = vlaneseq
      %v4758 = vshrl.u32 %v4757, 7
      %v4759 = vsub.s32 6, %v4758
      %v4760 = vrot.slane %v4698, %v4759
      %v4761 = vlaneseq
      %v4762 = vshrl.u32 %v4761, 7
      %v4763 = vsub.s32 7, %v4762
      %v4764 = vrot.slane %v4698, %v4763
      %v4781 = vmul.f32 %v4196, %v4704
      %v4782 = vmul.f32 %v4198, %v4708
      %v4783 = vmul.f32 %v4267, %v4712
      %v4784 = vmul.f32 %v4269, %v4716
      %v4785 = vmul.f32 %v4338, %v4720
      %v4786 = vmul.f32 %v4340, %v4724
      %v4787 = vmul.f32 %v4409, %v4728
      %v4788 = vmul.f32 %v4411, %v4732
      %v4789 = vmul.f32 %v4480, %v4736
      %v4790 = vmul.f32 %v4482, %v4740
      %v4791 = vmul.f32 %v4551, %v4744
      %v4792 = vmul.f32 %v4553, %v4748
      %v4793 = vmul.f32 %v4622, %v4752
      %v4794 = vmul.f32 %v4624, %v4756
      %v4795 = vmul.f32 %v4693, %v4760
      %v4796 = vmul.f32 %v4695, %v4764
      %v4797 = vadd.f32 %v4781, %v4782
      %v4798 = vadd.f32 %v4797, %v4783
      %v4799 = vadd.f32 %v4798, %v4784
      %v4800 = vadd.f32 %v4799, %v4785
      %v4801 = vadd.f32 %v4800, %v4786
      %v4802 = vadd.f32 %v4801, %v4787
      %v4803 = vadd.f32 %v4802, %v4788
      %v4804 = vadd.f32 %v4803, %v4789
      %v4805 = vadd.f32 %v4804, %v4790
      %v4806 = vadd.f32 %v4805, %v4791
      %v4807 = vadd.f32 %v4806, %v4792
      %v4808 = vadd.f32 %v4807, %v4793
      %v4809 = vadd.f32 %v4808, %v4794
      %v4810 = vadd.f32 %v4809, %v4795
      %v4811 = vadd.f32 %v4810, %v4796
      %4812 = vadd.xlane.f32.xlu0 %v4811
      %v4813 = vpop.xlane.xlu0 %4812
      %v4814 = vmul.f32 %v4781, %v4196
      %v4815 = vmul.f32 %v4782, %v4198
      %v4816 = vmul.f32 %v4783, %v4267
      %v4817 = vmul.f32 %v4784, %v4269
      %v4818 = vmul.f32 %v4785, %v4338
      %v4819 = vmul.f32 %v4786, %v4340
      %v4820 = vmul.f32 %v4787, %v4409
      %v4821 = vmul.f32 %v4788, %v4411
      %v4822 = vmul.f32 %v4789, %v4480
      %v4823 = vmul.f32 %v4790, %v4482
      %v4824 = vmul.f32 %v4791, %v4551
      %v4825 = vmul.f32 %v4792, %v4553
      %v4826 = vmul.f32 %v4793, %v4622
      %v4827 = vmul.f32 %v4794, %v4624
      %v4828 = vmul.f32 %v4795, %v4693
      %v4829 = vmul.f32 %v4796, %v4695
      %v4830 = vadd.f32 %v4814, %v4815
      %v4831 = vadd.f32 %v4830, %v4816
      %v4832 = vadd.f32 %v4831, %v4817
      %v4833 = vadd.f32 %v4832, %v4818
      %v4834 = vadd.f32 %v4833, %v4819
      %v4835 = vadd.f32 %v4834, %v4820
      %v4836 = vadd.f32 %v4835, %v4821
      %v4837 = vadd.f32 %v4836, %v4822
      %v4838 = vadd.f32 %v4837, %v4823
      %v4839 = vadd.f32 %v4838, %v4824
      %v4840 = vadd.f32 %v4839, %v4825
      %v4841 = vadd.f32 %v4840, %v4826
      %v4842 = vadd.f32 %v4841, %v4827
      %v4843 = vadd.f32 %v4842, %v4828
      %v4844 = vadd.f32 %v4843, %v4829
      %4845 = vadd.xlane.f32.xlu0 %v4844
      %v4846 = vpop.xlane.xlu0 %4845
      %vm4847 = vcmask 7168
      %v4848 = vsel %vm4847, %v4813, %v4846
      %vm4849 = vcmask 15360
      %v4850 = vsel %vm4849, %v4848, 0.0
      %4851 = vst [vmem:[%s342] sm:$0xff] %v4850
      %v4852 = vpack.c.bf16 %v4196, %v4196
      %v4853 = vpack.c.bf16 %v4198, %v4198
      %v4854 = vpack.c.bf16 %v4267, %v4267
      %v4855 = vpack.c.bf16 %v4269, %v4269
      %v4856 = vpack.c.bf16 %v4338, %v4338
      %v4857 = vpack.c.bf16 %v4340, %v4340
      %v4858 = vpack.c.bf16 %v4409, %v4409
      %v4859 = vpack.c.bf16 %v4411, %v4411
      %v4860 = vpack.c.bf16 %v4480, %v4480
      %v4861 = vpack.c.bf16 %v4482, %v4482
      %v4862 = vpack.c.bf16 %v4551, %v4551
      %v4863 = vpack.c.bf16 %v4553, %v4553
      %v4864 = vpack.c.bf16 %v4622, %v4622
      %v4865 = vpack.c.bf16 %v4624, %v4624
      %v4866 = vpack.c.bf16 %v4693, %v4693
      %v4867 = vpack.c.bf16 %v4695, %v4695
      %v4884 = vunpack.c.l.b16 %v4852
      %v4885 = vunpack.c.l.b16 %v4853
      %v4886 = vunpack.c.l.b16 %v4854
      %v4887 = vunpack.c.l.b16 %v4855
      %v4888 = vunpack.c.l.b16 %v4856
      %v4889 = vunpack.c.l.b16 %v4857
      %v4890 = vunpack.c.l.b16 %v4858
      %v4891 = vunpack.c.l.b16 %v4859
      %v4892 = vunpack.c.l.b16 %v4860
      %v4893 = vunpack.c.l.b16 %v4861
      %v4894 = vunpack.c.l.b16 %v4862
      %v4895 = vunpack.c.l.b16 %v4863
      %v4896 = vunpack.c.l.b16 %v4864
      %v4897 = vunpack.c.l.b16 %v4865
      %v4898 = vunpack.c.l.b16 %v4866
      %v4899 = vunpack.c.l.b16 %v4867
      %v4900 = vpack.c.b16 %v4885, %v4884
      %v4901 = vpack.c.b16 %v4887, %v4886
      %v4902 = vpack.c.b16 %v4889, %v4888
      %v4903 = vpack.c.b16 %v4891, %v4890
      %v4904 = vpack.c.b16 %v4893, %v4892
      %v4905 = vpack.c.b16 %v4895, %v4894
      %v4906 = vpack.c.b16 %v4897, %v4896
      %v4907 = vpack.c.b16 %v4899, %v4898
      %4916 = vst [vmem:[%s333] sm:$0xff] %v4900
      %4917 = vst [vmem:[%s333 + $0x8] sm:$0xff] %v4901
      %4918 = vst [vmem:[%s333 + $0x10] sm:$0xff] %v4902
      %4919 = vst [vmem:[%s333 + $0x18] sm:$0xff] %v4903
      %4920 = vst [vmem:[%s333 + $0x20] sm:$0xff] %v4904
      %4921 = vst [vmem:[%s333 + $0x28] sm:$0xff] %v4905
      %4922 = vst [vmem:[%s333 + $0x30] sm:$0xff] %v4906
      %4923 = vst [vmem:[%s333 + $0x38] sm:$0xff] %v4907
      %s4924 = smul.u32 16, %s22
      %p4925 = scmp.lt.s32.totalorder %s21, 1
      %s4926 = scalar_select %p4925, %s21, 1
      %p4927 = scmp.lt.s32.totalorder %s4924, 47
      %s4928 = scalar_select %p4927, %s4924, 47
      %s4929 = smul.addr %s4926, 48
      %s4930 = sadd.s32 %s4928, %s4929
      %s4931 = smul.addr %s4930, 4
      %s4932 = scalar_lea.vmem %s4, %s4931
      %p4933 = scmp.lt.s32.totalorder %s21, 1
      %s4934 = scalar_select %p4933, %s21, 1
      %p4935 = scmp.lt.s32.totalorder %s22, 2
      %s4936 = scalar_select %p4935, %s22, 2
      %s4937 = smul.addr %s4934, 3
      %s4938 = sadd.s32 %s4936, %s4937
      %s4939 = smul.addr %s4938, 8
      %s4940 = scalar_lea.vmem %s5, %s4939
      // Predicated region
      $region37: #{scn_forward.13} parent=35 // pred_check
        %p4941 = pneg %p154
      $region38: #{scn_forward.13} parent=35 // pred_check_branch
        %4943 = sbr.rel (%p4941) target = $region40
      $region39: #{scn_forward.13} parent=35 // pred_region
        %s4944 = smul.u32 16, %s22
      $region40: #{scn_forward.13} parent=35 // pred_fallthru
        _
      // Predicated region
      $region41: #{scn_forward.13} parent=35 // pred_check
        %p4945 = pneg %p182
      $region42: #{scn_forward.13} parent=35 // pred_check_branch
        %4947 = sbr.rel (%p4945) target = $region44
      $region43: #{scn_forward.13} parent=35 // pred_region
        _
      $region44: #{scn_forward.13} parent=35 // pred_fallthru
        _
    $region36: #{scn_forward.13} parent=5 // pred_fallthru
      _
    %p4948 = scmp.le.s32.totalorder 2, %s12
    // Predicated region
    $region45: #{scn_forward.13} parent=5 // pred_check
      %p4949 = pneg %p4948
    $region46: #{scn_forward.13} parent=5 // pred_check_branch
      %4951 = sbr.rel (%p4949) target = $region48
    $region47: #{scn_forward.13} parent=5 // pred_region
      %s4952 = ssub.s32 %s12, 2
      // Predicated region
      $region49: #{scn_forward.13} parent=47 // pred_check
        %p4953 = pneg %p160
      $region50: #{scn_forward.13} parent=47 // pred_check_branch
        %4955 = sbr.rel (%p4953) target = $region52
      $region51: #{scn_forward.13} parent=47 // pred_region
        %s4956 = smul.u32 16, %s24
        %p4957 = scmp.lt.s32.totalorder %s23, 1
        %s4958 = scalar_select %p4957, %s23, 1
        %p4959 = scmp.lt.s32.totalorder %s4956, 47
        %s4960 = scalar_select %p4959, %s4956, 47
        %s4961 = smul.addr %s4958, 48
        %s4962 = sadd.s32 %s4960, %s4961
        %s4963 = smul.addr %s4962, 4
        %s4964 = scalar_lea.vmem %s4, %s4963
      $region52: #{scn_forward.13} parent=47 // pred_fallthru
        _
      // Predicated region
      $region53: #{scn_forward.13} parent=47 // pred_check
        %p4965 = pneg %p188
      $region54: #{scn_forward.13} parent=47 // pred_check_branch
        %4967 = sbr.rel (%p4965) target = $region56
      $region55: #{scn_forward.13} parent=47 // pred_region
        %p4968 = scmp.lt.s32.totalorder %s23, 1
        %s4969 = scalar_select %p4968, %s23, 1
        %p4970 = scmp.lt.s32.totalorder %s24, 2
        %s4971 = scalar_select %p4970, %s24, 2
        %s4972 = smul.addr %s4969, 3
        %s4973 = sadd.s32 %s4971, %s4972
        %s4974 = smul.addr %s4973, 8
        %s4975 = scalar_lea.vmem %s5, %s4974
      $region56: #{scn_forward.13} parent=47 // pred_fallthru
        _
    $region48: #{scn_forward.13} parent=5 // pred_fallthru
      _
  $region6: #{scn_forward.13} parent=0 // loop_footer
    %s16 = sadd.s32 1, %s12
  $region7: #{scn_forward.13} parent=0 // loop_footer_branch
    %11 = sbr.rel target = $region3
  $region8: #{scn_forward.13} parent=0 // loop_exit
    _

// kernel: reverse
$region0: #{reverse}
  #allocation0 [shape = 's32[1]{0}', space=sflag, size = 0x4, scoped, tag = 'scoped memory for reverse']
  %s0 = inlined_call_operand.vmem [shape: f32[8,8,3,3,3], index: 0, kind: input, shape index: {}]
  %s1 = inlined_call_operand.vmem [shape: bf16[8,8,3,3,3], index: 1, kind: output, shape index: {}]
  %s2 = scalar_lea.vmem %s0, 208
  %v3 = vld [vmem:[%s2] sm:$0xff]
  %v4 = vpack.c.bf16 0.0, %v3
  %5 = vst [vmem:[%s1] sm:$0xf] %v4
  %s6 = scalar_lea.vmem %s0, 136
  %v7 = vld [vmem:[%s6] sm:$0xff]
  %s8 = scalar_lea.vmem %s1, 36
  %v9 = vpack.c.bf16 0.0, %v7
  %10 = vst [vmem:[%s8] sm:$0xf] %v9
  %s11 = scalar_lea.vmem %s0, 64
  %v12 = vld [vmem:[%s11] sm:$0xff]
  %s13 = scalar_lea.vmem %s1, 72
  %v14 = vpack.c.bf16 0.0, %v12
  %15 = vst [vmem:[%s13] sm:$0xf] %v14
  %s16 = scalar_lea.vmem %s0, 184
  %v17 = vld [vmem:[%s16] sm:$0xff]
  %s18 = scalar_lea.vmem %s1, 12
  %v19 = vpack.c.bf16 0.0, %v17
  %20 = vst [vmem:[%s18] sm:$0xf] %v19
  %s21 = scalar_lea.vmem %s0, 112
  %v22 = vld [vmem:[%s21] sm:$0xff]
  %s23 = scalar_lea.vmem %s1, 48
  %v24 = vpack.c.bf16 0.0, %v22
  %25 = vst [vmem:[%s23] sm:$0xf] %v24
  %s26 = scalar_lea.vmem %s0, 40
  %v27 = vld [vmem:[%s26] sm:$0xff]
  %s28 = scalar_lea.vmem %s1, 84
  %v29 = vpack.c.bf16 0.0, %v27
  %30 = vst [vmem:[%s28] sm:$0xf] %v29
  %s31 = scalar_lea.vmem %s0, 160
  %v32 = vld [vmem:[%s31] sm:$0xff]
  %s33 = scalar_lea.vmem %s1, 24
  %v34 = vpack.c.bf16 0.0, %v32
  %35 = vst [vmem:[%s33] sm:$0xf] %v34
  %s36 = scalar_lea.vmem %s0, 88
  %v37 = vld [vmem:[%s36] sm:$0xff]
  %s38 = scalar_lea.vmem %s1, 60
  %v39 = vpack.c.bf16 0.0, %v37
  %40 = vst [vmem:[%s38] sm:$0xf] %v39
  %s41 = scalar_lea.vmem %s0, 16
  %v42 = vld [vmem:[%s41] sm:$0xff]
  %s43 = scalar_lea.vmem %s1, 96
  %v44 = vpack.c.bf16 0.0, %v42
  %45 = vst [vmem:[%s43] sm:$0xf] %v44
  %s46 = scalar_lea.vmem %s0, 200
  %v47 = vld [vmem:[%s46] sm:$0xff]
  %s48 = scalar_lea.vmem %s1, 4
  %v49 = vpack.c.bf16 0.0, %v47
  %50 = vst [vmem:[%s48] sm:$0xf] %v49
  %s51 = scalar_lea.vmem %s0, 128
  %v52 = vld [vmem:[%s51] sm:$0xff]
  %s53 = scalar_lea.vmem %s1, 40
  %v54 = vpack.c.bf16 0.0, %v52
  %55 = vst [vmem:[%s53] sm:$0xf] %v54
  %s56 = scalar_lea.vmem %s0, 56
  %v57 = vld [vmem:[%s56] sm:$0xff]
  %s58 = scalar_lea.vmem %s1, 76
  %v59 = vpack.c.bf16 0.0, %v57
  %60 = vst [vmem:[%s58] sm:$0xf] %v59
  %s61 = scalar_lea.vmem %s0, 176
  %v62 = vld [vmem:[%s61] sm:$0xff]
  %s63 = scalar_lea.vmem %s1, 16
  %v64 = vpack.c.bf16 0.0, %v62
  %65 = vst [vmem:[%s63] sm:$0xf] %v64
  %s66 = scalar_lea.vmem %s0, 104
  %v67 = vld [vmem:[%s66] sm:$0xff]
  %s68 = scalar_lea.vmem %s1, 52
  %v69 = vpack.c.bf16 0.0, %v67
  %70 = vst [vmem:[%s68] sm:$0xf] %v69
  %s71 = scalar_lea.vmem %s0, 32
  %v72 = vld [vmem:[%s71] sm:$0xff]
  %s73 = scalar_lea.vmem %s1, 88
  %v74 = vpack.c.bf16 0.0, %v72
  %75 = vst [vmem:[%s73] sm:$0xf] %v74
  %s76 = scalar_lea.vmem %s0, 152
  %v77 = vld [vmem:[%s76] sm:$0xff]
  %s78 = scalar_lea.vmem %s1, 28
  %v79 = vpack.c.bf16 0.0, %v77
  %80 = vst [vmem:[%s78] sm:$0xf] %v79
  %s81 = scalar_lea.vmem %s0, 80
  %v82 = vld [vmem:[%s81] sm:$0xff]
  %s83 = scalar_lea.vmem %s1, 64
  %v84 = vpack.c.bf16 0.0, %v82
  %85 = vst [vmem:[%s83] sm:$0xf] %v84
  %s86 = scalar_lea.vmem %s0, 8
  %v87 = vld [vmem:[%s86] sm:$0xff]
  %s88 = scalar_lea.vmem %s1, 100
  %v89 = vpack.c.bf16 0.0, %v87
  %90 = vst [vmem:[%s88] sm:$0xf] %v89
  %s91 = scalar_lea.vmem %s0, 192
  %v92 = vld [vmem:[%s91] sm:$0xff]
  %s93 = scalar_lea.vmem %s1, 8
  %v94 = vpack.c.bf16 0.0, %v92
  %95 = vst [vmem:[%s93] sm:$0xf] %v94
  %s96 = scalar_lea.vmem %s0, 120
  %v97 = vld [vmem:[%s96] sm:$0xff]
  %s98 = scalar_lea.vmem %s1, 44
  %v99 = vpack.c.bf16 0.0, %v97
  %100 = vst [vmem:[%s98] sm:$0xf] %v99
  %s101 = scalar_lea.vmem %s0, 48
  %v102 = vld [vmem:[%s101] sm:$0xff]
  %s103 = scalar_lea.vmem %s1, 80
  %v104 = vpack.c.bf16 0.0, %v102
  %105 = vst [vmem:[%s103] sm:$0xf] %v104
  %s106 = scalar_lea.vmem %s0, 168
  %v107 = vld [vmem:[%s106] sm:$0xff]
  %s108 = scalar_lea.vmem %s1, 20
  %v109 = vpack.c.bf16 0.0, %v107
  %110 = vst [vmem:[%s108] sm:$0xf] %v109
  %s111 = scalar_lea.vmem %s0, 96
  %v112 = vld [vmem:[%s111] sm:$0xff]
  %s113 = scalar_lea.vmem %s1, 56
  %v114 = vpack.c.bf16 0.0, %v112
  %115 = vst [vmem:[%s113] sm:$0xf] %v114
  %s116 = scalar_lea.vmem %s0, 24
  %v117 = vld [vmem:[%s116] sm:$0xff]
  %s118 = scalar_lea.vmem %s1, 92
  %v119 = vpack.c.bf16 0.0, %v117
  %120 = vst [vmem:[%s118] sm:$0xf] %v119
  %s121 = scalar_lea.vmem %s0, 144
  %v122 = vld [vmem:[%s121] sm:$0xff]
  %s123 = scalar_lea.vmem %s1, 32
  %v124 = vpack.c.bf16 0.0, %v122
  %125 = vst [vmem:[%s123] sm:$0xf] %v124
  %s126 = scalar_lea.vmem %s0, 72
  %v127 = vld [vmem:[%s126] sm:$0xff]
  %s128 = scalar_lea.vmem %s1, 68
  %v129 = vpack.c.bf16 0.0, %v127
  %130 = vst [vmem:[%s128] sm:$0xf] %v129
  %v131 = vld [vmem:[%s0] sm:$0xff]
  %s132 = scalar_lea.vmem %s1, 104
  %v133 = vpack.c.bf16 0.0, %v131
  %134 = vst [vmem:[%s132] sm:$0xf] %v133

// kernel: reverse.2
$region0: #{reverse.2}
  #allocation0 [shape = 's32[1]{0}', space=sflag, size = 0x4, scoped, tag = 'scoped memory for reverse.2']
  %s0 = inlined_call_operand.vmem [shape: f32[8,8,7,7,7], index: 0, kind: input, shape index: {}]
  %s1 = inlined_call_operand.vmem [shape: bf16[8,8,7,7,7], index: 1, kind: output, shape index: {}]
  %s2 = scalar_lea.vmem %s0, 2736
  %v3 = vld [vmem:[%s2] sm:$0xff]
  %v4 = vpack.c.bf16 0.0, %v3
  %5 = vst [vmem:[%s1] sm:$0xf] %v4
  %s6 = scalar_lea.vmem %s0, 2344
  %v7 = vld [vmem:[%s6] sm:$0xff]
  %s8 = scalar_lea.vmem %s1, 196
  %v9 = vpack.c.bf16 0.0, %v7
  %10 = vst [vmem:[%s8] sm:$0xf] %v9
  %s11 = scalar_lea.vmem %s0, 1952
  %v12 = vld [vmem:[%s11] sm:$0xff]
  %s13 = scalar_lea.vmem %s1, 392
  %v14 = vpack.c.bf16 0.0, %v12
  %15 = vst [vmem:[%s13] sm:$0xf] %v14
  %s16 = scalar_lea.vmem %s0, 1560
  %v17 = vld [vmem:[%s16] sm:$0xff]
  %s18 = scalar_lea.vmem %s1, 588
  %v19 = vpack.c.bf16 0.0, %v17
  %20 = vst [vmem:[%s18] sm:$0xf] %v19
  %s21 = scalar_lea.vmem %s0, 1168
  %v22 = vld [vmem:[%s21] sm:$0xff]
  %s23 = scalar_lea.vmem %s1, 784
  %v24 = vpack.c.bf16 0.0, %v22
  %25 = vst [vmem:[%s23] sm:$0xf] %v24
  %s26 = scalar_lea.vmem %s0, 776
  %v27 = vld [vmem:[%s26] sm:$0xff]
  %s28 = scalar_lea.vmem %s1, 980
  %v29 = vpack.c.bf16 0.0, %v27
  %30 = vst [vmem:[%s28] sm:$0xf] %v29
  %s31 = scalar_lea.vmem %s0, 384
  %v32 = vld [vmem:[%s31] sm:$0xff]
  %s33 = scalar_lea.vmem %s1, 1176
  %v34 = vpack.c.bf16 0.0, %v32
  %35 = vst [vmem:[%s33] sm:$0xf] %v34
  %s36 = scalar_lea.vmem %s0, 2680
  %v37 = vld [vmem:[%s36] sm:$0xff]
  %s38 = scalar_lea.vmem %s1, 28
  %v39 = vpack.c.bf16 0.0, %v37
  %40 = vst [vmem:[%s38] sm:$0xf] %v39
  %s41 = scalar_lea.vmem %s0, 2288
  %v42 = vld [vmem:[%s41] sm:$0xff]
  %s43 = scalar_lea.vmem %s1, 224
  %v44 = vpack.c.bf16 0.0, %v42
  %45 = vst [vmem:[%s43] sm:$0xf] %v44
  %s46 = scalar_lea.vmem %s0, 1896
  %v47 = vld [vmem:[%s46] sm:$0xff]
  %s48 = scalar_lea.vmem %s1, 420
  %v49 = vpack.c.bf16 0.0, %v47
  %50 = vst [vmem:[%s48] sm:$0xf] %v49
  %s51 = scalar_lea.vmem %s0, 1504
  %v52 = vld [vmem:[%s51] sm:$0xff]
  %s53 = scalar_lea.vmem %s1, 616
  %v54 = vpack.c.bf16 0.0, %v52
  %55 = vst [vmem:[%s53] sm:$0xf] %v54
  %s56 = scalar_lea.vmem %s0, 1112
  %v57 = vld [vmem:[%s56] sm:$0xff]
  %s58 = scalar_lea.vmem %s1, 812
  %v59 = vpack.c.bf16 0.0, %v57
  %60 = vst [vmem:[%s58] sm:$0xf] %v59
  %s61 = scalar_lea.vmem %s0, 720
  %v62 = vld [vmem:[%s61] sm:$0xff]
  %s63 = scalar_lea.vmem %s1, 1008
  %v64 = vpack.c.bf16 0.0, %v62
  %65 = vst [vmem:[%s63] sm:$0xf] %v64
  %s66 = scalar_lea.vmem %s0, 328
  %v67 = vld [vmem:[%s66] sm:$0xff]
  %s68 = scalar_lea.vmem %s1, 1204
  %v69 = vpack.c.bf16 0.0, %v67
  %70 = vst [vmem:[%s68] sm:$0xf] %v69
  %s71 = scalar_lea.vmem %s0, 2624
  %v72 = vld [vmem:[%s71] sm:$0xff]
  %s73 = scalar_lea.vmem %s1, 56
  %v74 = vpack.c.bf16 0.0, %v72
  %75 = vst [vmem:[%s73] sm:$0xf] %v74
  %s76 = scalar_lea.vmem %s0, 2232
  %v77 = vld [vmem:[%s76] sm:$0xff]
  %s78 = scalar_lea.vmem %s1, 252
  %v79 = vpack.c.bf16 0.0, %v77
  %80 = vst [vmem:[%s78] sm:$0xf] %v79
  %s81 = scalar_lea.vmem %s0, 1840
  %v82 = vld [vmem:[%s81] sm:$0xff]
  %s83 = scalar_lea.vmem %s1, 448
  %v84 = vpack.c.bf16 0.0, %v82
  %85 = vst [vmem:[%s83] sm:$0xf] %v84
  %s86 = scalar_lea.vmem %s0, 1448
  %v87 = vld [vmem:[%s86] sm:$0xff]
  %s88 = scalar_lea.vmem %s1, 644
  %v89 = vpack.c.bf16 0.0, %v87
  %90 = vst [vmem:[%s88] sm:$0xf] %v89
  %s91 = scalar_lea.vmem %s0, 1056
  %v92 = vld [vmem:[%s91] sm:$0xff]
  %s93 = scalar_lea.vmem %s1, 840
  %v94 = vpack.c.bf16 0.0, %v92
  %95 = vst [vmem:[%s93] sm:$0xf] %v94
  %s96 = scalar_lea.vmem %s0, 664
  %v97 = vld [vmem:[%s96] sm:$0xff]
  %s98 = scalar_lea.vmem %s1, 1036
  %v99 = vpack.c.bf16 0.0, %v97
  %100 = vst [vmem:[%s98] sm:$0xf] %v99
  %s101 = scalar_lea.vmem %s0, 272
  %v102 = vld [vmem:[%s101] sm:$0xff]
  %s103 = scalar_lea.vmem %s1, 1232
  %v104 = vpack.c.bf16 0.0, %v102
  %105 = vst [vmem:[%s103] sm:$0xf] %v104
  %s106 = scalar_lea.vmem %s0, 2568
  %v107 = vld [vmem:[%s106] sm:$0xff]
  %s108 = scalar_lea.vmem %s1, 84
  %v109 = vpack.c.bf16 0.0, %v107
  %110 = vst [vmem:[%s108] sm:$0xf] %v109
  %s111 = scalar_lea.vmem %s0, 2176
  %v112 = vld [vmem:[%s111] sm:$0xff]
  %s113 = scalar_lea.vmem %s1, 280
  %v114 = vpack.c.bf16 0.0, %v112
  %115 = vst [vmem:[%s113] sm:$0xf] %v114
  %s116 = scalar_lea.vmem %s0, 1784
  %v117 = vld [vmem:[%s116] sm:$0xff]
  %s118 = scalar_lea.vmem %s1, 476
  %v119 = vpack.c.bf16 0.0, %v117
  %120 = vst [vmem:[%s118] sm:$0xf] %v119
  %s121 = scalar_lea.vmem %s0, 1392
  %v122 = vld [vmem:[%s121] sm:$0xff]
  %s123 = scalar_lea.vmem %s1, 672
  %v124 = vpack.c.bf16 0.0, %v122
  %125 = vst [vmem:[%s123] sm:$0xf] %v124
  %s126 = scalar_lea.vmem %s0, 1000
  %v127 = vld [vmem:[%s126] sm:$0xff]
  %s128 = scalar_lea.vmem %s1, 868
  %v129 = vpack.c.bf16 0.0, %v127
  %130 = vst [vmem:[%s128] sm:$0xf] %v129
  %s131 = scalar_lea.vmem %s0, 608
  %v132 = vld [vmem:[%s131] sm:$0xff]
  %s133 = scalar_lea.vmem %s1, 1064
  %v134 = vpack.c.bf16 0.0, %v132
  %135 = vst [vmem:[%s133] sm:$0xf] %v134
  %s136 = scalar_lea.vmem %s0, 216
  %v137 = vld [vmem:[%s136] sm:$0xff]
  %s138 = scalar_lea.vmem %s1, 1260
  %v139 = vpack.c.bf16 0.0, %v137
  %140 = vst [vmem:[%s138] sm:$0xf] %v139
  %s141 = scalar_lea.vmem %s0, 2512
  %v142 = vld [vmem:[%s141] sm:$0xff]
  %s143 = scalar_lea.vmem %s1, 112
  %v144 = vpack.c.bf16 0.0, %v142
  %145 = vst [vmem:[%s143] sm:$0xf] %v144
  %s146 = scalar_lea.vmem %s0, 2120
  %v147 = vld [vmem:[%s146] sm:$0xff]
  %s148 = scalar_lea.vmem %s1, 308
  %v149 = vpack.c.bf16 0.0, %v147
  %150 = vst [vmem:[%s148] sm:$0xf] %v149
  %s151 = scalar_lea.vmem %s0, 1728
  %v152 = vld [vmem:[%s151] sm:$0xff]
  %s153 = scalar_lea.vmem %s1, 504
  %v154 = vpack.c.bf16 0.0, %v152
  %155 = vst [vmem:[%s153] sm:$0xf] %v154
  %s156 = scalar_lea.vmem %s0, 1336
  %v157 = vld [vmem:[%s156] sm:$0xff]
  %s158 = scalar_lea.vmem %s1, 700
  %v159 = vpack.c.bf16 0.0, %v157
  %160 = vst [vmem:[%s158] sm:$0xf] %v159
  %s161 = scalar_lea.vmem %s0, 944
  %v162 = vld [vmem:[%s161] sm:$0xff]
  %s163 = scalar_lea.vmem %s1, 896
  %v164 = vpack.c.bf16 0.0, %v162
  %165 = vst [vmem:[%s163] sm:$0xf] %v164
  %s166 = scalar_lea.vmem %s0, 552
  %v167 = vld [vmem:[%s166] sm:$0xff]
  %s168 = scalar_lea.vmem %s1, 1092
  %v169 = vpack.c.bf16 0.0, %v167
  %170 = vst [vmem:[%s168] sm:$0xf] %v169
  %s171 = scalar_lea.vmem %s0, 160
  %v172 = vld [vmem:[%s171] sm:$0xff]
  %s173 = scalar_lea.vmem %s1, 1288
  %v174 = vpack.c.bf16 0.0, %v172
  %175 = vst [vmem:[%s173] sm:$0xf] %v174
  %s176 = scalar_lea.vmem %s0, 2456
  %v177 = vld [vmem:[%s176] sm:$0xff]
  %s178 = scalar_lea.vmem %s1, 140
  %v179 = vpack.c.bf16 0.0, %v177
  %180 = vst [vmem:[%s178] sm:$0xf] %v179
  %s181 = scalar_lea.vmem %s0, 2064
  %v182 = vld [vmem:[%s181] sm:$0xff]
  %s183 = scalar_lea.vmem %s1, 336
  %v184 = vpack.c.bf16 0.0, %v182
  %185 = vst [vmem:[%s183] sm:$0xf] %v184
  %s186 = scalar_lea.vmem %s0, 1672
  %v187 = vld [vmem:[%s186] sm:$0xff]
  %s188 = scalar_lea.vmem %s1, 532
  %v189 = vpack.c.bf16 0.0, %v187
  %190 = vst [vmem:[%s188] sm:$0xf] %v189
  %s191 = scalar_lea.vmem %s0, 1280
  %v192 = vld [vmem:[%s191] sm:$0xff]
  %s193 = scalar_lea.vmem %s1, 728
  %v194 = vpack.c.bf16 0.0, %v192
  %195 = vst [vmem:[%s193] sm:$0xf] %v194
  %s196 = scalar_lea.vmem %s0, 888
  %v197 = vld [vmem:[%s196] sm:$0xff]
  %s198 = scalar_lea.vmem %s1, 924
  %v199 = vpack.c.bf16 0.0, %v197
  %200 = vst [vmem:[%s198] sm:$0xf] %v199
  %s201 = scalar_lea.vmem %s0, 496
  %v202 = vld [vmem:[%s201] sm:$0xff]
  %s203 = scalar_lea.vmem %s1, 1120
  %v204 = vpack.c.bf16 0.0, %v202
  %205 = vst [vmem:[%s203] sm:$0xf] %v204
  %s206 = scalar_lea.vmem %s0, 104
  %v207 = vld [vmem:[%s206] sm:$0xff]
  %s208 = scalar_lea.vmem %s1, 1316
  %v209 = vpack.c.bf16 0.0, %v207
  %210 = vst [vmem:[%s208] sm:$0xf] %v209
  %s211 = scalar_lea.vmem %s0, 2400
  %v212 = vld [vmem:[%s211] sm:$0xff]
  %s213 = scalar_lea.vmem %s1, 168
  %v214 = vpack.c.bf16 0.0, %v212
  %215 = vst [vmem:[%s213] sm:$0xf] %v214
  %s216 = scalar_lea.vmem %s0, 2008
  %v217 = vld [vmem:[%s216] sm:$0xff]
  %s218 = scalar_lea.vmem %s1, 364
  %v219 = vpack.c.bf16 0.0, %v217
  %220 = vst [vmem:[%s218] sm:$0xf] %v219
  %s221 = scalar_lea.vmem %s0, 1616
  %v222 = vld [vmem:[%s221] sm:$0xff]
  %s223 = scalar_lea.vmem %s1, 560
  %v224 = vpack.c.bf16 0.0, %v222
  %225 = vst [vmem:[%s223] sm:$0xf] %v224
  %s226 = scalar_lea.vmem %s0, 1224
  %v227 = vld [vmem:[%s226] sm:$0xff]
  %s228 = scalar_lea.vmem %s1, 756
  %v229 = vpack.c.bf16 0.0, %v227
  %230 = vst [vmem:[%s228] sm:$0xf] %v229
  %s231 = scalar_lea.vmem %s0, 832
  %v232 = vld [vmem:[%s231] sm:$0xff]
  %s233 = scalar_lea.vmem %s1, 952
  %v234 = vpack.c.bf16 0.0, %v232
  %235 = vst [vmem:[%s233] sm:$0xf] %v234
  %s236 = scalar_lea.vmem %s0, 440
  %v237 = vld [vmem:[%s236] sm:$0xff]
  %s238 = scalar_lea.vmem %s1, 1148
  %v239 = vpack.c.bf16 0.0, %v237
  %240 = vst [vmem:[%s238] sm:$0xf] %v239
  %s241 = scalar_lea.vmem %s0, 48
  %v242 = vld [vmem:[%s241] sm:$0xff]
  %s243 = scalar_lea.vmem %s1, 1344
  %v244 = vpack.c.bf16 0.0, %v242
  %245 = vst [vmem:[%s243] sm:$0xf] %v244
  %s246 = scalar_lea.vmem %s0, 2728
  %v247 = vld [vmem:[%s246] sm:$0xff]
  %s248 = scalar_lea.vmem %s1, 4
  %v249 = vpack.c.bf16 0.0, %v247
  %250 = vst [vmem:[%s248] sm:$0xf] %v249
  %s251 = scalar_lea.vmem %s0, 2336
  %v252 = vld [vmem:[%s251] sm:$0xff]
  %s253 = scalar_lea.vmem %s1, 200
  %v254 = vpack.c.bf16 0.0, %v252
  %255 = vst [vmem:[%s253] sm:$0xf] %v254
  %s256 = scalar_lea.vmem %s0, 1944
  %v257 = vld [vmem:[%s256] sm:$0xff]
  %s258 = scalar_lea.vmem %s1, 396
  %v259 = vpack.c.bf16 0.0, %v257
  %260 = vst [vmem:[%s258] sm:$0xf] %v259
  %s261 = scalar_lea.vmem %s0, 1552
  %v262 = vld [vmem:[%s261] sm:$0xff]
  %s263 = scalar_lea.vmem %s1, 592
  %v264 = vpack.c.bf16 0.0, %v262
  %265 = vst [vmem:[%s263] sm:$0xf] %v264
  %s266 = scalar_lea.vmem %s0, 1160
  %v267 = vld [vmem:[%s266] sm:$0xff]
  %s268 = scalar_lea.vmem %s1, 788
  %v269 = vpack.c.bf16 0.0, %v267
  %270 = vst [vmem:[%s268] sm:$0xf] %v269
  %s271 = scalar_lea.vmem %s0, 768
  %v272 = vld [vmem:[%s271] sm:$0xff]
  %s273 = scalar_lea.vmem %s1, 984
  %v274 = vpack.c.bf16 0.0, %v272
  %275 = vst [vmem:[%s273] sm:$0xf] %v274
  %s276 = scalar_lea.vmem %s0, 376
  %v277 = vld [vmem:[%s276] sm:$0xff]
  %s278 = scalar_lea.vmem %s1, 1180
  %v279 = vpack.c.bf16 0.0, %v277
  %280 = vst [vmem:[%s278] sm:$0xf] %v279
  %s281 = scalar_lea.vmem %s0, 2672
  %v282 = vld [vmem:[%s281] sm:$0xff]
  %s283 = scalar_lea.vmem %s1, 32
  %v284 = vpack.c.bf16 0.0, %v282
  %285 = vst [vmem:[%s283] sm:$0xf] %v284
  %s286 = scalar_lea.vmem %s0, 2280
  %v287 = vld [vmem:[%s286] sm:$0xff]
  %s288 = scalar_lea.vmem %s1, 228
  %v289 = vpack.c.bf16 0.0, %v287
  %290 = vst [vmem:[%s288] sm:$0xf] %v289
  %s291 = scalar_lea.vmem %s0, 1888
  %v292 = vld [vmem:[%s291] sm:$0xff]
  %s293 = scalar_lea.vmem %s1, 424
  %v294 = vpack.c.bf16 0.0, %v292
  %295 = vst [vmem:[%s293] sm:$0xf] %v294
  %s296 = scalar_lea.vmem %s0, 1496
  %v297 = vld [vmem:[%s296] sm:$0xff]
  %s298 = scalar_lea.vmem %s1, 620
  %v299 = vpack.c.bf16 0.0, %v297
  %300 = vst [vmem:[%s298] sm:$0xf] %v299
  %s301 = scalar_lea.vmem %s0, 1104
  %v302 = vld [vmem:[%s301] sm:$0xff]
  %s303 = scalar_lea.vmem %s1, 816
  %v304 = vpack.c.bf16 0.0, %v302
  %305 = vst [vmem:[%s303] sm:$0xf] %v304
  %s306 = scalar_lea.vmem %s0, 712
  %v307 = vld [vmem:[%s306] sm:$0xff]
  %s308 = scalar_lea.vmem %s1, 1012
  %v309 = vpack.c.bf16 0.0, %v307
  %310 = vst [vmem:[%s308] sm:$0xf] %v309
  %s311 = scalar_lea.vmem %s0, 320
  %v312 = vld [vmem:[%s311] sm:$0xff]
  %s313 = scalar_lea.vmem %s1, 1208
  %v314 = vpack.c.bf16 0.0, %v312
  %315 = vst [vmem:[%s313] sm:$0xf] %v314
  %s316 = scalar_lea.vmem %s0, 2616
  %v317 = vld [vmem:[%s316] sm:$0xff]
  %s318 = scalar_lea.vmem %s1, 60
  %v319 = vpack.c.bf16 0.0, %v317
  %320 = vst [vmem:[%s318] sm:$0xf] %v319
  %s321 = scalar_lea.vmem %s0, 2224
  %v322 = vld [vmem:[%s321] sm:$0xff]
  %s323 = scalar_lea.vmem %s1, 256
  %v324 = vpack.c.bf16 0.0, %v322
  %325 = vst [vmem:[%s323] sm:$0xf] %v324
  %s326 = scalar_lea.vmem %s0, 1832
  %v327 = vld [vmem:[%s326] sm:$0xff]
  %s328 = scalar_lea.vmem %s1, 452
  %v329 = vpack.c.bf16 0.0, %v327
  %330 = vst [vmem:[%s328] sm:$0xf] %v329
  %s331 = scalar_lea.vmem %s0, 1440
  %v332 = vld [vmem:[%s331] sm:$0xff]
  %s333 = scalar_lea.vmem %s1, 648
  %v334 = vpack.c.bf16 0.0, %v332
  %335 = vst [vmem:[%s333] sm:$0xf] %v334
  %s336 = scalar_lea.vmem %s0, 1048
  %v337 = vld [vmem:[%s336] sm:$0xff]
  %s338 = scalar_lea.vmem %s1, 844
  %v339 = vpack.c.bf16 0.0, %v337
  %340 = vst [vmem:[%s338] sm:$0xf] %v339
  %s341 = scalar_lea.vmem %s0, 656
  %v342 = vld [vmem:[%s341] sm:$0xff]
  %s343 = scalar_lea.vmem %s1, 1040
  %v344 = vpack.c.bf16 0.0, %v342
  %345 = vst [vmem:[%s343] sm:$0xf] %v344
  %s346 = scalar_lea.vmem %s0, 264
  %v347 = vld [vmem:[%s346] sm:$0xff]
  %s348 = scalar_lea.vmem %s1, 1236
  %v349 = vpack.c.bf16 0.0, %v347
  %350 = vst [vmem:[%s348] sm:$0xf] %v349
  %s351 = scalar_lea.vmem %s0, 2560
  %v352 = vld [vmem:[%s351] sm:$0xff]
  %s353 = scalar_lea.vmem %s1, 88
  %v354 = vpack.c.bf16 0.0, %v352
  %355 = vst [vmem:[%s353] sm:$0xf] %v354
  %s356 = scalar_lea.vmem %s0, 2168
  %v357 = vld [vmem:[%s356] sm:$0xff]
  %s358 = scalar_lea.vmem %s1, 284
  %v359 = vpack.c.bf16 0.0, %v357
  %360 = vst [vmem:[%s358] sm:$0xf] %v359
  %s361 = scalar_lea.vmem %s0, 1776
  %v362 = vld [vmem:[%s361] sm:$0xff]
  %s363 = scalar_lea.vmem %s1, 480
  %v364 = vpack.c.bf16 0.0, %v362
  %365 = vst [vmem:[%s363] sm:$0xf] %v364
  %s366 = scalar_lea.vmem %s0, 1384
  %v367 = vld [vmem:[%s366] sm:$0xff]
  %s368 = scalar_lea.vmem %s1, 676
  %v369 = vpack.c.bf16 0.0, %v367
  %370 = vst [vmem:[%s368] sm:$0xf] %v369
  %s371 = scalar_lea.vmem %s0, 992
  %v372 = vld [vmem:[%s371] sm:$0xff]
  %s373 = scalar_lea.vmem %s1, 872
  %v374 = vpack.c.bf16 0.0, %v372
  %375 = vst [vmem:[%s373] sm:$0xf] %v374
  %s376 = scalar_lea.vmem %s0, 600
  %v377 = vld [vmem:[%s376] sm:$0xff]
  %s378 = scalar_lea.vmem %s1, 1068
  %v379 = vpack.c.bf16 0.0, %v377
  %380 = vst [vmem:[%s378] sm:$0xf] %v379
  %s381 = scalar_lea.vmem %s0, 208
  %v382 = vld [vmem:[%s381] sm:$0xff]
  %s383 = scalar_lea.vmem %s1, 1264
  %v384 = vpack.c.bf16 0.0, %v382
  %385 = vst [vmem:[%s383] sm:$0xf] %v384
  %s386 = scalar_lea.vmem %s0, 2504
  %v387 = vld [vmem:[%s386] sm:$0xff]
  %s388 = scalar_lea.vmem %s1, 116
  %v389 = vpack.c.bf16 0.0, %v387
  %390 = vst [vmem:[%s388] sm:$0xf] %v389
  %s391 = scalar_lea.vmem %s0, 2112
  %v392 = vld [vmem:[%s391] sm:$0xff]
  %s393 = scalar_lea.vmem %s1, 312
  %v394 = vpack.c.bf16 0.0, %v392
  %395 = vst [vmem:[%s393] sm:$0xf] %v394
  %s396 = scalar_lea.vmem %s0, 1720
  %v397 = vld [vmem:[%s396] sm:$0xff]
  %s398 = scalar_lea.vmem %s1, 508
  %v399 = vpack.c.bf16 0.0, %v397
  %400 = vst [vmem:[%s398] sm:$0xf] %v399
  %s401 = scalar_lea.vmem %s0, 1328
  %v402 = vld [vmem:[%s401] sm:$0xff]
  %s403 = scalar_lea.vmem %s1, 704
  %v404 = vpack.c.bf16 0.0, %v402
  %405 = vst [vmem:[%s403] sm:$0xf] %v404
  %s406 = scalar_lea.vmem %s0, 936
  %v407 = vld [vmem:[%s406] sm:$0xff]
  %s408 = scalar_lea.vmem %s1, 900
  %v409 = vpack.c.bf16 0.0, %v407
  %410 = vst [vmem:[%s408] sm:$0xf] %v409
  %s411 = scalar_lea.vmem %s0, 544
  %v412 = vld [vmem:[%s411] sm:$0xff]
  %s413 = scalar_lea.vmem %s1, 1096
  %v414 = vpack.c.bf16 0.0, %v412
  %415 = vst [vmem:[%s413] sm:$0xf] %v414
  %s416 = scalar_lea.vmem %s0, 152
  %v417 = vld [vmem:[%s416] sm:$0xff]
  %s418 = scalar_lea.vmem %s1, 1292
  %v419 = vpack.c.bf16 0.0, %v417
  %420 = vst [vmem:[%s418] sm:$0xf] %v419
  %s421 = scalar_lea.vmem %s0, 2448
  %v422 = vld [vmem:[%s421] sm:$0xff]
  %s423 = scalar_lea.vmem %s1, 144
  %v424 = vpack.c.bf16 0.0, %v422
  %425 = vst [vmem:[%s423] sm:$0xf] %v424
  %s426 = scalar_lea.vmem %s0, 2056
  %v427 = vld [vmem:[%s426] sm:$0xff]
  %s428 = scalar_lea.vmem %s1, 340
  %v429 = vpack.c.bf16 0.0, %v427
  %430 = vst [vmem:[%s428] sm:$0xf] %v429
  %s431 = scalar_lea.vmem %s0, 1664
  %v432 = vld [vmem:[%s431] sm:$0xff]
  %s433 = scalar_lea.vmem %s1, 536
  %v434 = vpack.c.bf16 0.0, %v432
  %435 = vst [vmem:[%s433] sm:$0xf] %v434
  %s436 = scalar_lea.vmem %s0, 1272
  %v437 = vld [vmem:[%s436] sm:$0xff]
  %s438 = scalar_lea.vmem %s1, 732
  %v439 = vpack.c.bf16 0.0, %v437
  %440 = vst [vmem:[%s438] sm:$0xf] %v439
  %s441 = scalar_lea.vmem %s0, 880
  %v442 = vld [vmem:[%s441] sm:$0xff]
  %s443 = scalar_lea.vmem %s1, 928
  %v444 = vpack.c.bf16 0.0, %v442
  %445 = vst [vmem:[%s443] sm:$0xf] %v444
  %s446 = scalar_lea.vmem %s0, 488
  %v447 = vld [vmem:[%s446] sm:$0xff]
  %s448 = scalar_lea.vmem %s1, 1124
  %v449 = vpack.c.bf16 0.0, %v447
  %450 = vst [vmem:[%s448] sm:$0xf] %v449
  %s451 = scalar_lea.vmem %s0, 96
  %v452 = vld [vmem:[%s451] sm:$0xff]
  %s453 = scalar_lea.vmem %s1, 1320
  %v454 = vpack.c.bf16 0.0, %v452
  %455 = vst [vmem:[%s453] sm:$0xf] %v454
  %s456 = scalar_lea.vmem %s0, 2392
  %v457 = vld [vmem:[%s456] sm:$0xff]
  %s458 = scalar_lea.vmem %s1, 172
  %v459 = vpack.c.bf16 0.0, %v457
  %460 = vst [vmem:[%s458] sm:$0xf] %v459
  %s461 = scalar_lea.vmem %s0, 2000
  %v462 = vld [vmem:[%s461] sm:$0xff]
  %s463 = scalar_lea.vmem %s1, 368
  %v464 = vpack.c.bf16 0.0, %v462
  %465 = vst [vmem:[%s463] sm:$0xf] %v464
  %s466 = scalar_lea.vmem %s0, 1608
  %v467 = vld [vmem:[%s466] sm:$0xff]
  %s468 = scalar_lea.vmem %s1, 564
  %v469 = vpack.c.bf16 0.0, %v467
  %470 = vst [vmem:[%s468] sm:$0xf] %v469
  %s471 = scalar_lea.vmem %s0, 1216
  %v472 = vld [vmem:[%s471] sm:$0xff]
  %s473 = scalar_lea.vmem %s1, 760
  %v474 = vpack.c.bf16 0.0, %v472
  %475 = vst [vmem:[%s473] sm:$0xf] %v474
  %s476 = scalar_lea.vmem %s0, 824
  %v477 = vld [vmem:[%s476] sm:$0xff]
  %s478 = scalar_lea.vmem %s1, 956
  %v479 = vpack.c.bf16 0.0, %v477
  %480 = vst [vmem:[%s478] sm:$0xf] %v479
  %s481 = scalar_lea.vmem %s0, 432
  %v482 = vld [vmem:[%s481] sm:$0xff]
  %s483 = scalar_lea.vmem %s1, 1152
  %v484 = vpack.c.bf16 0.0, %v482
  %485 = vst [vmem:[%s483] sm:$0xf] %v484
  %s486 = scalar_lea.vmem %s0, 40
  %v487 = vld [vmem:[%s486] sm:$0xff]
  %s488 = scalar_lea.vmem %s1, 1348
  %v489 = vpack.c.bf16 0.0, %v487
  %490 = vst [vmem:[%s488] sm:$0xf] %v489
  %s491 = scalar_lea.vmem %s0, 2720
  %v492 = vld [vmem:[%s491] sm:$0xff]
  %s493 = scalar_lea.vmem %s1, 8
  %v494 = vpack.c.bf16 0.0, %v492
  %495 = vst [vmem:[%s493] sm:$0xf] %v494
  %s496 = scalar_lea.vmem %s0, 2328
  %v497 = vld [vmem:[%s496] sm:$0xff]
  %s498 = scalar_lea.vmem %s1, 204
  %v499 = vpack.c.bf16 0.0, %v497
  %500 = vst [vmem:[%s498] sm:$0xf] %v499
  %s501 = scalar_lea.vmem %s0, 1936
  %v502 = vld [vmem:[%s501] sm:$0xff]
  %s503 = scalar_lea.vmem %s1, 400
  %v504 = vpack.c.bf16 0.0, %v502
  %505 = vst [vmem:[%s503] sm:$0xf] %v504
  %s506 = scalar_lea.vmem %s0, 1544
  %v507 = vld [vmem:[%s506] sm:$0xff]
  %s508 = scalar_lea.vmem %s1, 596
  %v509 = vpack.c.bf16 0.0, %v507
  %510 = vst [vmem:[%s508] sm:$0xf] %v509
  %s511 = scalar_lea.vmem %s0, 1152
  %v512 = vld [vmem:[%s511] sm:$0xff]
  %s513 = scalar_lea.vmem %s1, 792
  %v514 = vpack.c.bf16 0.0, %v512
  %515 = vst [vmem:[%s513] sm:$0xf] %v514
  %s516 = scalar_lea.vmem %s0, 760
  %v517 = vld [vmem:[%s516] sm:$0xff]
  %s518 = scalar_lea.vmem %s1, 988
  %v519 = vpack.c.bf16 0.0, %v517
  %520 = vst [vmem:[%s518] sm:$0xf] %v519
  %s521 = scalar_lea.vmem %s0, 368
  %v522 = vld [vmem:[%s521] sm:$0xff]
  %s523 = scalar_lea.vmem %s1, 1184
  %v524 = vpack.c.bf16 0.0, %v522
  %525 = vst [vmem:[%s523] sm:$0xf] %v524
  %s526 = scalar_lea.vmem %s0, 2664
  %v527 = vld [vmem:[%s526] sm:$0xff]
  %s528 = scalar_lea.vmem %s1, 36
  %v529 = vpack.c.bf16 0.0, %v527
  %530 = vst [vmem:[%s528] sm:$0xf] %v529
  %s531 = scalar_lea.vmem %s0, 2272
  %v532 = vld [vmem:[%s531] sm:$0xff]
  %s533 = scalar_lea.vmem %s1, 232
  %v534 = vpack.c.bf16 0.0, %v532
  %535 = vst [vmem:[%s533] sm:$0xf] %v534
  %s536 = scalar_lea.vmem %s0, 1880
  %v537 = vld [vmem:[%s536] sm:$0xff]
  %s538 = scalar_lea.vmem %s1, 428
  %v539 = vpack.c.bf16 0.0, %v537
  %540 = vst [vmem:[%s538] sm:$0xf] %v539
  %s541 = scalar_lea.vmem %s0, 1488
  %v542 = vld [vmem:[%s541] sm:$0xff]
  %s543 = scalar_lea.vmem %s1, 624
  %v544 = vpack.c.bf16 0.0, %v542
  %545 = vst [vmem:[%s543] sm:$0xf] %v544
  %s546 = scalar_lea.vmem %s0, 1096
  %v547 = vld [vmem:[%s546] sm:$0xff]
  %s548 = scalar_lea.vmem %s1, 820
  %v549 = vpack.c.bf16 0.0, %v547
  %550 = vst [vmem:[%s548] sm:$0xf] %v549
  %s551 = scalar_lea.vmem %s0, 704
  %v552 = vld [vmem:[%s551] sm:$0xff]
  %s553 = scalar_lea.vmem %s1, 1016
  %v554 = vpack.c.bf16 0.0, %v552
  %555 = vst [vmem:[%s553] sm:$0xf] %v554
  %s556 = scalar_lea.vmem %s0, 312
  %v557 = vld [vmem:[%s556] sm:$0xff]
  %s558 = scalar_lea.vmem %s1, 1212
  %v559 = vpack.c.bf16 0.0, %v557
  %560 = vst [vmem:[%s558] sm:$0xf] %v559
  %s561 = scalar_lea.vmem %s0, 2608
  %v562 = vld [vmem:[%s561] sm:$0xff]
  %s563 = scalar_lea.vmem %s1, 64
  %v564 = vpack.c.bf16 0.0, %v562
  %565 = vst [vmem:[%s563] sm:$0xf] %v564
  %s566 = scalar_lea.vmem %s0, 2216
  %v567 = vld [vmem:[%s566] sm:$0xff]
  %s568 = scalar_lea.vmem %s1, 260
  %v569 = vpack.c.bf16 0.0, %v567
  %570 = vst [vmem:[%s568] sm:$0xf] %v569
  %s571 = scalar_lea.vmem %s0, 1824
  %v572 = vld [vmem:[%s571] sm:$0xff]
  %s573 = scalar_lea.vmem %s1, 456
  %v574 = vpack.c.bf16 0.0, %v572
  %575 = vst [vmem:[%s573] sm:$0xf] %v574
  %s576 = scalar_lea.vmem %s0, 1432
  %v577 = vld [vmem:[%s576] sm:$0xff]
  %s578 = scalar_lea.vmem %s1, 652
  %v579 = vpack.c.bf16 0.0, %v577
  %580 = vst [vmem:[%s578] sm:$0xf] %v579
  %s581 = scalar_lea.vmem %s0, 1040
  %v582 = vld [vmem:[%s581] sm:$0xff]
  %s583 = scalar_lea.vmem %s1, 848
  %v584 = vpack.c.bf16 0.0, %v582
  %585 = vst [vmem:[%s583] sm:$0xf] %v584
  %s586 = scalar_lea.vmem %s0, 648
  %v587 = vld [vmem:[%s586] sm:$0xff]
  %s588 = scalar_lea.vmem %s1, 1044
  %v589 = vpack.c.bf16 0.0, %v587
  %590 = vst [vmem:[%s588] sm:$0xf] %v589
  %s591 = scalar_lea.vmem %s0, 256
  %v592 = vld [vmem:[%s591] sm:$0xff]
  %s593 = scalar_lea.vmem %s1, 1240
  %v594 = vpack.c.bf16 0.0, %v592
  %595 = vst [vmem:[%s593] sm:$0xf] %v594
  %s596 = scalar_lea.vmem %s0, 2552
  %v597 = vld [vmem:[%s596] sm:$0xff]
  %s598 = scalar_lea.vmem %s1, 92
  %v599 = vpack.c.bf16 0.0, %v597
  %600 = vst [vmem:[%s598] sm:$0xf] %v599
  %s601 = scalar_lea.vmem %s0, 2160
  %v602 = vld [vmem:[%s601] sm:$0xff]
  %s603 = scalar_lea.vmem %s1, 288
  %v604 = vpack.c.bf16 0.0, %v602
  %605 = vst [vmem:[%s603] sm:$0xf] %v604
  %s606 = scalar_lea.vmem %s0, 1768
  %v607 = vld [vmem:[%s606] sm:$0xff]
  %s608 = scalar_lea.vmem %s1, 484
  %v609 = vpack.c.bf16 0.0, %v607
  %610 = vst [vmem:[%s608] sm:$0xf] %v609
  %s611 = scalar_lea.vmem %s0, 1376
  %v612 = vld [vmem:[%s611] sm:$0xff]
  %s613 = scalar_lea.vmem %s1, 680
  %v614 = vpack.c.bf16 0.0, %v612
  %615 = vst [vmem:[%s613] sm:$0xf] %v614
  %s616 = scalar_lea.vmem %s0, 984
  %v617 = vld [vmem:[%s616] sm:$0xff]
  %s618 = scalar_lea.vmem %s1, 876
  %v619 = vpack.c.bf16 0.0, %v617
  %620 = vst [vmem:[%s618] sm:$0xf] %v619
  %s621 = scalar_lea.vmem %s0, 592
  %v622 = vld [vmem:[%s621] sm:$0xff]
  %s623 = scalar_lea.vmem %s1, 1072
  %v624 = vpack.c.bf16 0.0, %v622
  %625 = vst [vmem:[%s623] sm:$0xf] %v624
  %s626 = scalar_lea.vmem %s0, 200
  %v627 = vld [vmem:[%s626] sm:$0xff]
  %s628 = scalar_lea.vmem %s1, 1268
  %v629 = vpack.c.bf16 0.0, %v627
  %630 = vst [vmem:[%s628] sm:$0xf] %v629
  %s631 = scalar_lea.vmem %s0, 2496
  %v632 = vld [vmem:[%s631] sm:$0xff]
  %s633 = scalar_lea.vmem %s1, 120
  %v634 = vpack.c.bf16 0.0, %v632
  %635 = vst [vmem:[%s633] sm:$0xf] %v634
  %s636 = scalar_lea.vmem %s0, 2104
  %v637 = vld [vmem:[%s636] sm:$0xff]
  %s638 = scalar_lea.vmem %s1, 316
  %v639 = vpack.c.bf16 0.0, %v637
  %640 = vst [vmem:[%s638] sm:$0xf] %v639
  %s641 = scalar_lea.vmem %s0, 1712
  %v642 = vld [vmem:[%s641] sm:$0xff]
  %s643 = scalar_lea.vmem %s1, 512
  %v644 = vpack.c.bf16 0.0, %v642
  %645 = vst [vmem:[%s643] sm:$0xf] %v644
  %s646 = scalar_lea.vmem %s0, 1320
  %v647 = vld [vmem:[%s646] sm:$0xff]
  %s648 = scalar_lea.vmem %s1, 708
  %v649 = vpack.c.bf16 0.0, %v647
  %650 = vst [vmem:[%s648] sm:$0xf] %v649
  %s651 = scalar_lea.vmem %s0, 928
  %v652 = vld [vmem:[%s651] sm:$0xff]
  %s653 = scalar_lea.vmem %s1, 904
  %v654 = vpack.c.bf16 0.0, %v652
  %655 = vst [vmem:[%s653] sm:$0xf] %v654
  %s656 = scalar_lea.vmem %s0, 536
  %v657 = vld [vmem:[%s656] sm:$0xff]
  %s658 = scalar_lea.vmem %s1, 1100
  %v659 = vpack.c.bf16 0.0, %v657
  %660 = vst [vmem:[%s658] sm:$0xf] %v659
  %s661 = scalar_lea.vmem %s0, 144
  %v662 = vld [vmem:[%s661] sm:$0xff]
  %s663 = scalar_lea.vmem %s1, 1296
  %v664 = vpack.c.bf16 0.0, %v662
  %665 = vst [vmem:[%s663] sm:$0xf] %v664
  %s666 = scalar_lea.vmem %s0, 2440
  %v667 = vld [vmem:[%s666] sm:$0xff]
  %s668 = scalar_lea.vmem %s1, 148
  %v669 = vpack.c.bf16 0.0, %v667
  %670 = vst [vmem:[%s668] sm:$0xf] %v669
  %s671 = scalar_lea.vmem %s0, 2048
  %v672 = vld [vmem:[%s671] sm:$0xff]
  %s673 = scalar_lea.vmem %s1, 344
  %v674 = vpack.c.bf16 0.0, %v672
  %675 = vst [vmem:[%s673] sm:$0xf] %v674
  %s676 = scalar_lea.vmem %s0, 1656
  %v677 = vld [vmem:[%s676] sm:$0xff]
  %s678 = scalar_lea.vmem %s1, 540
  %v679 = vpack.c.bf16 0.0, %v677
  %680 = vst [vmem:[%s678] sm:$0xf] %v679
  %s681 = scalar_lea.vmem %s0, 1264
  %v682 = vld [vmem:[%s681] sm:$0xff]
  %s683 = scalar_lea.vmem %s1, 736
  %v684 = vpack.c.bf16 0.0, %v682
  %685 = vst [vmem:[%s683] sm:$0xf] %v684
  %s686 = scalar_lea.vmem %s0, 872
  %v687 = vld [vmem:[%s686] sm:$0xff]
  %s688 = scalar_lea.vmem %s1, 932
  %v689 = vpack.c.bf16 0.0, %v687
  %690 = vst [vmem:[%s688] sm:$0xf] %v689
  %s691 = scalar_lea.vmem %s0, 480
  %v692 = vld [vmem:[%s691] sm:$0xff]
  %s693 = scalar_lea.vmem %s1, 1128
  %v694 = vpack.c.bf16 0.0, %v692
  %695 = vst [vmem:[%s693] sm:$0xf] %v694
  %s696 = scalar_lea.vmem %s0, 88
  %v697 = vld [vmem:[%s696] sm:$0xff]
  %s698 = scalar_lea.vmem %s1, 1324
  %v699 = vpack.c.bf16 0.0, %v697
  %700 = vst [vmem:[%s698] sm:$0xf] %v699
  %s701 = scalar_lea.vmem %s0, 2384
  %v702 = vld [vmem:[%s701] sm:$0xff]
  %s703 = scalar_lea.vmem %s1, 176
  %v704 = vpack.c.bf16 0.0, %v702
  %705 = vst [vmem:[%s703] sm:$0xf] %v704
  %s706 = scalar_lea.vmem %s0, 1992
  %v707 = vld [vmem:[%s706] sm:$0xff]
  %s708 = scalar_lea.vmem %s1, 372
  %v709 = vpack.c.bf16 0.0, %v707
  %710 = vst [vmem:[%s708] sm:$0xf] %v709
  %s711 = scalar_lea.vmem %s0, 1600
  %v712 = vld [vmem:[%s711] sm:$0xff]
  %s713 = scalar_lea.vmem %s1, 568
  %v714 = vpack.c.bf16 0.0, %v712
  %715 = vst [vmem:[%s713] sm:$0xf] %v714
  %s716 = scalar_lea.vmem %s0, 1208
  %v717 = vld [vmem:[%s716] sm:$0xff]
  %s718 = scalar_lea.vmem %s1, 764
  %v719 = vpack.c.bf16 0.0, %v717
  %720 = vst [vmem:[%s718] sm:$0xf] %v719
  %s721 = scalar_lea.vmem %s0, 816
  %v722 = vld [vmem:[%s721] sm:$0xff]
  %s723 = scalar_lea.vmem %s1, 960
  %v724 = vpack.c.bf16 0.0, %v722
  %725 = vst [vmem:[%s723] sm:$0xf] %v724
  %s726 = scalar_lea.vmem %s0, 424
  %v727 = vld [vmem:[%s726] sm:$0xff]
  %s728 = scalar_lea.vmem %s1, 1156
  %v729 = vpack.c.bf16 0.0, %v727
  %730 = vst [vmem:[%s728] sm:$0xf] %v729
  %s731 = scalar_lea.vmem %s0, 32
  %v732 = vld [vmem:[%s731] sm:$0xff]
  %s733 = scalar_lea.vmem %s1, 1352
  %v734 = vpack.c.bf16 0.0, %v732
  %735 = vst [vmem:[%s733] sm:$0xf] %v734
  %s736 = scalar_lea.vmem %s0, 2712
  %v737 = vld [vmem:[%s736] sm:$0xff]
  %s738 = scalar_lea.vmem %s1, 12
  %v739 = vpack.c.bf16 0.0, %v737
  %740 = vst [vmem:[%s738] sm:$0xf] %v739
  %s741 = scalar_lea.vmem %s0, 2320
  %v742 = vld [vmem:[%s741] sm:$0xff]
  %s743 = scalar_lea.vmem %s1, 208
  %v744 = vpack.c.bf16 0.0, %v742
  %745 = vst [vmem:[%s743] sm:$0xf] %v744
  %s746 = scalar_lea.vmem %s0, 1928
  %v747 = vld [vmem:[%s746] sm:$0xff]
  %s748 = scalar_lea.vmem %s1, 404
  %v749 = vpack.c.bf16 0.0, %v747
  %750 = vst [vmem:[%s748] sm:$0xf] %v749
  %s751 = scalar_lea.vmem %s0, 1536
  %v752 = vld [vmem:[%s751] sm:$0xff]
  %s753 = scalar_lea.vmem %s1, 600
  %v754 = vpack.c.bf16 0.0, %v752
  %755 = vst [vmem:[%s753] sm:$0xf] %v754
  %s756 = scalar_lea.vmem %s0, 1144
  %v757 = vld [vmem:[%s756] sm:$0xff]
  %s758 = scalar_lea.vmem %s1, 796
  %v759 = vpack.c.bf16 0.0, %v757
  %760 = vst [vmem:[%s758] sm:$0xf] %v759
  %s761 = scalar_lea.vmem %s0, 752
  %v762 = vld [vmem:[%s761] sm:$0xff]
  %s763 = scalar_lea.vmem %s1, 992
  %v764 = vpack.c.bf16 0.0, %v762
  %765 = vst [vmem:[%s763] sm:$0xf] %v764
  %s766 = scalar_lea.vmem %s0, 360
  %v767 = vld [vmem:[%s766] sm:$0xff]
  %s768 = scalar_lea.vmem %s1, 1188
  %v769 = vpack.c.bf16 0.0, %v767
  %770 = vst [vmem:[%s768] sm:$0xf] %v769
  %s771 = scalar_lea.vmem %s0, 2656
  %v772 = vld [vmem:[%s771] sm:$0xff]
  %s773 = scalar_lea.vmem %s1, 40
  %v774 = vpack.c.bf16 0.0, %v772
  %775 = vst [vmem:[%s773] sm:$0xf] %v774
  %s776 = scalar_lea.vmem %s0, 2264
  %v777 = vld [vmem:[%s776] sm:$0xff]
  %s778 = scalar_lea.vmem %s1, 236
  %v779 = vpack.c.bf16 0.0, %v777
  %780 = vst [vmem:[%s778] sm:$0xf] %v779
  %s781 = scalar_lea.vmem %s0, 1872
  %v782 = vld [vmem:[%s781] sm:$0xff]
  %s783 = scalar_lea.vmem %s1, 432
  %v784 = vpack.c.bf16 0.0, %v782
  %785 = vst [vmem:[%s783] sm:$0xf] %v784
  %s786 = scalar_lea.vmem %s0, 1480
  %v787 = vld [vmem:[%s786] sm:$0xff]
  %s788 = scalar_lea.vmem %s1, 628
  %v789 = vpack.c.bf16 0.0, %v787
  %790 = vst [vmem:[%s788] sm:$0xf] %v789
  %s791 = scalar_lea.vmem %s0, 1088
  %v792 = vld [vmem:[%s791] sm:$0xff]
  %s793 = scalar_lea.vmem %s1, 824
  %v794 = vpack.c.bf16 0.0, %v792
  %795 = vst [vmem:[%s793] sm:$0xf] %v794
  %s796 = scalar_lea.vmem %s0, 696
  %v797 = vld [vmem:[%s796] sm:$0xff]
  %s798 = scalar_lea.vmem %s1, 1020
  %v799 = vpack.c.bf16 0.0, %v797
  %800 = vst [vmem:[%s798] sm:$0xf] %v799
  %s801 = scalar_lea.vmem %s0, 304
  %v802 = vld [vmem:[%s801] sm:$0xff]
  %s803 = scalar_lea.vmem %s1, 1216
  %v804 = vpack.c.bf16 0.0, %v802
  %805 = vst [vmem:[%s803] sm:$0xf] %v804
  %s806 = scalar_lea.vmem %s0, 2600
  %v807 = vld [vmem:[%s806] sm:$0xff]
  %s808 = scalar_lea.vmem %s1, 68
  %v809 = vpack.c.bf16 0.0, %v807
  %810 = vst [vmem:[%s808] sm:$0xf] %v809
  %s811 = scalar_lea.vmem %s0, 2208
  %v812 = vld [vmem:[%s811] sm:$0xff]
  %s813 = scalar_lea.vmem %s1, 264
  %v814 = vpack.c.bf16 0.0, %v812
  %815 = vst [vmem:[%s813] sm:$0xf] %v814
  %s816 = scalar_lea.vmem %s0, 1816
  %v817 = vld [vmem:[%s816] sm:$0xff]
  %s818 = scalar_lea.vmem %s1, 460
  %v819 = vpack.c.bf16 0.0, %v817
  %820 = vst [vmem:[%s818] sm:$0xf] %v819
  %s821 = scalar_lea.vmem %s0, 1424
  %v822 = vld [vmem:[%s821] sm:$0xff]
  %s823 = scalar_lea.vmem %s1, 656
  %v824 = vpack.c.bf16 0.0, %v822
  %825 = vst [vmem:[%s823] sm:$0xf] %v824
  %s826 = scalar_lea.vmem %s0, 1032
  %v827 = vld [vmem:[%s826] sm:$0xff]
  %s828 = scalar_lea.vmem %s1, 852
  %v829 = vpack.c.bf16 0.0, %v827
  %830 = vst [vmem:[%s828] sm:$0xf] %v829
  %s831 = scalar_lea.vmem %s0, 640
  %v832 = vld [vmem:[%s831] sm:$0xff]
  %s833 = scalar_lea.vmem %s1, 1048
  %v834 = vpack.c.bf16 0.0, %v832
  %835 = vst [vmem:[%s833] sm:$0xf] %v834
  %s836 = scalar_lea.vmem %s0, 248
  %v837 = vld [vmem:[%s836] sm:$0xff]
  %s838 = scalar_lea.vmem %s1, 1244
  %v839 = vpack.c.bf16 0.0, %v837
  %840 = vst [vmem:[%s838] sm:$0xf] %v839
  %s841 = scalar_lea.vmem %s0, 2544
  %v842 = vld [vmem:[%s841] sm:$0xff]
  %s843 = scalar_lea.vmem %s1, 96
  %v844 = vpack.c.bf16 0.0, %v842
  %845 = vst [vmem:[%s843] sm:$0xf] %v844
  %s846 = scalar_lea.vmem %s0, 2152
  %v847 = vld [vmem:[%s846] sm:$0xff]
  %s848 = scalar_lea.vmem %s1, 292
  %v849 = vpack.c.bf16 0.0, %v847
  %850 = vst [vmem:[%s848] sm:$0xf] %v849
  %s851 = scalar_lea.vmem %s0, 1760
  %v852 = vld [vmem:[%s851] sm:$0xff]
  %s853 = scalar_lea.vmem %s1, 488
  %v854 = vpack.c.bf16 0.0, %v852
  %855 = vst [vmem:[%s853] sm:$0xf] %v854
  %s856 = scalar_lea.vmem %s0, 1368
  %v857 = vld [vmem:[%s856] sm:$0xff]
  %s858 = scalar_lea.vmem %s1, 684
  %v859 = vpack.c.bf16 0.0, %v857
  %860 = vst [vmem:[%s858] sm:$0xf] %v859
  %s861 = scalar_lea.vmem %s0, 976
  %v862 = vld [vmem:[%s861] sm:$0xff]
  %s863 = scalar_lea.vmem %s1, 880
  %v864 = vpack.c.bf16 0.0, %v862
  %865 = vst [vmem:[%s863] sm:$0xf] %v864
  %s866 = scalar_lea.vmem %s0, 584
  %v867 = vld [vmem:[%s866] sm:$0xff]
  %s868 = scalar_lea.vmem %s1, 1076
  %v869 = vpack.c.bf16 0.0, %v867
  %870 = vst [vmem:[%s868] sm:$0xf] %v869
  %s871 = scalar_lea.vmem %s0, 192
  %v872 = vld [vmem:[%s871] sm:$0xff]
  %s873 = scalar_lea.vmem %s1, 1272
  %v874 = vpack.c.bf16 0.0, %v872
  %875 = vst [vmem:[%s873] sm:$0xf] %v874
  %s876 = scalar_lea.vmem %s0, 2488
  %v877 = vld [vmem:[%s876] sm:$0xff]
  %s878 = scalar_lea.vmem %s1, 124
  %v879 = vpack.c.bf16 0.0, %v877
  %880 = vst [vmem:[%s878] sm:$0xf] %v879
  %s881 = scalar_lea.vmem %s0, 2096
  %v882 = vld [vmem:[%s881] sm:$0xff]
  %s883 = scalar_lea.vmem %s1, 320
  %v884 = vpack.c.bf16 0.0, %v882
  %885 = vst [vmem:[%s883] sm:$0xf] %v884
  %s886 = scalar_lea.vmem %s0, 1704
  %v887 = vld [vmem:[%s886] sm:$0xff]
  %s888 = scalar_lea.vmem %s1, 516
  %v889 = vpack.c.bf16 0.0, %v887
  %890 = vst [vmem:[%s888] sm:$0xf] %v889
  %s891 = scalar_lea.vmem %s0, 1312
  %v892 = vld [vmem:[%s891] sm:$0xff]
  %s893 = scalar_lea.vmem %s1, 712
  %v894 = vpack.c.bf16 0.0, %v892
  %895 = vst [vmem:[%s893] sm:$0xf] %v894
  %s896 = scalar_lea.vmem %s0, 920
  %v897 = vld [vmem:[%s896] sm:$0xff]
  %s898 = scalar_lea.vmem %s1, 908
  %v899 = vpack.c.bf16 0.0, %v897
  %900 = vst [vmem:[%s898] sm:$0xf] %v899
  %s901 = scalar_lea.vmem %s0, 528
  %v902 = vld [vmem:[%s901] sm:$0xff]
  %s903 = scalar_lea.vmem %s1, 1104
  %v904 = vpack.c.bf16 0.0, %v902
  %905 = vst [vmem:[%s903] sm:$0xf] %v904
  %s906 = scalar_lea.vmem %s0, 136
  %v907 = vld [vmem:[%s906] sm:$0xff]
  %s908 = scalar_lea.vmem %s1, 1300
  %v909 = vpack.c.bf16 0.0, %v907
  %910 = vst [vmem:[%s908] sm:$0xf] %v909
  %s911 = scalar_lea.vmem %s0, 2432
  %v912 = vld [vmem:[%s911] sm:$0xff]
  %s913 = scalar_lea.vmem %s1, 152
  %v914 = vpack.c.bf16 0.0, %v912
  %915 = vst [vmem:[%s913] sm:$0xf] %v914
  %s916 = scalar_lea.vmem %s0, 2040
  %v917 = vld [vmem:[%s916] sm:$0xff]
  %s918 = scalar_lea.vmem %s1, 348
  %v919 = vpack.c.bf16 0.0, %v917
  %920 = vst [vmem:[%s918] sm:$0xf] %v919
  %s921 = scalar_lea.vmem %s0, 1648
  %v922 = vld [vmem:[%s921] sm:$0xff]
  %s923 = scalar_lea.vmem %s1, 544
  %v924 = vpack.c.bf16 0.0, %v922
  %925 = vst [vmem:[%s923] sm:$0xf] %v924
  %s926 = scalar_lea.vmem %s0, 1256
  %v927 = vld [vmem:[%s926] sm:$0xff]
  %s928 = scalar_lea.vmem %s1, 740
  %v929 = vpack.c.bf16 0.0, %v927
  %930 = vst [vmem:[%s928] sm:$0xf] %v929
  %s931 = scalar_lea.vmem %s0, 864
  %v932 = vld [vmem:[%s931] sm:$0xff]
  %s933 = scalar_lea.vmem %s1, 936
  %v934 = vpack.c.bf16 0.0, %v932
  %935 = vst [vmem:[%s933] sm:$0xf] %v934
  %s936 = scalar_lea.vmem %s0, 472
  %v937 = vld [vmem:[%s936] sm:$0xff]
  %s938 = scalar_lea.vmem %s1, 1132
  %v939 = vpack.c.bf16 0.0, %v937
  %940 = vst [vmem:[%s938] sm:$0xf] %v939
  %s941 = scalar_lea.vmem %s0, 80
  %v942 = vld [vmem:[%s941] sm:$0xff]
  %s943 = scalar_lea.vmem %s1, 1328
  %v944 = vpack.c.bf16 0.0, %v942
  %945 = vst [vmem:[%s943] sm:$0xf] %v944
  %s946 = scalar_lea.vmem %s0, 2376
  %v947 = vld [vmem:[%s946] sm:$0xff]
  %s948 = scalar_lea.vmem %s1, 180
  %v949 = vpack.c.bf16 0.0, %v947
  %950 = vst [vmem:[%s948] sm:$0xf] %v949
  %s951 = scalar_lea.vmem %s0, 1984
  %v952 = vld [vmem:[%s951] sm:$0xff]
  %s953 = scalar_lea.vmem %s1, 376
  %v954 = vpack.c.bf16 0.0, %v952
  %955 = vst [vmem:[%s953] sm:$0xf] %v954
  %s956 = scalar_lea.vmem %s0, 1592
  %v957 = vld [vmem:[%s956] sm:$0xff]
  %s958 = scalar_lea.vmem %s1, 572
  %v959 = vpack.c.bf16 0.0, %v957
  %960 = vst [vmem:[%s958] sm:$0xf] %v959
  %s961 = scalar_lea.vmem %s0, 1200
  %v962 = vld [vmem:[%s961] sm:$0xff]
  %s963 = scalar_lea.vmem %s1, 768
  %v964 = vpack.c.bf16 0.0, %v962
  %965 = vst [vmem:[%s963] sm:$0xf] %v964
  %s966 = scalar_lea.vmem %s0, 808
  %v967 = vld [vmem:[%s966] sm:$0xff]
  %s968 = scalar_lea.vmem %s1, 964
  %v969 = vpack.c.bf16 0.0, %v967
  %970 = vst [vmem:[%s968] sm:$0xf] %v969
  %s971 = scalar_lea.vmem %s0, 416
  %v972 = vld [vmem:[%s971] sm:$0xff]
  %s973 = scalar_lea.vmem %s1, 1160
  %v974 = vpack.c.bf16 0.0, %v972
  %975 = vst [vmem:[%s973] sm:$0xf] %v974
  %s976 = scalar_lea.vmem %s0, 24
  %v977 = vld [vmem:[%s976] sm:$0xff]
  %s978 = scalar_lea.vmem %s1, 1356
  %v979 = vpack.c.bf16 0.0, %v977
  %980 = vst [vmem:[%s978] sm:$0xf] %v979
  %s981 = scalar_lea.vmem %s0, 2704
  %v982 = vld [vmem:[%s981] sm:$0xff]
  %s983 = scalar_lea.vmem %s1, 16
  %v984 = vpack.c.bf16 0.0, %v982
  %985 = vst [vmem:[%s983] sm:$0xf] %v984
  %s986 = scalar_lea.vmem %s0, 2312
  %v987 = vld [vmem:[%s986] sm:$0xff]
  %s988 = scalar_lea.vmem %s1, 212
  %v989 = vpack.c.bf16 0.0, %v987
  %990 = vst [vmem:[%s988] sm:$0xf] %v989
  %s991 = scalar_lea.vmem %s0, 1920
  %v992 = vld [vmem:[%s991] sm:$0xff]
  %s993 = scalar_lea.vmem %s1, 408
  %v994 = vpack.c.bf16 0.0, %v992
  %995 = vst [vmem:[%s993] sm:$0xf] %v994
  %s996 = scalar_lea.vmem %s0, 1528
  %v997 = vld [vmem:[%s996] sm:$0xff]
  %s998 = scalar_lea.vmem %s1, 604
  %v999 = vpack.c.bf16 0.0, %v997
  %1000 = vst [vmem:[%s998] sm:$0xf] %v999
  %s1001 = scalar_lea.vmem %s0, 1136
  %v1002 = vld [vmem:[%s1001] sm:$0xff]
  %s1003 = scalar_lea.vmem %s1, 800
  %v1004 = vpack.c.bf16 0.0, %v1002
  %1005 = vst [vmem:[%s1003] sm:$0xf] %v1004
  %s1006 = scalar_lea.vmem %s0, 744
  %v1007 = vld [vmem:[%s1006] sm:$0xff]
  %s1008 = scalar_lea.vmem %s1, 996
  %v1009 = vpack.c.bf16 0.0, %v1007
  %1010 = vst [vmem:[%s1008] sm:$0xf] %v1009
  %s1011 = scalar_lea.vmem %s0, 352
  %v1012 = vld [vmem:[%s1011] sm:$0xff]
  %s1013 = scalar_lea.vmem %s1, 1192
  %v1014 = vpack.c.bf16 0.0, %v1012
  %1015 = vst [vmem:[%s1013] sm:$0xf] %v1014
  %s1016 = scalar_lea.vmem %s0, 2648
  %v1017 = vld [vmem:[%s1016] sm:$0xff]
  %s1018 = scalar_lea.vmem %s1, 44
  %v1019 = vpack.c.bf16 0.0, %v1017
  %1020 = vst [vmem:[%s1018] sm:$0xf] %v1019
  %s1021 = scalar_lea.vmem %s0, 2256
  %v1022 = vld [vmem:[%s1021] sm:$0xff]
  %s1023 = scalar_lea.vmem %s1, 240
  %v1024 = vpack.c.bf16 0.0, %v1022
  %1025 = vst [vmem:[%s1023] sm:$0xf] %v1024
  %s1026 = scalar_lea.vmem %s0, 1864
  %v1027 = vld [vmem:[%s1026] sm:$0xff]
  %s1028 = scalar_lea.vmem %s1, 436
  %v1029 = vpack.c.bf16 0.0, %v1027
  %1030 = vst [vmem:[%s1028] sm:$0xf] %v1029
  %s1031 = scalar_lea.vmem %s0, 1472
  %v1032 = vld [vmem:[%s1031] sm:$0xff]
  %s1033 = scalar_lea.vmem %s1, 632
  %v1034 = vpack.c.bf16 0.0, %v1032
  %1035 = vst [vmem:[%s1033] sm:$0xf] %v1034
  %s1036 = scalar_lea.vmem %s0, 1080
  %v1037 = vld [vmem:[%s1036] sm:$0xff]
  %s1038 = scalar_lea.vmem %s1, 828
  %v1039 = vpack.c.bf16 0.0, %v1037
  %1040 = vst [vmem:[%s1038] sm:$0xf] %v1039
  %s1041 = scalar_lea.vmem %s0, 688
  %v1042 = vld [vmem:[%s1041] sm:$0xff]
  %s1043 = scalar_lea.vmem %s1, 1024
  %v1044 = vpack.c.bf16 0.0, %v1042
  %1045 = vst [vmem:[%s1043] sm:$0xf] %v1044
  %s1046 = scalar_lea.vmem %s0, 296
  %v1047 = vld [vmem:[%s1046] sm:$0xff]
  %s1048 = scalar_lea.vmem %s1, 1220
  %v1049 = vpack.c.bf16 0.0, %v1047
  %1050 = vst [vmem:[%s1048] sm:$0xf] %v1049
  %s1051 = scalar_lea.vmem %s0, 2592
  %v1052 = vld [vmem:[%s1051] sm:$0xff]
  %s1053 = scalar_lea.vmem %s1, 72
  %v1054 = vpack.c.bf16 0.0, %v1052
  %1055 = vst [vmem:[%s1053] sm:$0xf] %v1054
  %s1056 = scalar_lea.vmem %s0, 2200
  %v1057 = vld [vmem:[%s1056] sm:$0xff]
  %s1058 = scalar_lea.vmem %s1, 268
  %v1059 = vpack.c.bf16 0.0, %v1057
  %1060 = vst [vmem:[%s1058] sm:$0xf] %v1059
  %s1061 = scalar_lea.vmem %s0, 1808
  %v1062 = vld [vmem:[%s1061] sm:$0xff]
  %s1063 = scalar_lea.vmem %s1, 464
  %v1064 = vpack.c.bf16 0.0, %v1062
  %1065 = vst [vmem:[%s1063] sm:$0xf] %v1064
  %s1066 = scalar_lea.vmem %s0, 1416
  %v1067 = vld [vmem:[%s1066] sm:$0xff]
  %s1068 = scalar_lea.vmem %s1, 660
  %v1069 = vpack.c.bf16 0.0, %v1067
  %1070 = vst [vmem:[%s1068] sm:$0xf] %v1069
  %s1071 = scalar_lea.vmem %s0, 1024
  %v1072 = vld [vmem:[%s1071] sm:$0xff]
  %s1073 = scalar_lea.vmem %s1, 856
  %v1074 = vpack.c.bf16 0.0, %v1072
  %1075 = vst [vmem:[%s1073] sm:$0xf] %v1074
  %s1076 = scalar_lea.vmem %s0, 632
  %v1077 = vld [vmem:[%s1076] sm:$0xff]
  %s1078 = scalar_lea.vmem %s1, 1052
  %v1079 = vpack.c.bf16 0.0, %v1077
  %1080 = vst [vmem:[%s1078] sm:$0xf] %v1079
  %s1081 = scalar_lea.vmem %s0, 240
  %v1082 = vld [vmem:[%s1081] sm:$0xff]
  %s1083 = scalar_lea.vmem %s1, 1248
  %v1084 = vpack.c.bf16 0.0, %v1082
  %1085 = vst [vmem:[%s1083] sm:$0xf] %v1084
  %s1086 = scalar_lea.vmem %s0, 2536
  %v1087 = vld [vmem:[%s1086] sm:$0xff]
  %s1088 = scalar_lea.vmem %s1, 100
  %v1089 = vpack.c.bf16 0.0, %v1087
  %1090 = vst [vmem:[%s1088] sm:$0xf] %v1089
  %s1091 = scalar_lea.vmem %s0, 2144
  %v1092 = vld [vmem:[%s1091] sm:$0xff]
  %s1093 = scalar_lea.vmem %s1, 296
  %v1094 = vpack.c.bf16 0.0, %v1092
  %1095 = vst [vmem:[%s1093] sm:$0xf] %v1094
  %s1096 = scalar_lea.vmem %s0, 1752
  %v1097 = vld [vmem:[%s1096] sm:$0xff]
  %s1098 = scalar_lea.vmem %s1, 492
  %v1099 = vpack.c.bf16 0.0, %v1097
  %1100 = vst [vmem:[%s1098] sm:$0xf] %v1099
  %s1101 = scalar_lea.vmem %s0, 1360
  %v1102 = vld [vmem:[%s1101] sm:$0xff]
  %s1103 = scalar_lea.vmem %s1, 688
  %v1104 = vpack.c.bf16 0.0, %v1102
  %1105 = vst [vmem:[%s1103] sm:$0xf] %v1104
  %s1106 = scalar_lea.vmem %s0, 968
  %v1107 = vld [vmem:[%s1106] sm:$0xff]
  %s1108 = scalar_lea.vmem %s1, 884
  %v1109 = vpack.c.bf16 0.0, %v1107
  %1110 = vst [vmem:[%s1108] sm:$0xf] %v1109
  %s1111 = scalar_lea.vmem %s0, 576
  %v1112 = vld [vmem:[%s1111] sm:$0xff]
  %s1113 = scalar_lea.vmem %s1, 1080
  %v1114 = vpack.c.bf16 0.0, %v1112
  %1115 = vst [vmem:[%s1113] sm:$0xf] %v1114
  %s1116 = scalar_lea.vmem %s0, 184
  %v1117 = vld [vmem:[%s1116] sm:$0xff]
  %s1118 = scalar_lea.vmem %s1, 1276
  %v1119 = vpack.c.bf16 0.0, %v1117
  %1120 = vst [vmem:[%s1118] sm:$0xf] %v1119
  %s1121 = scalar_lea.vmem %s0, 2480
  %v1122 = vld [vmem:[%s1121] sm:$0xff]
  %s1123 = scalar_lea.vmem %s1, 128
  %v1124 = vpack.c.bf16 0.0, %v1122
  %1125 = vst [vmem:[%s1123] sm:$0xf] %v1124
  %s1126 = scalar_lea.vmem %s0, 2088
  %v1127 = vld [vmem:[%s1126] sm:$0xff]
  %s1128 = scalar_lea.vmem %s1, 324
  %v1129 = vpack.c.bf16 0.0, %v1127
  %1130 = vst [vmem:[%s1128] sm:$0xf] %v1129
  %s1131 = scalar_lea.vmem %s0, 1696
  %v1132 = vld [vmem:[%s1131] sm:$0xff]
  %s1133 = scalar_lea.vmem %s1, 520
  %v1134 = vpack.c.bf16 0.0, %v1132
  %1135 = vst [vmem:[%s1133] sm:$0xf] %v1134
  %s1136 = scalar_lea.vmem %s0, 1304
  %v1137 = vld [vmem:[%s1136] sm:$0xff]
  %s1138 = scalar_lea.vmem %s1, 716
  %v1139 = vpack.c.bf16 0.0, %v1137
  %1140 = vst [vmem:[%s1138] sm:$0xf] %v1139
  %s1141 = scalar_lea.vmem %s0, 912
  %v1142 = vld [vmem:[%s1141] sm:$0xff]
  %s1143 = scalar_lea.vmem %s1, 912
  %v1144 = vpack.c.bf16 0.0, %v1142
  %1145 = vst [vmem:[%s1143] sm:$0xf] %v1144
  %s1146 = scalar_lea.vmem %s0, 520
  %v1147 = vld [vmem:[%s1146] sm:$0xff]
  %s1148 = scalar_lea.vmem %s1, 1108
  %v1149 = vpack.c.bf16 0.0, %v1147
  %1150 = vst [vmem:[%s1148] sm:$0xf] %v1149
  %s1151 = scalar_lea.vmem %s0, 128
  %v1152 = vld [vmem:[%s1151] sm:$0xff]
  %s1153 = scalar_lea.vmem %s1, 1304
  %v1154 = vpack.c.bf16 0.0, %v1152
  %1155 = vst [vmem:[%s1153] sm:$0xf] %v1154
  %s1156 = scalar_lea.vmem %s0, 2424
  %v1157 = vld [vmem:[%s1156] sm:$0xff]
  %s1158 = scalar_lea.vmem %s1, 156
  %v1159 = vpack.c.bf16 0.0, %v1157
  %1160 = vst [vmem:[%s1158] sm:$0xf] %v1159
  %s1161 = scalar_lea.vmem %s0, 2032
  %v1162 = vld [vmem:[%s1161] sm:$0xff]
  %s1163 = scalar_lea.vmem %s1, 352
  %v1164 = vpack.c.bf16 0.0, %v1162
  %1165 = vst [vmem:[%s1163] sm:$0xf] %v1164
  %s1166 = scalar_lea.vmem %s0, 1640
  %v1167 = vld [vmem:[%s1166] sm:$0xff]
  %s1168 = scalar_lea.vmem %s1, 548
  %v1169 = vpack.c.bf16 0.0, %v1167
  %1170 = vst [vmem:[%s1168] sm:$0xf] %v1169
  %s1171 = scalar_lea.vmem %s0, 1248
  %v1172 = vld [vmem:[%s1171] sm:$0xff]
  %s1173 = scalar_lea.vmem %s1, 744
  %v1174 = vpack.c.bf16 0.0, %v1172
  %1175 = vst [vmem:[%s1173] sm:$0xf] %v1174
  %s1176 = scalar_lea.vmem %s0, 856
  %v1177 = vld [vmem:[%s1176] sm:$0xff]
  %s1178 = scalar_lea.vmem %s1, 940
  %v1179 = vpack.c.bf16 0.0, %v1177
  %1180 = vst [vmem:[%s1178] sm:$0xf] %v1179
  %s1181 = scalar_lea.vmem %s0, 464
  %v1182 = vld [vmem:[%s1181] sm:$0xff]
  %s1183 = scalar_lea.vmem %s1, 1136
  %v1184 = vpack.c.bf16 0.0, %v1182
  %1185 = vst [vmem:[%s1183] sm:$0xf] %v1184
  %s1186 = scalar_lea.vmem %s0, 72
  %v1187 = vld [vmem:[%s1186] sm:$0xff]
  %s1188 = scalar_lea.vmem %s1, 1332
  %v1189 = vpack.c.bf16 0.0, %v1187
  %1190 = vst [vmem:[%s1188] sm:$0xf] %v1189
  %s1191 = scalar_lea.vmem %s0, 2368
  %v1192 = vld [vmem:[%s1191] sm:$0xff]
  %s1193 = scalar_lea.vmem %s1, 184
  %v1194 = vpack.c.bf16 0.0, %v1192
  %1195 = vst [vmem:[%s1193] sm:$0xf] %v1194
  %s1196 = scalar_lea.vmem %s0, 1976
  %v1197 = vld [vmem:[%s1196] sm:$0xff]
  %s1198 = scalar_lea.vmem %s1, 380
  %v1199 = vpack.c.bf16 0.0, %v1197
  %1200 = vst [vmem:[%s1198] sm:$0xf] %v1199
  %s1201 = scalar_lea.vmem %s0, 1584
  %v1202 = vld [vmem:[%s1201] sm:$0xff]
  %s1203 = scalar_lea.vmem %s1, 576
  %v1204 = vpack.c.bf16 0.0, %v1202
  %1205 = vst [vmem:[%s1203] sm:$0xf] %v1204
  %s1206 = scalar_lea.vmem %s0, 1192
  %v1207 = vld [vmem:[%s1206] sm:$0xff]
  %s1208 = scalar_lea.vmem %s1, 772
  %v1209 = vpack.c.bf16 0.0, %v1207
  %1210 = vst [vmem:[%s1208] sm:$0xf] %v1209
  %s1211 = scalar_lea.vmem %s0, 800
  %v1212 = vld [vmem:[%s1211] sm:$0xff]
  %s1213 = scalar_lea.vmem %s1, 968
  %v1214 = vpack.c.bf16 0.0, %v1212
  %1215 = vst [vmem:[%s1213] sm:$0xf] %v1214
  %s1216 = scalar_lea.vmem %s0, 408
  %v1217 = vld [vmem:[%s1216] sm:$0xff]
  %s1218 = scalar_lea.vmem %s1, 1164
  %v1219 = vpack.c.bf16 0.0, %v1217
  %1220 = vst [vmem:[%s1218] sm:$0xf] %v1219
  %s1221 = scalar_lea.vmem %s0, 16
  %v1222 = vld [vmem:[%s1221] sm:$0xff]
  %s1223 = scalar_lea.vmem %s1, 1360
  %v1224 = vpack.c.bf16 0.0, %v1222
  %1225 = vst [vmem:[%s1223] sm:$0xf] %v1224
  %s1226 = scalar_lea.vmem %s0, 2696
  %v1227 = vld [vmem:[%s1226] sm:$0xff]
  %s1228 = scalar_lea.vmem %s1, 20
  %v1229 = vpack.c.bf16 0.0, %v1227
  %1230 = vst [vmem:[%s1228] sm:$0xf] %v1229
  %s1231 = scalar_lea.vmem %s0, 2304
  %v1232 = vld [vmem:[%s1231] sm:$0xff]
  %s1233 = scalar_lea.vmem %s1, 216
  %v1234 = vpack.c.bf16 0.0, %v1232
  %1235 = vst [vmem:[%s1233] sm:$0xf] %v1234
  %s1236 = scalar_lea.vmem %s0, 1912
  %v1237 = vld [vmem:[%s1236] sm:$0xff]
  %s1238 = scalar_lea.vmem %s1, 412
  %v1239 = vpack.c.bf16 0.0, %v1237
  %1240 = vst [vmem:[%s1238] sm:$0xf] %v1239
  %s1241 = scalar_lea.vmem %s0, 1520
  %v1242 = vld [vmem:[%s1241] sm:$0xff]
  %s1243 = scalar_lea.vmem %s1, 608
  %v1244 = vpack.c.bf16 0.0, %v1242
  %1245 = vst [vmem:[%s1243] sm:$0xf] %v1244
  %s1246 = scalar_lea.vmem %s0, 1128
  %v1247 = vld [vmem:[%s1246] sm:$0xff]
  %s1248 = scalar_lea.vmem %s1, 804
  %v1249 = vpack.c.bf16 0.0, %v1247
  %1250 = vst [vmem:[%s1248] sm:$0xf] %v1249
  %s1251 = scalar_lea.vmem %s0, 736
  %v1252 = vld [vmem:[%s1251] sm:$0xff]
  %s1253 = scalar_lea.vmem %s1, 1000
  %v1254 = vpack.c.bf16 0.0, %v1252
  %1255 = vst [vmem:[%s1253] sm:$0xf] %v1254
  %s1256 = scalar_lea.vmem %s0, 344
  %v1257 = vld [vmem:[%s1256] sm:$0xff]
  %s1258 = scalar_lea.vmem %s1, 1196
  %v1259 = vpack.c.bf16 0.0, %v1257
  %1260 = vst [vmem:[%s1258] sm:$0xf] %v1259
  %s1261 = scalar_lea.vmem %s0, 2640
  %v1262 = vld [vmem:[%s1261] sm:$0xff]
  %s1263 = scalar_lea.vmem %s1, 48
  %v1264 = vpack.c.bf16 0.0, %v1262
  %1265 = vst [vmem:[%s1263] sm:$0xf] %v1264
  %s1266 = scalar_lea.vmem %s0, 2248
  %v1267 = vld [vmem:[%s1266] sm:$0xff]
  %s1268 = scalar_lea.vmem %s1, 244
  %v1269 = vpack.c.bf16 0.0, %v1267
  %1270 = vst [vmem:[%s1268] sm:$0xf] %v1269
  %s1271 = scalar_lea.vmem %s0, 1856
  %v1272 = vld [vmem:[%s1271] sm:$0xff]
  %s1273 = scalar_lea.vmem %s1, 440
  %v1274 = vpack.c.bf16 0.0, %v1272
  %1275 = vst [vmem:[%s1273] sm:$0xf] %v1274
  %s1276 = scalar_lea.vmem %s0, 1464
  %v1277 = vld [vmem:[%s1276] sm:$0xff]
  %s1278 = scalar_lea.vmem %s1, 636
  %v1279 = vpack.c.bf16 0.0, %v1277
  %1280 = vst [vmem:[%s1278] sm:$0xf] %v1279
  %s1281 = scalar_lea.vmem %s0, 1072
  %v1282 = vld [vmem:[%s1281] sm:$0xff]
  %s1283 = scalar_lea.vmem %s1, 832
  %v1284 = vpack.c.bf16 0.0, %v1282
  %1285 = vst [vmem:[%s1283] sm:$0xf] %v1284
  %s1286 = scalar_lea.vmem %s0, 680
  %v1287 = vld [vmem:[%s1286] sm:$0xff]
  %s1288 = scalar_lea.vmem %s1, 1028
  %v1289 = vpack.c.bf16 0.0, %v1287
  %1290 = vst [vmem:[%s1288] sm:$0xf] %v1289
  %s1291 = scalar_lea.vmem %s0, 288
  %v1292 = vld [vmem:[%s1291] sm:$0xff]
  %s1293 = scalar_lea.vmem %s1, 1224
  %v1294 = vpack.c.bf16 0.0, %v1292
  %1295 = vst [vmem:[%s1293] sm:$0xf] %v1294
  %s1296 = scalar_lea.vmem %s0, 2584
  %v1297 = vld [vmem:[%s1296] sm:$0xff]
  %s1298 = scalar_lea.vmem %s1, 76
  %v1299 = vpack.c.bf16 0.0, %v1297
  %1300 = vst [vmem:[%s1298] sm:$0xf] %v1299
  %s1301 = scalar_lea.vmem %s0, 2192
  %v1302 = vld [vmem:[%s1301] sm:$0xff]
  %s1303 = scalar_lea.vmem %s1, 272
  %v1304 = vpack.c.bf16 0.0, %v1302
  %1305 = vst [vmem:[%s1303] sm:$0xf] %v1304
  %s1306 = scalar_lea.vmem %s0, 1800
  %v1307 = vld [vmem:[%s1306] sm:$0xff]
  %s1308 = scalar_lea.vmem %s1, 468
  %v1309 = vpack.c.bf16 0.0, %v1307
  %1310 = vst [vmem:[%s1308] sm:$0xf] %v1309
  %s1311 = scalar_lea.vmem %s0, 1408
  %v1312 = vld [vmem:[%s1311] sm:$0xff]
  %s1313 = scalar_lea.vmem %s1, 664
  %v1314 = vpack.c.bf16 0.0, %v1312
  %1315 = vst [vmem:[%s1313] sm:$0xf] %v1314
  %s1316 = scalar_lea.vmem %s0, 1016
  %v1317 = vld [vmem:[%s1316] sm:$0xff]
  %s1318 = scalar_lea.vmem %s1, 860
  %v1319 = vpack.c.bf16 0.0, %v1317
  %1320 = vst [vmem:[%s1318] sm:$0xf] %v1319
  %s1321 = scalar_lea.vmem %s0, 624
  %v1322 = vld [vmem:[%s1321] sm:$0xff]
  %s1323 = scalar_lea.vmem %s1, 1056
  %v1324 = vpack.c.bf16 0.0, %v1322
  %1325 = vst [vmem:[%s1323] sm:$0xf] %v1324
  %s1326 = scalar_lea.vmem %s0, 232
  %v1327 = vld [vmem:[%s1326] sm:$0xff]
  %s1328 = scalar_lea.vmem %s1, 1252
  %v1329 = vpack.c.bf16 0.0, %v1327
  %1330 = vst [vmem:[%s1328] sm:$0xf] %v1329
  %s1331 = scalar_lea.vmem %s0, 2528
  %v1332 = vld [vmem:[%s1331] sm:$0xff]
  %s1333 = scalar_lea.vmem %s1, 104
  %v1334 = vpack.c.bf16 0.0, %v1332
  %1335 = vst [vmem:[%s1333] sm:$0xf] %v1334
  %s1336 = scalar_lea.vmem %s0, 2136
  %v1337 = vld [vmem:[%s1336] sm:$0xff]
  %s1338 = scalar_lea.vmem %s1, 300
  %v1339 = vpack.c.bf16 0.0, %v1337
  %1340 = vst [vmem:[%s1338] sm:$0xf] %v1339
  %s1341 = scalar_lea.vmem %s0, 1744
  %v1342 = vld [vmem:[%s1341] sm:$0xff]
  %s1343 = scalar_lea.vmem %s1, 496
  %v1344 = vpack.c.bf16 0.0, %v1342
  %1345 = vst [vmem:[%s1343] sm:$0xf] %v1344
  %s1346 = scalar_lea.vmem %s0, 1352
  %v1347 = vld [vmem:[%s1346] sm:$0xff]
  %s1348 = scalar_lea.vmem %s1, 692
  %v1349 = vpack.c.bf16 0.0, %v1347
  %1350 = vst [vmem:[%s1348] sm:$0xf] %v1349
  %s1351 = scalar_lea.vmem %s0, 960
  %v1352 = vld [vmem:[%s1351] sm:$0xff]
  %s1353 = scalar_lea.vmem %s1, 888
  %v1354 = vpack.c.bf16 0.0, %v1352
  %1355 = vst [vmem:[%s1353] sm:$0xf] %v1354
  %s1356 = scalar_lea.vmem %s0, 568
  %v1357 = vld [vmem:[%s1356] sm:$0xff]
  %s1358 = scalar_lea.vmem %s1, 1084
  %v1359 = vpack.c.bf16 0.0, %v1357
  %1360 = vst [vmem:[%s1358] sm:$0xf] %v1359
  %s1361 = scalar_lea.vmem %s0, 176
  %v1362 = vld [vmem:[%s1361] sm:$0xff]
  %s1363 = scalar_lea.vmem %s1, 1280
  %v1364 = vpack.c.bf16 0.0, %v1362
  %1365 = vst [vmem:[%s1363] sm:$0xf] %v1364
  %s1366 = scalar_lea.vmem %s0, 2472
  %v1367 = vld [vmem:[%s1366] sm:$0xff]
  %s1368 = scalar_lea.vmem %s1, 132
  %v1369 = vpack.c.bf16 0.0, %v1367
  %1370 = vst [vmem:[%s1368] sm:$0xf] %v1369
  %s1371 = scalar_lea.vmem %s0, 2080
  %v1372 = vld [vmem:[%s1371] sm:$0xff]
  %s1373 = scalar_lea.vmem %s1, 328
  %v1374 = vpack.c.bf16 0.0, %v1372
  %1375 = vst [vmem:[%s1373] sm:$0xf] %v1374
  %s1376 = scalar_lea.vmem %s0, 1688
  %v1377 = vld [vmem:[%s1376] sm:$0xff]
  %s1378 = scalar_lea.vmem %s1, 524
  %v1379 = vpack.c.bf16 0.0, %v1377
  %1380 = vst [vmem:[%s1378] sm:$0xf] %v1379
  %s1381 = scalar_lea.vmem %s0, 1296
  %v1382 = vld [vmem:[%s1381] sm:$0xff]
  %s1383 = scalar_lea.vmem %s1, 720
  %v1384 = vpack.c.bf16 0.0, %v1382
  %1385 = vst [vmem:[%s1383] sm:$0xf] %v1384
  %s1386 = scalar_lea.vmem %s0, 904
  %v1387 = vld [vmem:[%s1386] sm:$0xff]
  %s1388 = scalar_lea.vmem %s1, 916
  %v1389 = vpack.c.bf16 0.0, %v1387
  %1390 = vst [vmem:[%s1388] sm:$0xf] %v1389
  %s1391 = scalar_lea.vmem %s0, 512
  %v1392 = vld [vmem:[%s1391] sm:$0xff]
  %s1393 = scalar_lea.vmem %s1, 1112
  %v1394 = vpack.c.bf16 0.0, %v1392
  %1395 = vst [vmem:[%s1393] sm:$0xf] %v1394
  %s1396 = scalar_lea.vmem %s0, 120
  %v1397 = vld [vmem:[%s1396] sm:$0xff]
  %s1398 = scalar_lea.vmem %s1, 1308
  %v1399 = vpack.c.bf16 0.0, %v1397
  %1400 = vst [vmem:[%s1398] sm:$0xf] %v1399
  %s1401 = scalar_lea.vmem %s0, 2416
  %v1402 = vld [vmem:[%s1401] sm:$0xff]
  %s1403 = scalar_lea.vmem %s1, 160
  %v1404 = vpack.c.bf16 0.0, %v1402
  %1405 = vst [vmem:[%s1403] sm:$0xf] %v1404
  %s1406 = scalar_lea.vmem %s0, 2024
  %v1407 = vld [vmem:[%s1406] sm:$0xff]
  %s1408 = scalar_lea.vmem %s1, 356
  %v1409 = vpack.c.bf16 0.0, %v1407
  %1410 = vst [vmem:[%s1408] sm:$0xf] %v1409
  %s1411 = scalar_lea.vmem %s0, 1632
  %v1412 = vld [vmem:[%s1411] sm:$0xff]
  %s1413 = scalar_lea.vmem %s1, 552
  %v1414 = vpack.c.bf16 0.0, %v1412
  %1415 = vst [vmem:[%s1413] sm:$0xf] %v1414
  %s1416 = scalar_lea.vmem %s0, 1240
  %v1417 = vld [vmem:[%s1416] sm:$0xff]
  %s1418 = scalar_lea.vmem %s1, 748
  %v1419 = vpack.c.bf16 0.0, %v1417
  %1420 = vst [vmem:[%s1418] sm:$0xf] %v1419
  %s1421 = scalar_lea.vmem %s0, 848
  %v1422 = vld [vmem:[%s1421] sm:$0xff]
  %s1423 = scalar_lea.vmem %s1, 944
  %v1424 = vpack.c.bf16 0.0, %v1422
  %1425 = vst [vmem:[%s1423] sm:$0xf] %v1424
  %s1426 = scalar_lea.vmem %s0, 456
  %v1427 = vld [vmem:[%s1426] sm:$0xff]
  %s1428 = scalar_lea.vmem %s1, 1140
  %v1429 = vpack.c.bf16 0.0, %v1427
  %1430 = vst [vmem:[%s1428] sm:$0xf] %v1429
  %s1431 = scalar_lea.vmem %s0, 64
  %v1432 = vld [vmem:[%s1431] sm:$0xff]
  %s1433 = scalar_lea.vmem %s1, 1336
  %v1434 = vpack.c.bf16 0.0, %v1432
  %1435 = vst [vmem:[%s1433] sm:$0xf] %v1434
  %s1436 = scalar_lea.vmem %s0, 2360
  %v1437 = vld [vmem:[%s1436] sm:$0xff]
  %s1438 = scalar_lea.vmem %s1, 188
  %v1439 = vpack.c.bf16 0.0, %v1437
  %1440 = vst [vmem:[%s1438] sm:$0xf] %v1439
  %s1441 = scalar_lea.vmem %s0, 1968
  %v1442 = vld [vmem:[%s1441] sm:$0xff]
  %s1443 = scalar_lea.vmem %s1, 384
  %v1444 = vpack.c.bf16 0.0, %v1442
  %1445 = vst [vmem:[%s1443] sm:$0xf] %v1444
  %s1446 = scalar_lea.vmem %s0, 1576
  %v1447 = vld [vmem:[%s1446] sm:$0xff]
  %s1448 = scalar_lea.vmem %s1, 580
  %v1449 = vpack.c.bf16 0.0, %v1447
  %1450 = vst [vmem:[%s1448] sm:$0xf] %v1449
  %s1451 = scalar_lea.vmem %s0, 1184
  %v1452 = vld [vmem:[%s1451] sm:$0xff]
  %s1453 = scalar_lea.vmem %s1, 776
  %v1454 = vpack.c.bf16 0.0, %v1452
  %1455 = vst [vmem:[%s1453] sm:$0xf] %v1454
  %s1456 = scalar_lea.vmem %s0, 792
  %v1457 = vld [vmem:[%s1456] sm:$0xff]
  %s1458 = scalar_lea.vmem %s1, 972
  %v1459 = vpack.c.bf16 0.0, %v1457
  %1460 = vst [vmem:[%s1458] sm:$0xf] %v1459
  %s1461 = scalar_lea.vmem %s0, 400
  %v1462 = vld [vmem:[%s1461] sm:$0xff]
  %s1463 = scalar_lea.vmem %s1, 1168
  %v1464 = vpack.c.bf16 0.0, %v1462
  %1465 = vst [vmem:[%s1463] sm:$0xf] %v1464
  %s1466 = scalar_lea.vmem %s0, 8
  %v1467 = vld [vmem:[%s1466] sm:$0xff]
  %s1468 = scalar_lea.vmem %s1, 1364
  %v1469 = vpack.c.bf16 0.0, %v1467
  %1470 = vst [vmem:[%s1468] sm:$0xf] %v1469
  %s1471 = scalar_lea.vmem %s0, 2688
  %v1472 = vld [vmem:[%s1471] sm:$0xff]
  %s1473 = scalar_lea.vmem %s1, 24
  %v1474 = vpack.c.bf16 0.0, %v1472
  %1475 = vst [vmem:[%s1473] sm:$0xf] %v1474
  %s1476 = scalar_lea.vmem %s0, 2296
  %v1477 = vld [vmem:[%s1476] sm:$0xff]
  %s1478 = scalar_lea.vmem %s1, 220
  %v1479 = vpack.c.bf16 0.0, %v1477
  %1480 = vst [vmem:[%s1478] sm:$0xf] %v1479
  %s1481 = scalar_lea.vmem %s0, 1904
  %v1482 = vld [vmem:[%s1481] sm:$0xff]
  %s1483 = scalar_lea.vmem %s1, 416
  %v1484 = vpack.c.bf16 0.0, %v1482
  %1485 = vst [vmem:[%s1483] sm:$0xf] %v1484
  %s1486 = scalar_lea.vmem %s0, 1512
  %v1487 = vld [vmem:[%s1486] sm:$0xff]
  %s1488 = scalar_lea.vmem %s1, 612
  %v1489 = vpack.c.bf16 0.0, %v1487
  %1490 = vst [vmem:[%s1488] sm:$0xf] %v1489
  %s1491 = scalar_lea.vmem %s0, 1120
  %v1492 = vld [vmem:[%s1491] sm:$0xff]
  %s1493 = scalar_lea.vmem %s1, 808
  %v1494 = vpack.c.bf16 0.0, %v1492
  %1495 = vst [vmem:[%s1493] sm:$0xf] %v1494
  %s1496 = scalar_lea.vmem %s0, 728
  %v1497 = vld [vmem:[%s1496] sm:$0xff]
  %s1498 = scalar_lea.vmem %s1, 1004
  %v1499 = vpack.c.bf16 0.0, %v1497
  %1500 = vst [vmem:[%s1498] sm:$0xf] %v1499
  %s1501 = scalar_lea.vmem %s0, 336
  %v1502 = vld [vmem:[%s1501] sm:$0xff]
  %s1503 = scalar_lea.vmem %s1, 1200
  %v1504 = vpack.c.bf16 0.0, %v1502
  %1505 = vst [vmem:[%s1503] sm:$0xf] %v1504
  %s1506 = scalar_lea.vmem %s0, 2632
  %v1507 = vld [vmem:[%s1506] sm:$0xff]
  %s1508 = scalar_lea.vmem %s1, 52
  %v1509 = vpack.c.bf16 0.0, %v1507
  %1510 = vst [vmem:[%s1508] sm:$0xf] %v1509
  %s1511 = scalar_lea.vmem %s0, 2240
  %v1512 = vld [vmem:[%s1511] sm:$0xff]
  %s1513 = scalar_lea.vmem %s1, 248
  %v1514 = vpack.c.bf16 0.0, %v1512
  %1515 = vst [vmem:[%s1513] sm:$0xf] %v1514
  %s1516 = scalar_lea.vmem %s0, 1848
  %v1517 = vld [vmem:[%s1516] sm:$0xff]
  %s1518 = scalar_lea.vmem %s1, 444
  %v1519 = vpack.c.bf16 0.0, %v1517
  %1520 = vst [vmem:[%s1518] sm:$0xf] %v1519
  %s1521 = scalar_lea.vmem %s0, 1456
  %v1522 = vld [vmem:[%s1521] sm:$0xff]
  %s1523 = scalar_lea.vmem %s1, 640
  %v1524 = vpack.c.bf16 0.0, %v1522
  %1525 = vst [vmem:[%s1523] sm:$0xf] %v1524
  %s1526 = scalar_lea.vmem %s0, 1064
  %v1527 = vld [vmem:[%s1526] sm:$0xff]
  %s1528 = scalar_lea.vmem %s1, 836
  %v1529 = vpack.c.bf16 0.0, %v1527
  %1530 = vst [vmem:[%s1528] sm:$0xf] %v1529
  %s1531 = scalar_lea.vmem %s0, 672
  %v1532 = vld [vmem:[%s1531] sm:$0xff]
  %s1533 = scalar_lea.vmem %s1, 1032
  %v1534 = vpack.c.bf16 0.0, %v1532
  %1535 = vst [vmem:[%s1533] sm:$0xf] %v1534
  %s1536 = scalar_lea.vmem %s0, 280
  %v1537 = vld [vmem:[%s1536] sm:$0xff]
  %s1538 = scalar_lea.vmem %s1, 1228
  %v1539 = vpack.c.bf16 0.0, %v1537
  %1540 = vst [vmem:[%s1538] sm:$0xf] %v1539
  %s1541 = scalar_lea.vmem %s0, 2576
  %v1542 = vld [vmem:[%s1541] sm:$0xff]
  %s1543 = scalar_lea.vmem %s1, 80
  %v1544 = vpack.c.bf16 0.0, %v1542
  %1545 = vst [vmem:[%s1543] sm:$0xf] %v1544
  %s1546 = scalar_lea.vmem %s0, 2184
  %v1547 = vld [vmem:[%s1546] sm:$0xff]
  %s1548 = scalar_lea.vmem %s1, 276
  %v1549 = vpack.c.bf16 0.0, %v1547
  %1550 = vst [vmem:[%s1548] sm:$0xf] %v1549
  %s1551 = scalar_lea.vmem %s0, 1792
  %v1552 = vld [vmem:[%s1551] sm:$0xff]
  %s1553 = scalar_lea.vmem %s1, 472
  %v1554 = vpack.c.bf16 0.0, %v1552
  %1555 = vst [vmem:[%s1553] sm:$0xf] %v1554
  %s1556 = scalar_lea.vmem %s0, 1400
  %v1557 = vld [vmem:[%s1556] sm:$0xff]
  %s1558 = scalar_lea.vmem %s1, 668
  %v1559 = vpack.c.bf16 0.0, %v1557
  %1560 = vst [vmem:[%s1558] sm:$0xf] %v1559
  %s1561 = scalar_lea.vmem %s0, 1008
  %v1562 = vld [vmem:[%s1561] sm:$0xff]
  %s1563 = scalar_lea.vmem %s1, 864
  %v1564 = vpack.c.bf16 0.0, %v1562
  %1565 = vst [vmem:[%s1563] sm:$0xf] %v1564
  %s1566 = scalar_lea.vmem %s0, 616
  %v1567 = vld [vmem:[%s1566] sm:$0xff]
  %s1568 = scalar_lea.vmem %s1, 1060
  %v1569 = vpack.c.bf16 0.0, %v1567
  %1570 = vst [vmem:[%s1568] sm:$0xf] %v1569
  %s1571 = scalar_lea.vmem %s0, 224
  %v1572 = vld [vmem:[%s1571] sm:$0xff]
  %s1573 = scalar_lea.vmem %s1, 1256
  %v1574 = vpack.c.bf16 0.0, %v1572
  %1575 = vst [vmem:[%s1573] sm:$0xf] %v1574
  %s1576 = scalar_lea.vmem %s0, 2520
  %v1577 = vld [vmem:[%s1576] sm:$0xff]
  %s1578 = scalar_lea.vmem %s1, 108
  %v1579 = vpack.c.bf16 0.0, %v1577
  %1580 = vst [vmem:[%s1578] sm:$0xf] %v1579
  %s1581 = scalar_lea.vmem %s0, 2128
  %v1582 = vld [vmem:[%s1581] sm:$0xff]
  %s1583 = scalar_lea.vmem %s1, 304
  %v1584 = vpack.c.bf16 0.0, %v1582
  %1585 = vst [vmem:[%s1583] sm:$0xf] %v1584
  %s1586 = scalar_lea.vmem %s0, 1736
  %v1587 = vld [vmem:[%s1586] sm:$0xff]
  %s1588 = scalar_lea.vmem %s1, 500
  %v1589 = vpack.c.bf16 0.0, %v1587
  %1590 = vst [vmem:[%s1588] sm:$0xf] %v1589
  %s1591 = scalar_lea.vmem %s0, 1344
  %v1592 = vld [vmem:[%s1591] sm:$0xff]
  %s1593 = scalar_lea.vmem %s1, 696
  %v1594 = vpack.c.bf16 0.0, %v1592
  %1595 = vst [vmem:[%s1593] sm:$0xf] %v1594
  %s1596 = scalar_lea.vmem %s0, 952
  %v1597 = vld [vmem:[%s1596] sm:$0xff]
  %s1598 = scalar_lea.vmem %s1, 892
  %v1599 = vpack.c.bf16 0.0, %v1597
  %1600 = vst [vmem:[%s1598] sm:$0xf] %v1599
  %s1601 = scalar_lea.vmem %s0, 560
  %v1602 = vld [vmem:[%s1601] sm:$0xff]
  %s1603 = scalar_lea.vmem %s1, 1088
  %v1604 = vpack.c.bf16 0.0, %v1602
  %1605 = vst [vmem:[%s1603] sm:$0xf] %v1604
  %s1606 = scalar_lea.vmem %s0, 168
  %v1607 = vld [vmem:[%s1606] sm:$0xff]
  %s1608 = scalar_lea.vmem %s1, 1284
  %v1609 = vpack.c.bf16 0.0, %v1607
  %1610 = vst [vmem:[%s1608] sm:$0xf] %v1609
  %s1611 = scalar_lea.vmem %s0, 2464
  %v1612 = vld [vmem:[%s1611] sm:$0xff]
  %s1613 = scalar_lea.vmem %s1, 136
  %v1614 = vpack.c.bf16 0.0, %v1612
  %1615 = vst [vmem:[%s1613] sm:$0xf] %v1614
  %s1616 = scalar_lea.vmem %s0, 2072
  %v1617 = vld [vmem:[%s1616] sm:$0xff]
  %s1618 = scalar_lea.vmem %s1, 332
  %v1619 = vpack.c.bf16 0.0, %v1617
  %1620 = vst [vmem:[%s1618] sm:$0xf] %v1619
  %s1621 = scalar_lea.vmem %s0, 1680
  %v1622 = vld [vmem:[%s1621] sm:$0xff]
  %s1623 = scalar_lea.vmem %s1, 528
  %v1624 = vpack.c.bf16 0.0, %v1622
  %1625 = vst [vmem:[%s1623] sm:$0xf] %v1624
  %s1626 = scalar_lea.vmem %s0, 1288
  %v1627 = vld [vmem:[%s1626] sm:$0xff]
  %s1628 = scalar_lea.vmem %s1, 724
  %v1629 = vpack.c.bf16 0.0, %v1627
  %1630 = vst [vmem:[%s1628] sm:$0xf] %v1629
  %s1631 = scalar_lea.vmem %s0, 896
  %v1632 = vld [vmem:[%s1631] sm:$0xff]
  %s1633 = scalar_lea.vmem %s1, 920
  %v1634 = vpack.c.bf16 0.0, %v1632
  %1635 = vst [vmem:[%s1633] sm:$0xf] %v1634
  %s1636 = scalar_lea.vmem %s0, 504
  %v1637 = vld [vmem:[%s1636] sm:$0xff]
  %s1638 = scalar_lea.vmem %s1, 1116
  %v1639 = vpack.c.bf16 0.0, %v1637
  %1640 = vst [vmem:[%s1638] sm:$0xf] %v1639
  %s1641 = scalar_lea.vmem %s0, 112
  %v1642 = vld [vmem:[%s1641] sm:$0xff]
  %s1643 = scalar_lea.vmem %s1, 1312
  %v1644 = vpack.c.bf16 0.0, %v1642
  %1645 = vst [vmem:[%s1643] sm:$0xf] %v1644
  %s1646 = scalar_lea.vmem %s0, 2408
  %v1647 = vld [vmem:[%s1646] sm:$0xff]
  %s1648 = scalar_lea.vmem %s1, 164
  %v1649 = vpack.c.bf16 0.0, %v1647
  %1650 = vst [vmem:[%s1648] sm:$0xf] %v1649
  %s1651 = scalar_lea.vmem %s0, 2016
  %v1652 = vld [vmem:[%s1651] sm:$0xff]
  %s1653 = scalar_lea.vmem %s1, 360
  %v1654 = vpack.c.bf16 0.0, %v1652
  %1655 = vst [vmem:[%s1653] sm:$0xf] %v1654
  %s1656 = scalar_lea.vmem %s0, 1624
  %v1657 = vld [vmem:[%s1656] sm:$0xff]
  %s1658 = scalar_lea.vmem %s1, 556
  %v1659 = vpack.c.bf16 0.0, %v1657
  %1660 = vst [vmem:[%s1658] sm:$0xf] %v1659
  %s1661 = scalar_lea.vmem %s0, 1232
  %v1662 = vld [vmem:[%s1661] sm:$0xff]
  %s1663 = scalar_lea.vmem %s1, 752
  %v1664 = vpack.c.bf16 0.0, %v1662
  %1665 = vst [vmem:[%s1663] sm:$0xf] %v1664
  %s1666 = scalar_lea.vmem %s0, 840
  %v1667 = vld [vmem:[%s1666] sm:$0xff]
  %s1668 = scalar_lea.vmem %s1, 948
  %v1669 = vpack.c.bf16 0.0, %v1667
  %1670 = vst [vmem:[%s1668] sm:$0xf] %v1669
  %s1671 = scalar_lea.vmem %s0, 448
  %v1672 = vld [vmem:[%s1671] sm:$0xff]
  %s1673 = scalar_lea.vmem %s1, 1144
  %v1674 = vpack.c.bf16 0.0, %v1672
  %1675 = vst [vmem:[%s1673] sm:$0xf] %v1674
  %s1676 = scalar_lea.vmem %s0, 56
  %v1677 = vld [vmem:[%s1676] sm:$0xff]
  %s1678 = scalar_lea.vmem %s1, 1340
  %v1679 = vpack.c.bf16 0.0, %v1677
  %1680 = vst [vmem:[%s1678] sm:$0xf] %v1679
  %s1681 = scalar_lea.vmem %s0, 2352
  %v1682 = vld [vmem:[%s1681] sm:$0xff]
  %s1683 = scalar_lea.vmem %s1, 192
  %v1684 = vpack.c.bf16 0.0, %v1682
  %1685 = vst [vmem:[%s1683] sm:$0xf] %v1684
  %s1686 = scalar_lea.vmem %s0, 1960
  %v1687 = vld [vmem:[%s1686] sm:$0xff]
  %s1688 = scalar_lea.vmem %s1, 388
  %v1689 = vpack.c.bf16 0.0, %v1687
  %1690 = vst [vmem:[%s1688] sm:$0xf] %v1689
  %s1691 = scalar_lea.vmem %s0, 1568
  %v1692 = vld [vmem:[%s1691] sm:$0xff]
  %s1693 = scalar_lea.vmem %s1, 584
  %v1694 = vpack.c.bf16 0.0, %v1692
  %1695 = vst [vmem:[%s1693] sm:$0xf] %v1694
  %s1696 = scalar_lea.vmem %s0, 1176
  %v1697 = vld [vmem:[%s1696] sm:$0xff]
  %s1698 = scalar_lea.vmem %s1, 780
  %v1699 = vpack.c.bf16 0.0, %v1697
  %1700 = vst [vmem:[%s1698] sm:$0xf] %v1699
  %s1701 = scalar_lea.vmem %s0, 784
  %v1702 = vld [vmem:[%s1701] sm:$0xff]
  %s1703 = scalar_lea.vmem %s1, 976
  %v1704 = vpack.c.bf16 0.0, %v1702
  %1705 = vst [vmem:[%s1703] sm:$0xf] %v1704
  %s1706 = scalar_lea.vmem %s0, 392
  %v1707 = vld [vmem:[%s1706] sm:$0xff]
  %s1708 = scalar_lea.vmem %s1, 1172
  %v1709 = vpack.c.bf16 0.0, %v1707
  %1710 = vst [vmem:[%s1708] sm:$0xf] %v1709
  %v1711 = vld [vmem:[%s0] sm:$0xff]
  %s1712 = scalar_lea.vmem %s1, 1368
  %v1713 = vpack.c.bf16 0.0, %v1711
  %1714 = vst [vmem:[%s1712] sm:$0xf] %v1713

// kernel: reverse.5
$region0: #{reverse.5}
  #allocation0 [shape = 's32[1]{0}', space=sflag, size = 0x4, scoped, tag = 'scoped memory for reverse.5']
  %s0 = inlined_call_operand.vmem [shape: f32[4,8,7,7,7], index: 0, kind: input, shape index: {}]
  %s1 = inlined_call_operand.vmem [shape: bf16[4,8,7,7,7], index: 1, kind: output, shape index: {}]
  %s2 = scalar_lea.vmem %s0, 1368
  %v3 = vld [vmem:[%s2] sm:$0xf]
  %v4 = vpack.c.bf16 0.0, %v3
  %5 = vst [vmem:[%s1] sm:$0x3] %v4
  %s6 = scalar_lea.vmem %s0, 1172
  %v7 = vld [vmem:[%s6] sm:$0xf]
  %s8 = scalar_lea.vmem %s1, 98
  %v9 = vpack.c.bf16 0.0, %v7
  %10 = vst [vmem:[%s8] sm:$0x3] %v9
  %s11 = scalar_lea.vmem %s0, 976
  %v12 = vld [vmem:[%s11] sm:$0xf]
  %s13 = scalar_lea.vmem %s1, 196
  %v14 = vpack.c.bf16 0.0, %v12
  %15 = vst [vmem:[%s13] sm:$0x3] %v14
  %s16 = scalar_lea.vmem %s0, 780
  %v17 = vld [vmem:[%s16] sm:$0xf]
  %s18 = scalar_lea.vmem %s1, 294
  %v19 = vpack.c.bf16 0.0, %v17
  %20 = vst [vmem:[%s18] sm:$0x3] %v19
  %s21 = scalar_lea.vmem %s0, 584
  %v22 = vld [vmem:[%s21] sm:$0xf]
  %s23 = scalar_lea.vmem %s1, 392
  %v24 = vpack.c.bf16 0.0, %v22
  %25 = vst [vmem:[%s23] sm:$0x3] %v24
  %s26 = scalar_lea.vmem %s0, 388
  %v27 = vld [vmem:[%s26] sm:$0xf]
  %s28 = scalar_lea.vmem %s1, 490
  %v29 = vpack.c.bf16 0.0, %v27
  %30 = vst [vmem:[%s28] sm:$0x3] %v29
  %s31 = scalar_lea.vmem %s0, 192
  %v32 = vld [vmem:[%s31] sm:$0xf]
  %s33 = scalar_lea.vmem %s1, 588
  %v34 = vpack.c.bf16 0.0, %v32
  %35 = vst [vmem:[%s33] sm:$0x3] %v34
  %s36 = scalar_lea.vmem %s0, 1340
  %v37 = vld [vmem:[%s36] sm:$0xf]
  %s38 = scalar_lea.vmem %s1, 14
  %v39 = vpack.c.bf16 0.0, %v37
  %40 = vst [vmem:[%s38] sm:$0x3] %v39
  %s41 = scalar_lea.vmem %s0, 1144
  %v42 = vld [vmem:[%s41] sm:$0xf]
  %s43 = scalar_lea.vmem %s1, 112
  %v44 = vpack.c.bf16 0.0, %v42
  %45 = vst [vmem:[%s43] sm:$0x3] %v44
  %s46 = scalar_lea.vmem %s0, 948
  %v47 = vld [vmem:[%s46] sm:$0xf]
  %s48 = scalar_lea.vmem %s1, 210
  %v49 = vpack.c.bf16 0.0, %v47
  %50 = vst [vmem:[%s48] sm:$0x3] %v49
  %s51 = scalar_lea.vmem %s0, 752
  %v52 = vld [vmem:[%s51] sm:$0xf]
  %s53 = scalar_lea.vmem %s1, 308
  %v54 = vpack.c.bf16 0.0, %v52
  %55 = vst [vmem:[%s53] sm:$0x3] %v54
  %s56 = scalar_lea.vmem %s0, 556
  %v57 = vld [vmem:[%s56] sm:$0xf]
  %s58 = scalar_lea.vmem %s1, 406
  %v59 = vpack.c.bf16 0.0, %v57
  %60 = vst [vmem:[%s58] sm:$0x3] %v59
  %s61 = scalar_lea.vmem %s0, 360
  %v62 = vld [vmem:[%s61] sm:$0xf]
  %s63 = scalar_lea.vmem %s1, 504
  %v64 = vpack.c.bf16 0.0, %v62
  %65 = vst [vmem:[%s63] sm:$0x3] %v64
  %s66 = scalar_lea.vmem %s0, 164
  %v67 = vld [vmem:[%s66] sm:$0xf]
  %s68 = scalar_lea.vmem %s1, 602
  %v69 = vpack.c.bf16 0.0, %v67
  %70 = vst [vmem:[%s68] sm:$0x3] %v69
  %s71 = scalar_lea.vmem %s0, 1312
  %v72 = vld [vmem:[%s71] sm:$0xf]
  %s73 = scalar_lea.vmem %s1, 28
  %v74 = vpack.c.bf16 0.0, %v72
  %75 = vst [vmem:[%s73] sm:$0x3] %v74
  %s76 = scalar_lea.vmem %s0, 1116
  %v77 = vld [vmem:[%s76] sm:$0xf]
  %s78 = scalar_lea.vmem %s1, 126
  %v79 = vpack.c.bf16 0.0, %v77
  %80 = vst [vmem:[%s78] sm:$0x3] %v79
  %s81 = scalar_lea.vmem %s0, 920
  %v82 = vld [vmem:[%s81] sm:$0xf]
  %s83 = scalar_lea.vmem %s1, 224
  %v84 = vpack.c.bf16 0.0, %v82
  %85 = vst [vmem:[%s83] sm:$0x3] %v84
  %s86 = scalar_lea.vmem %s0, 724
  %v87 = vld [vmem:[%s86] sm:$0xf]
  %s88 = scalar_lea.vmem %s1, 322
  %v89 = vpack.c.bf16 0.0, %v87
  %90 = vst [vmem:[%s88] sm:$0x3] %v89
  %s91 = scalar_lea.vmem %s0, 528
  %v92 = vld [vmem:[%s91] sm:$0xf]
  %s93 = scalar_lea.vmem %s1, 420
  %v94 = vpack.c.bf16 0.0, %v92
  %95 = vst [vmem:[%s93] sm:$0x3] %v94
  %s96 = scalar_lea.vmem %s0, 332
  %v97 = vld [vmem:[%s96] sm:$0xf]
  %s98 = scalar_lea.vmem %s1, 518
  %v99 = vpack.c.bf16 0.0, %v97
  %100 = vst [vmem:[%s98] sm:$0x3] %v99
  %s101 = scalar_lea.vmem %s0, 136
  %v102 = vld [vmem:[%s101] sm:$0xf]
  %s103 = scalar_lea.vmem %s1, 616
  %v104 = vpack.c.bf16 0.0, %v102
  %105 = vst [vmem:[%s103] sm:$0x3] %v104
  %s106 = scalar_lea.vmem %s0, 1284
  %v107 = vld [vmem:[%s106] sm:$0xf]
  %s108 = scalar_lea.vmem %s1, 42
  %v109 = vpack.c.bf16 0.0, %v107
  %110 = vst [vmem:[%s108] sm:$0x3] %v109
  %s111 = scalar_lea.vmem %s0, 1088
  %v112 = vld [vmem:[%s111] sm:$0xf]
  %s113 = scalar_lea.vmem %s1, 140
  %v114 = vpack.c.bf16 0.0, %v112
  %115 = vst [vmem:[%s113] sm:$0x3] %v114
  %s116 = scalar_lea.vmem %s0, 892
  %v117 = vld [vmem:[%s116] sm:$0xf]
  %s118 = scalar_lea.vmem %s1, 238
  %v119 = vpack.c.bf16 0.0, %v117
  %120 = vst [vmem:[%s118] sm:$0x3] %v119
  %s121 = scalar_lea.vmem %s0, 696
  %v122 = vld [vmem:[%s121] sm:$0xf]
  %s123 = scalar_lea.vmem %s1, 336
  %v124 = vpack.c.bf16 0.0, %v122
  %125 = vst [vmem:[%s123] sm:$0x3] %v124
  %s126 = scalar_lea.vmem %s0, 500
  %v127 = vld [vmem:[%s126] sm:$0xf]
  %s128 = scalar_lea.vmem %s1, 434
  %v129 = vpack.c.bf16 0.0, %v127
  %130 = vst [vmem:[%s128] sm:$0x3] %v129
  %s131 = scalar_lea.vmem %s0, 304
  %v132 = vld [vmem:[%s131] sm:$0xf]
  %s133 = scalar_lea.vmem %s1, 532
  %v134 = vpack.c.bf16 0.0, %v132
  %135 = vst [vmem:[%s133] sm:$0x3] %v134
  %s136 = scalar_lea.vmem %s0, 108
  %v137 = vld [vmem:[%s136] sm:$0xf]
  %s138 = scalar_lea.vmem %s1, 630
  %v139 = vpack.c.bf16 0.0, %v137
  %140 = vst [vmem:[%s138] sm:$0x3] %v139
  %s141 = scalar_lea.vmem %s0, 1256
  %v142 = vld [vmem:[%s141] sm:$0xf]
  %s143 = scalar_lea.vmem %s1, 56
  %v144 = vpack.c.bf16 0.0, %v142
  %145 = vst [vmem:[%s143] sm:$0x3] %v144
  %s146 = scalar_lea.vmem %s0, 1060
  %v147 = vld [vmem:[%s146] sm:$0xf]
  %s148 = scalar_lea.vmem %s1, 154
  %v149 = vpack.c.bf16 0.0, %v147
  %150 = vst [vmem:[%s148] sm:$0x3] %v149
  %s151 = scalar_lea.vmem %s0, 864
  %v152 = vld [vmem:[%s151] sm:$0xf]
  %s153 = scalar_lea.vmem %s1, 252
  %v154 = vpack.c.bf16 0.0, %v152
  %155 = vst [vmem:[%s153] sm:$0x3] %v154
  %s156 = scalar_lea.vmem %s0, 668
  %v157 = vld [vmem:[%s156] sm:$0xf]
  %s158 = scalar_lea.vmem %s1, 350
  %v159 = vpack.c.bf16 0.0, %v157
  %160 = vst [vmem:[%s158] sm:$0x3] %v159
  %s161 = scalar_lea.vmem %s0, 472
  %v162 = vld [vmem:[%s161] sm:$0xf]
  %s163 = scalar_lea.vmem %s1, 448
  %v164 = vpack.c.bf16 0.0, %v162
  %165 = vst [vmem:[%s163] sm:$0x3] %v164
  %s166 = scalar_lea.vmem %s0, 276
  %v167 = vld [vmem:[%s166] sm:$0xf]
  %s168 = scalar_lea.vmem %s1, 546
  %v169 = vpack.c.bf16 0.0, %v167
  %170 = vst [vmem:[%s168] sm:$0x3] %v169
  %s171 = scalar_lea.vmem %s0, 80
  %v172 = vld [vmem:[%s171] sm:$0xf]
  %s173 = scalar_lea.vmem %s1, 644
  %v174 = vpack.c.bf16 0.0, %v172
  %175 = vst [vmem:[%s173] sm:$0x3] %v174
  %s176 = scalar_lea.vmem %s0, 1228
  %v177 = vld [vmem:[%s176] sm:$0xf]
  %s178 = scalar_lea.vmem %s1, 70
  %v179 = vpack.c.bf16 0.0, %v177
  %180 = vst [vmem:[%s178] sm:$0x3] %v179
  %s181 = scalar_lea.vmem %s0, 1032
  %v182 = vld [vmem:[%s181] sm:$0xf]
  %s183 = scalar_lea.vmem %s1, 168
  %v184 = vpack.c.bf16 0.0, %v182
  %185 = vst [vmem:[%s183] sm:$0x3] %v184
  %s186 = scalar_lea.vmem %s0, 836
  %v187 = vld [vmem:[%s186] sm:$0xf]
  %s188 = scalar_lea.vmem %s1, 266
  %v189 = vpack.c.bf16 0.0, %v187
  %190 = vst [vmem:[%s188] sm:$0x3] %v189
  %s191 = scalar_lea.vmem %s0, 640
  %v192 = vld [vmem:[%s191] sm:$0xf]
  %s193 = scalar_lea.vmem %s1, 364
  %v194 = vpack.c.bf16 0.0, %v192
  %195 = vst [vmem:[%s193] sm:$0x3] %v194
  %s196 = scalar_lea.vmem %s0, 444
  %v197 = vld [vmem:[%s196] sm:$0xf]
  %s198 = scalar_lea.vmem %s1, 462
  %v199 = vpack.c.bf16 0.0, %v197
  %200 = vst [vmem:[%s198] sm:$0x3] %v199
  %s201 = scalar_lea.vmem %s0, 248
  %v202 = vld [vmem:[%s201] sm:$0xf]
  %s203 = scalar_lea.vmem %s1, 560
  %v204 = vpack.c.bf16 0.0, %v202
  %205 = vst [vmem:[%s203] sm:$0x3] %v204
  %s206 = scalar_lea.vmem %s0, 52
  %v207 = vld [vmem:[%s206] sm:$0xf]
  %s208 = scalar_lea.vmem %s1, 658
  %v209 = vpack.c.bf16 0.0, %v207
  %210 = vst [vmem:[%s208] sm:$0x3] %v209
  %s211 = scalar_lea.vmem %s0, 1200
  %v212 = vld [vmem:[%s211] sm:$0xf]
  %s213 = scalar_lea.vmem %s1, 84
  %v214 = vpack.c.bf16 0.0, %v212
  %215 = vst [vmem:[%s213] sm:$0x3] %v214
  %s216 = scalar_lea.vmem %s0, 1004
  %v217 = vld [vmem:[%s216] sm:$0xf]
  %s218 = scalar_lea.vmem %s1, 182
  %v219 = vpack.c.bf16 0.0, %v217
  %220 = vst [vmem:[%s218] sm:$0x3] %v219
  %s221 = scalar_lea.vmem %s0, 808
  %v222 = vld [vmem:[%s221] sm:$0xf]
  %s223 = scalar_lea.vmem %s1, 280
  %v224 = vpack.c.bf16 0.0, %v222
  %225 = vst [vmem:[%s223] sm:$0x3] %v224
  %s226 = scalar_lea.vmem %s0, 612
  %v227 = vld [vmem:[%s226] sm:$0xf]
  %s228 = scalar_lea.vmem %s1, 378
  %v229 = vpack.c.bf16 0.0, %v227
  %230 = vst [vmem:[%s228] sm:$0x3] %v229
  %s231 = scalar_lea.vmem %s0, 416
  %v232 = vld [vmem:[%s231] sm:$0xf]
  %s233 = scalar_lea.vmem %s1, 476
  %v234 = vpack.c.bf16 0.0, %v232
  %235 = vst [vmem:[%s233] sm:$0x3] %v234
  %s236 = scalar_lea.vmem %s0, 220
  %v237 = vld [vmem:[%s236] sm:$0xf]
  %s238 = scalar_lea.vmem %s1, 574
  %v239 = vpack.c.bf16 0.0, %v237
  %240 = vst [vmem:[%s238] sm:$0x3] %v239
  %s241 = scalar_lea.vmem %s0, 24
  %v242 = vld [vmem:[%s241] sm:$0xf]
  %s243 = scalar_lea.vmem %s1, 672
  %v244 = vpack.c.bf16 0.0, %v242
  %245 = vst [vmem:[%s243] sm:$0x3] %v244
  %s246 = scalar_lea.vmem %s0, 1364
  %v247 = vld [vmem:[%s246] sm:$0xf]
  %s248 = scalar_lea.vmem %s1, 2
  %v249 = vpack.c.bf16 0.0, %v247
  %250 = vst [vmem:[%s248] sm:$0x3] %v249
  %s251 = scalar_lea.vmem %s0, 1168
  %v252 = vld [vmem:[%s251] sm:$0xf]
  %s253 = scalar_lea.vmem %s1, 100
  %v254 = vpack.c.bf16 0.0, %v252
  %255 = vst [vmem:[%s253] sm:$0x3] %v254
  %s256 = scalar_lea.vmem %s0, 972
  %v257 = vld [vmem:[%s256] sm:$0xf]
  %s258 = scalar_lea.vmem %s1, 198
  %v259 = vpack.c.bf16 0.0, %v257
  %260 = vst [vmem:[%s258] sm:$0x3] %v259
  %s261 = scalar_lea.vmem %s0, 776
  %v262 = vld [vmem:[%s261] sm:$0xf]
  %s263 = scalar_lea.vmem %s1, 296
  %v264 = vpack.c.bf16 0.0, %v262
  %265 = vst [vmem:[%s263] sm:$0x3] %v264
  %s266 = scalar_lea.vmem %s0, 580
  %v267 = vld [vmem:[%s266] sm:$0xf]
  %s268 = scalar_lea.vmem %s1, 394
  %v269 = vpack.c.bf16 0.0, %v267
  %270 = vst [vmem:[%s268] sm:$0x3] %v269
  %s271 = scalar_lea.vmem %s0, 384
  %v272 = vld [vmem:[%s271] sm:$0xf]
  %s273 = scalar_lea.vmem %s1, 492
  %v274 = vpack.c.bf16 0.0, %v272
  %275 = vst [vmem:[%s273] sm:$0x3] %v274
  %s276 = scalar_lea.vmem %s0, 188
  %v277 = vld [vmem:[%s276] sm:$0xf]
  %s278 = scalar_lea.vmem %s1, 590
  %v279 = vpack.c.bf16 0.0, %v277
  %280 = vst [vmem:[%s278] sm:$0x3] %v279
  %s281 = scalar_lea.vmem %s0, 1336
  %v282 = vld [vmem:[%s281] sm:$0xf]
  %s283 = scalar_lea.vmem %s1, 16
  %v284 = vpack.c.bf16 0.0, %v282
  %285 = vst [vmem:[%s283] sm:$0x3] %v284
  %s286 = scalar_lea.vmem %s0, 1140
  %v287 = vld [vmem:[%s286] sm:$0xf]
  %s288 = scalar_lea.vmem %s1, 114
  %v289 = vpack.c.bf16 0.0, %v287
  %290 = vst [vmem:[%s288] sm:$0x3] %v289
  %s291 = scalar_lea.vmem %s0, 944
  %v292 = vld [vmem:[%s291] sm:$0xf]
  %s293 = scalar_lea.vmem %s1, 212
  %v294 = vpack.c.bf16 0.0, %v292
  %295 = vst [vmem:[%s293] sm:$0x3] %v294
  %s296 = scalar_lea.vmem %s0, 748
  %v297 = vld [vmem:[%s296] sm:$0xf]
  %s298 = scalar_lea.vmem %s1, 310
  %v299 = vpack.c.bf16 0.0, %v297
  %300 = vst [vmem:[%s298] sm:$0x3] %v299
  %s301 = scalar_lea.vmem %s0, 552
  %v302 = vld [vmem:[%s301] sm:$0xf]
  %s303 = scalar_lea.vmem %s1, 408
  %v304 = vpack.c.bf16 0.0, %v302
  %305 = vst [vmem:[%s303] sm:$0x3] %v304
  %s306 = scalar_lea.vmem %s0, 356
  %v307 = vld [vmem:[%s306] sm:$0xf]
  %s308 = scalar_lea.vmem %s1, 506
  %v309 = vpack.c.bf16 0.0, %v307
  %310 = vst [vmem:[%s308] sm:$0x3] %v309
  %s311 = scalar_lea.vmem %s0, 160
  %v312 = vld [vmem:[%s311] sm:$0xf]
  %s313 = scalar_lea.vmem %s1, 604
  %v314 = vpack.c.bf16 0.0, %v312
  %315 = vst [vmem:[%s313] sm:$0x3] %v314
  %s316 = scalar_lea.vmem %s0, 1308
  %v317 = vld [vmem:[%s316] sm:$0xf]
  %s318 = scalar_lea.vmem %s1, 30
  %v319 = vpack.c.bf16 0.0, %v317
  %320 = vst [vmem:[%s318] sm:$0x3] %v319
  %s321 = scalar_lea.vmem %s0, 1112
  %v322 = vld [vmem:[%s321] sm:$0xf]
  %s323 = scalar_lea.vmem %s1, 128
  %v324 = vpack.c.bf16 0.0, %v322
  %325 = vst [vmem:[%s323] sm:$0x3] %v324
  %s326 = scalar_lea.vmem %s0, 916
  %v327 = vld [vmem:[%s326] sm:$0xf]
  %s328 = scalar_lea.vmem %s1, 226
  %v329 = vpack.c.bf16 0.0, %v327
  %330 = vst [vmem:[%s328] sm:$0x3] %v329
  %s331 = scalar_lea.vmem %s0, 720
  %v332 = vld [vmem:[%s331] sm:$0xf]
  %s333 = scalar_lea.vmem %s1, 324
  %v334 = vpack.c.bf16 0.0, %v332
  %335 = vst [vmem:[%s333] sm:$0x3] %v334
  %s336 = scalar_lea.vmem %s0, 524
  %v337 = vld [vmem:[%s336] sm:$0xf]
  %s338 = scalar_lea.vmem %s1, 422
  %v339 = vpack.c.bf16 0.0, %v337
  %340 = vst [vmem:[%s338] sm:$0x3] %v339
  %s341 = scalar_lea.vmem %s0, 328
  %v342 = vld [vmem:[%s341] sm:$0xf]
  %s343 = scalar_lea.vmem %s1, 520
  %v344 = vpack.c.bf16 0.0, %v342
  %345 = vst [vmem:[%s343] sm:$0x3] %v344
  %s346 = scalar_lea.vmem %s0, 132
  %v347 = vld [vmem:[%s346] sm:$0xf]
  %s348 = scalar_lea.vmem %s1, 618
  %v349 = vpack.c.bf16 0.0, %v347
  %350 = vst [vmem:[%s348] sm:$0x3] %v349
  %s351 = scalar_lea.vmem %s0, 1280
  %v352 = vld [vmem:[%s351] sm:$0xf]
  %s353 = scalar_lea.vmem %s1, 44
  %v354 = vpack.c.bf16 0.0, %v352
  %355 = vst [vmem:[%s353] sm:$0x3] %v354
  %s356 = scalar_lea.vmem %s0, 1084
  %v357 = vld [vmem:[%s356] sm:$0xf]
  %s358 = scalar_lea.vmem %s1, 142
  %v359 = vpack.c.bf16 0.0, %v357
  %360 = vst [vmem:[%s358] sm:$0x3] %v359
  %s361 = scalar_lea.vmem %s0, 888
  %v362 = vld [vmem:[%s361] sm:$0xf]
  %s363 = scalar_lea.vmem %s1, 240
  %v364 = vpack.c.bf16 0.0, %v362
  %365 = vst [vmem:[%s363] sm:$0x3] %v364
  %s366 = scalar_lea.vmem %s0, 692
  %v367 = vld [vmem:[%s366] sm:$0xf]
  %s368 = scalar_lea.vmem %s1, 338
  %v369 = vpack.c.bf16 0.0, %v367
  %370 = vst [vmem:[%s368] sm:$0x3] %v369
  %s371 = scalar_lea.vmem %s0, 496
  %v372 = vld [vmem:[%s371] sm:$0xf]
  %s373 = scalar_lea.vmem %s1, 436
  %v374 = vpack.c.bf16 0.0, %v372
  %375 = vst [vmem:[%s373] sm:$0x3] %v374
  %s376 = scalar_lea.vmem %s0, 300
  %v377 = vld [vmem:[%s376] sm:$0xf]
  %s378 = scalar_lea.vmem %s1, 534
  %v379 = vpack.c.bf16 0.0, %v377
  %380 = vst [vmem:[%s378] sm:$0x3] %v379
  %s381 = scalar_lea.vmem %s0, 104
  %v382 = vld [vmem:[%s381] sm:$0xf]
  %s383 = scalar_lea.vmem %s1, 632
  %v384 = vpack.c.bf16 0.0, %v382
  %385 = vst [vmem:[%s383] sm:$0x3] %v384
  %s386 = scalar_lea.vmem %s0, 1252
  %v387 = vld [vmem:[%s386] sm:$0xf]
  %s388 = scalar_lea.vmem %s1, 58
  %v389 = vpack.c.bf16 0.0, %v387
  %390 = vst [vmem:[%s388] sm:$0x3] %v389
  %s391 = scalar_lea.vmem %s0, 1056
  %v392 = vld [vmem:[%s391] sm:$0xf]
  %s393 = scalar_lea.vmem %s1, 156
  %v394 = vpack.c.bf16 0.0, %v392
  %395 = vst [vmem:[%s393] sm:$0x3] %v394
  %s396 = scalar_lea.vmem %s0, 860
  %v397 = vld [vmem:[%s396] sm:$0xf]
  %s398 = scalar_lea.vmem %s1, 254
  %v399 = vpack.c.bf16 0.0, %v397
  %400 = vst [vmem:[%s398] sm:$0x3] %v399
  %s401 = scalar_lea.vmem %s0, 664
  %v402 = vld [vmem:[%s401] sm:$0xf]
  %s403 = scalar_lea.vmem %s1, 352
  %v404 = vpack.c.bf16 0.0, %v402
  %405 = vst [vmem:[%s403] sm:$0x3] %v404
  %s406 = scalar_lea.vmem %s0, 468
  %v407 = vld [vmem:[%s406] sm:$0xf]
  %s408 = scalar_lea.vmem %s1, 450
  %v409 = vpack.c.bf16 0.0, %v407
  %410 = vst [vmem:[%s408] sm:$0x3] %v409
  %s411 = scalar_lea.vmem %s0, 272
  %v412 = vld [vmem:[%s411] sm:$0xf]
  %s413 = scalar_lea.vmem %s1, 548
  %v414 = vpack.c.bf16 0.0, %v412
  %415 = vst [vmem:[%s413] sm:$0x3] %v414
  %s416 = scalar_lea.vmem %s0, 76
  %v417 = vld [vmem:[%s416] sm:$0xf]
  %s418 = scalar_lea.vmem %s1, 646
  %v419 = vpack.c.bf16 0.0, %v417
  %420 = vst [vmem:[%s418] sm:$0x3] %v419
  %s421 = scalar_lea.vmem %s0, 1224
  %v422 = vld [vmem:[%s421] sm:$0xf]
  %s423 = scalar_lea.vmem %s1, 72
  %v424 = vpack.c.bf16 0.0, %v422
  %425 = vst [vmem:[%s423] sm:$0x3] %v424
  %s426 = scalar_lea.vmem %s0, 1028
  %v427 = vld [vmem:[%s426] sm:$0xf]
  %s428 = scalar_lea.vmem %s1, 170
  %v429 = vpack.c.bf16 0.0, %v427
  %430 = vst [vmem:[%s428] sm:$0x3] %v429
  %s431 = scalar_lea.vmem %s0, 832
  %v432 = vld [vmem:[%s431] sm:$0xf]
  %s433 = scalar_lea.vmem %s1, 268
  %v434 = vpack.c.bf16 0.0, %v432
  %435 = vst [vmem:[%s433] sm:$0x3] %v434
  %s436 = scalar_lea.vmem %s0, 636
  %v437 = vld [vmem:[%s436] sm:$0xf]
  %s438 = scalar_lea.vmem %s1, 366
  %v439 = vpack.c.bf16 0.0, %v437
  %440 = vst [vmem:[%s438] sm:$0x3] %v439
  %s441 = scalar_lea.vmem %s0, 440
  %v442 = vld [vmem:[%s441] sm:$0xf]
  %s443 = scalar_lea.vmem %s1, 464
  %v444 = vpack.c.bf16 0.0, %v442
  %445 = vst [vmem:[%s443] sm:$0x3] %v444
  %s446 = scalar_lea.vmem %s0, 244
  %v447 = vld [vmem:[%s446] sm:$0xf]
  %s448 = scalar_lea.vmem %s1, 562
  %v449 = vpack.c.bf16 0.0, %v447
  %450 = vst [vmem:[%s448] sm:$0x3] %v449
  %s451 = scalar_lea.vmem %s0, 48
  %v452 = vld [vmem:[%s451] sm:$0xf]
  %s453 = scalar_lea.vmem %s1, 660
  %v454 = vpack.c.bf16 0.0, %v452
  %455 = vst [vmem:[%s453] sm:$0x3] %v454
  %s456 = scalar_lea.vmem %s0, 1196
  %v457 = vld [vmem:[%s456] sm:$0xf]
  %s458 = scalar_lea.vmem %s1, 86
  %v459 = vpack.c.bf16 0.0, %v457
  %460 = vst [vmem:[%s458] sm:$0x3] %v459
  %s461 = scalar_lea.vmem %s0, 1000
  %v462 = vld [vmem:[%s461] sm:$0xf]
  %s463 = scalar_lea.vmem %s1, 184
  %v464 = vpack.c.bf16 0.0, %v462
  %465 = vst [vmem:[%s463] sm:$0x3] %v464
  %s466 = scalar_lea.vmem %s0, 804
  %v467 = vld [vmem:[%s466] sm:$0xf]
  %s468 = scalar_lea.vmem %s1, 282
  %v469 = vpack.c.bf16 0.0, %v467
  %470 = vst [vmem:[%s468] sm:$0x3] %v469
  %s471 = scalar_lea.vmem %s0, 608
  %v472 = vld [vmem:[%s471] sm:$0xf]
  %s473 = scalar_lea.vmem %s1, 380
  %v474 = vpack.c.bf16 0.0, %v472
  %475 = vst [vmem:[%s473] sm:$0x3] %v474
  %s476 = scalar_lea.vmem %s0, 412
  %v477 = vld [vmem:[%s476] sm:$0xf]
  %s478 = scalar_lea.vmem %s1, 478
  %v479 = vpack.c.bf16 0.0, %v477
  %480 = vst [vmem:[%s478] sm:$0x3] %v479
  %s481 = scalar_lea.vmem %s0, 216
  %v482 = vld [vmem:[%s481] sm:$0xf]
  %s483 = scalar_lea.vmem %s1, 576
  %v484 = vpack.c.bf16 0.0, %v482
  %485 = vst [vmem:[%s483] sm:$0x3] %v484
  %s486 = scalar_lea.vmem %s0, 20
  %v487 = vld [vmem:[%s486] sm:$0xf]
  %s488 = scalar_lea.vmem %s1, 674
  %v489 = vpack.c.bf16 0.0, %v487
  %490 = vst [vmem:[%s488] sm:$0x3] %v489
  %s491 = scalar_lea.vmem %s0, 1360
  %v492 = vld [vmem:[%s491] sm:$0xf]
  %s493 = scalar_lea.vmem %s1, 4
  %v494 = vpack.c.bf16 0.0, %v492
  %495 = vst [vmem:[%s493] sm:$0x3] %v494
  %s496 = scalar_lea.vmem %s0, 1164
  %v497 = vld [vmem:[%s496] sm:$0xf]
  %s498 = scalar_lea.vmem %s1, 102
  %v499 = vpack.c.bf16 0.0, %v497
  %500 = vst [vmem:[%s498] sm:$0x3] %v499
  %s501 = scalar_lea.vmem %s0, 968
  %v502 = vld [vmem:[%s501] sm:$0xf]
  %s503 = scalar_lea.vmem %s1, 200
  %v504 = vpack.c.bf16 0.0, %v502
  %505 = vst [vmem:[%s503] sm:$0x3] %v504
  %s506 = scalar_lea.vmem %s0, 772
  %v507 = vld [vmem:[%s506] sm:$0xf]
  %s508 = scalar_lea.vmem %s1, 298
  %v509 = vpack.c.bf16 0.0, %v507
  %510 = vst [vmem:[%s508] sm:$0x3] %v509
  %s511 = scalar_lea.vmem %s0, 576
  %v512 = vld [vmem:[%s511] sm:$0xf]
  %s513 = scalar_lea.vmem %s1, 396
  %v514 = vpack.c.bf16 0.0, %v512
  %515 = vst [vmem:[%s513] sm:$0x3] %v514
  %s516 = scalar_lea.vmem %s0, 380
  %v517 = vld [vmem:[%s516] sm:$0xf]
  %s518 = scalar_lea.vmem %s1, 494
  %v519 = vpack.c.bf16 0.0, %v517
  %520 = vst [vmem:[%s518] sm:$0x3] %v519
  %s521 = scalar_lea.vmem %s0, 184
  %v522 = vld [vmem:[%s521] sm:$0xf]
  %s523 = scalar_lea.vmem %s1, 592
  %v524 = vpack.c.bf16 0.0, %v522
  %525 = vst [vmem:[%s523] sm:$0x3] %v524
  %s526 = scalar_lea.vmem %s0, 1332
  %v527 = vld [vmem:[%s526] sm:$0xf]
  %s528 = scalar_lea.vmem %s1, 18
  %v529 = vpack.c.bf16 0.0, %v527
  %530 = vst [vmem:[%s528] sm:$0x3] %v529
  %s531 = scalar_lea.vmem %s0, 1136
  %v532 = vld [vmem:[%s531] sm:$0xf]
  %s533 = scalar_lea.vmem %s1, 116
  %v534 = vpack.c.bf16 0.0, %v532
  %535 = vst [vmem:[%s533] sm:$0x3] %v534
  %s536 = scalar_lea.vmem %s0, 940
  %v537 = vld [vmem:[%s536] sm:$0xf]
  %s538 = scalar_lea.vmem %s1, 214
  %v539 = vpack.c.bf16 0.0, %v537
  %540 = vst [vmem:[%s538] sm:$0x3] %v539
  %s541 = scalar_lea.vmem %s0, 744
  %v542 = vld [vmem:[%s541] sm:$0xf]
  %s543 = scalar_lea.vmem %s1, 312
  %v544 = vpack.c.bf16 0.0, %v542
  %545 = vst [vmem:[%s543] sm:$0x3] %v544
  %s546 = scalar_lea.vmem %s0, 548
  %v547 = vld [vmem:[%s546] sm:$0xf]
  %s548 = scalar_lea.vmem %s1, 410
  %v549 = vpack.c.bf16 0.0, %v547
  %550 = vst [vmem:[%s548] sm:$0x3] %v549
  %s551 = scalar_lea.vmem %s0, 352
  %v552 = vld [vmem:[%s551] sm:$0xf]
  %s553 = scalar_lea.vmem %s1, 508
  %v554 = vpack.c.bf16 0.0, %v552
  %555 = vst [vmem:[%s553] sm:$0x3] %v554
  %s556 = scalar_lea.vmem %s0, 156
  %v557 = vld [vmem:[%s556] sm:$0xf]
  %s558 = scalar_lea.vmem %s1, 606
  %v559 = vpack.c.bf16 0.0, %v557
  %560 = vst [vmem:[%s558] sm:$0x3] %v559
  %s561 = scalar_lea.vmem %s0, 1304
  %v562 = vld [vmem:[%s561] sm:$0xf]
  %s563 = scalar_lea.vmem %s1, 32
  %v564 = vpack.c.bf16 0.0, %v562
  %565 = vst [vmem:[%s563] sm:$0x3] %v564
  %s566 = scalar_lea.vmem %s0, 1108
  %v567 = vld [vmem:[%s566] sm:$0xf]
  %s568 = scalar_lea.vmem %s1, 130
  %v569 = vpack.c.bf16 0.0, %v567
  %570 = vst [vmem:[%s568] sm:$0x3] %v569
  %s571 = scalar_lea.vmem %s0, 912
  %v572 = vld [vmem:[%s571] sm:$0xf]
  %s573 = scalar_lea.vmem %s1, 228
  %v574 = vpack.c.bf16 0.0, %v572
  %575 = vst [vmem:[%s573] sm:$0x3] %v574
  %s576 = scalar_lea.vmem %s0, 716
  %v577 = vld [vmem:[%s576] sm:$0xf]
  %s578 = scalar_lea.vmem %s1, 326
  %v579 = vpack.c.bf16 0.0, %v577
  %580 = vst [vmem:[%s578] sm:$0x3] %v579
  %s581 = scalar_lea.vmem %s0, 520
  %v582 = vld [vmem:[%s581] sm:$0xf]
  %s583 = scalar_lea.vmem %s1, 424
  %v584 = vpack.c.bf16 0.0, %v582
  %585 = vst [vmem:[%s583] sm:$0x3] %v584
  %s586 = scalar_lea.vmem %s0, 324
  %v587 = vld [vmem:[%s586] sm:$0xf]
  %s588 = scalar_lea.vmem %s1, 522
  %v589 = vpack.c.bf16 0.0, %v587
  %590 = vst [vmem:[%s588] sm:$0x3] %v589
  %s591 = scalar_lea.vmem %s0, 128
  %v592 = vld [vmem:[%s591] sm:$0xf]
  %s593 = scalar_lea.vmem %s1, 620
  %v594 = vpack.c.bf16 0.0, %v592
  %595 = vst [vmem:[%s593] sm:$0x3] %v594
  %s596 = scalar_lea.vmem %s0, 1276
  %v597 = vld [vmem:[%s596] sm:$0xf]
  %s598 = scalar_lea.vmem %s1, 46
  %v599 = vpack.c.bf16 0.0, %v597
  %600 = vst [vmem:[%s598] sm:$0x3] %v599
  %s601 = scalar_lea.vmem %s0, 1080
  %v602 = vld [vmem:[%s601] sm:$0xf]
  %s603 = scalar_lea.vmem %s1, 144
  %v604 = vpack.c.bf16 0.0, %v602
  %605 = vst [vmem:[%s603] sm:$0x3] %v604
  %s606 = scalar_lea.vmem %s0, 884
  %v607 = vld [vmem:[%s606] sm:$0xf]
  %s608 = scalar_lea.vmem %s1, 242
  %v609 = vpack.c.bf16 0.0, %v607
  %610 = vst [vmem:[%s608] sm:$0x3] %v609
  %s611 = scalar_lea.vmem %s0, 688
  %v612 = vld [vmem:[%s611] sm:$0xf]
  %s613 = scalar_lea.vmem %s1, 340
  %v614 = vpack.c.bf16 0.0, %v612
  %615 = vst [vmem:[%s613] sm:$0x3] %v614
  %s616 = scalar_lea.vmem %s0, 492
  %v617 = vld [vmem:[%s616] sm:$0xf]
  %s618 = scalar_lea.vmem %s1, 438
  %v619 = vpack.c.bf16 0.0, %v617
  %620 = vst [vmem:[%s618] sm:$0x3] %v619
  %s621 = scalar_lea.vmem %s0, 296
  %v622 = vld [vmem:[%s621] sm:$0xf]
  %s623 = scalar_lea.vmem %s1, 536
  %v624 = vpack.c.bf16 0.0, %v622
  %625 = vst [vmem:[%s623] sm:$0x3] %v624
  %s626 = scalar_lea.vmem %s0, 100
  %v627 = vld [vmem:[%s626] sm:$0xf]
  %s628 = scalar_lea.vmem %s1, 634
  %v629 = vpack.c.bf16 0.0, %v627
  %630 = vst [vmem:[%s628] sm:$0x3] %v629
  %s631 = scalar_lea.vmem %s0, 1248
  %v632 = vld [vmem:[%s631] sm:$0xf]
  %s633 = scalar_lea.vmem %s1, 60
  %v634 = vpack.c.bf16 0.0, %v632
  %635 = vst [vmem:[%s633] sm:$0x3] %v634
  %s636 = scalar_lea.vmem %s0, 1052
  %v637 = vld [vmem:[%s636] sm:$0xf]
  %s638 = scalar_lea.vmem %s1, 158
  %v639 = vpack.c.bf16 0.0, %v637
  %640 = vst [vmem:[%s638] sm:$0x3] %v639
  %s641 = scalar_lea.vmem %s0, 856
  %v642 = vld [vmem:[%s641] sm:$0xf]
  %s643 = scalar_lea.vmem %s1, 256
  %v644 = vpack.c.bf16 0.0, %v642
  %645 = vst [vmem:[%s643] sm:$0x3] %v644
  %s646 = scalar_lea.vmem %s0, 660
  %v647 = vld [vmem:[%s646] sm:$0xf]
  %s648 = scalar_lea.vmem %s1, 354
  %v649 = vpack.c.bf16 0.0, %v647
  %650 = vst [vmem:[%s648] sm:$0x3] %v649
  %s651 = scalar_lea.vmem %s0, 464
  %v652 = vld [vmem:[%s651] sm:$0xf]
  %s653 = scalar_lea.vmem %s1, 452
  %v654 = vpack.c.bf16 0.0, %v652
  %655 = vst [vmem:[%s653] sm:$0x3] %v654
  %s656 = scalar_lea.vmem %s0, 268
  %v657 = vld [vmem:[%s656] sm:$0xf]
  %s658 = scalar_lea.vmem %s1, 550
  %v659 = vpack.c.bf16 0.0, %v657
  %660 = vst [vmem:[%s658] sm:$0x3] %v659
  %s661 = scalar_lea.vmem %s0, 72
  %v662 = vld [vmem:[%s661] sm:$0xf]
  %s663 = scalar_lea.vmem %s1, 648
  %v664 = vpack.c.bf16 0.0, %v662
  %665 = vst [vmem:[%s663] sm:$0x3] %v664
  %s666 = scalar_lea.vmem %s0, 1220
  %v667 = vld [vmem:[%s666] sm:$0xf]
  %s668 = scalar_lea.vmem %s1, 74
  %v669 = vpack.c.bf16 0.0, %v667
  %670 = vst [vmem:[%s668] sm:$0x3] %v669
  %s671 = scalar_lea.vmem %s0, 1024
  %v672 = vld [vmem:[%s671] sm:$0xf]
  %s673 = scalar_lea.vmem %s1, 172
  %v674 = vpack.c.bf16 0.0, %v672
  %675 = vst [vmem:[%s673] sm:$0x3] %v674
  %s676 = scalar_lea.vmem %s0, 828
  %v677 = vld [vmem:[%s676] sm:$0xf]
  %s678 = scalar_lea.vmem %s1, 270
  %v679 = vpack.c.bf16 0.0, %v677
  %680 = vst [vmem:[%s678] sm:$0x3] %v679
  %s681 = scalar_lea.vmem %s0, 632
  %v682 = vld [vmem:[%s681] sm:$0xf]
  %s683 = scalar_lea.vmem %s1, 368
  %v684 = vpack.c.bf16 0.0, %v682
  %685 = vst [vmem:[%s683] sm:$0x3] %v684
  %s686 = scalar_lea.vmem %s0, 436
  %v687 = vld [vmem:[%s686] sm:$0xf]
  %s688 = scalar_lea.vmem %s1, 466
  %v689 = vpack.c.bf16 0.0, %v687
  %690 = vst [vmem:[%s688] sm:$0x3] %v689
  %s691 = scalar_lea.vmem %s0, 240
  %v692 = vld [vmem:[%s691] sm:$0xf]
  %s693 = scalar_lea.vmem %s1, 564
  %v694 = vpack.c.bf16 0.0, %v692
  %695 = vst [vmem:[%s693] sm:$0x3] %v694
  %s696 = scalar_lea.vmem %s0, 44
  %v697 = vld [vmem:[%s696] sm:$0xf]
  %s698 = scalar_lea.vmem %s1, 662
  %v699 = vpack.c.bf16 0.0, %v697
  %700 = vst [vmem:[%s698] sm:$0x3] %v699
  %s701 = scalar_lea.vmem %s0, 1192
  %v702 = vld [vmem:[%s701] sm:$0xf]
  %s703 = scalar_lea.vmem %s1, 88
  %v704 = vpack.c.bf16 0.0, %v702
  %705 = vst [vmem:[%s703] sm:$0x3] %v704
  %s706 = scalar_lea.vmem %s0, 996
  %v707 = vld [vmem:[%s706] sm:$0xf]
  %s708 = scalar_lea.vmem %s1, 186
  %v709 = vpack.c.bf16 0.0, %v707
  %710 = vst [vmem:[%s708] sm:$0x3] %v709
  %s711 = scalar_lea.vmem %s0, 800
  %v712 = vld [vmem:[%s711] sm:$0xf]
  %s713 = scalar_lea.vmem %s1, 284
  %v714 = vpack.c.bf16 0.0, %v712
  %715 = vst [vmem:[%s713] sm:$0x3] %v714
  %s716 = scalar_lea.vmem %s0, 604
  %v717 = vld [vmem:[%s716] sm:$0xf]
  %s718 = scalar_lea.vmem %s1, 382
  %v719 = vpack.c.bf16 0.0, %v717
  %720 = vst [vmem:[%s718] sm:$0x3] %v719
  %s721 = scalar_lea.vmem %s0, 408
  %v722 = vld [vmem:[%s721] sm:$0xf]
  %s723 = scalar_lea.vmem %s1, 480
  %v724 = vpack.c.bf16 0.0, %v722
  %725 = vst [vmem:[%s723] sm:$0x3] %v724
  %s726 = scalar_lea.vmem %s0, 212
  %v727 = vld [vmem:[%s726] sm:$0xf]
  %s728 = scalar_lea.vmem %s1, 578
  %v729 = vpack.c.bf16 0.0, %v727
  %730 = vst [vmem:[%s728] sm:$0x3] %v729
  %s731 = scalar_lea.vmem %s0, 16
  %v732 = vld [vmem:[%s731] sm:$0xf]
  %s733 = scalar_lea.vmem %s1, 676
  %v734 = vpack.c.bf16 0.0, %v732
  %735 = vst [vmem:[%s733] sm:$0x3] %v734
  %s736 = scalar_lea.vmem %s0, 1356
  %v737 = vld [vmem:[%s736] sm:$0xf]
  %s738 = scalar_lea.vmem %s1, 6
  %v739 = vpack.c.bf16 0.0, %v737
  %740 = vst [vmem:[%s738] sm:$0x3] %v739
  %s741 = scalar_lea.vmem %s0, 1160
  %v742 = vld [vmem:[%s741] sm:$0xf]
  %s743 = scalar_lea.vmem %s1, 104
  %v744 = vpack.c.bf16 0.0, %v742
  %745 = vst [vmem:[%s743] sm:$0x3] %v744
  %s746 = scalar_lea.vmem %s0, 964
  %v747 = vld [vmem:[%s746] sm:$0xf]
  %s748 = scalar_lea.vmem %s1, 202
  %v749 = vpack.c.bf16 0.0, %v747
  %750 = vst [vmem:[%s748] sm:$0x3] %v749
  %s751 = scalar_lea.vmem %s0, 768
  %v752 = vld [vmem:[%s751] sm:$0xf]
  %s753 = scalar_lea.vmem %s1, 300
  %v754 = vpack.c.bf16 0.0, %v752
  %755 = vst [vmem:[%s753] sm:$0x3] %v754
  %s756 = scalar_lea.vmem %s0, 572
  %v757 = vld [vmem:[%s756] sm:$0xf]
  %s758 = scalar_lea.vmem %s1, 398
  %v759 = vpack.c.bf16 0.0, %v757
  %760 = vst [vmem:[%s758] sm:$0x3] %v759
  %s761 = scalar_lea.vmem %s0, 376
  %v762 = vld [vmem:[%s761] sm:$0xf]
  %s763 = scalar_lea.vmem %s1, 496
  %v764 = vpack.c.bf16 0.0, %v762
  %765 = vst [vmem:[%s763] sm:$0x3] %v764
  %s766 = scalar_lea.vmem %s0, 180
  %v767 = vld [vmem:[%s766] sm:$0xf]
  %s768 = scalar_lea.vmem %s1, 594
  %v769 = vpack.c.bf16 0.0, %v767
  %770 = vst [vmem:[%s768] sm:$0x3] %v769
  %s771 = scalar_lea.vmem %s0, 1328
  %v772 = vld [vmem:[%s771] sm:$0xf]
  %s773 = scalar_lea.vmem %s1, 20
  %v774 = vpack.c.bf16 0.0, %v772
  %775 = vst [vmem:[%s773] sm:$0x3] %v774
  %s776 = scalar_lea.vmem %s0, 1132
  %v777 = vld [vmem:[%s776] sm:$0xf]
  %s778 = scalar_lea.vmem %s1, 118
  %v779 = vpack.c.bf16 0.0, %v777
  %780 = vst [vmem:[%s778] sm:$0x3] %v779
  %s781 = scalar_lea.vmem %s0, 936
  %v782 = vld [vmem:[%s781] sm:$0xf]
  %s783 = scalar_lea.vmem %s1, 216
  %v784 = vpack.c.bf16 0.0, %v782
  %785 = vst [vmem:[%s783] sm:$0x3] %v784
  %s786 = scalar_lea.vmem %s0, 740
  %v787 = vld [vmem:[%s786] sm:$0xf]
  %s788 = scalar_lea.vmem %s1, 314
  %v789 = vpack.c.bf16 0.0, %v787
  %790 = vst [vmem:[%s788] sm:$0x3] %v789
  %s791 = scalar_lea.vmem %s0, 544
  %v792 = vld [vmem:[%s791] sm:$0xf]
  %s793 = scalar_lea.vmem %s1, 412
  %v794 = vpack.c.bf16 0.0, %v792
  %795 = vst [vmem:[%s793] sm:$0x3] %v794
  %s796 = scalar_lea.vmem %s0, 348
  %v797 = vld [vmem:[%s796] sm:$0xf]
  %s798 = scalar_lea.vmem %s1, 510
  %v799 = vpack.c.bf16 0.0, %v797
  %800 = vst [vmem:[%s798] sm:$0x3] %v799
  %s801 = scalar_lea.vmem %s0, 152
  %v802 = vld [vmem:[%s801] sm:$0xf]
  %s803 = scalar_lea.vmem %s1, 608
  %v804 = vpack.c.bf16 0.0, %v802
  %805 = vst [vmem:[%s803] sm:$0x3] %v804
  %s806 = scalar_lea.vmem %s0, 1300
  %v807 = vld [vmem:[%s806] sm:$0xf]
  %s808 = scalar_lea.vmem %s1, 34
  %v809 = vpack.c.bf16 0.0, %v807
  %810 = vst [vmem:[%s808] sm:$0x3] %v809
  %s811 = scalar_lea.vmem %s0, 1104
  %v812 = vld [vmem:[%s811] sm:$0xf]
  %s813 = scalar_lea.vmem %s1, 132
  %v814 = vpack.c.bf16 0.0, %v812
  %815 = vst [vmem:[%s813] sm:$0x3] %v814
  %s816 = scalar_lea.vmem %s0, 908
  %v817 = vld [vmem:[%s816] sm:$0xf]
  %s818 = scalar_lea.vmem %s1, 230
  %v819 = vpack.c.bf16 0.0, %v817
  %820 = vst [vmem:[%s818] sm:$0x3] %v819
  %s821 = scalar_lea.vmem %s0, 712
  %v822 = vld [vmem:[%s821] sm:$0xf]
  %s823 = scalar_lea.vmem %s1, 328
  %v824 = vpack.c.bf16 0.0, %v822
  %825 = vst [vmem:[%s823] sm:$0x3] %v824
  %s826 = scalar_lea.vmem %s0, 516
  %v827 = vld [vmem:[%s826] sm:$0xf]
  %s828 = scalar_lea.vmem %s1, 426
  %v829 = vpack.c.bf16 0.0, %v827
  %830 = vst [vmem:[%s828] sm:$0x3] %v829
  %s831 = scalar_lea.vmem %s0, 320
  %v832 = vld [vmem:[%s831] sm:$0xf]
  %s833 = scalar_lea.vmem %s1, 524
  %v834 = vpack.c.bf16 0.0, %v832
  %835 = vst [vmem:[%s833] sm:$0x3] %v834
  %s836 = scalar_lea.vmem %s0, 124
  %v837 = vld [vmem:[%s836] sm:$0xf]
  %s838 = scalar_lea.vmem %s1, 622
  %v839 = vpack.c.bf16 0.0, %v837
  %840 = vst [vmem:[%s838] sm:$0x3] %v839
  %s841 = scalar_lea.vmem %s0, 1272
  %v842 = vld [vmem:[%s841] sm:$0xf]
  %s843 = scalar_lea.vmem %s1, 48
  %v844 = vpack.c.bf16 0.0, %v842
  %845 = vst [vmem:[%s843] sm:$0x3] %v844
  %s846 = scalar_lea.vmem %s0, 1076
  %v847 = vld [vmem:[%s846] sm:$0xf]
  %s848 = scalar_lea.vmem %s1, 146
  %v849 = vpack.c.bf16 0.0, %v847
  %850 = vst [vmem:[%s848] sm:$0x3] %v849
  %s851 = scalar_lea.vmem %s0, 880
  %v852 = vld [vmem:[%s851] sm:$0xf]
  %s853 = scalar_lea.vmem %s1, 244
  %v854 = vpack.c.bf16 0.0, %v852
  %855 = vst [vmem:[%s853] sm:$0x3] %v854
  %s856 = scalar_lea.vmem %s0, 684
  %v857 = vld [vmem:[%s856] sm:$0xf]
  %s858 = scalar_lea.vmem %s1, 342
  %v859 = vpack.c.bf16 0.0, %v857
  %860 = vst [vmem:[%s858] sm:$0x3] %v859
  %s861 = scalar_lea.vmem %s0, 488
  %v862 = vld [vmem:[%s861] sm:$0xf]
  %s863 = scalar_lea.vmem %s1, 440
  %v864 = vpack.c.bf16 0.0, %v862
  %865 = vst [vmem:[%s863] sm:$0x3] %v864
  %s866 = scalar_lea.vmem %s0, 292
  %v867 = vld [vmem:[%s866] sm:$0xf]
  %s868 = scalar_lea.vmem %s1, 538
  %v869 = vpack.c.bf16 0.0, %v867
  %870 = vst [vmem:[%s868] sm:$0x3] %v869
  %s871 = scalar_lea.vmem %s0, 96
  %v872 = vld [vmem:[%s871] sm:$0xf]
  %s873 = scalar_lea.vmem %s1, 636
  %v874 = vpack.c.bf16 0.0, %v872
  %875 = vst [vmem:[%s873] sm:$0x3] %v874
  %s876 = scalar_lea.vmem %s0, 1244
  %v877 = vld [vmem:[%s876] sm:$0xf]
  %s878 = scalar_lea.vmem %s1, 62
  %v879 = vpack.c.bf16 0.0, %v877
  %880 = vst [vmem:[%s878] sm:$0x3] %v879
  %s881 = scalar_lea.vmem %s0, 1048
  %v882 = vld [vmem:[%s881] sm:$0xf]
  %s883 = scalar_lea.vmem %s1, 160
  %v884 = vpack.c.bf16 0.0, %v882
  %885 = vst [vmem:[%s883] sm:$0x3] %v884
  %s886 = scalar_lea.vmem %s0, 852
  %v887 = vld [vmem:[%s886] sm:$0xf]
  %s888 = scalar_lea.vmem %s1, 258
  %v889 = vpack.c.bf16 0.0, %v887
  %890 = vst [vmem:[%s888] sm:$0x3] %v889
  %s891 = scalar_lea.vmem %s0, 656
  %v892 = vld [vmem:[%s891] sm:$0xf]
  %s893 = scalar_lea.vmem %s1, 356
  %v894 = vpack.c.bf16 0.0, %v892
  %895 = vst [vmem:[%s893] sm:$0x3] %v894
  %s896 = scalar_lea.vmem %s0, 460
  %v897 = vld [vmem:[%s896] sm:$0xf]
  %s898 = scalar_lea.vmem %s1, 454
  %v899 = vpack.c.bf16 0.0, %v897
  %900 = vst [vmem:[%s898] sm:$0x3] %v899
  %s901 = scalar_lea.vmem %s0, 264
  %v902 = vld [vmem:[%s901] sm:$0xf]
  %s903 = scalar_lea.vmem %s1, 552
  %v904 = vpack.c.bf16 0.0, %v902
  %905 = vst [vmem:[%s903] sm:$0x3] %v904
  %s906 = scalar_lea.vmem %s0, 68
  %v907 = vld [vmem:[%s906] sm:$0xf]
  %s908 = scalar_lea.vmem %s1, 650
  %v909 = vpack.c.bf16 0.0, %v907
  %910 = vst [vmem:[%s908] sm:$0x3] %v909
  %s911 = scalar_lea.vmem %s0, 1216
  %v912 = vld [vmem:[%s911] sm:$0xf]
  %s913 = scalar_lea.vmem %s1, 76
  %v914 = vpack.c.bf16 0.0, %v912
  %915 = vst [vmem:[%s913] sm:$0x3] %v914
  %s916 = scalar_lea.vmem %s0, 1020
  %v917 = vld [vmem:[%s916] sm:$0xf]
  %s918 = scalar_lea.vmem %s1, 174
  %v919 = vpack.c.bf16 0.0, %v917
  %920 = vst [vmem:[%s918] sm:$0x3] %v919
  %s921 = scalar_lea.vmem %s0, 824
  %v922 = vld [vmem:[%s921] sm:$0xf]
  %s923 = scalar_lea.vmem %s1, 272
  %v924 = vpack.c.bf16 0.0, %v922
  %925 = vst [vmem:[%s923] sm:$0x3] %v924
  %s926 = scalar_lea.vmem %s0, 628
  %v927 = vld [vmem:[%s926] sm:$0xf]
  %s928 = scalar_lea.vmem %s1, 370
  %v929 = vpack.c.bf16 0.0, %v927
  %930 = vst [vmem:[%s928] sm:$0x3] %v929
  %s931 = scalar_lea.vmem %s0, 432
  %v932 = vld [vmem:[%s931] sm:$0xf]
  %s933 = scalar_lea.vmem %s1, 468
  %v934 = vpack.c.bf16 0.0, %v932
  %935 = vst [vmem:[%s933] sm:$0x3] %v934
  %s936 = scalar_lea.vmem %s0, 236
  %v937 = vld [vmem:[%s936] sm:$0xf]
  %s938 = scalar_lea.vmem %s1, 566
  %v939 = vpack.c.bf16 0.0, %v937
  %940 = vst [vmem:[%s938] sm:$0x3] %v939
  %s941 = scalar_lea.vmem %s0, 40
  %v942 = vld [vmem:[%s941] sm:$0xf]
  %s943 = scalar_lea.vmem %s1, 664
  %v944 = vpack.c.bf16 0.0, %v942
  %945 = vst [vmem:[%s943] sm:$0x3] %v944
  %s946 = scalar_lea.vmem %s0, 1188
  %v947 = vld [vmem:[%s946] sm:$0xf]
  %s948 = scalar_lea.vmem %s1, 90
  %v949 = vpack.c.bf16 0.0, %v947
  %950 = vst [vmem:[%s948] sm:$0x3] %v949
  %s951 = scalar_lea.vmem %s0, 992
  %v952 = vld [vmem:[%s951] sm:$0xf]
  %s953 = scalar_lea.vmem %s1, 188
  %v954 = vpack.c.bf16 0.0, %v952
  %955 = vst [vmem:[%s953] sm:$0x3] %v954
  %s956 = scalar_lea.vmem %s0, 796
  %v957 = vld [vmem:[%s956] sm:$0xf]
  %s958 = scalar_lea.vmem %s1, 286
  %v959 = vpack.c.bf16 0.0, %v957
  %960 = vst [vmem:[%s958] sm:$0x3] %v959
  %s961 = scalar_lea.vmem %s0, 600
  %v962 = vld [vmem:[%s961] sm:$0xf]
  %s963 = scalar_lea.vmem %s1, 384
  %v964 = vpack.c.bf16 0.0, %v962
  %965 = vst [vmem:[%s963] sm:$0x3] %v964
  %s966 = scalar_lea.vmem %s0, 404
  %v967 = vld [vmem:[%s966] sm:$0xf]
  %s968 = scalar_lea.vmem %s1, 482
  %v969 = vpack.c.bf16 0.0, %v967
  %970 = vst [vmem:[%s968] sm:$0x3] %v969
  %s971 = scalar_lea.vmem %s0, 208
  %v972 = vld [vmem:[%s971] sm:$0xf]
  %s973 = scalar_lea.vmem %s1, 580
  %v974 = vpack.c.bf16 0.0, %v972
  %975 = vst [vmem:[%s973] sm:$0x3] %v974
  %s976 = scalar_lea.vmem %s0, 12
  %v977 = vld [vmem:[%s976] sm:$0xf]
  %s978 = scalar_lea.vmem %s1, 678
  %v979 = vpack.c.bf16 0.0, %v977
  %980 = vst [vmem:[%s978] sm:$0x3] %v979
  %s981 = scalar_lea.vmem %s0, 1352
  %v982 = vld [vmem:[%s981] sm:$0xf]
  %s983 = scalar_lea.vmem %s1, 8
  %v984 = vpack.c.bf16 0.0, %v982
  %985 = vst [vmem:[%s983] sm:$0x3] %v984
  %s986 = scalar_lea.vmem %s0, 1156
  %v987 = vld [vmem:[%s986] sm:$0xf]
  %s988 = scalar_lea.vmem %s1, 106
  %v989 = vpack.c.bf16 0.0, %v987
  %990 = vst [vmem:[%s988] sm:$0x3] %v989
  %s991 = scalar_lea.vmem %s0, 960
  %v992 = vld [vmem:[%s991] sm:$0xf]
  %s993 = scalar_lea.vmem %s1, 204
  %v994 = vpack.c.bf16 0.0, %v992
  %995 = vst [vmem:[%s993] sm:$0x3] %v994
  %s996 = scalar_lea.vmem %s0, 764
  %v997 = vld [vmem:[%s996] sm:$0xf]
  %s998 = scalar_lea.vmem %s1, 302
  %v999 = vpack.c.bf16 0.0, %v997
  %1000 = vst [vmem:[%s998] sm:$0x3] %v999
  %s1001 = scalar_lea.vmem %s0, 568
  %v1002 = vld [vmem:[%s1001] sm:$0xf]
  %s1003 = scalar_lea.vmem %s1, 400
  %v1004 = vpack.c.bf16 0.0, %v1002
  %1005 = vst [vmem:[%s1003] sm:$0x3] %v1004
  %s1006 = scalar_lea.vmem %s0, 372
  %v1007 = vld [vmem:[%s1006] sm:$0xf]
  %s1008 = scalar_lea.vmem %s1, 498
  %v1009 = vpack.c.bf16 0.0, %v1007
  %1010 = vst [vmem:[%s1008] sm:$0x3] %v1009
  %s1011 = scalar_lea.vmem %s0, 176
  %v1012 = vld [vmem:[%s1011] sm:$0xf]
  %s1013 = scalar_lea.vmem %s1, 596
  %v1014 = vpack.c.bf16 0.0, %v1012
  %1015 = vst [vmem:[%s1013] sm:$0x3] %v1014
  %s1016 = scalar_lea.vmem %s0, 1324
  %v1017 = vld [vmem:[%s1016] sm:$0xf]
  %s1018 = scalar_lea.vmem %s1, 22
  %v1019 = vpack.c.bf16 0.0, %v1017
  %1020 = vst [vmem:[%s1018] sm:$0x3] %v1019
  %s1021 = scalar_lea.vmem %s0, 1128
  %v1022 = vld [vmem:[%s1021] sm:$0xf]
  %s1023 = scalar_lea.vmem %s1, 120
  %v1024 = vpack.c.bf16 0.0, %v1022
  %1025 = vst [vmem:[%s1023] sm:$0x3] %v1024
  %s1026 = scalar_lea.vmem %s0, 932
  %v1027 = vld [vmem:[%s1026] sm:$0xf]
  %s1028 = scalar_lea.vmem %s1, 218
  %v1029 = vpack.c.bf16 0.0, %v1027
  %1030 = vst [vmem:[%s1028] sm:$0x3] %v1029
  %s1031 = scalar_lea.vmem %s0, 736
  %v1032 = vld [vmem:[%s1031] sm:$0xf]
  %s1033 = scalar_lea.vmem %s1, 316
  %v1034 = vpack.c.bf16 0.0, %v1032
  %1035 = vst [vmem:[%s1033] sm:$0x3] %v1034
  %s1036 = scalar_lea.vmem %s0, 540
  %v1037 = vld [vmem:[%s1036] sm:$0xf]
  %s1038 = scalar_lea.vmem %s1, 414
  %v1039 = vpack.c.bf16 0.0, %v1037
  %1040 = vst [vmem:[%s1038] sm:$0x3] %v1039
  %s1041 = scalar_lea.vmem %s0, 344
  %v1042 = vld [vmem:[%s1041] sm:$0xf]
  %s1043 = scalar_lea.vmem %s1, 512
  %v1044 = vpack.c.bf16 0.0, %v1042
  %1045 = vst [vmem:[%s1043] sm:$0x3] %v1044
  %s1046 = scalar_lea.vmem %s0, 148
  %v1047 = vld [vmem:[%s1046] sm:$0xf]
  %s1048 = scalar_lea.vmem %s1, 610
  %v1049 = vpack.c.bf16 0.0, %v1047
  %1050 = vst [vmem:[%s1048] sm:$0x3] %v1049
  %s1051 = scalar_lea.vmem %s0, 1296
  %v1052 = vld [vmem:[%s1051] sm:$0xf]
  %s1053 = scalar_lea.vmem %s1, 36
  %v1054 = vpack.c.bf16 0.0, %v1052
  %1055 = vst [vmem:[%s1053] sm:$0x3] %v1054
  %s1056 = scalar_lea.vmem %s0, 1100
  %v1057 = vld [vmem:[%s1056] sm:$0xf]
  %s1058 = scalar_lea.vmem %s1, 134
  %v1059 = vpack.c.bf16 0.0, %v1057
  %1060 = vst [vmem:[%s1058] sm:$0x3] %v1059
  %s1061 = scalar_lea.vmem %s0, 904
  %v1062 = vld [vmem:[%s1061] sm:$0xf]
  %s1063 = scalar_lea.vmem %s1, 232
  %v1064 = vpack.c.bf16 0.0, %v1062
  %1065 = vst [vmem:[%s1063] sm:$0x3] %v1064
  %s1066 = scalar_lea.vmem %s0, 708
  %v1067 = vld [vmem:[%s1066] sm:$0xf]
  %s1068 = scalar_lea.vmem %s1, 330
  %v1069 = vpack.c.bf16 0.0, %v1067
  %1070 = vst [vmem:[%s1068] sm:$0x3] %v1069
  %s1071 = scalar_lea.vmem %s0, 512
  %v1072 = vld [vmem:[%s1071] sm:$0xf]
  %s1073 = scalar_lea.vmem %s1, 428
  %v1074 = vpack.c.bf16 0.0, %v1072
  %1075 = vst [vmem:[%s1073] sm:$0x3] %v1074
  %s1076 = scalar_lea.vmem %s0, 316
  %v1077 = vld [vmem:[%s1076] sm:$0xf]
  %s1078 = scalar_lea.vmem %s1, 526
  %v1079 = vpack.c.bf16 0.0, %v1077
  %1080 = vst [vmem:[%s1078] sm:$0x3] %v1079
  %s1081 = scalar_lea.vmem %s0, 120
  %v1082 = vld [vmem:[%s1081] sm:$0xf]
  %s1083 = scalar_lea.vmem %s1, 624
  %v1084 = vpack.c.bf16 0.0, %v1082
  %1085 = vst [vmem:[%s1083] sm:$0x3] %v1084
  %s1086 = scalar_lea.vmem %s0, 1268
  %v1087 = vld [vmem:[%s1086] sm:$0xf]
  %s1088 = scalar_lea.vmem %s1, 50
  %v1089 = vpack.c.bf16 0.0, %v1087
  %1090 = vst [vmem:[%s1088] sm:$0x3] %v1089
  %s1091 = scalar_lea.vmem %s0, 1072
  %v1092 = vld [vmem:[%s1091] sm:$0xf]
  %s1093 = scalar_lea.vmem %s1, 148
  %v1094 = vpack.c.bf16 0.0, %v1092
  %1095 = vst [vmem:[%s1093] sm:$0x3] %v1094
  %s1096 = scalar_lea.vmem %s0, 876
  %v1097 = vld [vmem:[%s1096] sm:$0xf]
  %s1098 = scalar_lea.vmem %s1, 246
  %v1099 = vpack.c.bf16 0.0, %v1097
  %1100 = vst [vmem:[%s1098] sm:$0x3] %v1099
  %s1101 = scalar_lea.vmem %s0, 680
  %v1102 = vld [vmem:[%s1101] sm:$0xf]
  %s1103 = scalar_lea.vmem %s1, 344
  %v1104 = vpack.c.bf16 0.0, %v1102
  %1105 = vst [vmem:[%s1103] sm:$0x3] %v1104
  %s1106 = scalar_lea.vmem %s0, 484
  %v1107 = vld [vmem:[%s1106] sm:$0xf]
  %s1108 = scalar_lea.vmem %s1, 442
  %v1109 = vpack.c.bf16 0.0, %v1107
  %1110 = vst [vmem:[%s1108] sm:$0x3] %v1109
  %s1111 = scalar_lea.vmem %s0, 288
  %v1112 = vld [vmem:[%s1111] sm:$0xf]
  %s1113 = scalar_lea.vmem %s1, 540
  %v1114 = vpack.c.bf16 0.0, %v1112
  %1115 = vst [vmem:[%s1113] sm:$0x3] %v1114
  %s1116 = scalar_lea.vmem %s0, 92
  %v1117 = vld [vmem:[%s1116] sm:$0xf]
  %s1118 = scalar_lea.vmem %s1, 638
  %v1119 = vpack.c.bf16 0.0, %v1117
  %1120 = vst [vmem:[%s1118] sm:$0x3] %v1119
  %s1121 = scalar_lea.vmem %s0, 1240
  %v1122 = vld [vmem:[%s1121] sm:$0xf]
  %s1123 = scalar_lea.vmem %s1, 64
  %v1124 = vpack.c.bf16 0.0, %v1122
  %1125 = vst [vmem:[%s1123] sm:$0x3] %v1124
  %s1126 = scalar_lea.vmem %s0, 1044
  %v1127 = vld [vmem:[%s1126] sm:$0xf]
  %s1128 = scalar_lea.vmem %s1, 162
  %v1129 = vpack.c.bf16 0.0, %v1127
  %1130 = vst [vmem:[%s1128] sm:$0x3] %v1129
  %s1131 = scalar_lea.vmem %s0, 848
  %v1132 = vld [vmem:[%s1131] sm:$0xf]
  %s1133 = scalar_lea.vmem %s1, 260
  %v1134 = vpack.c.bf16 0.0, %v1132
  %1135 = vst [vmem:[%s1133] sm:$0x3] %v1134
  %s1136 = scalar_lea.vmem %s0, 652
  %v1137 = vld [vmem:[%s1136] sm:$0xf]
  %s1138 = scalar_lea.vmem %s1, 358
  %v1139 = vpack.c.bf16 0.0, %v1137
  %1140 = vst [vmem:[%s1138] sm:$0x3] %v1139
  %s1141 = scalar_lea.vmem %s0, 456
  %v1142 = vld [vmem:[%s1141] sm:$0xf]
  %s1143 = scalar_lea.vmem %s1, 456
  %v1144 = vpack.c.bf16 0.0, %v1142
  %1145 = vst [vmem:[%s1143] sm:$0x3] %v1144
  %s1146 = scalar_lea.vmem %s0, 260
  %v1147 = vld [vmem:[%s1146] sm:$0xf]
  %s1148 = scalar_lea.vmem %s1, 554
  %v1149 = vpack.c.bf16 0.0, %v1147
  %1150 = vst [vmem:[%s1148] sm:$0x3] %v1149
  %s1151 = scalar_lea.vmem %s0, 64
  %v1152 = vld [vmem:[%s1151] sm:$0xf]
  %s1153 = scalar_lea.vmem %s1, 652
  %v1154 = vpack.c.bf16 0.0, %v1152
  %1155 = vst [vmem:[%s1153] sm:$0x3] %v1154
  %s1156 = scalar_lea.vmem %s0, 1212
  %v1157 = vld [vmem:[%s1156] sm:$0xf]
  %s1158 = scalar_lea.vmem %s1, 78
  %v1159 = vpack.c.bf16 0.0, %v1157
  %1160 = vst [vmem:[%s1158] sm:$0x3] %v1159
  %s1161 = scalar_lea.vmem %s0, 1016
  %v1162 = vld [vmem:[%s1161] sm:$0xf]
  %s1163 = scalar_lea.vmem %s1, 176
  %v1164 = vpack.c.bf16 0.0, %v1162
  %1165 = vst [vmem:[%s1163] sm:$0x3] %v1164
  %s1166 = scalar_lea.vmem %s0, 820
  %v1167 = vld [vmem:[%s1166] sm:$0xf]
  %s1168 = scalar_lea.vmem %s1, 274
  %v1169 = vpack.c.bf16 0.0, %v1167
  %1170 = vst [vmem:[%s1168] sm:$0x3] %v1169
  %s1171 = scalar_lea.vmem %s0, 624
  %v1172 = vld [vmem:[%s1171] sm:$0xf]
  %s1173 = scalar_lea.vmem %s1, 372
  %v1174 = vpack.c.bf16 0.0, %v1172
  %1175 = vst [vmem:[%s1173] sm:$0x3] %v1174
  %s1176 = scalar_lea.vmem %s0, 428
  %v1177 = vld [vmem:[%s1176] sm:$0xf]
  %s1178 = scalar_lea.vmem %s1, 470
  %v1179 = vpack.c.bf16 0.0, %v1177
  %1180 = vst [vmem:[%s1178] sm:$0x3] %v1179
  %s1181 = scalar_lea.vmem %s0, 232
  %v1182 = vld [vmem:[%s1181] sm:$0xf]
  %s1183 = scalar_lea.vmem %s1, 568
  %v1184 = vpack.c.bf16 0.0, %v1182
  %1185 = vst [vmem:[%s1183] sm:$0x3] %v1184
  %s1186 = scalar_lea.vmem %s0, 36
  %v1187 = vld [vmem:[%s1186] sm:$0xf]
  %s1188 = scalar_lea.vmem %s1, 666
  %v1189 = vpack.c.bf16 0.0, %v1187
  %1190 = vst [vmem:[%s1188] sm:$0x3] %v1189
  %s1191 = scalar_lea.vmem %s0, 1184
  %v1192 = vld [vmem:[%s1191] sm:$0xf]
  %s1193 = scalar_lea.vmem %s1, 92
  %v1194 = vpack.c.bf16 0.0, %v1192
  %1195 = vst [vmem:[%s1193] sm:$0x3] %v1194
  %s1196 = scalar_lea.vmem %s0, 988
  %v1197 = vld [vmem:[%s1196] sm:$0xf]
  %s1198 = scalar_lea.vmem %s1, 190
  %v1199 = vpack.c.bf16 0.0, %v1197
  %1200 = vst [vmem:[%s1198] sm:$0x3] %v1199
  %s1201 = scalar_lea.vmem %s0, 792
  %v1202 = vld [vmem:[%s1201] sm:$0xf]
  %s1203 = scalar_lea.vmem %s1, 288
  %v1204 = vpack.c.bf16 0.0, %v1202
  %1205 = vst [vmem:[%s1203] sm:$0x3] %v1204
  %s1206 = scalar_lea.vmem %s0, 596
  %v1207 = vld [vmem:[%s1206] sm:$0xf]
  %s1208 = scalar_lea.vmem %s1, 386
  %v1209 = vpack.c.bf16 0.0, %v1207
  %1210 = vst [vmem:[%s1208] sm:$0x3] %v1209
  %s1211 = scalar_lea.vmem %s0, 400
  %v1212 = vld [vmem:[%s1211] sm:$0xf]
  %s1213 = scalar_lea.vmem %s1, 484
  %v1214 = vpack.c.bf16 0.0, %v1212
  %1215 = vst [vmem:[%s1213] sm:$0x3] %v1214
  %s1216 = scalar_lea.vmem %s0, 204
  %v1217 = vld [vmem:[%s1216] sm:$0xf]
  %s1218 = scalar_lea.vmem %s1, 582
  %v1219 = vpack.c.bf16 0.0, %v1217
  %1220 = vst [vmem:[%s1218] sm:$0x3] %v1219
  %s1221 = scalar_lea.vmem %s0, 8
  %v1222 = vld [vmem:[%s1221] sm:$0xf]
  %s1223 = scalar_lea.vmem %s1, 680
  %v1224 = vpack.c.bf16 0.0, %v1222
  %1225 = vst [vmem:[%s1223] sm:$0x3] %v1224
  %s1226 = scalar_lea.vmem %s0, 1348
  %v1227 = vld [vmem:[%s1226] sm:$0xf]
  %s1228 = scalar_lea.vmem %s1, 10
  %v1229 = vpack.c.bf16 0.0, %v1227
  %1230 = vst [vmem:[%s1228] sm:$0x3] %v1229
  %s1231 = scalar_lea.vmem %s0, 1152
  %v1232 = vld [vmem:[%s1231] sm:$0xf]
  %s1233 = scalar_lea.vmem %s1, 108
  %v1234 = vpack.c.bf16 0.0, %v1232
  %1235 = vst [vmem:[%s1233] sm:$0x3] %v1234
  %s1236 = scalar_lea.vmem %s0, 956
  %v1237 = vld [vmem:[%s1236] sm:$0xf]
  %s1238 = scalar_lea.vmem %s1, 206
  %v1239 = vpack.c.bf16 0.0, %v1237
  %1240 = vst [vmem:[%s1238] sm:$0x3] %v1239
  %s1241 = scalar_lea.vmem %s0, 760
  %v1242 = vld [vmem:[%s1241] sm:$0xf]
  %s1243 = scalar_lea.vmem %s1, 304
  %v1244 = vpack.c.bf16 0.0, %v1242
  %1245 = vst [vmem:[%s1243] sm:$0x3] %v1244
  %s1246 = scalar_lea.vmem %s0, 564
  %v1247 = vld [vmem:[%s1246] sm:$0xf]
  %s1248 = scalar_lea.vmem %s1, 402
  %v1249 = vpack.c.bf16 0.0, %v1247
  %1250 = vst [vmem:[%s1248] sm:$0x3] %v1249
  %s1251 = scalar_lea.vmem %s0, 368
  %v1252 = vld [vmem:[%s1251] sm:$0xf]
  %s1253 = scalar_lea.vmem %s1, 500
  %v1254 = vpack.c.bf16 0.0, %v1252
  %1255 = vst [vmem:[%s1253] sm:$0x3] %v1254
  %s1256 = scalar_lea.vmem %s0, 172
  %v1257 = vld [vmem:[%s1256] sm:$0xf]
  %s1258 = scalar_lea.vmem %s1, 598
  %v1259 = vpack.c.bf16 0.0, %v1257
  %1260 = vst [vmem:[%s1258] sm:$0x3] %v1259
  %s1261 = scalar_lea.vmem %s0, 1320
  %v1262 = vld [vmem:[%s1261] sm:$0xf]
  %s1263 = scalar_lea.vmem %s1, 24
  %v1264 = vpack.c.bf16 0.0, %v1262
  %1265 = vst [vmem:[%s1263] sm:$0x3] %v1264
  %s1266 = scalar_lea.vmem %s0, 1124
  %v1267 = vld [vmem:[%s1266] sm:$0xf]
  %s1268 = scalar_lea.vmem %s1, 122
  %v1269 = vpack.c.bf16 0.0, %v1267
  %1270 = vst [vmem:[%s1268] sm:$0x3] %v1269
  %s1271 = scalar_lea.vmem %s0, 928
  %v1272 = vld [vmem:[%s1271] sm:$0xf]
  %s1273 = scalar_lea.vmem %s1, 220
  %v1274 = vpack.c.bf16 0.0, %v1272
  %1275 = vst [vmem:[%s1273] sm:$0x3] %v1274
  %s1276 = scalar_lea.vmem %s0, 732
  %v1277 = vld [vmem:[%s1276] sm:$0xf]
  %s1278 = scalar_lea.vmem %s1, 318
  %v1279 = vpack.c.bf16 0.0, %v1277
  %1280 = vst [vmem:[%s1278] sm:$0x3] %v1279
  %s1281 = scalar_lea.vmem %s0, 536
  %v1282 = vld [vmem:[%s1281] sm:$0xf]
  %s1283 = scalar_lea.vmem %s1, 416
  %v1284 = vpack.c.bf16 0.0, %v1282
  %1285 = vst [vmem:[%s1283] sm:$0x3] %v1284
  %s1286 = scalar_lea.vmem %s0, 340
  %v1287 = vld [vmem:[%s1286] sm:$0xf]
  %s1288 = scalar_lea.vmem %s1, 514
  %v1289 = vpack.c.bf16 0.0, %v1287
  %1290 = vst [vmem:[%s1288] sm:$0x3] %v1289
  %s1291 = scalar_lea.vmem %s0, 144
  %v1292 = vld [vmem:[%s1291] sm:$0xf]
  %s1293 = scalar_lea.vmem %s1, 612
  %v1294 = vpack.c.bf16 0.0, %v1292
  %1295 = vst [vmem:[%s1293] sm:$0x3] %v1294
  %s1296 = scalar_lea.vmem %s0, 1292
  %v1297 = vld [vmem:[%s1296] sm:$0xf]
  %s1298 = scalar_lea.vmem %s1, 38
  %v1299 = vpack.c.bf16 0.0, %v1297
  %1300 = vst [vmem:[%s1298] sm:$0x3] %v1299
  %s1301 = scalar_lea.vmem %s0, 1096
  %v1302 = vld [vmem:[%s1301] sm:$0xf]
  %s1303 = scalar_lea.vmem %s1, 136
  %v1304 = vpack.c.bf16 0.0, %v1302
  %1305 = vst [vmem:[%s1303] sm:$0x3] %v1304
  %s1306 = scalar_lea.vmem %s0, 900
  %v1307 = vld [vmem:[%s1306] sm:$0xf]
  %s1308 = scalar_lea.vmem %s1, 234
  %v1309 = vpack.c.bf16 0.0, %v1307
  %1310 = vst [vmem:[%s1308] sm:$0x3] %v1309
  %s1311 = scalar_lea.vmem %s0, 704
  %v1312 = vld [vmem:[%s1311] sm:$0xf]
  %s1313 = scalar_lea.vmem %s1, 332
  %v1314 = vpack.c.bf16 0.0, %v1312
  %1315 = vst [vmem:[%s1313] sm:$0x3] %v1314
  %s1316 = scalar_lea.vmem %s0, 508
  %v1317 = vld [vmem:[%s1316] sm:$0xf]
  %s1318 = scalar_lea.vmem %s1, 430
  %v1319 = vpack.c.bf16 0.0, %v1317
  %1320 = vst [vmem:[%s1318] sm:$0x3] %v1319
  %s1321 = scalar_lea.vmem %s0, 312
  %v1322 = vld [vmem:[%s1321] sm:$0xf]
  %s1323 = scalar_lea.vmem %s1, 528
  %v1324 = vpack.c.bf16 0.0, %v1322
  %1325 = vst [vmem:[%s1323] sm:$0x3] %v1324
  %s1326 = scalar_lea.vmem %s0, 116
  %v1327 = vld [vmem:[%s1326] sm:$0xf]
  %s1328 = scalar_lea.vmem %s1, 626
  %v1329 = vpack.c.bf16 0.0, %v1327
  %1330 = vst [vmem:[%s1328] sm:$0x3] %v1329
  %s1331 = scalar_lea.vmem %s0, 1264
  %v1332 = vld [vmem:[%s1331] sm:$0xf]
  %s1333 = scalar_lea.vmem %s1, 52
  %v1334 = vpack.c.bf16 0.0, %v1332
  %1335 = vst [vmem:[%s1333] sm:$0x3] %v1334
  %s1336 = scalar_lea.vmem %s0, 1068
  %v1337 = vld [vmem:[%s1336] sm:$0xf]
  %s1338 = scalar_lea.vmem %s1, 150
  %v1339 = vpack.c.bf16 0.0, %v1337
  %1340 = vst [vmem:[%s1338] sm:$0x3] %v1339
  %s1341 = scalar_lea.vmem %s0, 872
  %v1342 = vld [vmem:[%s1341] sm:$0xf]
  %s1343 = scalar_lea.vmem %s1, 248
  %v1344 = vpack.c.bf16 0.0, %v1342
  %1345 = vst [vmem:[%s1343] sm:$0x3] %v1344
  %s1346 = scalar_lea.vmem %s0, 676
  %v1347 = vld [vmem:[%s1346] sm:$0xf]
  %s1348 = scalar_lea.vmem %s1, 346
  %v1349 = vpack.c.bf16 0.0, %v1347
  %1350 = vst [vmem:[%s1348] sm:$0x3] %v1349
  %s1351 = scalar_lea.vmem %s0, 480
  %v1352 = vld [vmem:[%s1351] sm:$0xf]
  %s1353 = scalar_lea.vmem %s1, 444
  %v1354 = vpack.c.bf16 0.0, %v1352
  %1355 = vst [vmem:[%s1353] sm:$0x3] %v1354
  %s1356 = scalar_lea.vmem %s0, 284
  %v1357 = vld [vmem:[%s1356] sm:$0xf]
  %s1358 = scalar_lea.vmem %s1, 542
  %v1359 = vpack.c.bf16 0.0, %v1357
  %1360 = vst [vmem:[%s1358] sm:$0x3] %v1359
  %s1361 = scalar_lea.vmem %s0, 88
  %v1362 = vld [vmem:[%s1361] sm:$0xf]
  %s1363 = scalar_lea.vmem %s1, 640
  %v1364 = vpack.c.bf16 0.0, %v1362
  %1365 = vst [vmem:[%s1363] sm:$0x3] %v1364
  %s1366 = scalar_lea.vmem %s0, 1236
  %v1367 = vld [vmem:[%s1366] sm:$0xf]
  %s1368 = scalar_lea.vmem %s1, 66
  %v1369 = vpack.c.bf16 0.0, %v1367
  %1370 = vst [vmem:[%s1368] sm:$0x3] %v1369
  %s1371 = scalar_lea.vmem %s0, 1040
  %v1372 = vld [vmem:[%s1371] sm:$0xf]
  %s1373 = scalar_lea.vmem %s1, 164
  %v1374 = vpack.c.bf16 0.0, %v1372
  %1375 = vst [vmem:[%s1373] sm:$0x3] %v1374
  %s1376 = scalar_lea.vmem %s0, 844
  %v1377 = vld [vmem:[%s1376] sm:$0xf]
  %s1378 = scalar_lea.vmem %s1, 262
  %v1379 = vpack.c.bf16 0.0, %v1377
  %1380 = vst [vmem:[%s1378] sm:$0x3] %v1379
  %s1381 = scalar_lea.vmem %s0, 648
  %v1382 = vld [vmem:[%s1381] sm:$0xf]
  %s1383 = scalar_lea.vmem %s1, 360
  %v1384 = vpack.c.bf16 0.0, %v1382
  %1385 = vst [vmem:[%s1383] sm:$0x3] %v1384
  %s1386 = scalar_lea.vmem %s0, 452
  %v1387 = vld [vmem:[%s1386] sm:$0xf]
  %s1388 = scalar_lea.vmem %s1, 458
  %v1389 = vpack.c.bf16 0.0, %v1387
  %1390 = vst [vmem:[%s1388] sm:$0x3] %v1389
  %s1391 = scalar_lea.vmem %s0, 256
  %v1392 = vld [vmem:[%s1391] sm:$0xf]
  %s1393 = scalar_lea.vmem %s1, 556
  %v1394 = vpack.c.bf16 0.0, %v1392
  %1395 = vst [vmem:[%s1393] sm:$0x3] %v1394
  %s1396 = scalar_lea.vmem %s0, 60
  %v1397 = vld [vmem:[%s1396] sm:$0xf]
  %s1398 = scalar_lea.vmem %s1, 654
  %v1399 = vpack.c.bf16 0.0, %v1397
  %1400 = vst [vmem:[%s1398] sm:$0x3] %v1399
  %s1401 = scalar_lea.vmem %s0, 1208
  %v1402 = vld [vmem:[%s1401] sm:$0xf]
  %s1403 = scalar_lea.vmem %s1, 80
  %v1404 = vpack.c.bf16 0.0, %v1402
  %1405 = vst [vmem:[%s1403] sm:$0x3] %v1404
  %s1406 = scalar_lea.vmem %s0, 1012
  %v1407 = vld [vmem:[%s1406] sm:$0xf]
  %s1408 = scalar_lea.vmem %s1, 178
  %v1409 = vpack.c.bf16 0.0, %v1407
  %1410 = vst [vmem:[%s1408] sm:$0x3] %v1409
  %s1411 = scalar_lea.vmem %s0, 816
  %v1412 = vld [vmem:[%s1411] sm:$0xf]
  %s1413 = scalar_lea.vmem %s1, 276
  %v1414 = vpack.c.bf16 0.0, %v1412
  %1415 = vst [vmem:[%s1413] sm:$0x3] %v1414
  %s1416 = scalar_lea.vmem %s0, 620
  %v1417 = vld [vmem:[%s1416] sm:$0xf]
  %s1418 = scalar_lea.vmem %s1, 374
  %v1419 = vpack.c.bf16 0.0, %v1417
  %1420 = vst [vmem:[%s1418] sm:$0x3] %v1419
  %s1421 = scalar_lea.vmem %s0, 424
  %v1422 = vld [vmem:[%s1421] sm:$0xf]
  %s1423 = scalar_lea.vmem %s1, 472
  %v1424 = vpack.c.bf16 0.0, %v1422
  %1425 = vst [vmem:[%s1423] sm:$0x3] %v1424
  %s1426 = scalar_lea.vmem %s0, 228
  %v1427 = vld [vmem:[%s1426] sm:$0xf]
  %s1428 = scalar_lea.vmem %s1, 570
  %v1429 = vpack.c.bf16 0.0, %v1427
  %1430 = vst [vmem:[%s1428] sm:$0x3] %v1429
  %s1431 = scalar_lea.vmem %s0, 32
  %v1432 = vld [vmem:[%s1431] sm:$0xf]
  %s1433 = scalar_lea.vmem %s1, 668
  %v1434 = vpack.c.bf16 0.0, %v1432
  %1435 = vst [vmem:[%s1433] sm:$0x3] %v1434
  %s1436 = scalar_lea.vmem %s0, 1180
  %v1437 = vld [vmem:[%s1436] sm:$0xf]
  %s1438 = scalar_lea.vmem %s1, 94
  %v1439 = vpack.c.bf16 0.0, %v1437
  %1440 = vst [vmem:[%s1438] sm:$0x3] %v1439
  %s1441 = scalar_lea.vmem %s0, 984
  %v1442 = vld [vmem:[%s1441] sm:$0xf]
  %s1443 = scalar_lea.vmem %s1, 192
  %v1444 = vpack.c.bf16 0.0, %v1442
  %1445 = vst [vmem:[%s1443] sm:$0x3] %v1444
  %s1446 = scalar_lea.vmem %s0, 788
  %v1447 = vld [vmem:[%s1446] sm:$0xf]
  %s1448 = scalar_lea.vmem %s1, 290
  %v1449 = vpack.c.bf16 0.0, %v1447
  %1450 = vst [vmem:[%s1448] sm:$0x3] %v1449
  %s1451 = scalar_lea.vmem %s0, 592
  %v1452 = vld [vmem:[%s1451] sm:$0xf]
  %s1453 = scalar_lea.vmem %s1, 388
  %v1454 = vpack.c.bf16 0.0, %v1452
  %1455 = vst [vmem:[%s1453] sm:$0x3] %v1454
  %s1456 = scalar_lea.vmem %s0, 396
  %v1457 = vld [vmem:[%s1456] sm:$0xf]
  %s1458 = scalar_lea.vmem %s1, 486
  %v1459 = vpack.c.bf16 0.0, %v1457
  %1460 = vst [vmem:[%s1458] sm:$0x3] %v1459
  %s1461 = scalar_lea.vmem %s0, 200
  %v1462 = vld [vmem:[%s1461] sm:$0xf]
  %s1463 = scalar_lea.vmem %s1, 584
  %v1464 = vpack.c.bf16 0.0, %v1462
  %1465 = vst [vmem:[%s1463] sm:$0x3] %v1464
  %s1466 = scalar_lea.vmem %s0, 4
  %v1467 = vld [vmem:[%s1466] sm:$0xf]
  %s1468 = scalar_lea.vmem %s1, 682
  %v1469 = vpack.c.bf16 0.0, %v1467
  %1470 = vst [vmem:[%s1468] sm:$0x3] %v1469
  %s1471 = scalar_lea.vmem %s0, 1344
  %v1472 = vld [vmem:[%s1471] sm:$0xf]
  %s1473 = scalar_lea.vmem %s1, 12
  %v1474 = vpack.c.bf16 0.0, %v1472
  %1475 = vst [vmem:[%s1473] sm:$0x3] %v1474
  %s1476 = scalar_lea.vmem %s0, 1148
  %v1477 = vld [vmem:[%s1476] sm:$0xf]
  %s1478 = scalar_lea.vmem %s1, 110
  %v1479 = vpack.c.bf16 0.0, %v1477
  %1480 = vst [vmem:[%s1478] sm:$0x3] %v1479
  %s1481 = scalar_lea.vmem %s0, 952
  %v1482 = vld [vmem:[%s1481] sm:$0xf]
  %s1483 = scalar_lea.vmem %s1, 208
  %v1484 = vpack.c.bf16 0.0, %v1482
  %1485 = vst [vmem:[%s1483] sm:$0x3] %v1484
  %s1486 = scalar_lea.vmem %s0, 756
  %v1487 = vld [vmem:[%s1486] sm:$0xf]
  %s1488 = scalar_lea.vmem %s1, 306
  %v1489 = vpack.c.bf16 0.0, %v1487
  %1490 = vst [vmem:[%s1488] sm:$0x3] %v1489
  %s1491 = scalar_lea.vmem %s0, 560
  %v1492 = vld [vmem:[%s1491] sm:$0xf]
  %s1493 = scalar_lea.vmem %s1, 404
  %v1494 = vpack.c.bf16 0.0, %v1492
  %1495 = vst [vmem:[%s1493] sm:$0x3] %v1494
  %s1496 = scalar_lea.vmem %s0, 364
  %v1497 = vld [vmem:[%s1496] sm:$0xf]
  %s1498 = scalar_lea.vmem %s1, 502
  %v1499 = vpack.c.bf16 0.0, %v1497
  %1500 = vst [vmem:[%s1498] sm:$0x3] %v1499
  %s1501 = scalar_lea.vmem %s0, 168
  %v1502 = vld [vmem:[%s1501] sm:$0xf]
  %s1503 = scalar_lea.vmem %s1, 600
  %v1504 = vpack.c.bf16 0.0, %v1502
  %1505 = vst [vmem:[%s1503] sm:$0x3] %v1504
  %s1506 = scalar_lea.vmem %s0, 1316
  %v1507 = vld [vmem:[%s1506] sm:$0xf]
  %s1508 = scalar_lea.vmem %s1, 26
  %v1509 = vpack.c.bf16 0.0, %v1507
  %1510 = vst [vmem:[%s1508] sm:$0x3] %v1509
  %s1511 = scalar_lea.vmem %s0, 1120
  %v1512 = vld [vmem:[%s1511] sm:$0xf]
  %s1513 = scalar_lea.vmem %s1, 124
  %v1514 = vpack.c.bf16 0.0, %v1512
  %1515 = vst [vmem:[%s1513] sm:$0x3] %v1514
  %s1516 = scalar_lea.vmem %s0, 924
  %v1517 = vld [vmem:[%s1516] sm:$0xf]
  %s1518 = scalar_lea.vmem %s1, 222
  %v1519 = vpack.c.bf16 0.0, %v1517
  %1520 = vst [vmem:[%s1518] sm:$0x3] %v1519
  %s1521 = scalar_lea.vmem %s0, 728
  %v1522 = vld [vmem:[%s1521] sm:$0xf]
  %s1523 = scalar_lea.vmem %s1, 320
  %v1524 = vpack.c.bf16 0.0, %v1522
  %1525 = vst [vmem:[%s1523] sm:$0x3] %v1524
  %s1526 = scalar_lea.vmem %s0, 532
  %v1527 = vld [vmem:[%s1526] sm:$0xf]
  %s1528 = scalar_lea.vmem %s1, 418
  %v1529 = vpack.c.bf16 0.0, %v1527
  %1530 = vst [vmem:[%s1528] sm:$0x3] %v1529
  %s1531 = scalar_lea.vmem %s0, 336
  %v1532 = vld [vmem:[%s1531] sm:$0xf]
  %s1533 = scalar_lea.vmem %s1, 516
  %v1534 = vpack.c.bf16 0.0, %v1532
  %1535 = vst [vmem:[%s1533] sm:$0x3] %v1534
  %s1536 = scalar_lea.vmem %s0, 140
  %v1537 = vld [vmem:[%s1536] sm:$0xf]
  %s1538 = scalar_lea.vmem %s1, 614
  %v1539 = vpack.c.bf16 0.0, %v1537
  %1540 = vst [vmem:[%s1538] sm:$0x3] %v1539
  %s1541 = scalar_lea.vmem %s0, 1288
  %v1542 = vld [vmem:[%s1541] sm:$0xf]
  %s1543 = scalar_lea.vmem %s1, 40
  %v1544 = vpack.c.bf16 0.0, %v1542
  %1545 = vst [vmem:[%s1543] sm:$0x3] %v1544
  %s1546 = scalar_lea.vmem %s0, 1092
  %v1547 = vld [vmem:[%s1546] sm:$0xf]
  %s1548 = scalar_lea.vmem %s1, 138
  %v1549 = vpack.c.bf16 0.0, %v1547
  %1550 = vst [vmem:[%s1548] sm:$0x3] %v1549
  %s1551 = scalar_lea.vmem %s0, 896
  %v1552 = vld [vmem:[%s1551] sm:$0xf]
  %s1553 = scalar_lea.vmem %s1, 236
  %v1554 = vpack.c.bf16 0.0, %v1552
  %1555 = vst [vmem:[%s1553] sm:$0x3] %v1554
  %s1556 = scalar_lea.vmem %s0, 700
  %v1557 = vld [vmem:[%s1556] sm:$0xf]
  %s1558 = scalar_lea.vmem %s1, 334
  %v1559 = vpack.c.bf16 0.0, %v1557
  %1560 = vst [vmem:[%s1558] sm:$0x3] %v1559
  %s1561 = scalar_lea.vmem %s0, 504
  %v1562 = vld [vmem:[%s1561] sm:$0xf]
  %s1563 = scalar_lea.vmem %s1, 432
  %v1564 = vpack.c.bf16 0.0, %v1562
  %1565 = vst [vmem:[%s1563] sm:$0x3] %v1564
  %s1566 = scalar_lea.vmem %s0, 308
  %v1567 = vld [vmem:[%s1566] sm:$0xf]
  %s1568 = scalar_lea.vmem %s1, 530
  %v1569 = vpack.c.bf16 0.0, %v1567
  %1570 = vst [vmem:[%s1568] sm:$0x3] %v1569
  %s1571 = scalar_lea.vmem %s0, 112
  %v1572 = vld [vmem:[%s1571] sm:$0xf]
  %s1573 = scalar_lea.vmem %s1, 628
  %v1574 = vpack.c.bf16 0.0, %v1572
  %1575 = vst [vmem:[%s1573] sm:$0x3] %v1574
  %s1576 = scalar_lea.vmem %s0, 1260
  %v1577 = vld [vmem:[%s1576] sm:$0xf]
  %s1578 = scalar_lea.vmem %s1, 54
  %v1579 = vpack.c.bf16 0.0, %v1577
  %1580 = vst [vmem:[%s1578] sm:$0x3] %v1579
  %s1581 = scalar_lea.vmem %s0, 1064
  %v1582 = vld [vmem:[%s1581] sm:$0xf]
  %s1583 = scalar_lea.vmem %s1, 152
  %v1584 = vpack.c.bf16 0.0, %v1582
  %1585 = vst [vmem:[%s1583] sm:$0x3] %v1584
  %s1586 = scalar_lea.vmem %s0, 868
  %v1587 = vld [vmem:[%s1586] sm:$0xf]
  %s1588 = scalar_lea.vmem %s1, 250
  %v1589 = vpack.c.bf16 0.0, %v1587
  %1590 = vst [vmem:[%s1588] sm:$0x3] %v1589
  %s1591 = scalar_lea.vmem %s0, 672
  %v1592 = vld [vmem:[%s1591] sm:$0xf]
  %s1593 = scalar_lea.vmem %s1, 348
  %v1594 = vpack.c.bf16 0.0, %v1592
  %1595 = vst [vmem:[%s1593] sm:$0x3] %v1594
  %s1596 = scalar_lea.vmem %s0, 476
  %v1597 = vld [vmem:[%s1596] sm:$0xf]
  %s1598 = scalar_lea.vmem %s1, 446
  %v1599 = vpack.c.bf16 0.0, %v1597
  %1600 = vst [vmem:[%s1598] sm:$0x3] %v1599
  %s1601 = scalar_lea.vmem %s0, 280
  %v1602 = vld [vmem:[%s1601] sm:$0xf]
  %s1603 = scalar_lea.vmem %s1, 544
  %v1604 = vpack.c.bf16 0.0, %v1602
  %1605 = vst [vmem:[%s1603] sm:$0x3] %v1604
  %s1606 = scalar_lea.vmem %s0, 84
  %v1607 = vld [vmem:[%s1606] sm:$0xf]
  %s1608 = scalar_lea.vmem %s1, 642
  %v1609 = vpack.c.bf16 0.0, %v1607
  %1610 = vst [vmem:[%s1608] sm:$0x3] %v1609
  %s1611 = scalar_lea.vmem %s0, 1232
  %v1612 = vld [vmem:[%s1611] sm:$0xf]
  %s1613 = scalar_lea.vmem %s1, 68
  %v1614 = vpack.c.bf16 0.0, %v1612
  %1615 = vst [vmem:[%s1613] sm:$0x3] %v1614
  %s1616 = scalar_lea.vmem %s0, 1036
  %v1617 = vld [vmem:[%s1616] sm:$0xf]
  %s1618 = scalar_lea.vmem %s1, 166
  %v1619 = vpack.c.bf16 0.0, %v1617
  %1620 = vst [vmem:[%s1618] sm:$0x3] %v1619
  %s1621 = scalar_lea.vmem %s0, 840
  %v1622 = vld [vmem:[%s1621] sm:$0xf]
  %s1623 = scalar_lea.vmem %s1, 264
  %v1624 = vpack.c.bf16 0.0, %v1622
  %1625 = vst [vmem:[%s1623] sm:$0x3] %v1624
  %s1626 = scalar_lea.vmem %s0, 644
  %v1627 = vld [vmem:[%s1626] sm:$0xf]
  %s1628 = scalar_lea.vmem %s1, 362
  %v1629 = vpack.c.bf16 0.0, %v1627
  %1630 = vst [vmem:[%s1628] sm:$0x3] %v1629
  %s1631 = scalar_lea.vmem %s0, 448
  %v1632 = vld [vmem:[%s1631] sm:$0xf]
  %s1633 = scalar_lea.vmem %s1, 460
  %v1634 = vpack.c.bf16 0.0, %v1632
  %1635 = vst [vmem:[%s1633] sm:$0x3] %v1634
  %s1636 = scalar_lea.vmem %s0, 252
  %v1637 = vld [vmem:[%s1636] sm:$0xf]
  %s1638 = scalar_lea.vmem %s1, 558
  %v1639 = vpack.c.bf16 0.0, %v1637
  %1640 = vst [vmem:[%s1638] sm:$0x3] %v1639
  %s1641 = scalar_lea.vmem %s0, 56
  %v1642 = vld [vmem:[%s1641] sm:$0xf]
  %s1643 = scalar_lea.vmem %s1, 656
  %v1644 = vpack.c.bf16 0.0, %v1642
  %1645 = vst [vmem:[%s1643] sm:$0x3] %v1644
  %s1646 = scalar_lea.vmem %s0, 1204
  %v1647 = vld [vmem:[%s1646] sm:$0xf]
  %s1648 = scalar_lea.vmem %s1, 82
  %v1649 = vpack.c.bf16 0.0, %v1647
  %1650 = vst [vmem:[%s1648] sm:$0x3] %v1649
  %s1651 = scalar_lea.vmem %s0, 1008
  %v1652 = vld [vmem:[%s1651] sm:$0xf]
  %s1653 = scalar_lea.vmem %s1, 180
  %v1654 = vpack.c.bf16 0.0, %v1652
  %1655 = vst [vmem:[%s1653] sm:$0x3] %v1654
  %s1656 = scalar_lea.vmem %s0, 812
  %v1657 = vld [vmem:[%s1656] sm:$0xf]
  %s1658 = scalar_lea.vmem %s1, 278
  %v1659 = vpack.c.bf16 0.0, %v1657
  %1660 = vst [vmem:[%s1658] sm:$0x3] %v1659
  %s1661 = scalar_lea.vmem %s0, 616
  %v1662 = vld [vmem:[%s1661] sm:$0xf]
  %s1663 = scalar_lea.vmem %s1, 376
  %v1664 = vpack.c.bf16 0.0, %v1662
  %1665 = vst [vmem:[%s1663] sm:$0x3] %v1664
  %s1666 = scalar_lea.vmem %s0, 420
  %v1667 = vld [vmem:[%s1666] sm:$0xf]
  %s1668 = scalar_lea.vmem %s1, 474
  %v1669 = vpack.c.bf16 0.0, %v1667
  %1670 = vst [vmem:[%s1668] sm:$0x3] %v1669
  %s1671 = scalar_lea.vmem %s0, 224
  %v1672 = vld [vmem:[%s1671] sm:$0xf]
  %s1673 = scalar_lea.vmem %s1, 572
  %v1674 = vpack.c.bf16 0.0, %v1672
  %1675 = vst [vmem:[%s1673] sm:$0x3] %v1674
  %s1676 = scalar_lea.vmem %s0, 28
  %v1677 = vld [vmem:[%s1676] sm:$0xf]
  %s1678 = scalar_lea.vmem %s1, 670
  %v1679 = vpack.c.bf16 0.0, %v1677
  %1680 = vst [vmem:[%s1678] sm:$0x3] %v1679
  %s1681 = scalar_lea.vmem %s0, 1176
  %v1682 = vld [vmem:[%s1681] sm:$0xf]
  %s1683 = scalar_lea.vmem %s1, 96
  %v1684 = vpack.c.bf16 0.0, %v1682
  %1685 = vst [vmem:[%s1683] sm:$0x3] %v1684
  %s1686 = scalar_lea.vmem %s0, 980
  %v1687 = vld [vmem:[%s1686] sm:$0xf]
  %s1688 = scalar_lea.vmem %s1, 194
  %v1689 = vpack.c.bf16 0.0, %v1687
  %1690 = vst [vmem:[%s1688] sm:$0x3] %v1689
  %s1691 = scalar_lea.vmem %s0, 784
  %v1692 = vld [vmem:[%s1691] sm:$0xf]
  %s1693 = scalar_lea.vmem %s1, 292
  %v1694 = vpack.c.bf16 0.0, %v1692
  %1695 = vst [vmem:[%s1693] sm:$0x3] %v1694
  %s1696 = scalar_lea.vmem %s0, 588
  %v1697 = vld [vmem:[%s1696] sm:$0xf]
  %s1698 = scalar_lea.vmem %s1, 390
  %v1699 = vpack.c.bf16 0.0, %v1697
  %1700 = vst [vmem:[%s1698] sm:$0x3] %v1699
  %s1701 = scalar_lea.vmem %s0, 392
  %v1702 = vld [vmem:[%s1701] sm:$0xf]
  %s1703 = scalar_lea.vmem %s1, 488
  %v1704 = vpack.c.bf16 0.0, %v1702
  %1705 = vst [vmem:[%s1703] sm:$0x3] %v1704
  %s1706 = scalar_lea.vmem %s0, 196
  %v1707 = vld [vmem:[%s1706] sm:$0xf]
  %s1708 = scalar_lea.vmem %s1, 586
  %v1709 = vpack.c.bf16 0.0, %v1707
  %1710 = vst [vmem:[%s1708] sm:$0x3] %v1709
  %v1711 = vld [vmem:[%s0] sm:$0xf]
  %s1712 = scalar_lea.vmem %s1, 684
  %v1713 = vpack.c.bf16 0.0, %v1711
  %1714 = vst [vmem:[%s1712] sm:$0x3] %v1713

// kernel: scn_forward.25
$region0: #{scn_forward.25}
  #allocation0 [shape = 'u32[]', space=smem, size = 0x4, offset = 0x4, fixed_abs, tag = 'smem constant byte address 0x4 - core index']
  #allocation1 [shape = 'u32[144,128]{1,0:T(1,128)}', space=vmem, size = 0x12000, scoped, tag = 'internal scratch']
  #allocation2 [shape = 'bf16[8,4096]{1,0:T(8,128)(2,1)}', space=vmem, size = 0x10000, scoped, tag = 'scratch operand']
  #allocation3 [shape = 'f32[8,2048]{1,0:T(8,128)}', space=vmem, size = 0x10000, scoped, tag = 'scratch operand']
  %s0 = inlined_call_operand.vmem [shape: bf16[2,3,8,2048], index: 0, kind: input, shape index: {}, may-alias: {0,1}]
  %s1 = inlined_call_operand.vmem [shape: bf16[2,3,8,2048], index: 1, kind: input, shape index: {}, may-alias: {0,1}]
  %s2 = inlined_call_operand.vmem [shape: f32[8,8], index: 2, kind: input, shape index: {}]
  %s3 = inlined_call_operand.vmem [shape: f32[1,4096], index: 3, kind: input, shape index: {}]
  %s4 = inlined_call_operand.vmem [shape: f32[2,8,4096], index: 4, kind: output, shape index: {0}]
  %s5 = inlined_call_operand.hbm [shape: f32[2,2,8,128], index: 5, kind: output, shape index: {1}]
  %6 = xla_tuple %s4, %s5
  %s7 = sld [smem:[#allocation0]]
  $region57: #{scn_forward.25} parent=0
    _
  %s9 = ssub.s32 1, %s7
  %s10 = scalar_select 0, %s9, %s7
  $region1: #{scn_forward.25} parent=0
    #allocation4 [shape = 'u8[8192]{0}', space=vmem, size = 0x2000, scoped, tag = 'output window, operand 1']
    #allocation5 [shape = 's32[2]{0}', space=sflag, size = 0x8, scoped, tag = 'scoped memory for scn_forward.25']
    %11 = vsyncpa [#allocation5], 0
    %s12 = scalar_lea.sflag [#allocation5], 1
    %13 = vsyncpa %s12, 0
    loop: start=0, step=1, limit=6
    $region2: #{scn_forward.25} parent=1 // loop_pre_header
      _
    $region3: #{scn_forward.25} parent=1 // loop_header
      %s15 = sphi 0, %s19
      %p16 = scmp.ge.s32.totalorder %s15, 6
      %s22 = sphi 0, %s34
      %s23 = sphi 0, %s30
      %s24 = sphi 0, %s22
      %s25 = sphi 0, %s23
      %s26 = sphi 0, %s24
      %s27 = sphi 0, %s25
      %s39 = sphi 0, %s41
      %s42 = sphi 0, %s39
      %s43 = sphi 0, %s42
      %s59 = sphi 0, %s43
      %s69 = sphi 0, %s71
      %s72 = sphi 0, %s69
      %s73 = sphi 0, %s72
      %s89 = sphi 0, %s73
      %s93 = sphi 0, %s93
      %s95 = sphi 0, %s93
      %s96 = sphi 0, %s95
      %s110 = sphi 0, %s96
      %s116 = sphi 0, %s118
      %s119 = sphi 0, %s116
      %s120 = sphi 0, %s119
      %s136 = sphi 0, %s120
      %s144 = sphi 0, %s146
      %s147 = sphi 0, %s144
      %s148 = sphi 0, %s147
      %s164 = sphi 0, %s148
      %s172 = sphi 0, %s174
      %s175 = sphi 0, %s172
      %s176 = sphi 0, %s175
      %s192 = sphi 0, %s176
    $region4: #{scn_forward.25} parent=1 // loop_header_branch
      %18 = sbr.rel (%p16) target = $region8
    $region5: #{scn_forward.25} parent=1 // loop_body
      %s20 = ssub.s32 %s15, 1
      %s21 = ssub.s32 %s15, 2
      %s28 = sadd.s32 1, %s23
      %p29 = scmp.ge.s32.totalorder %s28, 2
      %s30 = scalar_select %p29, 0, %s28
      %s31 = sadd.s32 1, %s22
      %s32 = scalar_select %p29, %s31, %s22
      %p33 = scmp.ge.s32.totalorder %s32, 2
      %s34 = scalar_select %p33, 0, %s32
      %s35 = ssub.s32 %s22, %s34
      %s36 = ssub.s32 %s23, %s30
      %s37 = sor.u32 %s35, %s36
      %p38 = scmp.eq.s32.totalorder %s37, 0
      %s40 = sadd.s32 %s39, 1
      %s41 = scalar_select %p38, %s39, %s40
      %p44 = pneg %p38
      %p45 = scmp.eq.s32.totalorder %s15, 3
      %p46 = por %p44, %p45
      %p47 = scmp.ne.s32.totalorder %s39, %s42
      %p48 = scmp.eq.s32.totalorder %s15, 0
      %p49 = por %p47, %p48
      %p50 = scmp.ne.s32.totalorder %s39, %s42
      %p51 = scmp.eq.s32.totalorder %s20, 3
      %p52 = por %p50, %p51
      %p53 = scmp.ne.s32.totalorder %s42, %s43
      %p54 = scmp.eq.s32.totalorder %s20, 0
      %p55 = por %p53, %p54
      %p56 = scmp.ne.s32.totalorder %s42, %s43
      %p57 = scmp.eq.s32.totalorder %s21, 3
      %p58 = por %p56, %p57
      %p60 = scmp.ne.s32.totalorder %s43, %s59
      %p61 = scmp.eq.s32.totalorder %s21, 0
      %p62 = por %p60, %p61
      %s63 = sadd.s32 %s23, 1
      %s64 = sadd.s32 %s30, 1
      %s65 = ssub.s32 %s22, %s34
      %s66 = ssub.s32 %s63, %s64
      %s67 = sor.u32 %s65, %s66
      %p68 = scmp.eq.s32.totalorder %s67, 0
      %s70 = sadd.s32 %s69, 1
      %s71 = scalar_select %p68, %s69, %s70
      %p74 = pneg %p68
      %p75 = scmp.eq.s32.totalorder %s15, 3
      %p76 = por %p74, %p75
      %p77 = scmp.ne.s32.totalorder %s69, %s72
      %p78 = scmp.eq.s32.totalorder %s15, 0
      %p79 = por %p77, %p78
      %p80 = scmp.ne.s32.totalorder %s69, %s72
      %p81 = scmp.eq.s32.totalorder %s20, 3
      %p82 = por %p80, %p81
      %p83 = scmp.ne.s32.totalorder %s72, %s73
      %p84 = scmp.eq.s32.totalorder %s20, 0
      %p85 = por %p83, %p84
      %p86 = scmp.ne.s32.totalorder %s72, %s73
      %p87 = scmp.eq.s32.totalorder %s21, 3
      %p88 = por %p86, %p87
      %p90 = scmp.ne.s32.totalorder %s73, %s89
      %p91 = scmp.eq.s32.totalorder %s21, 0
      %p92 = por %p90, %p91
      %s94 = sadd.s32 %s93, 1
      %p97 = scmp.eq.s32.totalorder %s15, 3
      %p98 = scmp.ne.s32.totalorder %s93, %s95
      %p99 = scmp.eq.s32.totalorder %s15, 0
      %p100 = por %p98, %p99
      %p101 = scmp.ne.s32.totalorder %s93, %s95
      %p102 = scmp.eq.s32.totalorder %s20, 3
      %p103 = por %p101, %p102
      %p104 = scmp.ne.s32.totalorder %s95, %s96
      %p105 = scmp.eq.s32.totalorder %s20, 0
      %p106 = por %p104, %p105
      %p107 = scmp.ne.s32.totalorder %s95, %s96
      %p108 = scmp.eq.s32.totalorder %s21, 3
      %p109 = por %p107, %p108
      %p111 = scmp.ne.s32.totalorder %s96, %s110
      %p112 = scmp.eq.s32.totalorder %s21, 0
      %p113 = por %p111, %p112
      %s114 = ssub.s32 %s23, %s30
      %p115 = scmp.eq.s32.totalorder %s114, 0
      %s117 = sadd.s32 %s116, 1
      %s118 = scalar_select %p115, %s116, %s117
      %p121 = pneg %p115
      %p122 = scmp.eq.s32.totalorder %s15, 3
      %p123 = por %p121, %p122
      %p124 = scmp.ne.s32.totalorder %s116, %s119
      %p125 = scmp.eq.s32.totalorder %s15, 0
      %p126 = por %p124, %p125
      %p127 = scmp.ne.s32.totalorder %s116, %s119
      %p128 = scmp.eq.s32.totalorder %s20, 3
      %p129 = por %p127, %p128
      %p130 = scmp.ne.s32.totalorder %s119, %s120
      %p131 = scmp.eq.s32.totalorder %s20, 0
      %p132 = por %p130, %p131
      %p133 = scmp.ne.s32.totalorder %s119, %s120
      %p134 = scmp.eq.s32.totalorder %s21, 3
      %p135 = por %p133, %p134
      %p137 = scmp.ne.s32.totalorder %s120, %s136
      %p138 = scmp.eq.s32.totalorder %s21, 0
      %p139 = por %p137, %p138
      %s140 = ssub.s32 %s22, %s34
      %s141 = ssub.s32 %s23, %s30
      %s142 = sor.u32 %s140, %s141
      %p143 = scmp.eq.s32.totalorder %s142, 0
      %s145 = sadd.s32 %s144, 1
      %s146 = scalar_select %p143, %s144, %s145
      %p149 = pneg %p143
      %p150 = scmp.eq.s32.totalorder %s15, 3
      %p151 = por %p149, %p150
      %p152 = scmp.ne.s32.totalorder %s144, %s147
      %p153 = scmp.eq.s32.totalorder %s15, 0
      %p154 = por %p152, %p153
      %p155 = scmp.ne.s32.totalorder %s144, %s147
      %p156 = scmp.eq.s32.totalorder %s20, 3
      %p157 = por %p155, %p156
      %p158 = scmp.ne.s32.totalorder %s147, %s148
      %p159 = scmp.eq.s32.totalorder %s20, 0
      %p160 = por %p158, %p159
      %p161 = scmp.ne.s32.totalorder %s147, %s148
      %p162 = scmp.eq.s32.totalorder %s21, 3
      %p163 = por %p161, %p162
      %p165 = scmp.ne.s32.totalorder %s148, %s164
      %p166 = scmp.eq.s32.totalorder %s21, 0
      %p167 = por %p165, %p166
      %s168 = ssub.s32 %s22, %s34
      %s169 = ssub.s32 %s23, %s30
      %s170 = sor.u32 %s168, %s169
      %p171 = scmp.eq.s32.totalorder %s170, 0
      %s173 = sadd.s32 %s172, 1
      %s174 = scalar_select %p171, %s172, %s173
      %p177 = pneg %p171
      %p178 = scmp.eq.s32.totalorder %s15, 3
      %p179 = por %p177, %p178
      %p180 = scmp.ne.s32.totalorder %s172, %s175
      %p181 = scmp.eq.s32.totalorder %s15, 0
      %p182 = por %p180, %p181
      %p183 = scmp.ne.s32.totalorder %s172, %s175
      %p184 = scmp.eq.s32.totalorder %s20, 3
      %p185 = por %p183, %p184
      %p186 = scmp.ne.s32.totalorder %s175, %s176
      %p187 = scmp.eq.s32.totalorder %s20, 0
      %p188 = por %p186, %p187
      %p189 = scmp.ne.s32.totalorder %s175, %s176
      %p190 = scmp.eq.s32.totalorder %s21, 3
      %p191 = por %p189, %p190
      %p193 = scmp.ne.s32.totalorder %s176, %s192
      %p194 = scmp.eq.s32.totalorder %s21, 0
      %p195 = por %p193, %p194
      %p196 = scmp.le.s32.totalorder 1, %s15
      %p197 = scmp.lt.s32.totalorder %s15, 5
      %p198 = pnand %p196, %p197
      %p199 = pneg %p198
      // Predicated region
      $region9: #{scn_forward.25} parent=5 // pred_check
        _
      $region10: #{scn_forward.25} parent=5 // pred_check_branch
        %201 = sbr.rel (%p198) target = $region12
      $region11: #{scn_forward.25} parent=5 // pred_region
        %s202 = ssub.s32 %s15, 1
        // Predicated region
        $region13: #{scn_forward.25} parent=11 // pred_check
          %p203 = pneg %p106
        $region14: #{scn_forward.25} parent=11 // pred_check_branch
          %205 = sbr.rel (%p203) target = $region16
        $region15: #{scn_forward.25} parent=11 // pred_region
          _
        $region16: #{scn_forward.25} parent=11 // pred_fallthru
          _
      $region12: #{scn_forward.25} parent=5 // pred_fallthru
        _
      %p206 = scmp.lt.s32.totalorder %s15, 4
      // Predicated region
      $region17: #{scn_forward.25} parent=5 // pred_check
        %p207 = pneg %p206
      $region18: #{scn_forward.25} parent=5 // pred_check_branch
        %209 = sbr.rel (%p207) target = $region20
      $region19: #{scn_forward.25} parent=5 // pred_region
        // Predicated region
        $region21: #{scn_forward.25} parent=19 // pred_check
          %p210 = pneg %p49
        $region22: #{scn_forward.25} parent=19 // pred_check_branch
          %212 = sbr.rel (%p210) target = $region24
        $region23: #{scn_forward.25} parent=19 // pred_region
          %p213 = scmp.lt.s32.totalorder %s22, 1
          %s214 = scalar_select %p213, %s22, 1
          %p215 = scmp.lt.s32.totalorder %s23, 2
          %s216 = scalar_select %p215, %s23, 2
          %s217 = smul.addr %s216, 16
          %s218 = smul.addr %s214, 48
          %s219 = sadd.s32 %s217, %s218
          %s220 = smul.addr %s219, 4
          %s221 = scalar_lea.vmem %s0, %s220
        $region24: #{scn_forward.25} parent=19 // pred_fallthru
          _
        // Predicated region
        $region25: #{scn_forward.25} parent=19 // pred_check
          %p222 = pneg %p79
        $region26: #{scn_forward.25} parent=19 // pred_check_branch
          %224 = sbr.rel (%p222) target = $region28
        $region27: #{scn_forward.25} parent=19 // pred_region
          %s225 = sadd.s32 %s23, 1
          %p226 = scmp.lt.s32.totalorder %s22, 1
          %s227 = scalar_select %p226, %s22, 1
          %p228 = scmp.lt.s32.totalorder %s225, 2
          %s229 = scalar_select %p228, %s225, 2
          %s230 = smul.addr %s229, 16
          %s231 = smul.addr %s227, 48
          %s232 = sadd.s32 %s230, %s231
          %s233 = smul.addr %s232, 4
          %s234 = scalar_lea.vmem %s1, %s233
          %s235 = sadd.s32 %s23, 1
        $region28: #{scn_forward.25} parent=19 // pred_fallthru
          _
        // Predicated region
        $region29: #{scn_forward.25} parent=19 // pred_check
          %p236 = pneg %p126
        $region30: #{scn_forward.25} parent=19 // pred_check_branch
          %238 = sbr.rel (%p236) target = $region32
        $region31: #{scn_forward.25} parent=19 // pred_region
          %s239 = smul.u32 16, %s23
          %p240 = scmp.lt.s32.totalorder %s239, 31
          %s241 = scalar_select %p240, %s239, 31
          %s242 = scalar_lea.vmem %s3, %s241
          %s243 = smul.u32 16, %s23
        $region32: #{scn_forward.25} parent=19 // pred_fallthru
          _
      $region20: #{scn_forward.25} parent=5 // pred_fallthru
        _
      %p244 = scmp.le.s32.totalorder 1, %s15
      %p245 = scmp.lt.s32.totalorder %s15, 5
      %p246 = pnand %p244, %p245
      %p247 = pneg %p246
      // Predicated region
      $region33: #{scn_forward.25} parent=5 // pred_check
        _
      $region34: #{scn_forward.25} parent=5 // pred_check_branch
        %249 = sbr.rel (%p246) target = $region36
      $region35: #{scn_forward.25} parent=5 // pred_region
        %s250 = ssub.s32 %s15, 1
        %p251 = scmp.lt.s32.totalorder %s24, 1
        %s252 = scalar_select %p251, %s24, 1
        %p253 = scmp.lt.s32.totalorder %s25, 2
        %s254 = scalar_select %p253, %s25, 2
        %s255 = smul.addr %s254, 16
        %s256 = smul.addr %s252, 48
        %s257 = sadd.s32 %s255, %s256
        %s258 = smul.addr %s257, 4
        %s259 = scalar_lea.vmem %s0, %s258
        %p260 = pneg %p55
        %p261 = pneg %p52
        %s262 = sadd.s32 %s25, 1
        %p263 = scmp.lt.s32.totalorder %s24, 1
        %s264 = scalar_select %p263, %s24, 1
        %p265 = scmp.lt.s32.totalorder %s262, 2
        %s266 = scalar_select %p265, %s262, 2
        %s267 = smul.addr %s266, 16
        %s268 = smul.addr %s264, 48
        %s269 = sadd.s32 %s267, %s268
        %s270 = smul.addr %s269, 4
        %s271 = scalar_lea.vmem %s1, %s270
        %p272 = pneg %p85
        %p273 = pneg %p82
        %p274 = pneg %p106
        %p275 = pneg %p103
        %s276 = smul.u32 16, %s25
        %p277 = scmp.lt.s32.totalorder %s276, 31
        %s278 = scalar_select %p277, %s276, 31
        %s279 = scalar_lea.vmem %s3, %s278
        %p280 = pneg %p132
        %p281 = pneg %p129
        %p282 = pneg %p160
        %p283 = pneg %p157
        %s284 = smul.u32 16, %s25
        %p285 = scmp.lt.s32.totalorder %s24, 1
        %s286 = scalar_select %p285, %s24, 1
        %p287 = scmp.lt.s32.totalorder %s284, 31
        %s288 = scalar_select %p287, %s284, 31
        %s289 = smul.addr %s286, 32
        %s290 = sadd.s32 %s288, %s289
        %s291 = smul.addr %s290, 8
        %s292 = scalar_lea.vmem %s4, %s291
        %p293 = pneg %p188
        %p294 = pneg %p185
        %s295 = sand.u32 %s175, 1
        %s296 = scalar_lea.sflag [#allocation5], %s295
        %s297 = sand.u32 %s175, 1
        %s298 = smul.addr %s297, 8
        %s299 = scalar_lea.vmem [#allocation4], %s298
        %p300 = scmp.lt.s32.totalorder %s24, 1
        %s301 = scalar_select %p300, %s24, 1
        %p302 = scmp.lt.s32.totalorder %s25, 2
        %s303 = scalar_select %p302, %s25, 2
        %s304 = smul.addr %s303, 16
        %s305 = smul.addr %s301, 48
        %s306 = sadd.s32 %s304, %s305
        %s307 = smul.addr %s306, 4
        %s308 = scalar_lea.vmem %s0, %s307
        %s309 = sadd.s32 %s25, 1
        %p310 = scmp.lt.s32.totalorder %s24, 1
        %s311 = scalar_select %p310, %s24, 1
        %p312 = scmp.lt.s32.totalorder %s309, 2
        %s313 = scalar_select %p312, %s309, 2
        %s314 = smul.addr %s313, 16
        %s315 = smul.addr %s311, 48
        %s316 = sadd.s32 %s314, %s315
        %s317 = smul.addr %s316, 4
        %s318 = scalar_lea.vmem %s1, %s317
        %s319 = sadd.s32 %s25, 1
        %s320 = smul.u32 16, %s25
        %p321 = scmp.lt.s32.totalorder %s320, 31
        %s322 = scalar_select %p321, %s320, 31
        %s323 = scalar_lea.vmem %s3, %s322
        %s324 = smul.u32 16, %s25
        %s325 = smul.u32 16, %s25
        %p326 = scmp.lt.s32.totalorder %s24, 1
        %s327 = scalar_select %p326, %s24, 1
        %p328 = scmp.lt.s32.totalorder %s325, 31
        %s329 = scalar_select %p328, %s325, 31
        %s330 = smul.addr %s327, 32
        %s331 = sadd.s32 %s329, %s330
        %s332 = smul.addr %s331, 8
        %s333 = scalar_lea.vmem %s4, %s332
        %s334 = smul.u32 16, %s25
        %v335 = vld [vmem:[%s308] sm:$0xff]
        %v336 = vld [vmem:[%s308 + $0x8] sm:$0xff]
        %v337 = vld [vmem:[%s308 + $0x10] sm:$0xff]
        %v338 = vld [vmem:[%s308 + $0x18] sm:$0xff]
        %v339 = vld [vmem:[%s308 + $0x20] sm:$0xff]
        %v340 = vld [vmem:[%s308 + $0x28] sm:$0xff]
        %v341 = vld [vmem:[%s308 + $0x30] sm:$0xff]
        %v342 = vld [vmem:[%s308 + $0x38] sm:$0xff]
        %343 = vst [vmem:[#allocation2] sm:$0xff] %v335
        %344 = vst [vmem:[#allocation2 + $0x8] sm:$0xff] %v336
        %345 = vst [vmem:[#allocation2 + $0x10] sm:$0xff] %v337
        %346 = vst [vmem:[#allocation2 + $0x18] sm:$0xff] %v338
        %347 = vst [vmem:[#allocation2 + $0x20] sm:$0xff] %v339
        %348 = vst [vmem:[#allocation2 + $0x28] sm:$0xff] %v340
        %349 = vst [vmem:[#allocation2 + $0x30] sm:$0xff] %v341
        %350 = vst [vmem:[#allocation2 + $0x38] sm:$0xff] %v342
        %v351 = vld [vmem:[#allocation2] sm:$0xff]
        %v352 = vld [vmem:[#allocation2 + $0x8] sm:$0xff]
        %v353 = vld [vmem:[#allocation2 + $0x10] sm:$0xff]
        %v354 = vld [vmem:[#allocation2 + $0x18] sm:$0xff]
        %v355 = vld [vmem:[#allocation2 + $0x20] sm:$0xff]
        %v356 = vld [vmem:[#allocation2 + $0x28] sm:$0xff]
        %v357 = vld [vmem:[#allocation2 + $0x30] sm:$0xff]
        %v358 = vld [vmem:[#allocation2 + $0x38] sm:$0xff]
        %v359 = vunpack.c.l.bf16 %v351
        %v360 = vunpack.c.h.bf16 %v351
        %v361 = vunpack.c.l.bf16 %v352
        %v362 = vunpack.c.h.bf16 %v352
        %v363 = vunpack.c.l.bf16 %v353
        %v364 = vunpack.c.h.bf16 %v353
        %v365 = vunpack.c.l.bf16 %v354
        %v366 = vunpack.c.h.bf16 %v354
        %v367 = vunpack.c.l.bf16 %v355
        %v368 = vunpack.c.h.bf16 %v355
        %v369 = vunpack.c.l.bf16 %v356
        %v370 = vunpack.c.h.bf16 %v356
        %v371 = vunpack.c.l.bf16 %v357
        %v372 = vunpack.c.h.bf16 %v357
        %v373 = vunpack.c.l.bf16 %v358
        %v374 = vunpack.c.h.bf16 %v358
        %375 = vst [vmem:[#allocation3] sm:$0xff] %v359
        %376 = vst [vmem:[#allocation3 + $0x8] sm:$0xff] %v360
        %377 = vst [vmem:[#allocation3 + $0x10] sm:$0xff] %v361
        %378 = vst [vmem:[#allocation3 + $0x18] sm:$0xff] %v362
        %379 = vst [vmem:[#allocation3 + $0x20] sm:$0xff] %v363
        %380 = vst [vmem:[#allocation3 + $0x28] sm:$0xff] %v364
        %381 = vst [vmem:[#allocation3 + $0x30] sm:$0xff] %v365
        %382 = vst [vmem:[#allocation3 + $0x38] sm:$0xff] %v366
        %383 = vst [vmem:[#allocation3 + $0x40] sm:$0xff] %v367
        %384 = vst [vmem:[#allocation3 + $0x48] sm:$0xff] %v368
        %385 = vst [vmem:[#allocation3 + $0x50] sm:$0xff] %v369
        %386 = vst [vmem:[#allocation3 + $0x58] sm:$0xff] %v370
        %387 = vst [vmem:[#allocation3 + $0x60] sm:$0xff] %v371
        %388 = vst [vmem:[#allocation3 + $0x68] sm:$0xff] %v372
        %389 = vst [vmem:[#allocation3 + $0x70] sm:$0xff] %v373
        %390 = vst [vmem:[#allocation3 + $0x78] sm:$0xff] %v374
        %v391 = vld [vmem:[%s2] sm:$0xff]
        %v392 = vld [vmem:[#allocation3] sm:$0xff]
        %v393 = vld [vmem:[#allocation3 + $0x8] sm:$0xff]
        %v394 = vld [vmem:[#allocation3 + $0x10] sm:$0xff]
        %v395 = vld [vmem:[#allocation3 + $0x18] sm:$0xff]
        %v396 = vld [vmem:[#allocation3 + $0x20] sm:$0xff]
        %v397 = vld [vmem:[#allocation3 + $0x28] sm:$0xff]
        %v398 = vld [vmem:[#allocation3 + $0x30] sm:$0xff]
        %v399 = vld [vmem:[#allocation3 + $0x38] sm:$0xff]
        %v400 = vld [vmem:[#allocation3 + $0x40] sm:$0xff]
        %v401 = vld [vmem:[#allocation3 + $0x48] sm:$0xff]
        %v402 = vld [vmem:[#allocation3 + $0x50] sm:$0xff]
        %v403 = vld [vmem:[#allocation3 + $0x58] sm:$0xff]
        %v404 = vld [vmem:[#allocation3 + $0x60] sm:$0xff]
        %v405 = vld [vmem:[#allocation3 + $0x68] sm:$0xff]
        %v406 = vld [vmem:[#allocation3 + $0x70] sm:$0xff]
        %v407 = vld [vmem:[#allocation3 + $0x78] sm:$0xff]
        %vm408 = vcmask 64512
        %v410 = vsel %vm408, %v391, 0
        %412 = vmatprep.subr.mxu0 %v393
        %413 = vmatpush1.msra.mxu0 %v392
        %414 = vmatprep.subr.mxu0 0.0
        %415 = vmatpush1.msra.mxu0 0.0
        %416 = vmatprep.subr.mxu0 0.0
        %417 = vmatpush1.msra.mxu0 0.0
        %418 = vmatprep.subr.mxu0 0.0
        %419 = vmatpush1.msra.mxu0 0.0
        %420 = vmatprep.subr.mxu0 0.0
        %421 = vmatpush1.msra.mxu0 0.0
        %422 = vmatprep.subr.mxu0 0.0
        %423 = vmatpush1.msra.mxu0 0.0
        %424 = vmatprep.subr.mxu0 0.0
        %425 = vmatpush1.msra.mxu0 0.0
        %426 = vmatprep.subr.mxu0 0.0
        %427 = vmatpush1.msra.mxu0 0.0
        %428 = vmatprep.subr.mxu0 0.0
        %429 = vmatpush1.msra.mxu0 0.0
        %430 = vmatprep.subr.mxu0 0.0
        %431 = vmatpush1.msra.mxu0 0.0
        %432 = vmatprep.subr.mxu0 0.0
        %433 = vmatpush1.msra.mxu0 0.0
        %434 = vmatprep.subr.mxu0 0.0
        %435 = vmatpush1.msra.mxu0 0.0
        %436 = vmatprep.subr.mxu0 0.0
        %437 = vmatpush1.msra.mxu0 0.0
        %438 = vmatprep.subr.mxu0 0.0
        %439 = vmatpush1.msra.mxu0 0.0
        %440 = vmatprep.subr.mxu0 0.0
        %441 = vmatpush1.msra.mxu0 0.0
        %442 = vmatprep.subr.mxu0 0.0
        %443 = vmatpush1.msra.mxu0 0.0
        %444 = vmatprep.subr.mxu0 0.0
        %445 = vmatpush1.msra.mxu0 0.0
        %446 = vmatprep.subr.mxu0 0.0
        %447 = vmatpush1.msra.mxu0 0.0
        %448 = vmatprep.subr.mxu0 0.0
        %449 = vmatpush1.msra.mxu0 0.0
        %450 = vmatprep.subr.mxu0 0.0
        %451 = vmatpush1.msra.mxu0 0.0
        %452 = vmatprep.subr.mxu0 0.0
        %453 = vmatpush1.msra.mxu0 0.0
        %454 = vmatprep.subr.mxu0 0.0
        %455 = vmatpush1.msra.mxu0 0.0
        %456 = vmatprep.subr.mxu0 0.0
        %457 = vmatpush1.msra.mxu0 0.0
        %458 = vmatprep.subr.mxu0 0.0
        %459 = vmatpush1.msra.mxu0 0.0
        %460 = vmatprep.subr.mxu0 0.0
        %461 = vmatpush1.msra.mxu0 0.0
        %462 = vmatprep.subr.mxu0 0.0
        %463 = vmatpush1.msra.mxu0 0.0
        %464 = vmatprep.subr.mxu0 0.0
        %465 = vmatpush1.msra.mxu0 0.0
        %466 = vmatprep.subr.mxu0 0.0
        %467 = vmatpush1.msra.mxu0 0.0
        %468 = vmatprep.subr.mxu0 0.0
        %469 = vmatpush1.msra.mxu0 0.0
        %470 = vmatprep.subr.mxu0 0.0
        %471 = vmatpush1.msra.mxu0 0.0
        %472 = vmatprep.subr.mxu0 0.0
        %473 = vmatpush1.msra.mxu0 0.0
        %474 = vmatprep.subr.mxu0 0.0
        %475 = vmatpush1.msra.mxu0 0.0
        %476 = vmatprep.mubr.f32.mxu0 0.0
        %477 = vmatmul.mubr.f32.gmra.mrb[0].mxu0 %v410
        %v478 = vpop.f32.mrb[0].mxu0
        %v479 = vadd.f32 0.0, %v478
        %v480 = vpop.f32.mrb[0].mxu0
        %v481 = vadd.f32 0.0, %v480
        %482 = vdwg.mxu0
        %483 = vmatprep.subr.mxu0 %v395
        %484 = vmatpush1.msra.mxu0 %v394
        %485 = vmatprep.subr.mxu0 0.0
        %486 = vmatpush1.msra.mxu0 0.0
        %487 = vmatprep.subr.mxu0 0.0
        %488 = vmatpush1.msra.mxu0 0.0
        %489 = vmatprep.subr.mxu0 0.0
        %490 = vmatpush1.msra.mxu0 0.0
        %491 = vmatprep.subr.mxu0 0.0
        %492 = vmatpush1.msra.mxu0 0.0
        %493 = vmatprep.subr.mxu0 0.0
        %494 = vmatpush1.msra.mxu0 0.0
        %495 = vmatprep.subr.mxu0 0.0
        %496 = vmatpush1.msra.mxu0 0.0
        %497 = vmatprep.subr.mxu0 0.0
        %498 = vmatpush1.msra.mxu0 0.0
        %499 = vmatprep.subr.mxu0 0.0
        %500 = vmatpush1.msra.mxu0 0.0
        %501 = vmatprep.subr.mxu0 0.0
        %502 = vmatpush1.msra.mxu0 0.0
        %503 = vmatprep.subr.mxu0 0.0
        %504 = vmatpush1.msra.mxu0 0.0
        %505 = vmatprep.subr.mxu0 0.0
        %506 = vmatpush1.msra.mxu0 0.0
        %507 = vmatprep.subr.mxu0 0.0
        %508 = vmatpush1.msra.mxu0 0.0
        %509 = vmatprep.subr.mxu0 0.0
        %510 = vmatpush1.msra.mxu0 0.0
        %511 = vmatprep.subr.mxu0 0.0
        %512 = vmatpush1.msra.mxu0 0.0
        %513 = vmatprep.subr.mxu0 0.0
        %514 = vmatpush1.msra.mxu0 0.0
        %515 = vmatprep.subr.mxu0 0.0
        %516 = vmatpush1.msra.mxu0 0.0
        %517 = vmatprep.subr.mxu0 0.0
        %518 = vmatpush1.msra.mxu0 0.0
        %519 = vmatprep.subr.mxu0 0.0
        %520 = vmatpush1.msra.mxu0 0.0
        %521 = vmatprep.subr.mxu0 0.0
        %522 = vmatpush1.msra.mxu0 0.0
        %523 = vmatprep.subr.mxu0 0.0
        %524 = vmatpush1.msra.mxu0 0.0
        %525 = vmatprep.subr.mxu0 0.0
        %526 = vmatpush1.msra.mxu0 0.0
        %527 = vmatprep.subr.mxu0 0.0
        %528 = vmatpush1.msra.mxu0 0.0
        %529 = vmatprep.subr.mxu0 0.0
        %530 = vmatpush1.msra.mxu0 0.0
        %531 = vmatprep.subr.mxu0 0.0
        %532 = vmatpush1.msra.mxu0 0.0
        %533 = vmatprep.subr.mxu0 0.0
        %534 = vmatpush1.msra.mxu0 0.0
        %535 = vmatprep.subr.mxu0 0.0
        %536 = vmatpush1.msra.mxu0 0.0
        %537 = vmatprep.subr.mxu0 0.0
        %538 = vmatpush1.msra.mxu0 0.0
        %539 = vmatprep.subr.mxu0 0.0
        %540 = vmatpush1.msra.mxu0 0.0
        %541 = vmatprep.subr.mxu0 0.0
        %542 = vmatpush1.msra.mxu0 0.0
        %543 = vmatprep.subr.mxu0 0.0
        %544 = vmatpush1.msra.mxu0 0.0
        %545 = vmatprep.subr.mxu0 0.0
        %546 = vmatpush1.msra.mxu0 0.0
        %547 = vmatprep.mubr.f32.mxu0 0.0
        %548 = vmatmul.mubr.f32.gmra.mrb[0].mxu0 %v410
        %v549 = vpop.f32.mrb[0].mxu0
        %v550 = vadd.f32 0.0, %v549
        %v551 = vpop.f32.mrb[0].mxu0
        %v552 = vadd.f32 0.0, %v551
        %553 = vdwg.mxu0
        %554 = vmatprep.subr.mxu0 %v397
        %555 = vmatpush1.msra.mxu0 %v396
        %556 = vmatprep.subr.mxu0 0.0
        %557 = vmatpush1.msra.mxu0 0.0
        %558 = vmatprep.subr.mxu0 0.0
        %559 = vmatpush1.msra.mxu0 0.0
        %560 = vmatprep.subr.mxu0 0.0
        %561 = vmatpush1.msra.mxu0 0.0
        %562 = vmatprep.subr.mxu0 0.0
        %563 = vmatpush1.msra.mxu0 0.0
        %564 = vmatprep.subr.mxu0 0.0
        %565 = vmatpush1.msra.mxu0 0.0
        %566 = vmatprep.subr.mxu0 0.0
        %567 = vmatpush1.msra.mxu0 0.0
        %568 = vmatprep.subr.mxu0 0.0
        %569 = vmatpush1.msra.mxu0 0.0
        %570 = vmatprep.subr.mxu0 0.0
        %571 = vmatpush1.msra.mxu0 0.0
        %572 = vmatprep.subr.mxu0 0.0
        %573 = vmatpush1.msra.mxu0 0.0
        %574 = vmatprep.subr.mxu0 0.0
        %575 = vmatpush1.msra.mxu0 0.0
        %576 = vmatprep.subr.mxu0 0.0
        %577 = vmatpush1.msra.mxu0 0.0
        %578 = vmatprep.subr.mxu0 0.0
        %579 = vmatpush1.msra.mxu0 0.0
        %580 = vmatprep.subr.mxu0 0.0
        %581 = vmatpush1.msra.mxu0 0.0
        %582 = vmatprep.subr.mxu0 0.0
        %583 = vmatpush1.msra.mxu0 0.0
        %584 = vmatprep.subr.mxu0 0.0
        %585 = vmatpush1.msra.mxu0 0.0
        %586 = vmatprep.subr.mxu0 0.0
        %587 = vmatpush1.msra.mxu0 0.0
        %588 = vmatprep.subr.mxu0 0.0
        %589 = vmatpush1.msra.mxu0 0.0
        %590 = vmatprep.subr.mxu0 0.0
        %591 = vmatpush1.msra.mxu0 0.0
        %592 = vmatprep.subr.mxu0 0.0
        %593 = vmatpush1.msra.mxu0 0.0
        %594 = vmatprep.subr.mxu0 0.0
        %595 = vmatpush1.msra.mxu0 0.0
        %596 = vmatprep.subr.mxu0 0.0
        %597 = vmatpush1.msra.mxu0 0.0
        %598 = vmatprep.subr.mxu0 0.0
        %599 = vmatpush1.msra.mxu0 0.0
        %600 = vmatprep.subr.mxu0 0.0
        %601 = vmatpush1.msra.mxu0 0.0
        %602 = vmatprep.subr.mxu0 0.0
        %603 = vmatpush1.msra.mxu0 0.0
        %604 = vmatprep.subr.mxu0 0.0
        %605 = vmatpush1.msra.mxu0 0.0
        %606 = vmatprep.subr.mxu0 0.0
        %607 = vmatpush1.msra.mxu0 0.0
        %608 = vmatprep.subr.mxu0 0.0
        %609 = vmatpush1.msra.mxu0 0.0
        %610 = vmatprep.subr.mxu0 0.0
        %611 = vmatpush1.msra.mxu0 0.0
        %612 = vmatprep.subr.mxu0 0.0
        %613 = vmatpush1.msra.mxu0 0.0
        %614 = vmatprep.subr.mxu0 0.0
        %615 = vmatpush1.msra.mxu0 0.0
        %616 = vmatprep.subr.mxu0 0.0
        %617 = vmatpush1.msra.mxu0 0.0
        %618 = vmatprep.mubr.f32.mxu0 0.0
        %619 = vmatmul.mubr.f32.gmra.mrb[0].mxu0 %v410
        %v620 = vpop.f32.mrb[0].mxu0
        %v621 = vadd.f32 0.0, %v620
        %v622 = vpop.f32.mrb[0].mxu0
        %v623 = vadd.f32 0.0, %v622
        %624 = vdwg.mxu0
        %625 = vmatprep.subr.mxu0 %v399
        %626 = vmatpush1.msra.mxu0 %v398
        %627 = vmatprep.subr.mxu0 0.0
        %628 = vmatpush1.msra.mxu0 0.0
        %629 = vmatprep.subr.mxu0 0.0
        %630 = vmatpush1.msra.mxu0 0.0
        %631 = vmatprep.subr.mxu0 0.0
        %632 = vmatpush1.msra.mxu0 0.0
        %633 = vmatprep.subr.mxu0 0.0
        %634 = vmatpush1.msra.mxu0 0.0
        %635 = vmatprep.subr.mxu0 0.0
        %636 = vmatpush1.msra.mxu0 0.0
        %637 = vmatprep.subr.mxu0 0.0
        %638 = vmatpush1.msra.mxu0 0.0
        %639 = vmatprep.subr.mxu0 0.0
        %640 = vmatpush1.msra.mxu0 0.0
        %641 = vmatprep.subr.mxu0 0.0
        %642 = vmatpush1.msra.mxu0 0.0
        %643 = vmatprep.subr.mxu0 0.0
        %644 = vmatpush1.msra.mxu0 0.0
        %645 = vmatprep.subr.mxu0 0.0
        %646 = vmatpush1.msra.mxu0 0.0
        %647 = vmatprep.subr.mxu0 0.0
        %648 = vmatpush1.msra.mxu0 0.0
        %649 = vmatprep.subr.mxu0 0.0
        %650 = vmatpush1.msra.mxu0 0.0
        %651 = vmatprep.subr.mxu0 0.0
        %652 = vmatpush1.msra.mxu0 0.0
        %653 = vmatprep.subr.mxu0 0.0
        %654 = vmatpush1.msra.mxu0 0.0
        %655 = vmatprep.subr.mxu0 0.0
        %656 = vmatpush1.msra.mxu0 0.0
        %657 = vmatprep.subr.mxu0 0.0
        %658 = vmatpush1.msra.mxu0 0.0
        %659 = vmatprep.subr.mxu0 0.0
        %660 = vmatpush1.msra.mxu0 0.0
        %661 = vmatprep.subr.mxu0 0.0
        %662 = vmatpush1.msra.mxu0 0.0
        %663 = vmatprep.subr.mxu0 0.0
        %664 = vmatpush1.msra.mxu0 0.0
        %665 = vmatprep.subr.mxu0 0.0
        %666 = vmatpush1.msra.mxu0 0.0
        %667 = vmatprep.subr.mxu0 0.0
        %668 = vmatpush1.msra.mxu0 0.0
        %669 = vmatprep.subr.mxu0 0.0
        %670 = vmatpush1.msra.mxu0 0.0
        %671 = vmatprep.subr.mxu0 0.0
        %672 = vmatpush1.msra.mxu0 0.0
        %673 = vmatprep.subr.mxu0 0.0
        %674 = vmatpush1.msra.mxu0 0.0
        %675 = vmatprep.subr.mxu0 0.0
        %676 = vmatpush1.msra.mxu0 0.0
        %677 = vmatprep.subr.mxu0 0.0
        %678 = vmatpush1.msra.mxu0 0.0
        %679 = vmatprep.subr.mxu0 0.0
        %680 = vmatpush1.msra.mxu0 0.0
        %681 = vmatprep.subr.mxu0 0.0
        %682 = vmatpush1.msra.mxu0 0.0
        %683 = vmatprep.subr.mxu0 0.0
        %684 = vmatpush1.msra.mxu0 0.0
        %685 = vmatprep.subr.mxu0 0.0
        %686 = vmatpush1.msra.mxu0 0.0
        %687 = vmatprep.subr.mxu0 0.0
        %688 = vmatpush1.msra.mxu0 0.0
        %689 = vmatprep.mubr.f32.mxu0 0.0
        %690 = vmatmul.mubr.f32.gmra.mrb[0].mxu0 %v410
        %v691 = vpop.f32.mrb[0].mxu0
        %v692 = vadd.f32 0.0, %v691
        %v693 = vpop.f32.mrb[0].mxu0
        %v694 = vadd.f32 0.0, %v693
        %695 = vdwg.mxu0
        %696 = vmatprep.subr.mxu0 %v401
        %697 = vmatpush1.msra.mxu0 %v400
        %698 = vmatprep.subr.mxu0 0.0
        %699 = vmatpush1.msra.mxu0 0.0
        %700 = vmatprep.subr.mxu0 0.0
        %701 = vmatpush1.msra.mxu0 0.0
        %702 = vmatprep.subr.mxu0 0.0
        %703 = vmatpush1.msra.mxu0 0.0
        %704 = vmatprep.subr.mxu0 0.0
        %705 = vmatpush1.msra.mxu0 0.0
        %706 = vmatprep.subr.mxu0 0.0
        %707 = vmatpush1.msra.mxu0 0.0
        %708 = vmatprep.subr.mxu0 0.0
        %709 = vmatpush1.msra.mxu0 0.0
        %710 = vmatprep.subr.mxu0 0.0
        %711 = vmatpush1.msra.mxu0 0.0
        %712 = vmatprep.subr.mxu0 0.0
        %713 = vmatpush1.msra.mxu0 0.0
        %714 = vmatprep.subr.mxu0 0.0
        %715 = vmatpush1.msra.mxu0 0.0
        %716 = vmatprep.subr.mxu0 0.0
        %717 = vmatpush1.msra.mxu0 0.0
        %718 = vmatprep.subr.mxu0 0.0
        %719 = vmatpush1.msra.mxu0 0.0
        %720 = vmatprep.subr.mxu0 0.0
        %721 = vmatpush1.msra.mxu0 0.0
        %722 = vmatprep.subr.mxu0 0.0
        %723 = vmatpush1.msra.mxu0 0.0
        %724 = vmatprep.subr.mxu0 0.0
        %725 = vmatpush1.msra.mxu0 0.0
        %726 = vmatprep.subr.mxu0 0.0
        %727 = vmatpush1.msra.mxu0 0.0
        %728 = vmatprep.subr.mxu0 0.0
        %729 = vmatpush1.msra.mxu0 0.0
        %730 = vmatprep.subr.mxu0 0.0
        %731 = vmatpush1.msra.mxu0 0.0
        %732 = vmatprep.subr.mxu0 0.0
        %733 = vmatpush1.msra.mxu0 0.0
        %734 = vmatprep.subr.mxu0 0.0
        %735 = vmatpush1.msra.mxu0 0.0
        %736 = vmatprep.subr.mxu0 0.0
        %737 = vmatpush1.msra.mxu0 0.0
        %738 = vmatprep.subr.mxu0 0.0
        %739 = vmatpush1.msra.mxu0 0.0
        %740 = vmatprep.subr.mxu0 0.0
        %741 = vmatpush1.msra.mxu0 0.0
        %742 = vmatprep.subr.mxu0 0.0
        %743 = vmatpush1.msra.mxu0 0.0
        %744 = vmatprep.subr.mxu0 0.0
        %745 = vmatpush1.msra.mxu0 0.0
        %746 = vmatprep.subr.mxu0 0.0
        %747 = vmatpush1.msra.mxu0 0.0
        %748 = vmatprep.subr.mxu0 0.0
        %749 = vmatpush1.msra.mxu0 0.0
        %750 = vmatprep.subr.mxu0 0.0
        %751 = vmatpush1.msra.mxu0 0.0
        %752 = vmatprep.subr.mxu0 0.0
        %753 = vmatpush1.msra.mxu0 0.0
        %754 = vmatprep.subr.mxu0 0.0
        %755 = vmatpush1.msra.mxu0 0.0
        %756 = vmatprep.subr.mxu0 0.0
        %757 = vmatpush1.msra.mxu0 0.0
        %758 = vmatprep.subr.mxu0 0.0
        %759 = vmatpush1.msra.mxu0 0.0
        %760 = vmatprep.mubr.f32.mxu0 0.0
        %761 = vmatmul.mubr.f32.gmra.mrb[0].mxu0 %v410
        %v762 = vpop.f32.mrb[0].mxu0
        %v763 = vadd.f32 0.0, %v762
        %v764 = vpop.f32.mrb[0].mxu0
        %v765 = vadd.f32 0.0, %v764
        %766 = vdwg.mxu0
        %767 = vmatprep.subr.mxu0 %v403
        %768 = vmatpush1.msra.mxu0 %v402
        %769 = vmatprep.subr.mxu0 0.0
        %770 = vmatpush1.msra.mxu0 0.0
        %771 = vmatprep.subr.mxu0 0.0
        %772 = vmatpush1.msra.mxu0 0.0
        %773 = vmatprep.subr.mxu0 0.0
        %774 = vmatpush1.msra.mxu0 0.0
        %775 = vmatprep.subr.mxu0 0.0
        %776 = vmatpush1.msra.mxu0 0.0
        %777 = vmatprep.subr.mxu0 0.0
        %778 = vmatpush1.msra.mxu0 0.0
        %779 = vmatprep.subr.mxu0 0.0
        %780 = vmatpush1.msra.mxu0 0.0
        %781 = vmatprep.subr.mxu0 0.0
        %782 = vmatpush1.msra.mxu0 0.0
        %783 = vmatprep.subr.mxu0 0.0
        %784 = vmatpush1.msra.mxu0 0.0
        %785 = vmatprep.subr.mxu0 0.0
        %786 = vmatpush1.msra.mxu0 0.0
        %787 = vmatprep.subr.mxu0 0.0
        %788 = vmatpush1.msra.mxu0 0.0
        %789 = vmatprep.subr.mxu0 0.0
        %790 = vmatpush1.msra.mxu0 0.0
        %791 = vmatprep.subr.mxu0 0.0
        %792 = vmatpush1.msra.mxu0 0.0
        %793 = vmatprep.subr.mxu0 0.0
        %794 = vmatpush1.msra.mxu0 0.0
        %795 = vmatprep.subr.mxu0 0.0
        %796 = vmatpush1.msra.mxu0 0.0
        %797 = vmatprep.subr.mxu0 0.0
        %798 = vmatpush1.msra.mxu0 0.0
        %799 = vmatprep.subr.mxu0 0.0
        %800 = vmatpush1.msra.mxu0 0.0
        %801 = vmatprep.subr.mxu0 0.0
        %802 = vmatpush1.msra.mxu0 0.0
        %803 = vmatprep.subr.mxu0 0.0
        %804 = vmatpush1.msra.mxu0 0.0
        %805 = vmatprep.subr.mxu0 0.0
        %806 = vmatpush1.msra.mxu0 0.0
        %807 = vmatprep.subr.mxu0 0.0
        %808 = vmatpush1.msra.mxu0 0.0
        %809 = vmatprep.subr.mxu0 0.0
        %810 = vmatpush1.msra.mxu0 0.0
        %811 = vmatprep.subr.mxu0 0.0
        %812 = vmatpush1.msra.mxu0 0.0
        %813 = vmatprep.subr.mxu0 0.0
        %814 = vmatpush1.msra.mxu0 0.0
        %815 = vmatprep.subr.mxu0 0.0
        %816 = vmatpush1.msra.mxu0 0.0
        %817 = vmatprep.subr.mxu0 0.0
        %818 = vmatpush1.msra.mxu0 0.0
        %819 = vmatprep.subr.mxu0 0.0
        %820 = vmatpush1.msra.mxu0 0.0
        %821 = vmatprep.subr.mxu0 0.0
        %822 = vmatpush1.msra.mxu0 0.0
        %823 = vmatprep.subr.mxu0 0.0
        %824 = vmatpush1.msra.mxu0 0.0
        %825 = vmatprep.subr.mxu0 0.0
        %826 = vmatpush1.msra.mxu0 0.0
        %827 = vmatprep.subr.mxu0 0.0
        %828 = vmatpush1.msra.mxu0 0.0
        %829 = vmatprep.subr.mxu0 0.0
        %830 = vmatpush1.msra.mxu0 0.0
        %831 = vmatprep.mubr.f32.mxu0 0.0
        %832 = vmatmul.mubr.f32.gmra.mrb[0].mxu0 %v410
        %v833 = vpop.f32.mrb[0].mxu0
        %v834 = vadd.f32 0.0, %v833
        %v835 = vpop.f32.mrb[0].mxu0
        %v836 = vadd.f32 0.0, %v835
        %837 = vdwg.mxu0
        %838 = vmatprep.subr.mxu0 %v405
        %839 = vmatpush1.msra.mxu0 %v404
        %840 = vmatprep.subr.mxu0 0.0
        %841 = vmatpush1.msra.mxu0 0.0
        %842 = vmatprep.subr.mxu0 0.0
        %843 = vmatpush1.msra.mxu0 0.0
        %844 = vmatprep.subr.mxu0 0.0
        %845 = vmatpush1.msra.mxu0 0.0
        %846 = vmatprep.subr.mxu0 0.0
        %847 = vmatpush1.msra.mxu0 0.0
        %848 = vmatprep.subr.mxu0 0.0
        %849 = vmatpush1.msra.mxu0 0.0
        %850 = vmatprep.subr.mxu0 0.0
        %851 = vmatpush1.msra.mxu0 0.0
        %852 = vmatprep.subr.mxu0 0.0
        %853 = vmatpush1.msra.mxu0 0.0
        %854 = vmatprep.subr.mxu0 0.0
        %855 = vmatpush1.msra.mxu0 0.0
        %856 = vmatprep.subr.mxu0 0.0
        %857 = vmatpush1.msra.mxu0 0.0
        %858 = vmatprep.subr.mxu0 0.0
        %859 = vmatpush1.msra.mxu0 0.0
        %860 = vmatprep.subr.mxu0 0.0
        %861 = vmatpush1.msra.mxu0 0.0
        %862 = vmatprep.subr.mxu0 0.0
        %863 = vmatpush1.msra.mxu0 0.0
        %864 = vmatprep.subr.mxu0 0.0
        %865 = vmatpush1.msra.mxu0 0.0
        %866 = vmatprep.subr.mxu0 0.0
        %867 = vmatpush1.msra.mxu0 0.0
        %868 = vmatprep.subr.mxu0 0.0
        %869 = vmatpush1.msra.mxu0 0.0
        %870 = vmatprep.subr.mxu0 0.0
        %871 = vmatpush1.msra.mxu0 0.0
        %872 = vmatprep.subr.mxu0 0.0
        %873 = vmatpush1.msra.mxu0 0.0
        %874 = vmatprep.subr.mxu0 0.0
        %875 = vmatpush1.msra.mxu0 0.0
        %876 = vmatprep.subr.mxu0 0.0
        %877 = vmatpush1.msra.mxu0 0.0
        %878 = vmatprep.subr.mxu0 0.0
        %879 = vmatpush1.msra.mxu0 0.0
        %880 = vmatprep.subr.mxu0 0.0
        %881 = vmatpush1.msra.mxu0 0.0
        %882 = vmatprep.subr.mxu0 0.0
        %883 = vmatpush1.msra.mxu0 0.0
        %884 = vmatprep.subr.mxu0 0.0
        %885 = vmatpush1.msra.mxu0 0.0
        %886 = vmatprep.subr.mxu0 0.0
        %887 = vmatpush1.msra.mxu0 0.0
        %888 = vmatprep.subr.mxu0 0.0
        %889 = vmatpush1.msra.mxu0 0.0
        %890 = vmatprep.subr.mxu0 0.0
        %891 = vmatpush1.msra.mxu0 0.0
        %892 = vmatprep.subr.mxu0 0.0
        %893 = vmatpush1.msra.mxu0 0.0
        %894 = vmatprep.subr.mxu0 0.0
        %895 = vmatpush1.msra.mxu0 0.0
        %896 = vmatprep.subr.mxu0 0.0
        %897 = vmatpush1.msra.mxu0 0.0
        %898 = vmatprep.subr.mxu0 0.0
        %899 = vmatpush1.msra.mxu0 0.0
        %900 = vmatprep.subr.mxu0 0.0
        %901 = vmatpush1.msra.mxu0 0.0
        %902 = vmatprep.mubr.f32.mxu0 0.0
        %903 = vmatmul.mubr.f32.gmra.mrb[0].mxu0 %v410
        %v904 = vpop.f32.mrb[0].mxu0
        %v905 = vadd.f32 0.0, %v904
        %v906 = vpop.f32.mrb[0].mxu0
        %v907 = vadd.f32 0.0, %v906
        %908 = vdwg.mxu0
        %909 = vmatprep.subr.mxu0 %v407
        %910 = vmatpush1.msra.mxu0 %v406
        %911 = vmatprep.subr.mxu0 0.0
        %912 = vmatpush1.msra.mxu0 0.0
        %913 = vmatprep.subr.mxu0 0.0
        %914 = vmatpush1.msra.mxu0 0.0
        %915 = vmatprep.subr.mxu0 0.0
        %916 = vmatpush1.msra.mxu0 0.0
        %917 = vmatprep.subr.mxu0 0.0
        %918 = vmatpush1.msra.mxu0 0.0
        %919 = vmatprep.subr.mxu0 0.0
        %920 = vmatpush1.msra.mxu0 0.0
        %921 = vmatprep.subr.mxu0 0.0
        %922 = vmatpush1.msra.mxu0 0.0
        %923 = vmatprep.subr.mxu0 0.0
        %924 = vmatpush1.msra.mxu0 0.0
        %925 = vmatprep.subr.mxu0 0.0
        %926 = vmatpush1.msra.mxu0 0.0
        %927 = vmatprep.subr.mxu0 0.0
        %928 = vmatpush1.msra.mxu0 0.0
        %929 = vmatprep.subr.mxu0 0.0
        %930 = vmatpush1.msra.mxu0 0.0
        %931 = vmatprep.subr.mxu0 0.0
        %932 = vmatpush1.msra.mxu0 0.0
        %933 = vmatprep.subr.mxu0 0.0
        %934 = vmatpush1.msra.mxu0 0.0
        %935 = vmatprep.subr.mxu0 0.0
        %936 = vmatpush1.msra.mxu0 0.0
        %937 = vmatprep.subr.mxu0 0.0
        %938 = vmatpush1.msra.mxu0 0.0
        %939 = vmatprep.subr.mxu0 0.0
        %940 = vmatpush1.msra.mxu0 0.0
        %941 = vmatprep.subr.mxu0 0.0
        %942 = vmatpush1.msra.mxu0 0.0
        %943 = vmatprep.subr.mxu0 0.0
        %944 = vmatpush1.msra.mxu0 0.0
        %945 = vmatprep.subr.mxu0 0.0
        %946 = vmatpush1.msra.mxu0 0.0
        %947 = vmatprep.subr.mxu0 0.0
        %948 = vmatpush1.msra.mxu0 0.0
        %949 = vmatprep.subr.mxu0 0.0
        %950 = vmatpush1.msra.mxu0 0.0
        %951 = vmatprep.subr.mxu0 0.0
        %952 = vmatpush1.msra.mxu0 0.0
        %953 = vmatprep.subr.mxu0 0.0
        %954 = vmatpush1.msra.mxu0 0.0
        %955 = vmatprep.subr.mxu0 0.0
        %956 = vmatpush1.msra.mxu0 0.0
        %957 = vmatprep.subr.mxu0 0.0
        %958 = vmatpush1.msra.mxu0 0.0
        %959 = vmatprep.subr.mxu0 0.0
        %960 = vmatpush1.msra.mxu0 0.0
        %961 = vmatprep.subr.mxu0 0.0
        %962 = vmatpush1.msra.mxu0 0.0
        %963 = vmatprep.subr.mxu0 0.0
        %964 = vmatpush1.msra.mxu0 0.0
        %965 = vmatprep.subr.mxu0 0.0
        %966 = vmatpush1.msra.mxu0 0.0
        %967 = vmatprep.subr.mxu0 0.0
        %968 = vmatpush1.msra.mxu0 0.0
        %969 = vmatprep.subr.mxu0 0.0
        %970 = vmatpush1.msra.mxu0 0.0
        %971 = vmatprep.subr.mxu0 0.0
        %972 = vmatpush1.msra.mxu0 0.0
        %973 = vmatprep.mubr.f32.mxu0 0.0
        %974 = vmatmul.mubr.f32.gmra.mrb[0].mxu0 %v410
        %v975 = vpop.f32.mrb[0].mxu0
        %v976 = vadd.f32 0.0, %v975
        %v977 = vpop.f32.mrb[0].mxu0
        %v978 = vadd.f32 0.0, %v977
        %979 = vdwg.mxu0
        %v980 = vld [vmem:[%s323] sm:$0xff]
        %v981 = vld [vmem:[%s323 + $0x8] sm:$0xff]
        %v984 = vlaneseq
        %v985 = vshrl.u32 %v984, 7
        %v986 = vsub.s32 0, %v985
        %v987 = vrot.slane %v980, %v986
        %v988 = vlaneseq
        %v989 = vshrl.u32 %v988, 7
        %v990 = vsub.s32 1, %v989
        %v991 = vrot.slane %v980, %v990
        %v992 = vlaneseq
        %v993 = vshrl.u32 %v992, 7
        %v994 = vsub.s32 2, %v993
        %v995 = vrot.slane %v980, %v994
        %v996 = vlaneseq
        %v997 = vshrl.u32 %v996, 7
        %v998 = vsub.s32 3, %v997
        %v999 = vrot.slane %v980, %v998
        %v1000 = vlaneseq
        %v1001 = vshrl.u32 %v1000, 7
        %v1002 = vsub.s32 4, %v1001
        %v1003 = vrot.slane %v980, %v1002
        %v1004 = vlaneseq
        %v1005 = vshrl.u32 %v1004, 7
        %v1006 = vsub.s32 5, %v1005
        %v1007 = vrot.slane %v980, %v1006
        %v1008 = vlaneseq
        %v1009 = vshrl.u32 %v1008, 7
        %v1010 = vsub.s32 6, %v1009
        %v1011 = vrot.slane %v980, %v1010
        %v1012 = vlaneseq
        %v1013 = vshrl.u32 %v1012, 7
        %v1014 = vsub.s32 7, %v1013
        %v1015 = vrot.slane %v980, %v1014
        %v1016 = vlaneseq
        %v1017 = vshrl.u32 %v1016, 7
        %v1018 = vsub.s32 0, %v1017
        %v1019 = vrot.slane %v981, %v1018
        %v1020 = vlaneseq
        %v1021 = vshrl.u32 %v1020, 7
        %v1022 = vsub.s32 1, %v1021
        %v1023 = vrot.slane %v981, %v1022
        %v1024 = vlaneseq
        %v1025 = vshrl.u32 %v1024, 7
        %v1026 = vsub.s32 2, %v1025
        %v1027 = vrot.slane %v981, %v1026
        %v1028 = vlaneseq
        %v1029 = vshrl.u32 %v1028, 7
        %v1030 = vsub.s32 3, %v1029
        %v1031 = vrot.slane %v981, %v1030
        %v1032 = vlaneseq
        %v1033 = vshrl.u32 %v1032, 7
        %v1034 = vsub.s32 4, %v1033
        %v1035 = vrot.slane %v981, %v1034
        %v1036 = vlaneseq
        %v1037 = vshrl.u32 %v1036, 7
        %v1038 = vsub.s32 5, %v1037
        %v1039 = vrot.slane %v981, %v1038
        %v1040 = vlaneseq
        %v1041 = vshrl.u32 %v1040, 7
        %v1042 = vsub.s32 6, %v1041
        %v1043 = vrot.slane %v981, %v1042
        %v1044 = vlaneseq
        %v1045 = vshrl.u32 %v1044, 7
        %v1046 = vsub.s32 7, %v1045
        %v1047 = vrot.slane %v981, %v1046
        %v1064 = vmul.f32 %v479, %v987
        %v1065 = vmul.f32 %v481, %v991
        %v1066 = vmul.f32 %v550, %v995
        %v1067 = vmul.f32 %v552, %v999
        %v1068 = vmul.f32 %v621, %v1003
        %v1069 = vmul.f32 %v623, %v1007
        %v1070 = vmul.f32 %v692, %v1011
        %v1071 = vmul.f32 %v694, %v1015
        %v1072 = vmul.f32 %v763, %v1019
        %v1073 = vmul.f32 %v765, %v1023
        %v1074 = vmul.f32 %v834, %v1027
        %v1075 = vmul.f32 %v836, %v1031
        %v1076 = vmul.f32 %v905, %v1035
        %v1077 = vmul.f32 %v907, %v1039
        %v1078 = vmul.f32 %v976, %v1043
        %v1079 = vmul.f32 %v978, %v1047
        %v1080 = vadd.f32 %v1064, %v1065
        %v1081 = vadd.f32 %v1080, %v1066
        %v1082 = vadd.f32 %v1081, %v1067
        %v1083 = vadd.f32 %v1082, %v1068
        %v1084 = vadd.f32 %v1083, %v1069
        %v1085 = vadd.f32 %v1084, %v1070
        %v1086 = vadd.f32 %v1085, %v1071
        %v1087 = vadd.f32 %v1086, %v1072
        %v1088 = vadd.f32 %v1087, %v1073
        %v1089 = vadd.f32 %v1088, %v1074
        %v1090 = vadd.f32 %v1089, %v1075
        %v1091 = vadd.f32 %v1090, %v1076
        %v1092 = vadd.f32 %v1091, %v1077
        %v1093 = vadd.f32 %v1092, %v1078
        %v1094 = vadd.f32 %v1093, %v1079
        %1095 = vadd.xlane.f32.xlu0 %v1094
        %v1096 = vpop.xlane.xlu0 %1095
        %v1097 = vmul.f32 %v1064, %v479
        %v1098 = vmul.f32 %v1065, %v481
        %v1099 = vmul.f32 %v1066, %v550
        %v1100 = vmul.f32 %v1067, %v552
        %v1101 = vmul.f32 %v1068, %v621
        %v1102 = vmul.f32 %v1069, %v623
        %v1103 = vmul.f32 %v1070, %v692
        %v1104 = vmul.f32 %v1071, %v694
        %v1105 = vmul.f32 %v1072, %v763
        %v1106 = vmul.f32 %v1073, %v765
        %v1107 = vmul.f32 %v1074, %v834
        %v1108 = vmul.f32 %v1075, %v836
        %v1109 = vmul.f32 %v1076, %v905
        %v1110 = vmul.f32 %v1077, %v907
        %v1111 = vmul.f32 %v1078, %v976
        %v1112 = vmul.f32 %v1079, %v978
        %v1113 = vadd.f32 %v1097, %v1098
        %v1114 = vadd.f32 %v1113, %v1099
        %v1115 = vadd.f32 %v1114, %v1100
        %v1116 = vadd.f32 %v1115, %v1101
        %v1117 = vadd.f32 %v1116, %v1102
        %v1118 = vadd.f32 %v1117, %v1103
        %v1119 = vadd.f32 %v1118, %v1104
        %v1120 = vadd.f32 %v1119, %v1105
        %v1121 = vadd.f32 %v1120, %v1106
        %v1122 = vadd.f32 %v1121, %v1107
        %v1123 = vadd.f32 %v1122, %v1108
        %v1124 = vadd.f32 %v1123, %v1109
        %v1125 = vadd.f32 %v1124, %v1110
        %v1126 = vadd.f32 %v1125, %v1111
        %v1127 = vadd.f32 %v1126, %v1112
        %1128 = vadd.xlane.f32.xlu0 %v1127
        %v1129 = vpop.xlane.xlu0 %1128
        %vm1130 = vcmask 7168
        %v1131 = vsel %vm1130, %v1096, %v1129
        %vm1132 = vcmask 15360
        %v1133 = vsel %vm1132, %v1131, 0.0
        %1134 = vst [vmem:[%s299] sm:$0xff] %v1133
        %1135 = vst [vmem:[%s333] sm:$0xff] %v479
        %1136 = vst [vmem:[%s333 + $0x8] sm:$0xff] %v481
        %1137 = vst [vmem:[%s333 + $0x10] sm:$0xff] %v550
        %1138 = vst [vmem:[%s333 + $0x18] sm:$0xff] %v552
        %1139 = vst [vmem:[%s333 + $0x20] sm:$0xff] %v621
        %1140 = vst [vmem:[%s333 + $0x28] sm:$0xff] %v623
        %1141 = vst [vmem:[%s333 + $0x30] sm:$0xff] %v692
        %1142 = vst [vmem:[%s333 + $0x38] sm:$0xff] %v694
        %1143 = vst [vmem:[%s333 + $0x40] sm:$0xff] %v763
        %1144 = vst [vmem:[%s333 + $0x48] sm:$0xff] %v765
        %1145 = vst [vmem:[%s333 + $0x50] sm:$0xff] %v834
        %1146 = vst [vmem:[%s333 + $0x58] sm:$0xff] %v836
        %1147 = vst [vmem:[%s333 + $0x60] sm:$0xff] %v905
        %1148 = vst [vmem:[%s333 + $0x68] sm:$0xff] %v907
        %1149 = vst [vmem:[%s333 + $0x70] sm:$0xff] %v976
        %1150 = vst [vmem:[%s333 + $0x78] sm:$0xff] %v978
        %s1151 = smul.u32 16, %s25
        %p1152 = scmp.lt.s32.totalorder %s24, 1
        %s1153 = scalar_select %p1152, %s24, 1
        %p1154 = scmp.lt.s32.totalorder %s1151, 31
        %s1155 = scalar_select %p1154, %s1151, 31
        %s1156 = smul.addr %s1153, 32
        %s1157 = sadd.s32 %s1155, %s1156
        %s1158 = smul.addr %s1157, 8
        %s1159 = scalar_lea.vmem %s4, %s1158
        %s1160 = sand.u32 %s175, 1
        %s1161 = scalar_lea.sflag [#allocation5], %s1160
        %s1162 = sand.u32 %s175, 1
        %s1163 = smul.addr %s1162, 8
        %s1164 = scalar_lea.vmem [#allocation4], %s1163
        // Predicated region
        $region37: #{scn_forward.25} parent=35 // pred_check
          %p1165 = pneg %p157
        $region38: #{scn_forward.25} parent=35 // pred_check_branch
          %1167 = sbr.rel (%p1165) target = $region40
        $region39: #{scn_forward.25} parent=35 // pred_region
          %s1168 = smul.u32 16, %s25
        $region40: #{scn_forward.25} parent=35 // pred_fallthru
          _
        // Predicated region
        $region41: #{scn_forward.25} parent=35 // pred_check
          %p1169 = pneg %p185
        $region42: #{scn_forward.25} parent=35 // pred_check_branch
          %1171 = sbr.rel (%p1169) target = $region44
        $region43: #{scn_forward.25} parent=35 // pred_region
          %s1173 = ssub.s32 128, 128
          %1174 = vsyncadd %s1161, %s1173
          %s1175 = smul.addr %s24, 2
          %s1176 = sadd.s32 %s25, %s1175
          %s1177 = smul.addr %s1176, 128
          %s1178 = scalar_lea.hbm %s5, %s1177
          %s1180 = sshll.u32 %s1164, 4
          %s1181 = int_to_ptr.vmem [resolvable:$true] %s1180
          %1183 = dma.vmem_to_hbm [thread:$0]  %s1181, 128, %s1178, %s1161
        $region44: #{scn_forward.25} parent=35 // pred_fallthru
          _
      $region36: #{scn_forward.25} parent=5 // pred_fallthru
        _
      %p1184 = scmp.le.s32.totalorder 2, %s15
      // Predicated region
      $region45: #{scn_forward.25} parent=5 // pred_check
        %p1185 = pneg %p1184
      $region46: #{scn_forward.25} parent=5 // pred_check_branch
        %1187 = sbr.rel (%p1185) target = $region48
      $region47: #{scn_forward.25} parent=5 // pred_region
        %s1188 = ssub.s32 %s15, 2
        // Predicated region
        $region49: #{scn_forward.25} parent=47 // pred_check
          %p1189 = pneg %p163
        $region50: #{scn_forward.25} parent=47 // pred_check_branch
          %1191 = sbr.rel (%p1189) target = $region52
        $region51: #{scn_forward.25} parent=47 // pred_region
          %s1192 = smul.u32 16, %s27
          %p1193 = scmp.lt.s32.totalorder %s26, 1
          %s1194 = scalar_select %p1193, %s26, 1
          %p1195 = scmp.lt.s32.totalorder %s1192, 31
          %s1196 = scalar_select %p1195, %s1192, 31
          %s1197 = smul.addr %s1194, 32
          %s1198 = sadd.s32 %s1196, %s1197
          %s1199 = smul.addr %s1198, 8
          %s1200 = scalar_lea.vmem %s4, %s1199
        $region52: #{scn_forward.25} parent=47 // pred_fallthru
          _
        // Predicated region
        $region53: #{scn_forward.25} parent=47 // pred_check
          %p1201 = pneg %p191
        $region54: #{scn_forward.25} parent=47 // pred_check_branch
          %1203 = sbr.rel (%p1201) target = $region56
        $region55: #{scn_forward.25} parent=47 // pred_region
          %s1204 = sand.u32 %s176, 1
          %s1205 = scalar_lea.sflag [#allocation5], %s1204
          %s1206 = sand.u32 %s176, 1
          %s1207 = smul.addr %s1206, 8
          %s1208 = scalar_lea.vmem [#allocation4], %s1207
          %1209 = dma.done %s1205, 128
        $region56: #{scn_forward.25} parent=47 // pred_fallthru
          _
      $region48: #{scn_forward.25} parent=5 // pred_fallthru
        _
    $region6: #{scn_forward.25} parent=1 // loop_footer
      %s19 = sadd.s32 1, %s15
    $region7: #{scn_forward.25} parent=1 // loop_footer_branch
      %14 = sbr.rel target = $region3
    $region8: #{scn_forward.25} parent=1 // loop_exit
      _
    %1210 = vsyncpa [#allocation5], 1
    %s1211 = scalar_lea.sflag [#allocation5], 1
    %1212 = vsyncpa %s1211, 1

</llo_original>
